<compile_context>
chip_gen: v7x
topology: tpu7x:2x2x1
jax: 0.10.0
libtpu: 0.0.40
codegen_flags: <defaults>
</compile_context>

<pallas_src>
import math

import jax
import jax.numpy as jnp
from jax import lax
from jax.experimental import pallas as pl
from jax.experimental.pallas import tpu as pltpu


_VMEM_LIMIT = 48 * 1024 * 1024   # leave headroom on v7x's 64 MiB per-core VMEM


# -----------------------------------------------------------------------------
# Tiling helpers: prefer tiles that divide the real dims (no host-side padding)
# -----------------------------------------------------------------------------
def _pick_tile(dim, target, align):
    """Returns (tile, padded_dim).  Full axis if dim <= target, else the largest
    `align`-multiple divisor of dim <= target; host padding only as a rare fallback."""
    if dim <= target:
        return dim, dim
    t = (target // align) * align
    min_t = max(align, (target // 4 // align) * align)
    while t >= min_t:
        if dim % t == 0:
            return t, dim
        t -= align
    tile = (target // align) * align
    return tile, ((dim + tile - 1) // tile) * tile


def _pick_channel_tile(c, target=512):
    """Lane-axis tile for the depthwise convs: full axis or a 128-multiple divisor."""
    if c <= target:
        return c
    t = (target // 128) * 128
    while t >= 128:
        if c % t == 0:
            return t
        t -= 128
    return c


# -----------------------------------------------------------------------------
# Tiled matmul (bf16 MXU operands, f32 accumulator)
# -----------------------------------------------------------------------------
def _matmul_kernel(x_ref, w_ref, o_ref, acc_ref):
    @pl.when(pl.program_id(2) == 0)
    def _init():
        acc_ref[...] = jnp.zeros_like(acc_ref)

    acc_ref[...] += jnp.dot(x_ref[...], w_ref[...],
                            preferred_element_type=jnp.float32)

    @pl.when(pl.program_id(2) == pl.num_programs(2) - 1)
    def _store():
        o_ref[...] = acc_ref[...].astype(o_ref.dtype)


def matmul(x, w, *, out_dtype=jnp.float32,
           tm_target=512, tn_target=256, tk_target=512):
    """x: [M, K] @ w: [K, N] -> [M, N]."""
    M, K = x.shape
    K2, N = w.shape
    assert K == K2
    if x.dtype != jnp.bfloat16:
        x = x.astype(jnp.bfloat16)
    if w.dtype != jnp.bfloat16:
        w = w.astype(jnp.bfloat16)

    tm, Mp = _pick_tile(M, tm_target, 8)
    tn, Np = _pick_tile(N, tn_target, 128)
    tk, Kp = _pick_tile(K, tk_target, 128)
    if (Mp, Kp) != (M, K):
        x = jnp.pad(x, ((0, Mp - M), (0, Kp - K)))
    if (Kp, Np) != (K, N):
        w = jnp.pad(w, ((0, Kp - K), (0, Np - N)))

    out = pl.pallas_call(
        _matmul_kernel,
        out_shape=jax.ShapeDtypeStruct((Mp, Np), out_dtype),
        grid=(Mp // tm, Np // tn, Kp // tk),
        in_specs=[pl.BlockSpec((tm, tk), lambda i, j, k: (i, k)),
                  pl.BlockSpec((tk, tn), lambda i, j, k: (k, j))],
        out_specs=pl.BlockSpec((tm, tn), lambda i, j, k: (i, j)),
        scratch_shapes=[pltpu.VMEM((tm, tn), jnp.float32)],
        compiler_params=pltpu.CompilerParams(
            dimension_semantics=("parallel", "parallel", "arbitrary"),
            vmem_limit_bytes=_VMEM_LIMIT),
    )(x, w)
    if (Mp, Np) != (M, N):
        out = out[:M, :N]
    return out


# -----------------------------------------------------------------------------
# Row-tiled LayerNorm (f32 compute, bf16 output for downstream matmuls)
# -----------------------------------------------------------------------------
def _layernorm_kernel(x_ref, g_ref, b_ref, o_ref):
    x = x_ref[...].astype(jnp.float32)
    mu = jnp.mean(x, axis=-1, keepdims=True)
    var = jnp.mean(jnp.square(x - mu), axis=-1, keepdims=True)
    xn = (x - mu) * lax.rsqrt(var + 1e-5)
    o_ref[...] = (xn * g_ref[...] + b_ref[...]).astype(o_ref.dtype)


def layernorm(x, gamma, beta, *, out_dtype=jnp.bfloat16, row_target=1024):
    M, C = x.shape
    tm, Mp = _pick_tile(M, row_target, 8)
    if Mp != M:
        x = jnp.pad(x, ((0, Mp - M), (0, 0)))
    out = pl.pallas_call(
        _layernorm_kernel,
        out_shape=jax.ShapeDtypeStruct((Mp, C), out_dtype),
        grid=(Mp // tm,),
        in_specs=[pl.BlockSpec((tm, C), lambda i: (i, 0)),
                  pl.BlockSpec((1, C), lambda i: (0, 0)),
                  pl.BlockSpec((1, C), lambda i: (0, 0))],
        out_specs=pl.BlockSpec((tm, C), lambda i: (i, 0)),
        compiler_params=pltpu.CompilerParams(
            dimension_semantics=("parallel",),
            vmem_limit_bytes=_VMEM_LIMIT),
    )(x, gamma.astype(jnp.float32), beta.astype(jnp.float32))
    if Mp != M:
        out = out[:M]
    return out


# -----------------------------------------------------------------------------
# Fused LayerNorm + matmul (Mamba use_norm fused into out_proj; K = full dim)
# -----------------------------------------------------------------------------
def _ln_matmul_kernel(x_ref, g_ref, b_ref, w_ref, o_ref):
    x = x_ref[...].astype(jnp.float32)
    mu = jnp.mean(x, axis=-1, keepdims=True)
    var = jnp.mean(jnp.square(x - mu), axis=-1, keepdims=True)
    xn = (x - mu) * lax.rsqrt(var + 1e-5)
    xn = (xn * g_ref[...] + b_ref[...]).astype(jnp.bfloat16)
    o_ref[...] = jnp.dot(xn, w_ref[...],
                         preferred_element_type=jnp.float32).astype(o_ref.dtype)


def layernorm_matmul(x, gamma, beta, w, *, out_dtype=jnp.bfloat16,
                     tm_target=512, tn_target=256):
    M, K = x.shape
    K2, N = w.shape
    assert K == K2
    if w.dtype != jnp.bfloat16:
        w = w.astype(jnp.bfloat16)
    tm, Mp = _pick_tile(M, tm_target, 8)
    tn, Np = _pick_tile(N, tn_target, 128)
    if Mp != M:
        x = jnp.pad(x, ((0, Mp - M), (0, 0)))
    if Np != N:
        w = jnp.pad(w, ((0, 0), (0, Np - N)))
    out = pl.pallas_call(
        _ln_matmul_kernel,
        out_shape=jax.ShapeDtypeStruct((Mp, Np), out_dtype),
        grid=(Mp // tm, Np // tn),
        in_specs=[pl.BlockSpec((tm, K), lambda i, j: (i, 0)),
                  pl.BlockSpec((1, K), lambda i, j: (0, 0)),
                  pl.BlockSpec((1, K), lambda i, j: (0, 0)),
                  pl.BlockSpec((K, tn), lambda i, j: (0, j))],
        out_specs=pl.BlockSpec((tm, tn), lambda i, j: (i, j)),
        compiler_params=pltpu.CompilerParams(
            dimension_semantics=("parallel", "parallel"),
            vmem_limit_bytes=_VMEM_LIMIT),
    )(x, gamma.astype(jnp.float32), beta.astype(jnp.float32), w)
    if (Mp, Np) != (M, N):
        out = out[:M, :N]
    return out


# -----------------------------------------------------------------------------
# Depthwise 3x3 conv (padding=1): taps accumulated in registers, one output store
# -----------------------------------------------------------------------------
def _dwconv3x3_kernel(x_ref, w_ref, o_ref, xp_ref):
    H = o_ref.shape[1]
    W = o_ref.shape[2]
    # zero-padded copy built once; all 9 taps are register-accumulated loads
    xp_ref[...] = jnp.zeros_like(xp_ref)
    xp_ref[1:H + 1, 1:W + 1, :] = x_ref[0].astype(jnp.float32)
    w = w_ref[...].astype(jnp.float32)
    acc = None
    for kh in range(3):
        for kw in range(3):
            tap = xp_ref[kh:kh + H, kw:kw + W, :] * w[kh, kw]
            acc = tap if acc is None else acc + tap
    o_ref[0] = acc.astype(o_ref.dtype)


def dwconv3x3(x, w, *, out_dtype=jnp.bfloat16):
    """Depthwise 3x3, padding=1, NHWC. x: [B, H, W, C], w: [3, 3, C]."""
    B, H, W, C = x.shape
    tc = _pick_channel_tile(C)
    # TODO(synk): for very large H*W on v7x additionally tile rows with a +/-1 halo;
    # at these sizes one image block per (batch, channel-tile) fits VMEM comfortably.
    return pl.pallas_call(
        _dwconv3x3_kernel,
        out_shape=jax.ShapeDtypeStruct((B, H, W, C), out_dtype),
        grid=(B, C // tc),
        in_specs=[pl.BlockSpec((1, H, W, tc), lambda b, c: (b, 0, 0, c)),
                  pl.BlockSpec((3, 3, tc), lambda b, c: (0, 0, c))],
        out_specs=pl.BlockSpec((1, H, W, tc), lambda b, c: (b, 0, 0, c)),
        scratch_shapes=[pltpu.VMEM((H + 2, W + 2, tc), jnp.float32)],
        compiler_params=pltpu.CompilerParams(
            dimension_semantics=("parallel", "parallel"),
            vmem_limit_bytes=_VMEM_LIMIT),
    )(x, w.astype(jnp.float32))


# -----------------------------------------------------------------------------
# Causal depthwise conv1d + SiLU: history handled in-kernel, one output store
# -----------------------------------------------------------------------------
def _causal_dwconv1d_silu_kernel(x_ref, w_ref, b_ref, o_ref, xp_ref):
    L = o_ref.shape[1]
    D = o_ref.shape[2]
    K = w_ref.shape[0]
    xp_ref[0:K - 1, :] = jnp.zeros((K - 1, D), jnp.float32)      # causal history
    xp_ref[K - 1:K - 1 + L, :] = x_ref[0].astype(jnp.float32)
    w = w_ref[...].astype(jnp.float32)
    acc = None
    for k in range(K):
        tap = xp_ref[k:k + L, :] * w[k]
        acc = tap if acc is None else acc + tap
    v = acc + b_ref[...].astype(jnp.float32)
    o_ref[0] = (v * jax.nn.sigmoid(v)).astype(o_ref.dtype)


def causal_dwconv1d_silu(x, w, b, *, out_dtype=jnp.bfloat16):
    """Causal depthwise conv1d (kernel K) + SiLU. x: [B, L, D], w: [K, D], b: [1, D]."""
    B, L, D = x.shape
    K = w.shape[0]
    td = _pick_channel_tile(D)
    # TODO(synk): for very long sequences on v7x additionally chunk over L and carry
    # K-1 rows of history between chunks.
    return pl.pallas_call(
        _causal_dwconv1d_silu_kernel,
        out_shape=jax.ShapeDtypeStruct((B, L, D), out_dtype),
        grid=(B, D // td),
        in_specs=[pl.BlockSpec((1, L, td), lambda b_, c: (b_, 0, c)),
                  pl.BlockSpec((K, td), lambda b_, c: (0, c)),
                  pl.BlockSpec((1, td), lambda b_, c: (0, c))],
        out_specs=pl.BlockSpec((1, L, td), lambda b_, c: (b_, 0, c)),
        scratch_shapes=[pltpu.VMEM((L + K - 1, td), jnp.float32)],
        compiler_params=pltpu.CompilerParams(
            dimension_semantics=("parallel", "parallel"),
            vmem_limit_bytes=_VMEM_LIMIT),
    )(x, w.astype(jnp.float32), b.astype(jnp.float32))


# -----------------------------------------------------------------------------
# Selective scan (S6) with fused dt/B/C projections and SiLU(z) gating.
#   grid = (batch, L-chunk); persistent packed [N, D] state (d_state on sublanes,
#   d_inner on lanes).  Per-chunk coefficients are precomputed vectorised into
#   n-major [N*Lc, D] scratches with dense stores; the serial loop does one strided
#   load per operand and one dense h store per step; y / skip / gate run in a
#   vectorised epilogue with a single dense output store.
# -----------------------------------------------------------------------------
def _selective_scan_kernel(u_ref, z_ref, wdt_ref, bdt_ref, wb_ref, wc_ref,
                           A_ref, Dp_ref, y_ref, h_ref, dA_s, dBu_s, hh_s):
    N = A_ref.shape[0]
    Lc = u_ref.shape[1]

    @pl.when(pl.program_id(1) == 0)
    def _init_state():
        h_ref[...] = jnp.zeros_like(h_ref)

    u_bf = u_ref[0]                                     # [Lc, D]
    u_c = u_bf.astype(jnp.float32)
    z_c = z_ref[0].astype(jnp.float32)

    # fused x_proj / dt_proj: dt, B, C produced on the MXU inside the kernel
    dt_lin = jnp.dot(u_bf, wdt_ref[...],
                     preferred_element_type=jnp.float32) + bdt_ref[...]
    dt_sp = jnp.maximum(dt_lin, 0.0) + jnp.log1p(jnp.exp(-jnp.abs(dt_lin)))  # softplus
    B_c = jnp.dot(u_bf, wb_ref[...], preferred_element_type=jnp.float32)     # [Lc, N]
    C_c = jnp.dot(u_bf, wc_ref[...], preferred_element_type=jnp.float32)     # [Lc, N]
    dtu = dt_sp * u_c

    # vectorised per-chunk coefficient precompute (dense [Lc, D] stores, n-major)
    for n in range(N):
        a_row = A_ref[n:n + 1, :]                               # [1, D]
        dA_s[pl.ds(n * Lc, Lc), :] = jnp.exp(dt_sp * a_row)
        dBu_s[pl.ds(n * Lc, Lc), :] = dtu * B_c[:, n:n + 1]

    # serial recurrence on the packed [N, D] state
    def step(t, h):
        dA_t = dA_s[pl.ds(t, N, stride=Lc), :]                  # [N, D]
        dBu_t = dBu_s[pl.ds(t, N, stride=Lc), :]                # [N, D]
        h = dA_t * h + dBu_t
        hh_s[pl.ds(pl.multiple_of(t * N, N), N), :] = h         # dense h_t store
        return h

    h_ref[...] = lax.fori_loop(0, Lc, step, h_ref[...])

    # vectorised epilogue: y_t = sum_n C[t, n] * h_t[n, :], skip term, SiLU(z) gate
    y = None
    for n in range(N):
        hn = hh_s[pl.ds(n, Lc, stride=N), :]                    # [Lc, D]
        contrib = hn * C_c[:, n:n + 1]
        y = contrib if y is None else y + contrib
    y = y + Dp_ref[...] * u_c
    y = y * (z_c * jax.nn.sigmoid(z_c))
    y_ref[0] = y.astype(y_ref.dtype)


def selective_scan(u, z, w_dt, b_dt, w_b, w_c, A_t, Dp, *,
                   out_dtype=jnp.bfloat16, chunk_target=128):
    """u/z: [B, L, D]; w_dt: [D, D]; b_dt: [1, D]; w_b/w_c: [D, N]; A_t: [N, D];
    Dp: [1, D] -> [B, L, D]."""
    Bn, L, D = u.shape
    N = A_t.shape[0]
    if u.dtype != jnp.bfloat16:
        u = u.astype(jnp.bfloat16)
    if z.dtype != jnp.bfloat16:
        z = z.astype(jnp.bfloat16)
    w_dt = w_dt.astype(jnp.bfloat16)
    w_b = w_b.astype(jnp.bfloat16)
    w_c = w_c.astype(jnp.bfloat16)

    Lc, Lp = _pick_tile(L, chunk_target, 8)
    if Lp != L:
        # rare fallback: zero-pad the sequence; padded outputs are sliced off and the
        # post-sequence state is never reused across calls.
        pad = ((0, 0), (0, Lp - L), (0, 0))
        u = jnp.pad(u, pad)
        z = jnp.pad(z, pad)
    nc = Lp // Lc

    y = pl.pallas_call(
        _selective_scan_kernel,
        out_shape=jax.ShapeDtypeStruct((Bn, Lp, D), out_dtype),
        grid=(Bn, nc),
        in_specs=[pl.BlockSpec((1, Lc, D), lambda b, c: (b, c, 0)),
                  pl.BlockSpec((1, Lc, D), lambda b, c: (b, c, 0)),
                  pl.BlockSpec((D, D), lambda b, c: (0, 0)),
                  pl.BlockSpec((1, D), lambda b, c: (0, 0)),
                  pl.BlockSpec((D, N), lambda b, c: (0, 0)),
                  pl.BlockSpec((D, N), lambda b, c: (0, 0)),
                  pl.BlockSpec((N, D), lambda b, c: (0, 0)),
                  pl.BlockSpec((1, D), lambda b, c: (0, 0))],
        out_specs=pl.BlockSpec((1, Lc, D), lambda b, c: (b, c, 0)),
        scratch_shapes=[pltpu.VMEM((N, D), jnp.float32),        # persistent state
                        pltpu.VMEM((N * Lc, D), jnp.float32),   # dA   (n-major)
                        pltpu.VMEM((N * Lc, D), jnp.float32),   # dB*u (n-major)
                        pltpu.VMEM((Lc * N, D), jnp.float32)],  # h history (t-major)
        compiler_params=pltpu.CompilerParams(
            dimension_semantics=("parallel", "arbitrary"),
            vmem_limit_bytes=_VMEM_LIMIT),
    )(u, z, w_dt, b_dt.astype(jnp.float32), w_b, w_c,
      A_t.astype(jnp.float32), Dp.astype(jnp.float32))
    if Lp != L:
        y = y[:, :L, :]
    return y


# -----------------------------------------------------------------------------
# GFFN fused gating + output projection: out = (up * SiLU(low)) @ W
# -----------------------------------------------------------------------------
def _gffn_fuse_kernel(up_ref, low_ref, w_ref, o_ref, acc_ref):
    @pl.when(pl.program_id(2) == 0)
    def _init():
        acc_ref[...] = jnp.zeros_like(acc_ref)

    low = low_ref[...].astype(jnp.float32)
    gated = up_ref[...].astype(jnp.float32) * (low * jax.nn.sigmoid(low))
    acc_ref[...] += jnp.dot(gated.astype(jnp.bfloat16), w_ref[...],
                            preferred_element_type=jnp.float32)

    @pl.when(pl.program_id(2) == pl.num_programs(2) - 1)
    def _store():
        o_ref[...] = acc_ref[...].astype(o_ref.dtype)


def gffn_fuse(up, low, w, *, out_dtype=jnp.float32,
              tm_target=512, tn_target=256, tk_target=512):
    M, C = up.shape
    C2, N = w.shape
    assert C == C2
    if up.dtype != jnp.bfloat16:
        up = up.astype(jnp.bfloat16)
    if low.dtype != jnp.bfloat16:
        low = low.astype(jnp.bfloat16)
    if w.dtype != jnp.bfloat16:
        w = w.astype(jnp.bfloat16)
    tm, Mp = _pick_tile(M, tm_target, 8)
    tn, Np = _pick_tile(N, tn_target, 128)
    tk, Kp = _pick_tile(C, tk_target, 128)
    if (Mp, Kp) != (M, C):
        up = jnp.pad(up, ((0, Mp - M), (0, Kp - C)))
        low = jnp.pad(low, ((0, Mp - M), (0, Kp - C)))
    if (Kp, Np) != (C, N):
        w = jnp.pad(w, ((0, Kp - C), (0, Np - N)))
    out = pl.pallas_call(
        _gffn_fuse_kernel,
        out_shape=jax.ShapeDtypeStruct((Mp, Np), out_dtype),
        grid=(Mp // tm, Np // tn, Kp // tk),
        in_specs=[pl.BlockSpec((tm, tk), lambda i, j, k: (i, k)),
                  pl.BlockSpec((tm, tk), lambda i, j, k: (i, k)),
                  pl.BlockSpec((tk, tn), lambda i, j, k: (k, j))],
        out_specs=pl.BlockSpec((tm, tn), lambda i, j, k: (i, j)),
        scratch_shapes=[pltpu.VMEM((tm, tn), jnp.float32)],
        compiler_params=pltpu.CompilerParams(
            dimension_semantics=("parallel", "parallel", "arbitrary"),
            vmem_limit_bytes=_VMEM_LIMIT),
    )(up, low, w)
    if (Mp, Np) != (M, N):
        out = out[:M, :N]
    return out


# -----------------------------------------------------------------------------
# Module forward passes (JAX glue calling the Pallas kernels)
# -----------------------------------------------------------------------------
def mamba_forward(x, p):
    """Single-direction Mamba S6 block.  x: [B, L, D] (bf16) -> [B, L, D] (bf16)."""
    Bn, L, D = x.shape
    d_inner = p["Dp"].shape[1]
    xf = x.reshape(Bn * L, D)
    # in_proj split into two column blocks -> no host-side lane-axis slices
    xpart = matmul(xf, p["w_in_x"], out_dtype=jnp.bfloat16).reshape(Bn, L, d_inner)
    z = matmul(xf, p["w_in_z"], out_dtype=jnp.bfloat16).reshape(Bn, L, d_inner)

    u = causal_dwconv1d_silu(xpart, p["conv_w"], p["conv_b"])      # [B, L, d_inner]

    # x_proj / dt_proj / B / C projections are fused inside the scan kernel
    y = selective_scan(u, z, p["w_dt"], p["b_dt"], p["w_b"], p["w_c"],
                       p["A_t"], p["Dp"])                          # [B, L, d_inner]

    # use_norm=True fused with out_proj
    out = layernorm_matmul(y.reshape(Bn * L, d_inner), p["norm_g"], p["norm_b"],
                           p["w_out"], out_dtype=jnp.bfloat16)
    # TODO(synk): bimamba_type='v6' reverse/spatial scans not reproducible without source.
    return out.reshape(Bn, L, D)


def mamba_attn_forward(x, p, window=5):
    """x: [B, H, W, C] (bf16) -> [B, H, W, C] (f32)."""
    Bn, H, W, C = x.shape
    xm = mamba_forward(x.reshape(Bn, H * W, C), p["mamba"]).reshape(Bn, H, W, C)
    hnum, wnum = H // window, W // window
    xl = x.reshape(Bn, hnum, window, wnum, window, C)
    xl = xl.transpose(0, 1, 3, 2, 4, 5).reshape(Bn * hnum * wnum, window * window, C)
    xl = mamba_forward(xl, p["mamba_l"])
    xl = xl.reshape(Bn, hnum, wnum, window, window, C)
    xl = xl.transpose(0, 1, 3, 2, 4, 5).reshape(Bn, H, W, C)
    out = xm + xl
    out = matmul(out.reshape(Bn * H * W, C), p["w_to_out"], out_dtype=jnp.float32)
    return out.reshape(Bn, H, W, C)


def gffn_forward(x, p):
    """x: [B, H, W, C] (bf16) -> [B, H, W, C] (f32)."""
    Bn, H, W, C = x.shape
    xf = x.reshape(Bn * H * W, C)
    up = matmul(xf, p["w_up1"], out_dtype=jnp.bfloat16).reshape(Bn, H, W, C)
    low = matmul(xf, p["w_low1"], out_dtype=jnp.bfloat16).reshape(Bn, H, W, C)
    up = dwconv3x3(up, p["up2_w"])
    low = dwconv3x3(low, p["low2_w"])
    out = gffn_fuse(up.reshape(Bn * H * W, C), low.reshape(Bn * H * W, C),
                    p["w_out"], out_dtype=jnp.float32)
    return out.reshape(Bn, H, W, C)


def mamba_block_forward(x_nchw, params):
    """MambaBlock.forward: x [B, C, H, W] -> [B, C, H, W]."""
    x = jnp.transpose(x_nchw, (0, 2, 3, 1)).astype(jnp.float32)    # NCHW -> NHWC
    Bn, H, W, C = x.shape
    for blk in params["blocks"]:
        xn = layernorm(x.reshape(Bn * H * W, C), blk["norm1_g"], blk["norm1_b"],
                       out_dtype=jnp.bfloat16).reshape(Bn, H, W, C)
        x = mamba_attn_forward(xn, blk["attn"]) + x
        xn = layernorm(x.reshape(Bn * H * W, C), blk["norm2_g"], blk["norm2_b"],
                       out_dtype=jnp.bfloat16).reshape(Bn, H, W, C)
        x = gffn_forward(xn, blk["ffn"]) + x
    return jnp.transpose(x, (0, 3, 1, 2))                          # NHWC -> NCHW


# -----------------------------------------------------------------------------
# Deterministic parameter init (torch-layout) + one-time kernel-ready preparation
# -----------------------------------------------------------------------------
def _rn(key, shape, scale=0.1):
    return (scale * jax.random.normal(key, shape)).astype(jnp.float32)


def init_mamba_params(key, dim, d_state):
    d_inner = dim                      # expand=1
    d_conv = 4
    dt_rank = max(1, math.ceil(dim / 16))
    ks = jax.random.split(key, 7)
    A = jnp.tile(jnp.arange(1, d_state + 1, dtype=jnp.float32)[None, :], (d_inner, 1))
    return dict(
        in_proj_w=_rn(ks[0], (2 * d_inner, dim)),
        conv_w=_rn(ks[1], (d_conv, d_inner)),
        conv_b=_rn(ks[2], (1, d_inner), 0.01),
        x_proj_w=_rn(ks[3], (dt_rank + 2 * d_state, d_inner)),
        dt_proj_w=_rn(ks[4], (d_inner, dt_rank), 1.0),
        dt_proj_b=_rn(ks[5], (d_inner,), 0.1),
        A_log=jnp.log(A),
        D=jnp.ones((1, d_inner), jnp.float32),
        norm_g=jnp.ones((1, d_inner), jnp.float32),
        norm_b=jnp.zeros((1, d_inner), jnp.float32),
        out_proj_w=_rn(ks[6], (dim, d_inner)),
    )


def init_gffn_params(key, dim):
    ks = jax.random.split(key, 5)
    return dict(
        up1_w=_rn(ks[0], (dim, dim)),
        up2_w=_rn(ks[1], (3, 3, dim)),
        low1_w=_rn(ks[2], (dim, dim)),
        low2_w=_rn(ks[3], (3, 3, dim)),
        out_w=_rn(ks[4], (dim, dim)),
    )


def init_mamba_block_params(key, dim, patch_size, num_blocks=1):
    blocks = []
    for i in range(num_blocks):
        kb = jax.random.fold_in(key, i)
        ks = jax.random.split(kb, 4)
        attn = dict(
            mamba=init_mamba_params(ks[0], dim, d_state=8),
            mamba_l=init_mamba_params(ks[1], dim, d_state=2),
            to_out_w=_rn(ks[2], (dim, dim)),
        )
        ffn = init_gffn_params(ks[3], dim)
        blocks.append(dict(
            norm1_g=jnp.ones((1, dim), jnp.float32),
            norm1_b=jnp.zeros((1, dim), jnp.float32),
            attn=attn,
            norm2_g=jnp.ones((1, dim), jnp.float32),
            norm2_b=jnp.zeros((1, dim), jnp.float32),
            ffn=ffn,
        ))
    return dict(blocks=blocks)


def prepare_mamba_params(p):
    """One-time transpose / bf16 cast / linear-composition of the Mamba weights."""
    d_inner = p["D"].shape[1]
    dt_rank = p["dt_proj_w"].shape[1]
    N = p["A_log"].shape[1]
    in_w = p["in_proj_w"]
    x_proj = p["x_proj_w"]
    w_dt = (p["dt_proj_w"] @ x_proj[:dt_rank]).T        # dt_proj o x_proj_dt, fused
    return dict(
        w_in_x=jnp.asarray(in_w[:d_inner].T, jnp.bfloat16),
        w_in_z=jnp.asarray(in_w[d_inner:].T, jnp.bfloat16),
        conv_w=p["conv_w"].astype(jnp.float32),
        conv_b=p["conv_b"].astype(jnp.float32),
        w_dt=jnp.asarray(w_dt, jnp.bfloat16),
        b_dt=p["dt_proj_b"].reshape(1, d_inner).astype(jnp.float32),
        w_b=jnp.asarray(x_proj[dt_rank:dt_rank + N].T, jnp.bfloat16),
        w_c=jnp.asarray(x_proj[dt_rank + N:].T, jnp.bfloat16),
        A_t=(-jnp.exp(p["A_log"])).T.astype(jnp.float32),
        Dp=p["D"].astype(jnp.float32),
        norm_g=p["norm_g"].astype(jnp.float32),
        norm_b=p["norm_b"].astype(jnp.float32),
        w_out=jnp.asarray(p["out_proj_w"].T, jnp.bfloat16),
    )


def prepare_gffn_params(p):
    return dict(
        w_up1=jnp.asarray(p["up1_w"].T, jnp.bfloat16),
        up2_w=p["up2_w"].astype(jnp.float32),
        w_low1=jnp.asarray(p["low1_w"].T, jnp.bfloat16),
        low2_w=p["low2_w"].astype(jnp.float32),
        w_out=jnp.asarray(p["out_w"].T, jnp.bfloat16),
    )


def prepare_attn_params(p):
    return dict(
        mamba=prepare_mamba_params(p["mamba"]),
        mamba_l=prepare_mamba_params(p["mamba_l"]),
        w_to_out=jnp.asarray(p["to_out_w"].T, jnp.bfloat16),
    )


def prepare_block_params(params):
    blocks = []
    for b in params["blocks"]:
        blocks.append(dict(
            norm1_g=b["norm1_g"].astype(jnp.float32),
            norm1_b=b["norm1_b"].astype(jnp.float32),
            attn=prepare_attn_params(b["attn"]),
            norm2_g=b["norm2_g"].astype(jnp.float32),
            norm2_b=b["norm2_b"].astype(jnp.float32),
            ffn=prepare_gffn_params(b["ffn"]),
        ))
    return dict(blocks=blocks)


# -----------------------------------------------------------------------------
if __name__ == "__main__":
    batch, dim, patch = 2, 8, 10      # patch must be divisible by window_size=5
    key = jax.random.PRNGKey(0)
    k_x, k_p = jax.random.split(key)

    x = jax.random.normal(k_x, (batch, dim, patch, patch), dtype=jnp.float32)  # NCHW
    raw_params = init_mamba_block_params(k_p, dim, patch, num_blocks=1)
    params = prepare_block_params(raw_params)   # one-time weight transpose/cast/fusion

    fwd = jax.jit(mamba_block_forward)
    out = jax.block_until_ready(fwd(x, params))
    assert out.shape == (batch, dim, patch, patch)
    assert bool(jnp.all(jnp.isfinite(out)))
    print("KERNEL_OK")
</pallas_src>

<mosaic_0001>
module attributes {stable_mosaic.version = 11 : i64} {
  func.func @_layernorm_kernel(%arg0: i32, %arg1: memref<200x8xf32, #tpu.memory_space<vmem>>, %arg2: memref<1x8xf32, #tpu.memory_space<vmem>>, %arg3: memref<1x8xf32, #tpu.memory_space<vmem>>, %arg4: memref<200x8xbf16, #tpu.memory_space<vmem>>) attributes {dimension_semantics = [#tpu.dimension_semantics<parallel>], iteration_bounds = array<i64: 1>, scalar_prefetch = 0 : i64, scratch_operands = 0 : i64, tpu.core_type = #tpu.core_type<tc>, window_params = [{transform_indices = @transform_0, window_bounds = array<i64: 200, 8>}, {pipeline_mode = #tpu.pipeline_mode<synchronous>, transform_indices = @transform_1, window_bounds = array<i64: 1, 8>}, {pipeline_mode = #tpu.pipeline_mode<synchronous>, transform_indices = @transform_2, window_bounds = array<i64: 1, 8>}, {transform_indices = @transform_3, window_bounds = array<i64: 200, 8>}]} {
    %c0 = arith.constant 0 : index
    %c0_0 = arith.constant 0 : index
    %0 = vector.load %arg1[%c0, %c0_0] : memref<200x8xf32, #tpu.memory_space<vmem>>, vector<200x8xf32>
    %cst = arith.constant dense<0.000000e+00> : vector<200xf32>
    %1 = vector.multi_reduction <add>, %0, %cst [1] : vector<200x8xf32> to vector<200xf32>
    %2 = vector.shape_cast %1 : vector<200xf32> to vector<200x1xf32>
    %cst_1 = arith.constant 8.000000e+00 : f32
    %3 = vector.broadcast %cst_1 : f32 to vector<200x1xf32>
    %4 = arith.divf %2, %3 : vector<200x1xf32>
    %5 = vector.broadcast %4 : vector<200x1xf32> to vector<200x8xf32>
    %6 = arith.subf %0, %5 : vector<200x8xf32>
    %7 = arith.mulf %6, %6 : vector<200x8xf32>
    %cst_2 = arith.constant dense<0.000000e+00> : vector<200xf32>
    %8 = vector.multi_reduction <add>, %7, %cst_2 [1] : vector<200x8xf32> to vector<200xf32>
    %9 = vector.shape_cast %8 : vector<200xf32> to vector<200x1xf32>
    %cst_3 = arith.constant 8.000000e+00 : f32
    %10 = vector.broadcast %cst_3 : f32 to vector<200x1xf32>
    %11 = arith.divf %9, %10 : vector<200x1xf32>
    %12 = vector.broadcast %4 : vector<200x1xf32> to vector<200x8xf32>
    %13 = arith.subf %0, %12 : vector<200x8xf32>
    %cst_4 = arith.constant 9.99999974E-6 : f32
    %14 = vector.broadcast %cst_4 : f32 to vector<200x1xf32>
    %15 = arith.addf %11, %14 : vector<200x1xf32>
    %16 = math.rsqrt %15 : vector<200x1xf32>
    %17 = vector.broadcast %16 : vector<200x1xf32> to vector<200x8xf32>
    %18 = arith.mulf %13, %17 : vector<200x8xf32>
    %c0_5 = arith.constant 0 : index
    %c0_6 = arith.constant 0 : index
    %19 = vector.load %arg2[%c0_5, %c0_6] : memref<1x8xf32, #tpu.memory_space<vmem>>, vector<1x8xf32>
    %20 = vector.broadcast %19 : vector<1x8xf32> to vector<200x8xf32>
    %21 = arith.mulf %18, %20 : vector<200x8xf32>
    %c0_7 = arith.constant 0 : index
    %c0_8 = arith.constant 0 : index
    %22 = vector.load %arg3[%c0_7, %c0_8] : memref<1x8xf32, #tpu.memory_space<vmem>>, vector<1x8xf32>
    %23 = vector.broadcast %22 : vector<1x8xf32> to vector<200x8xf32>
    %24 = arith.addf %21, %23 : vector<200x8xf32>
    %25 = arith.truncf %24 : vector<200x8xf32> to vector<200x8xbf16>
    %c0_9 = arith.constant 0 : index
    %c0_10 = arith.constant 0 : index
    %26 = vector.load %arg4[%c0_9, %c0_10] : memref<200x8xbf16, #tpu.memory_space<vmem>>, vector<200x8xbf16>
    tpu.vector_store %arg4[%c0_9, %c0_10], %25 {strides = array<i32>} : memref<200x8xbf16, #tpu.memory_space<vmem>>, vector<200x8xbf16>,
    return
  }
  func.func @transform_0(%arg0: i32) -> (i32, i32) {
    %c0_i32 = arith.constant 0 : i32
    %c0_i32_0 = arith.constant 0 : i32
    return %arg0, %c0_i32 : i32, i32
  }
  func.func @transform_1(%arg0: i32) -> (i32, i32) {
    %c0_i32 = arith.constant 0 : i32
    %c0_i32_0 = arith.constant 0 : i32
    %c0_i32_1 = arith.constant 0 : i32
    return %c0_i32, %c0_i32_0 : i32, i32
  }
  func.func @transform_2(%arg0: i32) -> (i32, i32) {
    %c0_i32 = arith.constant 0 : i32
    %c0_i32_0 = arith.constant 0 : i32
    %c0_i32_1 = arith.constant 0 : i32
    return %c0_i32, %c0_i32_0 : i32, i32
  }
  func.func @transform_3(%arg0: i32) -> (i32, i32) {
    %c0_i32 = arith.constant 0 : i32
    %c0_i32_0 = arith.constant 0 : i32
    return %arg0, %c0_i32 : i32, i32
  }
}

module attributes {stable_mosaic.version = 11 : i64} {
  func.func @_matmul_kernel(%arg0: i32, %arg1: i32, %arg2: i32, %arg3: memref<200x8xbf16, #tpu.memory_space<vmem>>, %arg4: memref<8x8xbf16, #tpu.memory_space<vmem>>, %arg5: memref<200x8xbf16, #tpu.memory_space<vmem>>, %arg6: memref<200x8xf32, #tpu.memory_space<vmem>>) attributes {dimension_semantics = [#tpu.dimension_semantics<parallel>, #tpu.dimension_semantics<parallel>, #tpu.dimension_semantics<arbitrary>], iteration_bounds = array<i64: 1, 1, 1>, scalar_prefetch = 0 : i64, scratch_operands = 1 : i64, tpu.core_type = #tpu.core_type<tc>, window_params = [{transform_indices = @transform_0, window_bounds = array<i64: 200, 8>}, {transform_indices = @transform_1, window_bounds = array<i64: 8, 8>}, {transform_indices = @transform_2, window_bounds = array<i64: 200, 8>}]} {
    %c0_i32 = arith.constant 0 : i32
    %0 = arith.cmpi eq, %arg2, %c0_i32 : i32
    %1 = arith.extui %0 : i1 to i32
    %c0_i32_0 = arith.constant 0 : i32
    %2 = arith.cmpi ne, %1, %c0_i32_0 : i32
    scf.if %2 {
      %cst_10 = arith.constant 0.000000e+00 : f32
      %12 = vector.broadcast %cst_10 : f32 to vector<200x8xf32>
      %c0_11 = arith.constant 0 : index
      %c0_12 = arith.constant 0 : index
      %13 = vector.load %arg6[%c0_11, %c0_12] : memref<200x8xf32, #tpu.memory_space<vmem>>, vector<200x8xf32>
      tpu.vector_store %arg6[%c0_11, %c0_12], %12 {strides = array<i32>} : memref<200x8xf32, #tpu.memory_space<vmem>>, vector<200x8xf32>,
    } else {
    }
    %c0 = arith.constant 0 : index
    %c0_1 = arith.constant 0 : index
    %3 = vector.load %arg6[%c0, %c0_1] : memref<200x8xf32, #tpu.memory_space<vmem>>, vector<200x8xf32>
    %c0_2 = arith.constant 0 : index
    %c0_3 = arith.constant 0 : index
    %4 = vector.load %arg3[%c0_2, %c0_3] : memref<200x8xbf16, #tpu.memory_space<vmem>>, vector<200x8xbf16>
    %c0_4 = arith.constant 0 : index
    %c0_5 = arith.constant 0 : index
    %5 = vector.load %arg4[%c0_4, %c0_5] : memref<8x8xbf16, #tpu.memory_space<vmem>>, vector<8x8xbf16>
    %cst = arith.constant dense<0.000000e+00> : vector<200x8xf32>
    %6 = tpu.matmul %4, %5, %cst {dimension_numbers = #tpu.dot_dimension_numbers<[1], [0], [0], [1], [0, 0, 1, 1], [], []>} : vector<200x8xbf16>, vector<8x8xbf16>, vector<200x8xf32> -> vector<200x8xf32>
    %7 = arith.addf %3, %6 : vector<200x8xf32>
    %c0_6 = arith.constant 0 : index
    %c0_7 = arith.constant 0 : index
    %8 = vector.load %arg6[%c0_6, %c0_7] : memref<200x8xf32, #tpu.memory_space<vmem>>, vector<200x8xf32>
    tpu.vector_store %arg6[%c0_6, %c0_7], %7 {strides = array<i32>} : memref<200x8xf32, #tpu.memory_space<vmem>>, vector<200x8xf32>,
    %c0_i32_8 = arith.constant 0 : i32
    %9 = arith.cmpi eq, %arg2, %c0_i32_8 : i32
    %10 = arith.extui %9 : i1 to i32
    %c0_i32_9 = arith.constant 0 : i32
    %11 = arith.cmpi ne, %10, %c0_i32_9 : i32
    scf.if %11 {
      %c0_10 = arith.constant 0 : index
      %c0_11 = arith.constant 0 : index
      %12 = vector.load %arg6[%c0_10, %c0_11] : memref<200x8xf32, #tpu.memory_space<vmem>>, vector<200x8xf32>
      %13 = arith.truncf %12 : vector<200x8xf32> to vector<200x8xbf16>
      %c0_12 = arith.constant 0 : index
      %c0_13 = arith.constant 0 : index
      %14 = vector.load %arg5[%c0_12, %c0_13] : memref<200x8xbf16, #tpu.memory_space<vmem>>, vector<200x8xbf16>
      tpu.vector_store %arg5[%c0_12, %c0_13], %13 {strides = array<i32>} : memref<200x8xbf16, #tpu.memory_space<vmem>>, vector<200x8xbf16>,
    } else {
    }
    return
  }
  func.func @transform_0(%arg0: i32, %arg1: i32, %arg2: i32) -> (i32, i32) {
    %c0_i32 = arith.constant 0 : i32
    return %arg0, %arg2 : i32, i32
  }
  func.func @transform_1(%arg0: i32, %arg1: i32, %arg2: i32) -> (i32, i32) {
    %c0_i32 = arith.constant 0 : i32
    return %arg2, %arg1 : i32, i32
  }
  func.func @transform_2(%arg0: i32, %arg1: i32, %arg2: i32) -> (i32, i32) {
    %c0_i32 = arith.constant 0 : i32
    return %arg0, %arg1 : i32, i32
  }
}

module attributes {stable_mosaic.version = 11 : i64} {
  func.func @_causal_dwconv1d_silu_kernel(%arg0: i32, %arg1: i32, %arg2: memref<1x100x8xbf16, #tpu.memory_space<vmem>>, %arg3: memref<4x8xf32, #tpu.memory_space<vmem>>, %arg4: memref<1x8xf32, #tpu.memory_space<vmem>>, %arg5: memref<1x100x8xbf16, #tpu.memory_space<vmem>>, %arg6: memref<103x8xf32, #tpu.memory_space<vmem>>) attributes {dimension_semantics = [#tpu.dimension_semantics<parallel>, #tpu.dimension_semantics<parallel>], iteration_bounds = array<i64: 2, 1>, scalar_prefetch = 0 : i64, scratch_operands = 1 : i64, tpu.core_type = #tpu.core_type<tc>, window_params = [{transform_indices = @transform_0, window_bounds = array<i64: 1, 100, 8>}, {transform_indices = @transform_1, window_bounds = array<i64: 4, 8>}, {transform_indices = @transform_2, window_bounds = array<i64: 1, 8>}, {transform_indices = @transform_3, window_bounds = array<i64: 1, 100, 8>}]} {
    %cst = arith.constant 0.000000e+00 : f32
    %0 = vector.broadcast %cst : f32 to vector<3x8xf32>
    %c0 = arith.constant 0 : index
    %c0_0 = arith.constant 0 : index
    %1 = vector.load %arg6[%c0, %c0_0] : memref<103x8xf32, #tpu.memory_space<vmem>>, vector<3x8xf32>
    tpu.vector_store %arg6[%c0, %c0_0], %0 {strides = array<i32>} : memref<103x8xf32, #tpu.memory_space<vmem>>, vector<3x8xf32>,
    %c0_1 = arith.constant 0 : index
    %c0_2 = arith.constant 0 : index
    %c0_3 = arith.constant 0 : index
    %2 = vector.load %arg2[%c0_1, %c0_2, %c0_3] : memref<1x100x8xbf16, #tpu.memory_space<vmem>>, vector<1x100x8xbf16>
    %3 = vector.shape_cast %2 : vector<1x100x8xbf16> to vector<100x8xbf16>
    %4 = arith.extf %3 : vector<100x8xbf16> to vector<100x8xf32>
    %c3 = arith.constant 3 : index
    %c0_4 = arith.constant 0 : index
    %5 = vector.load %arg6[%c3, %c0_4] : memref<103x8xf32, #tpu.memory_space<vmem>>, vector<100x8xf32>
    tpu.vector_store %arg6[%c3, %c0_4], %4 {strides = array<i32>} : memref<103x8xf32, #tpu.memory_space<vmem>>, vector<100x8xf32>,
    %c0_5 = arith.constant 0 : index
    %c0_6 = arith.constant 0 : index
    %6 = vector.load %arg3[%c0_5, %c0_6] : memref<4x8xf32, #tpu.memory_space<vmem>>, vector<4x8xf32>
    %c0_7 = arith.constant 0 : index
    %c0_8 = arith.constant 0 : index
    %7 = vector.load %arg6[%c0_7, %c0_8] : memref<103x8xf32, #tpu.memory_space<vmem>>, vector<100x8xf32>
    %8 = vector.extract_strided_slice %6 {offsets = [0, 0], sizes = [1, 8], strides = [1, 1]} : vector<4x8xf32> to vector<1x8xf32>
    %9 = vector.shape_cast %8 : vector<1x8xf32> to vector<8xf32>
    %10 = vector.shape_cast %9 : vector<8xf32> to vector<1x8xf32>
    %11 = vector.broadcast %10 : vector<1x8xf32> to vector<100x8xf32>
    %12 = arith.mulf %7, %11 : vector<100x8xf32>
    %c1 = arith.constant 1 : index
    %c0_9 = arith.constant 0 : index
    %13 = vector.load %arg6[%c1, %c0_9] : memref<103x8xf32, #tpu.memory_space<vmem>>, vector<100x8xf32>
    %14 = vector.extract_strided_slice %6 {offsets = [1, 0], sizes = [1, 8], strides = [1, 1]} : vector<4x8xf32> to vector<1x8xf32>
    %15 = vector.shape_cast %14 : vector<1x8xf32> to vector<8xf32>
    %16 = vector.shape_cast %15 : vector<8xf32> to vector<1x8xf32>
    %17 = vector.broadcast %16 : vector<1x8xf32> to vector<100x8xf32>
    %18 = arith.mulf %13, %17 : vector<100x8xf32>
    %19 = arith.addf %12, %18 : vector<100x8xf32>
    %c2 = arith.constant 2 : index
    %c0_10 = arith.constant 0 : index
    %20 = vector.load %arg6[%c2, %c0_10] : memref<103x8xf32, #tpu.memory_space<vmem>>, vector<100x8xf32>
    %21 = vector.extract_strided_slice %6 {offsets = [2, 0], sizes = [1, 8], strides = [1, 1]} : vector<4x8xf32> to vector<1x8xf32>
    %22 = vector.shape_cast %21 : vector<1x8xf32> to vector<8xf32>
    %23 = vector.shape_cast %22 : vector<8xf32> to vector<1x8xf32>
    %24 = vector.broadcast %23 : vector<1x8xf32> to vector<100x8xf32>
    %25 = arith.mulf %20, %24 : vector<100x8xf32>
    %26 = arith.addf %19, %25 : vector<100x8xf32>
    %c3_11 = arith.constant 3 : index
    %c0_12 = arith.constant 0 : index
    %27 = vector.load %arg6[%c3_11, %c0_12] : memref<103x8xf32, #tpu.memory_space<vmem>>, vector<100x8xf32>
    %28 = vector.extract_strided_slice %6 {offsets = [3, 0], sizes = [1, 8], strides = [1, 1]} : vector<4x8xf32> to vector<1x8xf32>
    %29 = vector.shape_cast %28 : vector<1x8xf32> to vector<8xf32>
    %30 = vector.shape_cast %29 : vector<8xf32> to vector<1x8xf32>
    %31 = vector.broadcast %30 : vector<1x8xf32> to vector<100x8xf32>
    %32 = arith.mulf %27, %31 : vector<100x8xf32>
    %33 = arith.addf %26, %32 : vector<100x8xf32>
    %c0_13 = arith.constant 0 : index
    %c0_14 = arith.constant 0 : index
    %34 = vector.load %arg4[%c0_13, %c0_14] : memref<1x8xf32, #tpu.memory_space<vmem>>, vector<1x8xf32>
    %35 = vector.broadcast %34 : vector<1x8xf32> to vector<100x8xf32>
    %36 = arith.addf %33, %35 : vector<100x8xf32>
    %37 = arith.negf %36 : vector<100x8xf32>
    %38 = math.exp %37 : vector<100x8xf32>
    %cst_15 = arith.constant 1.000000e+00 : f32
    %39 = vector.broadcast %cst_15 : f32 to vector<100x8xf32>
    %40 = arith.addf %39, %38 : vector<100x8xf32>
    %41 = arith.divf %39, %40 : vector<100x8xf32>
    %42 = arith.mulf %36, %41 : vector<100x8xf32>
    %43 = arith.truncf %42 : vector<100x8xf32> to vector<100x8xbf16>
    %c0_16 = arith.constant 0 : index
    %c0_17 = arith.constant 0 : index
    %c0_18 = arith.constant 0 : index
    %44 = vector.load %arg5[%c0_16, %c0_17, %c0_18] : memref<1x100x8xbf16, #tpu.memory_space<vmem>>, vector<1x100x8xbf16>
    %45 = vector.shape_cast %44 : vector<1x100x8xbf16> to vector<100x8xbf16>
    %46 = vector.shape_cast %43 : vector<100x8xbf16> to vector<1x100x8xbf16>
    tpu.vector_store %arg5[%c0_16, %c0_17, %c0_18], %46 {strides = array<i32>} : memref<1x100x8xbf16, #tpu.memory_space<vmem>>, vector<1x100x8xbf16>,
    return
  }
  func.func @transform_0(%arg0: i32, %arg1: i32) -> (i32, i32, i32) {
    %c0_i32 = arith.constant 0 : i32
    %c0_i32_0 = arith.constant 0 : i32
    return %arg0, %c0_i32, %arg1 : i32, i32, i32
  }
  func.func @transform_1(%arg0: i32, %arg1: i32) -> (i32, i32) {
    %c0_i32 = arith.constant 0 : i32
    %c0_i32_0 = arith.constant 0 : i32
    return %c0_i32, %arg1 : i32, i32
  }
  func.func @transform_2(%arg0: i32, %arg1: i32) -> (i32, i32) {
    %c0_i32 = arith.constant 0 : i32
    %c0_i32_0 = arith.constant 0 : i32
    return %c0_i32, %arg1 : i32, i32
  }
  func.func @transform_3(%arg0: i32, %arg1: i32) -> (i32, i32, i32) {
    %c0_i32 = arith.constant 0 : i32
    %c0_i32_0 = arith.constant 0 : i32
    return %arg0, %c0_i32, %arg1 : i32, i32, i32
  }
}

module attributes {stable_mosaic.version = 11 : i64} {
  func.func @_selective_scan_kernel(%arg0: i32, %arg1: i32, %arg2: memref<1x100x8xbf16, #tpu.memory_space<vmem>>, %arg3: memref<1x100x8xbf16, #tpu.memory_space<vmem>>, %arg4: memref<8x8xbf16, #tpu.memory_space<vmem>>, %arg5: memref<1x8xf32, #tpu.memory_space<vmem>>, %arg6: memref<8x8xbf16, #tpu.memory_space<vmem>>, %arg7: memref<8x8xbf16, #tpu.memory_space<vmem>>, %arg8: memref<8x8xf32, #tpu.memory_space<vmem>>, %arg9: memref<1x8xf32, #tpu.memory_space<vmem>>, %arg10: memref<1x100x8xbf16, #tpu.memory_space<vmem>>, %arg11: memref<8x8xf32, #tpu.memory_space<vmem>>, %arg12: memref<800x8xf32, #tpu.memory_space<vmem>>, %arg13: memref<800x8xf32, #tpu.memory_space<vmem>>, %arg14: memref<800x8xf32, #tpu.memory_space<vmem>>) attributes {dimension_semantics = [#tpu.dimension_semantics<parallel>, #tpu.dimension_semantics<arbitrary>], iteration_bounds = array<i64: 2, 1>, scalar_prefetch = 0 : i64, scratch_operands = 4 : i64, tpu.core_type = #tpu.core_type<tc>, window_params = [{transform_indices = @transform_0, window_bounds = array<i64: 1, 100, 8>}, {transform_indices = @transform_1, window_bounds = array<i64: 1, 100, 8>}, {pipeline_mode = #tpu.pipeline_mode<synchronous>, transform_indices = @transform_2, window_bounds = array<i64: 8, 8>}, {pipeline_mode = #tpu.pipeline_mode<synchronous>, transform_indices = @transform_3, window_bounds = array<i64: 1, 8>}, {pipeline_mode = #tpu.pipeline_mode<synchronous>, transform_indices = @transform_4, window_bounds = array<i64: 8, 8>}, {pipeline_mode = #tpu.pipeline_mode<synchronous>, transform_indices = @transform_5, window_bounds = array<i64: 8, 8>}, {pipeline_mode = #tpu.pipeline_mode<synchronous>, transform_indices = @transform_6, window_bounds = array<i64: 8, 8>}, {pipeline_mode = #tpu.pipeline_mode<synchronous>, transform_indices = @transform_7, window_bounds = array<i64: 1, 8>}, {transform_indices = @transform_8, window_bounds = array<i64: 1, 100, 8>}]} {
    %c0_i32 = arith.constant 0 : i32
    %0 = arith.cmpi eq, %arg1, %c0_i32 : i32
    %1 = arith.extui %0 : i1 to i32
    %c0_i32_0 = arith.constant 0 : i32
    %2 = arith.cmpi ne, %1, %c0_i32_0 : i32
    scf.if %2 {
      %cst_80 = arith.constant 0.000000e+00 : f32
      %157 = vector.broadcast %cst_80 : f32 to vector<8x8xf32>
      %c0_81 = arith.constant 0 : index
      %c0_82 = arith.constant 0 : index
      %158 = vector.load %arg11[%c0_81, %c0_82] : memref<8x8xf32, #tpu.memory_space<vmem>>, vector<8x8xf32>
      tpu.vector_store %arg11[%c0_81, %c0_82], %157 {strides = array<i32>} : memref<8x8xf32, #tpu.memory_space<vmem>>, vector<8x8xf32>,
    } else {
    }
    %c0 = arith.constant 0 : index
    %c0_1 = arith.constant 0 : index
    %c0_2 = arith.constant 0 : index
    %3 = vector.load %arg2[%c0, %c0_1, %c0_2] : memref<1x100x8xbf16, #tpu.memory_space<vmem>>, vector<1x100x8xbf16>
    %4 = vector.shape_cast %3 : vector<1x100x8xbf16> to vector<100x8xbf16>
    %5 = arith.extf %4 : vector<100x8xbf16> to vector<100x8xf32>
    %c0_3 = arith.constant 0 : index
    %c0_4 = arith.constant 0 : index
    %c0_5 = arith.constant 0 : index
    %6 = vector.load %arg3[%c0_3, %c0_4, %c0_5] : memref<1x100x8xbf16, #tpu.memory_space<vmem>>, vector<1x100x8xbf16>
    %7 = vector.shape_cast %6 : vector<1x100x8xbf16> to vector<100x8xbf16>
    %8 = arith.extf %7 : vector<100x8xbf16> to vector<100x8xf32>
    %c0_6 = arith.constant 0 : index
    %c0_7 = arith.constant 0 : index
    %9 = vector.load %arg4[%c0_6, %c0_7] : memref<8x8xbf16, #tpu.memory_space<vmem>>, vector<8x8xbf16>
    %cst = arith.constant dense<0.000000e+00> : vector<100x8xf32>
    %10 = tpu.matmul %4, %9, %cst {dimension_numbers = #tpu.dot_dimension_numbers<[1], [0], [0], [1], [0, 0, 1, 1], [], []>} : vector<100x8xbf16>, vector<8x8xbf16>, vector<100x8xf32> -> vector<100x8xf32>
    %c0_8 = arith.constant 0 : index
    %c0_9 = arith.constant 0 : index
    %11 = vector.load %arg5[%c0_8, %c0_9] : memref<1x8xf32, #tpu.memory_space<vmem>>, vector<1x8xf32>
    %12 = vector.broadcast %11 : vector<1x8xf32> to vector<100x8xf32>
    %13 = arith.addf %10, %12 : vector<100x8xf32>
    %cst_10 = arith.constant 0.000000e+00 : f32
    %14 = vector.broadcast %cst_10 : f32 to vector<100x8xf32>
    %15 = arith.maximumf %13, %14 : vector<100x8xf32>
    %16 = math.absf %13 : vector<100x8xf32>
    %cst_11 = arith.constant 0.000000e+00 : f32
    %17 = vector.broadcast %cst_11 : f32 to vector<100x8xf32>
    %18 = arith.subf %17, %16 : vector<100x8xf32>
    %19 = math.exp %18 : vector<100x8xf32>
    %20 = math.log1p %19 : vector<100x8xf32>
    %21 = arith.addf %15, %20 : vector<100x8xf32>
    %c0_12 = arith.constant 0 : index
    %c0_13 = arith.constant 0 : index
    %22 = vector.load %arg6[%c0_12, %c0_13] : memref<8x8xbf16, #tpu.memory_space<vmem>>, vector<8x8xbf16>
    %cst_14 = arith.constant dense<0.000000e+00> : vector<100x8xf32>
    %23 = tpu.matmul %4, %22, %cst_14 {dimension_numbers = #tpu.dot_dimension_numbers<[1], [0], [0], [1], [0, 0, 1, 1], [], []>} : vector<100x8xbf16>, vector<8x8xbf16>, vector<100x8xf32> -> vector<100x8xf32>
    %c0_15 = arith.constant 0 : index
    %c0_16 = arith.constant 0 : index
    %24 = vector.load %arg7[%c0_15, %c0_16] : memref<8x8xbf16, #tpu.memory_space<vmem>>, vector<8x8xbf16>
    %cst_17 = arith.constant dense<0.000000e+00> : vector<100x8xf32>
    %25 = tpu.matmul %4, %24, %cst_17 {dimension_numbers = #tpu.dot_dimension_numbers<[1], [0], [0], [1], [0, 0, 1, 1], [], []>} : vector<100x8xbf16>, vector<8x8xbf16>, vector<100x8xf32> -> vector<100x8xf32>
    %26 = arith.mulf %21, %5 : vector<100x8xf32>
    %c0_18 = arith.constant 0 : index
    %c0_19 = arith.constant 0 : index
    %27 = vector.load %arg8[%c0_18, %c0_19] : memref<8x8xf32, #tpu.memory_space<vmem>>, vector<1x8xf32>
    %28 = vector.broadcast %27 : vector<1x8xf32> to vector<100x8xf32>
    %29 = arith.mulf %21, %28 : vector<100x8xf32>
    %30 = math.exp %29 : vector<100x8xf32>
    %c0_20 = arith.constant 0 : index
    %c0_21 = arith.constant 0 : index
    %31 = vector.load %arg12[%c0_20, %c0_21] : memref<800x8xf32, #tpu.memory_space<vmem>>, vector<100x8xf32>
    tpu.vector_store %arg12[%c0_20, %c0_21], %30 {strides = array<i32>} : memref<800x8xf32, #tpu.memory_space<vmem>>, vector<100x8xf32>,
    %32 = vector.extract_strided_slice %23 {offsets = [0, 0], sizes = [100, 1], strides = [1, 1]} : vector<100x8xf32> to vector<100x1xf32>
    %33 = vector.broadcast %32 : vector<100x1xf32> to vector<100x8xf32>
    %34 = arith.mulf %26, %33 : vector<100x8xf32>
    %c0_22 = arith.constant 0 : index
    %c0_23 = arith.constant 0 : index
    %35 = vector.load %arg13[%c0_22, %c0_23] : memref<800x8xf32, #tpu.memory_space<vmem>>, vector<100x8xf32>
    tpu.vector_store %arg13[%c0_22, %c0_23], %34 {strides = array<i32>} : memref<800x8xf32, #tpu.memory_space<vmem>>, vector<100x8xf32>,
    %c1 = arith.constant 1 : index
    %c0_24 = arith.constant 0 : index
    %36 = vector.load %arg8[%c1, %c0_24] : memref<8x8xf32, #tpu.memory_space<vmem>>, vector<1x8xf32>
    %37 = vector.broadcast %36 : vector<1x8xf32> to vector<100x8xf32>
    %38 = arith.mulf %21, %37 : vector<100x8xf32>
    %39 = math.exp %38 : vector<100x8xf32>
    %c100 = arith.constant 100 : index
    %c0_25 = arith.constant 0 : index
    %40 = vector.load %arg12[%c100, %c0_25] : memref<800x8xf32, #tpu.memory_space<vmem>>, vector<100x8xf32>
    tpu.vector_store %arg12[%c100, %c0_25], %39 {strides = array<i32>} : memref<800x8xf32, #tpu.memory_space<vmem>>, vector<100x8xf32>,
    %41 = vector.extract_strided_slice %23 {offsets = [0, 1], sizes = [100, 1], strides = [1, 1]} : vector<100x8xf32> to vector<100x1xf32>
    %42 = vector.broadcast %41 : vector<100x1xf32> to vector<100x8xf32>
    %43 = arith.mulf %26, %42 : vector<100x8xf32>
    %c100_26 = arith.constant 100 : index
    %c0_27 = arith.constant 0 : index
    %44 = vector.load %arg13[%c100_26, %c0_27] : memref<800x8xf32, #tpu.memory_space<vmem>>, vector<100x8xf32>
    tpu.vector_store %arg13[%c100_26, %c0_27], %43 {strides = array<i32>} : memref<800x8xf32, #tpu.memory_space<vmem>>, vector<100x8xf32>,
    %c2 = arith.constant 2 : index
    %c0_28 = arith.constant 0 : index
    %45 = vector.load %arg8[%c2, %c0_28] : memref<8x8xf32, #tpu.memory_space<vmem>>, vector<1x8xf32>
    %46 = vector.broadcast %45 : vector<1x8xf32> to vector<100x8xf32>
    %47 = arith.mulf %21, %46 : vector<100x8xf32>
    %48 = math.exp %47 : vector<100x8xf32>
    %c200 = arith.constant 200 : index
    %c0_29 = arith.constant 0 : index
    %49 = vector.load %arg12[%c200, %c0_29] : memref<800x8xf32, #tpu.memory_space<vmem>>, vector<100x8xf32>
    tpu.vector_store %arg12[%c200, %c0_29], %48 {strides = array<i32>} : memref<800x8xf32, #tpu.memory_space<vmem>>, vector<100x8xf32>,
    %50 = vector.extract_strided_slice %23 {offsets = [0, 2], sizes = [100, 1], strides = [1, 1]} : vector<100x8xf32> to vector<100x1xf32>
    %51 = vector.broadcast %50 : vector<100x1xf32> to vector<100x8xf32>
    %52 = arith.mulf %26, %51 : vector<100x8xf32>
    %c200_30 = arith.constant 200 : index
    %c0_31 = arith.constant 0 : index
    %53 = vector.load %arg13[%c200_30, %c0_31] : memref<800x8xf32, #tpu.memory_space<vmem>>, vector<100x8xf32>
    tpu.vector_store %arg13[%c200_30, %c0_31], %52 {strides = array<i32>} : memref<800x8xf32, #tpu.memory_space<vmem>>, vector<100x8xf32>,
    %c3 = arith.constant 3 : index
    %c0_32 = arith.constant 0 : index
    %54 = vector.load %arg8[%c3, %c0_32] : memref<8x8xf32, #tpu.memory_space<vmem>>, vector<1x8xf32>
    %55 = vector.broadcast %54 : vector<1x8xf32> to vector<100x8xf32>
    %56 = arith.mulf %21, %55 : vector<100x8xf32>
    %57 = math.exp %56 : vector<100x8xf32>
    %c300 = arith.constant 300 : index
    %c0_33 = arith.constant 0 : index
    %58 = vector.load %arg12[%c300, %c0_33] : memref<800x8xf32, #tpu.memory_space<vmem>>, vector<100x8xf32>
    tpu.vector_store %arg12[%c300, %c0_33], %57 {strides = array<i32>} : memref<800x8xf32, #tpu.memory_space<vmem>>, vector<100x8xf32>,
    %59 = vector.extract_strided_slice %23 {offsets = [0, 3], sizes = [100, 1], strides = [1, 1]} : vector<100x8xf32> to vector<100x1xf32>
    %60 = vector.broadcast %59 : vector<100x1xf32> to vector<100x8xf32>
    %61 = arith.mulf %26, %60 : vector<100x8xf32>
    %c300_34 = arith.constant 300 : index
    %c0_35 = arith.constant 0 : index
    %62 = vector.load %arg13[%c300_34, %c0_35] : memref<800x8xf32, #tpu.memory_space<vmem>>, vector<100x8xf32>
    tpu.vector_store %arg13[%c300_34, %c0_35], %61 {strides = array<i32>} : memref<800x8xf32, #tpu.memory_space<vmem>>, vector<100x8xf32>,
    %c4 = arith.constant 4 : index
    %c0_36 = arith.constant 0 : index
    %63 = vector.load %arg8[%c4, %c0_36] : memref<8x8xf32, #tpu.memory_space<vmem>>, vector<1x8xf32>
    %64 = vector.broadcast %63 : vector<1x8xf32> to vector<100x8xf32>
    %65 = arith.mulf %21, %64 : vector<100x8xf32>
    %66 = math.exp %65 : vector<100x8xf32>
    %c400 = arith.constant 400 : index
    %c0_37 = arith.constant 0 : index
    %67 = vector.load %arg12[%c400, %c0_37] : memref<800x8xf32, #tpu.memory_space<vmem>>, vector<100x8xf32>
    tpu.vector_store %arg12[%c400, %c0_37], %66 {strides = array<i32>} : memref<800x8xf32, #tpu.memory_space<vmem>>, vector<100x8xf32>,
    %68 = vector.extract_strided_slice %23 {offsets = [0, 4], sizes = [100, 1], strides = [1, 1]} : vector<100x8xf32> to vector<100x1xf32>
    %69 = vector.broadcast %68 : vector<100x1xf32> to vector<100x8xf32>
    %70 = arith.mulf %26, %69 : vector<100x8xf32>
    %c400_38 = arith.constant 400 : index
    %c0_39 = arith.constant 0 : index
    %71 = vector.load %arg13[%c400_38, %c0_39] : memref<800x8xf32, #tpu.memory_space<vmem>>, vector<100x8xf32>
    tpu.vector_store %arg13[%c400_38, %c0_39], %70 {strides = array<i32>} : memref<800x8xf32, #tpu.memory_space<vmem>>, vector<100x8xf32>,
    %c5 = arith.constant 5 : index
    %c0_40 = arith.constant 0 : index
    %72 = vector.load %arg8[%c5, %c0_40] : memref<8x8xf32, #tpu.memory_space<vmem>>, vector<1x8xf32>
    %73 = vector.broadcast %72 : vector<1x8xf32> to vector<100x8xf32>
    %74 = arith.mulf %21, %73 : vector<100x8xf32>
    %75 = math.exp %74 : vector<100x8xf32>
    %c500 = arith.constant 500 : index
    %c0_41 = arith.constant 0 : index
    %76 = vector.load %arg12[%c500, %c0_41] : memref<800x8xf32, #tpu.memory_space<vmem>>, vector<100x8xf32>
    tpu.vector_store %arg12[%c500, %c0_41], %75 {strides = array<i32>} : memref<800x8xf32, #tpu.memory_space<vmem>>, vector<100x8xf32>,
    %77 = vector.extract_strided_slice %23 {offsets = [0, 5], sizes = [100, 1], strides = [1, 1]} : vector<100x8xf32> to vector<100x1xf32>
    %78 = vector.broadcast %77 : vector<100x1xf32> to vector<100x8xf32>
    %79 = arith.mulf %26, %78 : vector<100x8xf32>
    %c500_42 = arith.constant 500 : index
    %c0_43 = arith.constant 0 : index
    %80 = vector.load %arg13[%c500_42, %c0_43] : memref<800x8xf32, #tpu.memory_space<vmem>>, vector<100x8xf32>
    tpu.vector_store %arg13[%c500_42, %c0_43], %79 {strides = array<i32>} : memref<800x8xf32, #tpu.memory_space<vmem>>, vector<100x8xf32>,
    %c6 = arith.constant 6 : index
    %c0_44 = arith.constant 0 : index
    %81 = vector.load %arg8[%c6, %c0_44] : memref<8x8xf32, #tpu.memory_space<vmem>>, vector<1x8xf32>
    %82 = vector.broadcast %81 : vector<1x8xf32> to vector<100x8xf32>
    %83 = arith.mulf %21, %82 : vector<100x8xf32>
    %84 = math.exp %83 : vector<100x8xf32>
    %c600 = arith.constant 600 : index
    %c0_45 = arith.constant 0 : index
    %85 = vector.load %arg12[%c600, %c0_45] : memref<800x8xf32, #tpu.memory_space<vmem>>, vector<100x8xf32>
    tpu.vector_store %arg12[%c600, %c0_45], %84 {strides = array<i32>} : memref<800x8xf32, #tpu.memory_space<vmem>>, vector<100x8xf32>,
    %86 = vector.extract_strided_slice %23 {offsets = [0, 6], sizes = [100, 1], strides = [1, 1]} : vector<100x8xf32> to vector<100x1xf32>
    %87 = vector.broadcast %86 : vector<100x1xf32> to vector<100x8xf32>
    %88 = arith.mulf %26, %87 : vector<100x8xf32>
    %c600_46 = arith.constant 600 : index
    %c0_47 = arith.constant 0 : index
    %89 = vector.load %arg13[%c600_46, %c0_47] : memref<800x8xf32, #tpu.memory_space<vmem>>, vector<100x8xf32>
    tpu.vector_store %arg13[%c600_46, %c0_47], %88 {strides = array<i32>} : memref<800x8xf32, #tpu.memory_space<vmem>>, vector<100x8xf32>,
    %c7 = arith.constant 7 : index
    %c0_48 = arith.constant 0 : index
    %90 = vector.load %arg8[%c7, %c0_48] : memref<8x8xf32, #tpu.memory_space<vmem>>, vector<1x8xf32>
    %91 = vector.broadcast %90 : vector<1x8xf32> to vector<100x8xf32>
    %92 = arith.mulf %21, %91 : vector<100x8xf32>
    %93 = math.exp %92 : vector<100x8xf32>
    %c700 = arith.constant 700 : index
    %c0_49 = arith.constant 0 : index
    %94 = vector.load %arg12[%c700, %c0_49] : memref<800x8xf32, #tpu.memory_space<vmem>>, vector<100x8xf32>
    tpu.vector_store %arg12[%c700, %c0_49], %93 {strides = array<i32>} : memref<800x8xf32, #tpu.memory_space<vmem>>, vector<100x8xf32>,
    %95 = vector.extract_strided_slice %23 {offsets = [0, 7], sizes = [100, 1], strides = [1, 1]} : vector<100x8xf32> to vector<100x1xf32>
    %96 = vector.broadcast %95 : vector<100x1xf32> to vector<100x8xf32>
    %97 = arith.mulf %26, %96 : vector<100x8xf32>
    %c700_50 = arith.constant 700 : index
    %c0_51 = arith.constant 0 : index
    %98 = vector.load %arg13[%c700_50, %c0_51] : memref<800x8xf32, #tpu.memory_space<vmem>>, vector<100x8xf32>
    tpu.vector_store %arg13[%c700_50, %c0_51], %97 {strides = array<i32>} : memref<800x8xf32, #tpu.memory_space<vmem>>, vector<100x8xf32>,
    %c0_52 = arith.constant 0 : index
    %c0_53 = arith.constant 0 : index
    %99 = vector.load %arg11[%c0_52, %c0_53] : memref<8x8xf32, #tpu.memory_space<vmem>>, vector<8x8xf32>
    %c0_i32_54 = arith.constant 0 : i32
    %c100_i32 = arith.constant 100 : i32
    %100 = arith.addi %c0_i32_54, %c100_i32 : i32
    %c1_i32 = arith.constant 1 : i32
    %101 = scf.for %arg15 = %c0_i32_54 to %100 step %c1_i32 iter_args(%arg16 = %99) -> (vector<8x8xf32>)  : i32 {
      %157 = arith.index_cast %arg15 : i32 to index
      %c0_80 = arith.constant 0 : index
      %158 = tpu.strided_load %arg12[%157, %c0_80] {strides = array<i32: 100, 1>} : memref<800x8xf32, #tpu.memory_space<vmem>>, vector<8x8xf32>
      %159 = arith.index_cast %arg15 : i32 to index
      %c0_81 = arith.constant 0 : index
      %160 = tpu.strided_load %arg13[%159, %c0_81] {strides = array<i32: 100, 1>} : memref<800x8xf32, #tpu.memory_space<vmem>>, vector<8x8xf32>
      %161 = arith.mulf %158, %arg16 : vector<8x8xf32>
      %162 = arith.addf %161, %160 : vector<8x8xf32>
      %c8_i32 = arith.constant 8 : i32
      %163 = arith.muli %arg15, %c8_i32 : i32
      %164 = tpu.assume_multiple %163, 8 : i32
      %165 = arith.index_cast %164 : i32 to index
      %c0_82 = arith.constant 0 : index
      %166 = vector.load %arg14[%165, %c0_82] : memref<800x8xf32, #tpu.memory_space<vmem>>, vector<8x8xf32>
      tpu.vector_store %arg14[%165, %c0_82], %162 {strides = array<i32>} : memref<800x8xf32, #tpu.memory_space<vmem>>, vector<8x8xf32>,
      scf.yield %162 : vector<8x8xf32>
    }
    %c100_i32_55 = arith.constant 100 : i32
    %c0_56 = arith.constant 0 : index
    %c0_57 = arith.constant 0 : index
    %102 = vector.load %arg11[%c0_56, %c0_57] : memref<8x8xf32, #tpu.memory_space<vmem>>, vector<8x8xf32>
    tpu.vector_store %arg11[%c0_56, %c0_57], %101 {strides = array<i32>} : memref<8x8xf32, #tpu.memory_space<vmem>>, vector<8x8xf32>,
    %c0_58 = arith.constant 0 : index
    %c0_59 = arith.constant 0 : index
    %103 = tpu.strided_load %arg14[%c0_58, %c0_59] {strides = array<i32: 8, 1>} : memref<800x8xf32, #tpu.memory_space<vmem>>, vector<100x8xf32>
    %104 = vector.extract_strided_slice %25 {offsets = [0, 0], sizes = [100, 1], strides = [1, 1]} : vector<100x8xf32> to vector<100x1xf32>
    %105 = vector.broadcast %104 : vector<100x1xf32> to vector<100x8xf32>
    %106 = arith.mulf %103, %105 : vector<100x8xf32>
    %c1_60 = arith.constant 1 : index
    %c0_61 = arith.constant 0 : index
    %107 = tpu.strided_load %arg14[%c1_60, %c0_61] {strides = array<i32: 8, 1>} : memref<800x8xf32, #tpu.memory_space<vmem>>, vector<100x8xf32>
    %108 = vector.extract_strided_slice %25 {offsets = [0, 1], sizes = [100, 1], strides = [1, 1]} : vector<100x8xf32> to vector<100x1xf32>
    %109 = vector.broadcast %108 : vector<100x1xf32> to vector<100x8xf32>
    %110 = arith.mulf %107, %109 : vector<100x8xf32>
    %111 = arith.addf %106, %110 : vector<100x8xf32>
    %c2_62 = arith.constant 2 : index
    %c0_63 = arith.constant 0 : index
    %112 = tpu.strided_load %arg14[%c2_62, %c0_63] {strides = array<i32: 8, 1>} : memref<800x8xf32, #tpu.memory_space<vmem>>, vector<100x8xf32>
    %113 = vector.extract_strided_slice %25 {offsets = [0, 2], sizes = [100, 1], strides = [1, 1]} : vector<100x8xf32> to vector<100x1xf32>
    %114 = vector.broadcast %113 : vector<100x1xf32> to vector<100x8xf32>
    %115 = arith.mulf %112, %114 : vector<100x8xf32>
    %116 = arith.addf %111, %115 : vector<100x8xf32>
    %c3_64 = arith.constant 3 : index
    %c0_65 = arith.constant 0 : index
    %117 = tpu.strided_load %arg14[%c3_64, %c0_65] {strides = array<i32: 8, 1>} : memref<800x8xf32, #tpu.memory_space<vmem>>, vector<100x8xf32>
    %118 = vector.extract_strided_slice %25 {offsets = [0, 3], sizes = [100, 1], strides = [1, 1]} : vector<100x8xf32> to vector<100x1xf32>
    %119 = vector.broadcast %118 : vector<100x1xf32> to vector<100x8xf32>
    %120 = arith.mulf %117, %119 : vector<100x8xf32>
    %121 = arith.addf %116, %120 : vector<100x8xf32>
    %c4_66 = arith.constant 4 : index
    %c0_67 = arith.constant 0 : index
    %122 = tpu.strided_load %arg14[%c4_66, %c0_67] {strides = array<i32: 8, 1>} : memref<800x8xf32, #tpu.memory_space<vmem>>, vector<100x8xf32>
    %123 = vector.extract_strided_slice %25 {offsets = [0, 4], sizes = [100, 1], strides = [1, 1]} : vector<100x8xf32> to vector<100x1xf32>
    %124 = vector.broadcast %123 : vector<100x1xf32> to vector<100x8xf32>
    %125 = arith.mulf %122, %124 : vector<100x8xf32>
    %126 = arith.addf %121, %125 : vector<100x8xf32>
    %c5_68 = arith.constant 5 : index
    %c0_69 = arith.constant 0 : index
    %127 = tpu.strided_load %arg14[%c5_68, %c0_69] {strides = array<i32: 8, 1>} : memref<800x8xf32, #tpu.memory_space<vmem>>, vector<100x8xf32>
    %128 = vector.extract_strided_slice %25 {offsets = [0, 5], sizes = [100, 1], strides = [1, 1]} : vector<100x8xf32> to vector<100x1xf32>
    %129 = vector.broadcast %128 : vector<100x1xf32> to vector<100x8xf32>
    %130 = arith.mulf %127, %129 : vector<100x8xf32>
    %131 = arith.addf %126, %130 : vector<100x8xf32>
    %c6_70 = arith.constant 6 : index
    %c0_71 = arith.constant 0 : index
    %132 = tpu.strided_load %arg14[%c6_70, %c0_71] {strides = array<i32: 8, 1>} : memref<800x8xf32, #tpu.memory_space<vmem>>, vector<100x8xf32>
    %133 = vector.extract_strided_slice %25 {offsets = [0, 6], sizes = [100, 1], strides = [1, 1]} : vector<100x8xf32> to vector<100x1xf32>
    %134 = vector.broadcast %133 : vector<100x1xf32> to vector<100x8xf32>
    %135 = arith.mulf %132, %134 : vector<100x8xf32>
    %136 = arith.addf %131, %135 : vector<100x8xf32>
    %c7_72 = arith.constant 7 : index
    %c0_73 = arith.constant 0 : index
    %137 = tpu.strided_load %arg14[%c7_72, %c0_73] {strides = array<i32: 8, 1>} : memref<800x8xf32, #tpu.memory_space<vmem>>, vector<100x8xf32>
    %138 = vector.extract_strided_slice %25 {offsets = [0, 7], sizes = [100, 1], strides = [1, 1]} : vector<100x8xf32> to vector<100x1xf32>
    %139 = vector.broadcast %138 : vector<100x1xf32> to vector<100x8xf32>
    %140 = arith.mulf %137, %139 : vector<100x8xf32>
    %141 = arith.addf %136, %140 : vector<100x8xf32>
    %c0_74 = arith.constant 0 : index
    %c0_75 = arith.constant 0 : index
    %142 = vector.load %arg9[%c0_74, %c0_75] : memref<1x8xf32, #tpu.memory_space<vmem>>, vector<1x8xf32>
    %143 = vector.broadcast %142 : vector<1x8xf32> to vector<100x8xf32>
    %144 = arith.mulf %143, %5 : vector<100x8xf32>
    %145 = arith.addf %141, %144 : vector<100x8xf32>
    %146 = arith.negf %8 : vector<100x8xf32>
    %147 = math.exp %146 : vector<100x8xf32>
    %cst_76 = arith.constant 1.000000e+00 : f32
    %148 = vector.broadcast %cst_76 : f32 to vector<100x8xf32>
    %149 = arith.addf %148, %147 : vector<100x8xf32>
    %150 = arith.divf %148, %149 : vector<100x8xf32>
    %151 = arith.mulf %8, %150 : vector<100x8xf32>
    %152 = arith.mulf %145, %151 : vector<100x8xf32>
    %153 = arith.truncf %152 : vector<100x8xf32> to vector<100x8xbf16>
    %c0_77 = arith.constant 0 : index
    %c0_78 = arith.constant 0 : index
    %c0_79 = arith.constant 0 : index
    %154 = vector.load %arg10[%c0_77, %c0_78, %c0_79] : memref<1x100x8xbf16, #tpu.memory_space<vmem>>, vector<1x100x8xbf16>
    %155 = vector.shape_cast %154 : vector<1x100x8xbf16> to vector<100x8xbf16>
    %156 = vector.shape_cast %153 : vector<100x8xbf16> to vector<1x100x8xbf16>
    tpu.vector_store %arg10[%c0_77, %c0_78, %c0_79], %156 {strides = array<i32>} : memref<1x100x8xbf16, #tpu.memory_space<vmem>>, vector<1x100x8xbf16>,
    return
  }
  func.func @transform_0(%arg0: i32, %arg1: i32) -> (i32, i32, i32) {
    %c0_i32 = arith.constant 0 : i32
    %c0_i32_0 = arith.constant 0 : i32
    return %arg0, %arg1, %c0_i32 : i32, i32, i32
  }
  func.func @transform_1(%arg0: i32, %arg1: i32) -> (i32, i32, i32) {
    %c0_i32 = arith.constant 0 : i32
    %c0_i32_0 = arith.constant 0 : i32
    return %arg0, %arg1, %c0_i32 : i32, i32, i32
  }
  func.func @transform_2(%arg0: i32, %arg1: i32) -> (i32, i32) {
    %c0_i32 = arith.constant 0 : i32
    %c0_i32_0 = arith.constant 0 : i32
    %c0_i32_1 = arith.constant 0 : i32
    return %c0_i32, %c0_i32_0 : i32, i32
  }
  func.func @transform_3(%arg0: i32, %arg1: i32) -> (i32, i32) {
    %c0_i32 = arith.constant 0 : i32
    %c0_i32_0 = arith.constant 0 : i32
    %c0_i32_1 = arith.constant 0 : i32
    return %c0_i32, %c0_i32_0 : i32, i32
  }
  func.func @transform_4(%arg0: i32, %arg1: i32) -> (i32, i32) {
    %c0_i32 = arith.constant 0 : i32
    %c0_i32_0 = arith.constant 0 : i32
    %c0_i32_1 = arith.constant 0 : i32
    return %c0_i32, %c0_i32_0 : i32, i32
  }
  func.func @transform_5(%arg0: i32, %arg1: i32) -> (i32, i32) {
    %c0_i32 = arith.constant 0 : i32
    %c0_i32_0 = arith.constant 0 : i32
    %c0_i32_1 = arith.constant 0 : i32
    return %c0_i32, %c0_i32_0 : i32, i32
  }
  func.func @transform_6(%arg0: i32, %arg1: i32) -> (i32, i32) {
    %c0_i32 = arith.constant 0 : i32
    %c0_i32_0 = arith.constant 0 : i32
    %c0_i32_1 = arith.constant 0 : i32
    return %c0_i32, %c0_i32_0 : i32, i32
  }
  func.func @transform_7(%arg0: i32, %arg1: i32) -> (i32, i32) {
    %c0_i32 = arith.constant 0 : i32
    %c0_i32_0 = arith.constant 0 : i32
    %c0_i32_1 = arith.constant 0 : i32
    return %c0_i32, %c0_i32_0 : i32, i32
  }
  func.func @transform_8(%arg0: i32, %arg1: i32) -> (i32, i32, i32) {
    %c0_i32 = arith.constant 0 : i32
    %c0_i32_0 = arith.constant 0 : i32
    return %arg0, %arg1, %c0_i32 : i32, i32, i32
  }
}

module attributes {stable_mosaic.version = 11 : i64} {
  func.func @_ln_matmul_kernel(%arg0: i32, %arg1: i32, %arg2: memref<200x8xbf16, #tpu.memory_space<vmem>>, %arg3: memref<1x8xf32, #tpu.memory_space<vmem>>, %arg4: memref<1x8xf32, #tpu.memory_space<vmem>>, %arg5: memref<8x8xbf16, #tpu.memory_space<vmem>>, %arg6: memref<200x8xbf16, #tpu.memory_space<vmem>>) attributes {dimension_semantics = [#tpu.dimension_semantics<parallel>, #tpu.dimension_semantics<parallel>], iteration_bounds = array<i64: 1, 1>, scalar_prefetch = 0 : i64, scratch_operands = 0 : i64, tpu.core_type = #tpu.core_type<tc>, window_params = [{transform_indices = @transform_0, window_bounds = array<i64: 200, 8>}, {pipeline_mode = #tpu.pipeline_mode<synchronous>, transform_indices = @transform_1, window_bounds = array<i64: 1, 8>}, {pipeline_mode = #tpu.pipeline_mode<synchronous>, transform_indices = @transform_2, window_bounds = array<i64: 1, 8>}, {transform_indices = @transform_3, window_bounds = array<i64: 8, 8>}, {transform_indices = @transform_4, window_bounds = array<i64: 200, 8>}]} {
    %c0 = arith.constant 0 : index
    %c0_0 = arith.constant 0 : index
    %0 = vector.load %arg2[%c0, %c0_0] : memref<200x8xbf16, #tpu.memory_space<vmem>>, vector<200x8xbf16>
    %1 = arith.extf %0 : vector<200x8xbf16> to vector<200x8xf32>
    %cst = arith.constant dense<0.000000e+00> : vector<200xf32>
    %2 = vector.multi_reduction <add>, %1, %cst [1] : vector<200x8xf32> to vector<200xf32>
    %3 = vector.shape_cast %2 : vector<200xf32> to vector<200x1xf32>
    %cst_1 = arith.constant 8.000000e+00 : f32
    %4 = vector.broadcast %cst_1 : f32 to vector<200x1xf32>
    %5 = arith.divf %3, %4 : vector<200x1xf32>
    %6 = vector.broadcast %5 : vector<200x1xf32> to vector<200x8xf32>
    %7 = arith.subf %1, %6 : vector<200x8xf32>
    %8 = arith.mulf %7, %7 : vector<200x8xf32>
    %cst_2 = arith.constant dense<0.000000e+00> : vector<200xf32>
    %9 = vector.multi_reduction <add>, %8, %cst_2 [1] : vector<200x8xf32> to vector<200xf32>
    %10 = vector.shape_cast %9 : vector<200xf32> to vector<200x1xf32>
    %cst_3 = arith.constant 8.000000e+00 : f32
    %11 = vector.broadcast %cst_3 : f32 to vector<200x1xf32>
    %12 = arith.divf %10, %11 : vector<200x1xf32>
    %13 = vector.broadcast %5 : vector<200x1xf32> to vector<200x8xf32>
    %14 = arith.subf %1, %13 : vector<200x8xf32>
    %cst_4 = arith.constant 9.99999974E-6 : f32
    %15 = vector.broadcast %cst_4 : f32 to vector<200x1xf32>
    %16 = arith.addf %12, %15 : vector<200x1xf32>
    %17 = math.rsqrt %16 : vector<200x1xf32>
    %18 = vector.broadcast %17 : vector<200x1xf32> to vector<200x8xf32>
    %19 = arith.mulf %14, %18 : vector<200x8xf32>
    %c0_5 = arith.constant 0 : index
    %c0_6 = arith.constant 0 : index
    %20 = vector.load %arg3[%c0_5, %c0_6] : memref<1x8xf32, #tpu.memory_space<vmem>>, vector<1x8xf32>
    %21 = vector.broadcast %20 : vector<1x8xf32> to vector<200x8xf32>
    %22 = arith.mulf %19, %21 : vector<200x8xf32>
    %c0_7 = arith.constant 0 : index
    %c0_8 = arith.constant 0 : index
    %23 = vector.load %arg4[%c0_7, %c0_8] : memref<1x8xf32, #tpu.memory_space<vmem>>, vector<1x8xf32>
    %24 = vector.broadcast %23 : vector<1x8xf32> to vector<200x8xf32>
    %25 = arith.addf %22, %24 : vector<200x8xf32>
    %26 = arith.truncf %25 : vector<200x8xf32> to vector<200x8xbf16>
    %c0_9 = arith.constant 0 : index
    %c0_10 = arith.constant 0 : index
    %27 = vector.load %arg5[%c0_9, %c0_10] : memref<8x8xbf16, #tpu.memory_space<vmem>>, vector<8x8xbf16>
    %cst_11 = arith.constant dense<0.000000e+00> : vector<200x8xf32>
    %28 = tpu.matmul %26, %27, %cst_11 {dimension_numbers = #tpu.dot_dimension_numbers<[1], [0], [0], [1], [0, 0, 1, 1], [], []>} : vector<200x8xbf16>, vector<8x8xbf16>, vector<200x8xf32> -> vector<200x8xf32>
    %29 = arith.truncf %28 : vector<200x8xf32> to vector<200x8xbf16>
    %c0_12 = arith.constant 0 : index
    %c0_13 = arith.constant 0 : index
    %30 = vector.load %arg6[%c0_12, %c0_13] : memref<200x8xbf16, #tpu.memory_space<vmem>>, vector<200x8xbf16>
    tpu.vector_store %arg6[%c0_12, %c0_13], %29 {strides = array<i32>} : memref<200x8xbf16, #tpu.memory_space<vmem>>, vector<200x8xbf16>,
    return
  }
  func.func @transform_0(%arg0: i32, %arg1: i32) -> (i32, i32) {
    %c0_i32 = arith.constant 0 : i32
    %c0_i32_0 = arith.constant 0 : i32
    return %arg0, %c0_i32 : i32, i32
  }
  func.func @transform_1(%arg0: i32, %arg1: i32) -> (i32, i32) {
    %c0_i32 = arith.constant 0 : i32
    %c0_i32_0 = arith.constant 0 : i32
    %c0_i32_1 = arith.constant 0 : i32
    return %c0_i32, %c0_i32_0 : i32, i32
  }
  func.func @transform_2(%arg0: i32, %arg1: i32) -> (i32, i32) {
    %c0_i32 = arith.constant 0 : i32
    %c0_i32_0 = arith.constant 0 : i32
    %c0_i32_1 = arith.constant 0 : i32
    return %c0_i32, %c0_i32_0 : i32, i32
  }
  func.func @transform_3(%arg0: i32, %arg1: i32) -> (i32, i32) {
    %c0_i32 = arith.constant 0 : i32
    %c0_i32_0 = arith.constant 0 : i32
    return %c0_i32, %arg1 : i32, i32
  }
  func.func @transform_4(%arg0: i32, %arg1: i32) -> (i32, i32) {
    %c0_i32 = arith.constant 0 : i32
    return %arg0, %arg1 : i32, i32
  }
}

module attributes {stable_mosaic.version = 11 : i64} {
  func.func @_causal_dwconv1d_silu_kernel(%arg0: i32, %arg1: i32, %arg2: memref<1x25x8xbf16, #tpu.memory_space<vmem>>, %arg3: memref<4x8xf32, #tpu.memory_space<vmem>>, %arg4: memref<1x8xf32, #tpu.memory_space<vmem>>, %arg5: memref<1x25x8xbf16, #tpu.memory_space<vmem>>, %arg6: memref<28x8xf32, #tpu.memory_space<vmem>>) attributes {dimension_semantics = [#tpu.dimension_semantics<parallel>, #tpu.dimension_semantics<parallel>], iteration_bounds = array<i64: 8, 1>, scalar_prefetch = 0 : i64, scratch_operands = 1 : i64, tpu.core_type = #tpu.core_type<tc>, window_params = [{transform_indices = @transform_0, window_bounds = array<i64: 1, 25, 8>}, {transform_indices = @transform_1, window_bounds = array<i64: 4, 8>}, {transform_indices = @transform_2, window_bounds = array<i64: 1, 8>}, {transform_indices = @transform_3, window_bounds = array<i64: 1, 25, 8>}]} {
    %cst = arith.constant 0.000000e+00 : f32
    %0 = vector.broadcast %cst : f32 to vector<3x8xf32>
    %c0 = arith.constant 0 : index
    %c0_0 = arith.constant 0 : index
    %1 = vector.load %arg6[%c0, %c0_0] : memref<28x8xf32, #tpu.memory_space<vmem>>, vector<3x8xf32>
    tpu.vector_store %arg6[%c0, %c0_0], %0 {strides = array<i32>} : memref<28x8xf32, #tpu.memory_space<vmem>>, vector<3x8xf32>,
    %c0_1 = arith.constant 0 : index
    %c0_2 = arith.constant 0 : index
    %c0_3 = arith.constant 0 : index
    %2 = vector.load %arg2[%c0_1, %c0_2, %c0_3] : memref<1x25x8xbf16, #tpu.memory_space<vmem>>, vector<1x25x8xbf16>
    %3 = vector.shape_cast %2 : vector<1x25x8xbf16> to vector<25x8xbf16>
    %4 = arith.extf %3 : vector<25x8xbf16> to vector<25x8xf32>
    %c3 = arith.constant 3 : index
    %c0_4 = arith.constant 0 : index
    %5 = vector.load %arg6[%c3, %c0_4] : memref<28x8xf32, #tpu.memory_space<vmem>>, vector<25x8xf32>
    tpu.vector_store %arg6[%c3, %c0_4], %4 {strides = array<i32>} : memref<28x8xf32, #tpu.memory_space<vmem>>, vector<25x8xf32>,
    %c0_5 = arith.constant 0 : index
    %c0_6 = arith.constant 0 : index
    %6 = vector.load %arg3[%c0_5, %c0_6] : memref<4x8xf32, #tpu.memory_space<vmem>>, vector<4x8xf32>
    %c0_7 = arith.constant 0 : index
    %c0_8 = arith.constant 0 : index
    %7 = vector.load %arg6[%c0_7, %c0_8] : memref<28x8xf32, #tpu.memory_space<vmem>>, vector<25x8xf32>
    %8 = vector.extract_strided_slice %6 {offsets = [0, 0], sizes = [1, 8], strides = [1, 1]} : vector<4x8xf32> to vector<1x8xf32>
    %9 = vector.shape_cast %8 : vector<1x8xf32> to vector<8xf32>
    %10 = vector.shape_cast %9 : vector<8xf32> to vector<1x8xf32>
    %11 = vector.broadcast %10 : vector<1x8xf32> to vector<25x8xf32>
    %12 = arith.mulf %7, %11 : vector<25x8xf32>
    %c1 = arith.constant 1 : index
    %c0_9 = arith.constant 0 : index
    %13 = vector.load %arg6[%c1, %c0_9] : memref<28x8xf32, #tpu.memory_space<vmem>>, vector<25x8xf32>
    %14 = vector.extract_strided_slice %6 {offsets = [1, 0], sizes = [1, 8], strides = [1, 1]} : vector<4x8xf32> to vector<1x8xf32>
    %15 = vector.shape_cast %14 : vector<1x8xf32> to vector<8xf32>
    %16 = vector.shape_cast %15 : vector<8xf32> to vector<1x8xf32>
    %17 = vector.broadcast %16 : vector<1x8xf32> to vector<25x8xf32>
    %18 = arith.mulf %13, %17 : vector<25x8xf32>
    %19 = arith.addf %12, %18 : vector<25x8xf32>
    %c2 = arith.constant 2 : index
    %c0_10 = arith.constant 0 : index
    %20 = vector.load %arg6[%c2, %c0_10] : memref<28x8xf32, #tpu.memory_space<vmem>>, vector<25x8xf32>
    %21 = vector.extract_strided_slice %6 {offsets = [2, 0], sizes = [1, 8], strides = [1, 1]} : vector<4x8xf32> to vector<1x8xf32>
    %22 = vector.shape_cast %21 : vector<1x8xf32> to vector<8xf32>
    %23 = vector.shape_cast %22 : vector<8xf32> to vector<1x8xf32>
    %24 = vector.broadcast %23 : vector<1x8xf32> to vector<25x8xf32>
    %25 = arith.mulf %20, %24 : vector<25x8xf32>
    %26 = arith.addf %19, %25 : vector<25x8xf32>
    %c3_11 = arith.constant 3 : index
    %c0_12 = arith.constant 0 : index
    %27 = vector.load %arg6[%c3_11, %c0_12] : memref<28x8xf32, #tpu.memory_space<vmem>>, vector<25x8xf32>
    %28 = vector.extract_strided_slice %6 {offsets = [3, 0], sizes = [1, 8], strides = [1, 1]} : vector<4x8xf32> to vector<1x8xf32>
    %29 = vector.shape_cast %28 : vector<1x8xf32> to vector<8xf32>
    %30 = vector.shape_cast %29 : vector<8xf32> to vector<1x8xf32>
    %31 = vector.broadcast %30 : vector<1x8xf32> to vector<25x8xf32>
    %32 = arith.mulf %27, %31 : vector<25x8xf32>
    %33 = arith.addf %26, %32 : vector<25x8xf32>
    %c0_13 = arith.constant 0 : index
    %c0_14 = arith.constant 0 : index
    %34 = vector.load %arg4[%c0_13, %c0_14] : memref<1x8xf32, #tpu.memory_space<vmem>>, vector<1x8xf32>
    %35 = vector.broadcast %34 : vector<1x8xf32> to vector<25x8xf32>
    %36 = arith.addf %33, %35 : vector<25x8xf32>
    %37 = arith.negf %36 : vector<25x8xf32>
    %38 = math.exp %37 : vector<25x8xf32>
    %cst_15 = arith.constant 1.000000e+00 : f32
    %39 = vector.broadcast %cst_15 : f32 to vector<25x8xf32>
    %40 = arith.addf %39, %38 : vector<25x8xf32>
    %41 = arith.divf %39, %40 : vector<25x8xf32>
    %42 = arith.mulf %36, %41 : vector<25x8xf32>
    %43 = arith.truncf %42 : vector<25x8xf32> to vector<25x8xbf16>
    %c0_16 = arith.constant 0 : index
    %c0_17 = arith.constant 0 : index
    %c0_18 = arith.constant 0 : index
    %44 = vector.load %arg5[%c0_16, %c0_17, %c0_18] : memref<1x25x8xbf16, #tpu.memory_space<vmem>>, vector<1x25x8xbf16>
    %45 = vector.shape_cast %44 : vector<1x25x8xbf16> to vector<25x8xbf16>
    %46 = vector.shape_cast %43 : vector<25x8xbf16> to vector<1x25x8xbf16>
    tpu.vector_store %arg5[%c0_16, %c0_17, %c0_18], %46 {strides = array<i32>} : memref<1x25x8xbf16, #tpu.memory_space<vmem>>, vector<1x25x8xbf16>,
    return
  }
  func.func @transform_0(%arg0: i32, %arg1: i32) -> (i32, i32, i32) {
    %c0_i32 = arith.constant 0 : i32
    %c0_i32_0 = arith.constant 0 : i32
    return %arg0, %c0_i32, %arg1 : i32, i32, i32
  }
  func.func @transform_1(%arg0: i32, %arg1: i32) -> (i32, i32) {
    %c0_i32 = arith.constant 0 : i32
    %c0_i32_0 = arith.constant 0 : i32
    return %c0_i32, %arg1 : i32, i32
  }
  func.func @transform_2(%arg0: i32, %arg1: i32) -> (i32, i32) {
    %c0_i32 = arith.constant 0 : i32
    %c0_i32_0 = arith.constant 0 : i32
    return %c0_i32, %arg1 : i32, i32
  }
  func.func @transform_3(%arg0: i32, %arg1: i32) -> (i32, i32, i32) {
    %c0_i32 = arith.constant 0 : i32
    %c0_i32_0 = arith.constant 0 : i32
    return %arg0, %c0_i32, %arg1 : i32, i32, i32
  }
}

module attributes {stable_mosaic.version = 11 : i64} {
  func.func @_selective_scan_kernel(%arg0: i32, %arg1: i32, %arg2: memref<1x25x8xbf16, #tpu.memory_space<vmem>>, %arg3: memref<1x25x8xbf16, #tpu.memory_space<vmem>>, %arg4: memref<8x8xbf16, #tpu.memory_space<vmem>>, %arg5: memref<1x8xf32, #tpu.memory_space<vmem>>, %arg6: memref<8x2xbf16, #tpu.memory_space<vmem>>, %arg7: memref<8x2xbf16, #tpu.memory_space<vmem>>, %arg8: memref<2x8xf32, #tpu.memory_space<vmem>>, %arg9: memref<1x8xf32, #tpu.memory_space<vmem>>, %arg10: memref<1x25x8xbf16, #tpu.memory_space<vmem>>, %arg11: memref<2x8xf32, #tpu.memory_space<vmem>>, %arg12: memref<50x8xf32, #tpu.memory_space<vmem>>, %arg13: memref<50x8xf32, #tpu.memory_space<vmem>>, %arg14: memref<50x8xf32, #tpu.memory_space<vmem>>) attributes {dimension_semantics = [#tpu.dimension_semantics<parallel>, #tpu.dimension_semantics<arbitrary>], iteration_bounds = array<i64: 8, 1>, scalar_prefetch = 0 : i64, scratch_operands = 4 : i64, tpu.core_type = #tpu.core_type<tc>, window_params = [{transform_indices = @transform_0, window_bounds = array<i64: 1, 25, 8>}, {transform_indices = @transform_1, window_bounds = array<i64: 1, 25, 8>}, {pipeline_mode = #tpu.pipeline_mode<synchronous>, transform_indices = @transform_2, window_bounds = array<i64: 8, 8>}, {pipeline_mode = #tpu.pipeline_mode<synchronous>, transform_indices = @transform_3, window_bounds = array<i64: 1, 8>}, {pipeline_mode = #tpu.pipeline_mode<synchronous>, transform_indices = @transform_4, window_bounds = array<i64: 8, 2>}, {pipeline_mode = #tpu.pipeline_mode<synchronous>, transform_indices = @transform_5, window_bounds = array<i64: 8, 2>}, {pipeline_mode = #tpu.pipeline_mode<synchronous>, transform_indices = @transform_6, window_bounds = array<i64: 2, 8>}, {pipeline_mode = #tpu.pipeline_mode<synchronous>, transform_indices = @transform_7, window_bounds = array<i64: 1, 8>}, {transform_indices = @transform_8, window_bounds = array<i64: 1, 25, 8>}]} {
    %c0_i32 = arith.constant 0 : i32
    %0 = arith.cmpi eq, %arg1, %c0_i32 : i32
    %1 = arith.extui %0 : i1 to i32
    %c0_i32_0 = arith.constant 0 : i32
    %2 = arith.cmpi ne, %1, %c0_i32_0 : i32
    scf.if %2 {
      %cst_44 = arith.constant 0.000000e+00 : f32
      %73 = vector.broadcast %cst_44 : f32 to vector<2x8xf32>
      %c0_45 = arith.constant 0 : index
      %c0_46 = arith.constant 0 : index
      %74 = vector.load %arg11[%c0_45, %c0_46] : memref<2x8xf32, #tpu.memory_space<vmem>>, vector<2x8xf32>
      tpu.vector_store %arg11[%c0_45, %c0_46], %73 {strides = array<i32>} : memref<2x8xf32, #tpu.memory_space<vmem>>, vector<2x8xf32>,
    } else {
    }
    %c0 = arith.constant 0 : index
    %c0_1 = arith.constant 0 : index
    %c0_2 = arith.constant 0 : index
    %3 = vector.load %arg2[%c0, %c0_1, %c0_2] : memref<1x25x8xbf16, #tpu.memory_space<vmem>>, vector<1x25x8xbf16>
    %4 = vector.shape_cast %3 : vector<1x25x8xbf16> to vector<25x8xbf16>
    %5 = arith.extf %4 : vector<25x8xbf16> to vector<25x8xf32>
    %c0_3 = arith.constant 0 : index
    %c0_4 = arith.constant 0 : index
    %c0_5 = arith.constant 0 : index
    %6 = vector.load %arg3[%c0_3, %c0_4, %c0_5] : memref<1x25x8xbf16, #tpu.memory_space<vmem>>, vector<1x25x8xbf16>
    %7 = vector.shape_cast %6 : vector<1x25x8xbf16> to vector<25x8xbf16>
    %8 = arith.extf %7 : vector<25x8xbf16> to vector<25x8xf32>
    %c0_6 = arith.constant 0 : index
    %c0_7 = arith.constant 0 : index
    %9 = vector.load %arg4[%c0_6, %c0_7] : memref<8x8xbf16, #tpu.memory_space<vmem>>, vector<8x8xbf16>
    %cst = arith.constant dense<0.000000e+00> : vector<25x8xf32>
    %10 = tpu.matmul %4, %9, %cst {dimension_numbers = #tpu.dot_dimension_numbers<[1], [0], [0], [1], [0, 0, 1, 1], [], []>} : vector<25x8xbf16>, vector<8x8xbf16>, vector<25x8xf32> -> vector<25x8xf32>
    %c0_8 = arith.constant 0 : index
    %c0_9 = arith.constant 0 : index
    %11 = vector.load %arg5[%c0_8, %c0_9] : memref<1x8xf32, #tpu.memory_space<vmem>>, vector<1x8xf32>
    %12 = vector.broadcast %11 : vector<1x8xf32> to vector<25x8xf32>
    %13 = arith.addf %10, %12 : vector<25x8xf32>
    %cst_10 = arith.constant 0.000000e+00 : f32
    %14 = vector.broadcast %cst_10 : f32 to vector<25x8xf32>
    %15 = arith.maximumf %13, %14 : vector<25x8xf32>
    %16 = math.absf %13 : vector<25x8xf32>
    %cst_11 = arith.constant 0.000000e+00 : f32
    %17 = vector.broadcast %cst_11 : f32 to vector<25x8xf32>
    %18 = arith.subf %17, %16 : vector<25x8xf32>
    %19 = math.exp %18 : vector<25x8xf32>
    %20 = math.log1p %19 : vector<25x8xf32>
    %21 = arith.addf %15, %20 : vector<25x8xf32>
    %c0_12 = arith.constant 0 : index
    %c0_13 = arith.constant 0 : index
    %22 = vector.load %arg6[%c0_12, %c0_13] : memref<8x2xbf16, #tpu.memory_space<vmem>>, vector<8x2xbf16>
    %cst_14 = arith.constant dense<0.000000e+00> : vector<25x2xf32>
    %23 = tpu.matmul %4, %22, %cst_14 {dimension_numbers = #tpu.dot_dimension_numbers<[1], [0], [0], [1], [0, 0, 1, 1], [], []>} : vector<25x8xbf16>, vector<8x2xbf16>, vector<25x2xf32> -> vector<25x2xf32>
    %c0_15 = arith.constant 0 : index
    %c0_16 = arith.constant 0 : index
    %24 = vector.load %arg7[%c0_15, %c0_16] : memref<8x2xbf16, #tpu.memory_space<vmem>>, vector<8x2xbf16>
    %cst_17 = arith.constant dense<0.000000e+00> : vector<25x2xf32>
    %25 = tpu.matmul %4, %24, %cst_17 {dimension_numbers = #tpu.dot_dimension_numbers<[1], [0], [0], [1], [0, 0, 1, 1], [], []>} : vector<25x8xbf16>, vector<8x2xbf16>, vector<25x2xf32> -> vector<25x2xf32>
    %26 = arith.mulf %21, %5 : vector<25x8xf32>
    %c0_18 = arith.constant 0 : index
    %c0_19 = arith.constant 0 : index
    %27 = vector.load %arg8[%c0_18, %c0_19] : memref<2x8xf32, #tpu.memory_space<vmem>>, vector<1x8xf32>
    %28 = vector.broadcast %27 : vector<1x8xf32> to vector<25x8xf32>
    %29 = arith.mulf %21, %28 : vector<25x8xf32>
    %30 = math.exp %29 : vector<25x8xf32>
    %c0_20 = arith.constant 0 : index
    %c0_21 = arith.constant 0 : index
    %31 = vector.load %arg12[%c0_20, %c0_21] : memref<50x8xf32, #tpu.memory_space<vmem>>, vector<25x8xf32>
    tpu.vector_store %arg12[%c0_20, %c0_21], %30 {strides = array<i32>} : memref<50x8xf32, #tpu.memory_space<vmem>>, vector<25x8xf32>,
    %32 = vector.extract_strided_slice %23 {offsets = [0, 0], sizes = [25, 1], strides = [1, 1]} : vector<25x2xf32> to vector<25x1xf32>
    %33 = vector.broadcast %32 : vector<25x1xf32> to vector<25x8xf32>
    %34 = arith.mulf %26, %33 : vector<25x8xf32>
    %c0_22 = arith.constant 0 : index
    %c0_23 = arith.constant 0 : index
    %35 = vector.load %arg13[%c0_22, %c0_23] : memref<50x8xf32, #tpu.memory_space<vmem>>, vector<25x8xf32>
    tpu.vector_store %arg13[%c0_22, %c0_23], %34 {strides = array<i32>} : memref<50x8xf32, #tpu.memory_space<vmem>>, vector<25x8xf32>,
    %c1 = arith.constant 1 : index
    %c0_24 = arith.constant 0 : index
    %36 = vector.load %arg8[%c1, %c0_24] : memref<2x8xf32, #tpu.memory_space<vmem>>, vector<1x8xf32>
    %37 = vector.broadcast %36 : vector<1x8xf32> to vector<25x8xf32>
    %38 = arith.mulf %21, %37 : vector<25x8xf32>
    %39 = math.exp %38 : vector<25x8xf32>
    %c25 = arith.constant 25 : index
    %c0_25 = arith.constant 0 : index
    %40 = vector.load %arg12[%c25, %c0_25] : memref<50x8xf32, #tpu.memory_space<vmem>>, vector<25x8xf32>
    tpu.vector_store %arg12[%c25, %c0_25], %39 {strides = array<i32>} : memref<50x8xf32, #tpu.memory_space<vmem>>, vector<25x8xf32>,
    %41 = vector.extract_strided_slice %23 {offsets = [0, 1], sizes = [25, 1], strides = [1, 1]} : vector<25x2xf32> to vector<25x1xf32>
    %42 = vector.broadcast %41 : vector<25x1xf32> to vector<25x8xf32>
    %43 = arith.mulf %26, %42 : vector<25x8xf32>
    %c25_26 = arith.constant 25 : index
    %c0_27 = arith.constant 0 : index
    %44 = vector.load %arg13[%c25_26, %c0_27] : memref<50x8xf32, #tpu.memory_space<vmem>>, vector<25x8xf32>
    tpu.vector_store %arg13[%c25_26, %c0_27], %43 {strides = array<i32>} : memref<50x8xf32, #tpu.memory_space<vmem>>, vector<25x8xf32>,
    %c0_28 = arith.constant 0 : index
    %c0_29 = arith.constant 0 : index
    %45 = vector.load %arg11[%c0_28, %c0_29] : memref<2x8xf32, #tpu.memory_space<vmem>>, vector<2x8xf32>
    %c0_i32_30 = arith.constant 0 : i32
    %c25_i32 = arith.constant 25 : i32
    %46 = arith.addi %c0_i32_30, %c25_i32 : i32
    %c1_i32 = arith.constant 1 : i32
    %47 = scf.for %arg15 = %c0_i32_30 to %46 step %c1_i32 iter_args(%arg16 = %45) -> (vector<2x8xf32>)  : i32 {
      %73 = arith.index_cast %arg15 : i32 to index
      %c0_44 = arith.constant 0 : index
      %74 = tpu.strided_load %arg12[%73, %c0_44] {strides = array<i32: 25, 1>} : memref<50x8xf32, #tpu.memory_space<vmem>>, vector<2x8xf32>
      %75 = arith.index_cast %arg15 : i32 to index
      %c0_45 = arith.constant 0 : index
      %76 = tpu.strided_load %arg13[%75, %c0_45] {strides = array<i32: 25, 1>} : memref<50x8xf32, #tpu.memory_space<vmem>>, vector<2x8xf32>
      %77 = arith.mulf %74, %arg16 : vector<2x8xf32>
      %78 = arith.addf %77, %76 : vector<2x8xf32>
      %c2_i32 = arith.constant 2 : i32
      %79 = arith.muli %arg15, %c2_i32 : i32
      %80 = tpu.assume_multiple %79, 2 : i32
      %81 = arith.index_cast %80 : i32 to index
      %c0_46 = arith.constant 0 : index
      %82 = vector.load %arg14[%81, %c0_46] : memref<50x8xf32, #tpu.memory_space<vmem>>, vector<2x8xf32>
      tpu.vector_store %arg14[%81, %c0_46], %78 {strides = array<i32>} : memref<50x8xf32, #tpu.memory_space<vmem>>, vector<2x8xf32>,
      scf.yield %78 : vector<2x8xf32>
    }
    %c25_i32_31 = arith.constant 25 : i32
    %c0_32 = arith.constant 0 : index
    %c0_33 = arith.constant 0 : index
    %48 = vector.load %arg11[%c0_32, %c0_33] : memref<2x8xf32, #tpu.memory_space<vmem>>, vector<2x8xf32>
    tpu.vector_store %arg11[%c0_32, %c0_33], %47 {strides = array<i32>} : memref<2x8xf32, #tpu.memory_space<vmem>>, vector<2x8xf32>,
    %c0_34 = arith.constant 0 : index
    %c0_35 = arith.constant 0 : index
    %49 = tpu.strided_load %arg14[%c0_34, %c0_35] {strides = array<i32: 2, 1>} : memref<50x8xf32, #tpu.memory_space<vmem>>, vector<25x8xf32>
    %50 = vector.extract_strided_slice %25 {offsets = [0, 0], sizes = [25, 1], strides = [1, 1]} : vector<25x2xf32> to vector<25x1xf32>
    %51 = vector.broadcast %50 : vector<25x1xf32> to vector<25x8xf32>
    %52 = arith.mulf %49, %51 : vector<25x8xf32>
    %c1_36 = arith.constant 1 : index
    %c0_37 = arith.constant 0 : index
    %53 = tpu.strided_load %arg14[%c1_36, %c0_37] {strides = array<i32: 2, 1>} : memref<50x8xf32, #tpu.memory_space<vmem>>, vector<25x8xf32>
    %54 = vector.extract_strided_slice %25 {offsets = [0, 1], sizes = [25, 1], strides = [1, 1]} : vector<25x2xf32> to vector<25x1xf32>
    %55 = vector.broadcast %54 : vector<25x1xf32> to vector<25x8xf32>
    %56 = arith.mulf %53, %55 : vector<25x8xf32>
    %57 = arith.addf %52, %56 : vector<25x8xf32>
    %c0_38 = arith.constant 0 : index
    %c0_39 = arith.constant 0 : index
    %58 = vector.load %arg9[%c0_38, %c0_39] : memref<1x8xf32, #tpu.memory_space<vmem>>, vector<1x8xf32>
    %59 = vector.broadcast %58 : vector<1x8xf32> to vector<25x8xf32>
    %60 = arith.mulf %59, %5 : vector<25x8xf32>
    %61 = arith.addf %57, %60 : vector<25x8xf32>
    %62 = arith.negf %8 : vector<25x8xf32>
    %63 = math.exp %62 : vector<25x8xf32>
    %cst_40 = arith.constant 1.000000e+00 : f32
    %64 = vector.broadcast %cst_40 : f32 to vector<25x8xf32>
    %65 = arith.addf %64, %63 : vector<25x8xf32>
    %66 = arith.divf %64, %65 : vector<25x8xf32>
    %67 = arith.mulf %8, %66 : vector<25x8xf32>
    %68 = arith.mulf %61, %67 : vector<25x8xf32>
    %69 = arith.truncf %68 : vector<25x8xf32> to vector<25x8xbf16>
    %c0_41 = arith.constant 0 : index
    %c0_42 = arith.constant 0 : index
    %c0_43 = arith.constant 0 : index
    %70 = vector.load %arg10[%c0_41, %c0_42, %c0_43] : memref<1x25x8xbf16, #tpu.memory_space<vmem>>, vector<1x25x8xbf16>
    %71 = vector.shape_cast %70 : vector<1x25x8xbf16> to vector<25x8xbf16>
    %72 = vector.shape_cast %69 : vector<25x8xbf16> to vector<1x25x8xbf16>
    tpu.vector_store %arg10[%c0_41, %c0_42, %c0_43], %72 {strides = array<i32>} : memref<1x25x8xbf16, #tpu.memory_space<vmem>>, vector<1x25x8xbf16>,
    return
  }
  func.func @transform_0(%arg0: i32, %arg1: i32) -> (i32, i32, i32) {
    %c0_i32 = arith.constant 0 : i32
    %c0_i32_0 = arith.constant 0 : i32
    return %arg0, %arg1, %c0_i32 : i32, i32, i32
  }
  func.func @transform_1(%arg0: i32, %arg1: i32) -> (i32, i32, i32) {
    %c0_i32 = arith.constant 0 : i32
    %c0_i32_0 = arith.constant 0 : i32
    return %arg0, %arg1, %c0_i32 : i32, i32, i32
  }
  func.func @transform_2(%arg0: i32, %arg1: i32) -> (i32, i32) {
    %c0_i32 = arith.constant 0 : i32
    %c0_i32_0 = arith.constant 0 : i32
    %c0_i32_1 = arith.constant 0 : i32
    return %c0_i32, %c0_i32_0 : i32, i32
  }
  func.func @transform_3(%arg0: i32, %arg1: i32) -> (i32, i32) {
    %c0_i32 = arith.constant 0 : i32
    %c0_i32_0 = arith.constant 0 : i32
    %c0_i32_1 = arith.constant 0 : i32
    return %c0_i32, %c0_i32_0 : i32, i32
  }
  func.func @transform_4(%arg0: i32, %arg1: i32) -> (i32, i32) {
    %c0_i32 = arith.constant 0 : i32
    %c0_i32_0 = arith.constant 0 : i32
    %c0_i32_1 = arith.constant 0 : i32
    return %c0_i32, %c0_i32_0 : i32, i32
  }
  func.func @transform_5(%arg0: i32, %arg1: i32) -> (i32, i32) {
    %c0_i32 = arith.constant 0 : i32
    %c0_i32_0 = arith.constant 0 : i32
    %c0_i32_1 = arith.constant 0 : i32
    return %c0_i32, %c0_i32_0 : i32, i32
  }
  func.func @transform_6(%arg0: i32, %arg1: i32) -> (i32, i32) {
    %c0_i32 = arith.constant 0 : i32
    %c0_i32_0 = arith.constant 0 : i32
    %c0_i32_1 = arith.constant 0 : i32
    return %c0_i32, %c0_i32_0 : i32, i32
  }
  func.func @transform_7(%arg0: i32, %arg1: i32) -> (i32, i32) {
    %c0_i32 = arith.constant 0 : i32
    %c0_i32_0 = arith.constant 0 : i32
    %c0_i32_1 = arith.constant 0 : i32
    return %c0_i32, %c0_i32_0 : i32, i32
  }
  func.func @transform_8(%arg0: i32, %arg1: i32) -> (i32, i32, i32) {
    %c0_i32 = arith.constant 0 : i32
    %c0_i32_0 = arith.constant 0 : i32
    return %arg0, %arg1, %c0_i32 : i32, i32, i32
  }
}

module attributes {stable_mosaic.version = 11 : i64} {
  func.func @_matmul_kernel(%arg0: i32, %arg1: i32, %arg2: i32, %arg3: memref<200x8xbf16, #tpu.memory_space<vmem>>, %arg4: memref<8x8xbf16, #tpu.memory_space<vmem>>, %arg5: memref<200x8xf32, #tpu.memory_space<vmem>>, %arg6: memref<200x8xf32, #tpu.memory_space<vmem>>) attributes {dimension_semantics = [#tpu.dimension_semantics<parallel>, #tpu.dimension_semantics<parallel>, #tpu.dimension_semantics<arbitrary>], iteration_bounds = array<i64: 1, 1, 1>, scalar_prefetch = 0 : i64, scratch_operands = 1 : i64, tpu.core_type = #tpu.core_type<tc>, window_params = [{transform_indices = @transform_0, window_bounds = array<i64: 200, 8>}, {transform_indices = @transform_1, window_bounds = array<i64: 8, 8>}, {transform_indices = @transform_2, window_bounds = array<i64: 200, 8>}]} {
    %c0_i32 = arith.constant 0 : i32
    %0 = arith.cmpi eq, %arg2, %c0_i32 : i32
    %1 = arith.extui %0 : i1 to i32
    %c0_i32_0 = arith.constant 0 : i32
    %2 = arith.cmpi ne, %1, %c0_i32_0 : i32
    scf.if %2 {
      %cst_10 = arith.constant 0.000000e+00 : f32
      %12 = vector.broadcast %cst_10 : f32 to vector<200x8xf32>
      %c0_11 = arith.constant 0 : index
      %c0_12 = arith.constant 0 : index
      %13 = vector.load %arg6[%c0_11, %c0_12] : memref<200x8xf32, #tpu.memory_space<vmem>>, vector<200x8xf32>
      tpu.vector_store %arg6[%c0_11, %c0_12], %12 {strides = array<i32>} : memref<200x8xf32, #tpu.memory_space<vmem>>, vector<200x8xf32>,
    } else {
    }
    %c0 = arith.constant 0 : index
    %c0_1 = arith.constant 0 : index
    %3 = vector.load %arg6[%c0, %c0_1] : memref<200x8xf32, #tpu.memory_space<vmem>>, vector<200x8xf32>
    %c0_2 = arith.constant 0 : index
    %c0_3 = arith.constant 0 : index
    %4 = vector.load %arg3[%c0_2, %c0_3] : memref<200x8xbf16, #tpu.memory_space<vmem>>, vector<200x8xbf16>
    %c0_4 = arith.constant 0 : index
    %c0_5 = arith.constant 0 : index
    %5 = vector.load %arg4[%c0_4, %c0_5] : memref<8x8xbf16, #tpu.memory_space<vmem>>, vector<8x8xbf16>
    %cst = arith.constant dense<0.000000e+00> : vector<200x8xf32>
    %6 = tpu.matmul %4, %5, %cst {dimension_numbers = #tpu.dot_dimension_numbers<[1], [0], [0], [1], [0, 0, 1, 1], [], []>} : vector<200x8xbf16>, vector<8x8xbf16>, vector<200x8xf32> -> vector<200x8xf32>
    %7 = arith.addf %3, %6 : vector<200x8xf32>
    %c0_6 = arith.constant 0 : index
    %c0_7 = arith.constant 0 : index
    %8 = vector.load %arg6[%c0_6, %c0_7] : memref<200x8xf32, #tpu.memory_space<vmem>>, vector<200x8xf32>
    tpu.vector_store %arg6[%c0_6, %c0_7], %7 {strides = array<i32>} : memref<200x8xf32, #tpu.memory_space<vmem>>, vector<200x8xf32>,
    %c0_i32_8 = arith.constant 0 : i32
    %9 = arith.cmpi eq, %arg2, %c0_i32_8 : i32
    %10 = arith.extui %9 : i1 to i32
    %c0_i32_9 = arith.constant 0 : i32
    %11 = arith.cmpi ne, %10, %c0_i32_9 : i32
    scf.if %11 {
      %c0_10 = arith.constant 0 : index
      %c0_11 = arith.constant 0 : index
      %12 = vector.load %arg6[%c0_10, %c0_11] : memref<200x8xf32, #tpu.memory_space<vmem>>, vector<200x8xf32>
      %c0_12 = arith.constant 0 : index
      %c0_13 = arith.constant 0 : index
      %13 = vector.load %arg5[%c0_12, %c0_13] : memref<200x8xf32, #tpu.memory_space<vmem>>, vector<200x8xf32>
      tpu.vector_store %arg5[%c0_12, %c0_13], %12 {strides = array<i32>} : memref<200x8xf32, #tpu.memory_space<vmem>>, vector<200x8xf32>,
    } else {
    }
    return
  }
  func.func @transform_0(%arg0: i32, %arg1: i32, %arg2: i32) -> (i32, i32) {
    %c0_i32 = arith.constant 0 : i32
    return %arg0, %arg2 : i32, i32
  }
  func.func @transform_1(%arg0: i32, %arg1: i32, %arg2: i32) -> (i32, i32) {
    %c0_i32 = arith.constant 0 : i32
    return %arg2, %arg1 : i32, i32
  }
  func.func @transform_2(%arg0: i32, %arg1: i32, %arg2: i32) -> (i32, i32) {
    %c0_i32 = arith.constant 0 : i32
    return %arg0, %arg1 : i32, i32
  }
}

module attributes {stable_mosaic.version = 11 : i64} {
  func.func @_dwconv3x3_kernel(%arg0: i32, %arg1: i32, %arg2: memref<1x10x10x8xbf16, #tpu.memory_space<vmem>>, %arg3: memref<3x3x8xf32, #tpu.memory_space<vmem>>, %arg4: memref<1x10x10x8xbf16, #tpu.memory_space<vmem>>, %arg5: memref<12x12x8xf32, #tpu.memory_space<vmem>>) attributes {dimension_semantics = [#tpu.dimension_semantics<parallel>, #tpu.dimension_semantics<parallel>], iteration_bounds = array<i64: 2, 1>, scalar_prefetch = 0 : i64, scratch_operands = 1 : i64, tpu.core_type = #tpu.core_type<tc>, window_params = [{transform_indices = @transform_0, window_bounds = array<i64: 1, 10, 10, 8>}, {transform_indices = @transform_1, window_bounds = array<i64: 3, 3, 8>}, {transform_indices = @transform_2, window_bounds = array<i64: 1, 10, 10, 8>}]} {
    %cst = arith.constant 0.000000e+00 : f32
    %0 = vector.broadcast %cst : f32 to vector<12x12x8xf32>
    %c0 = arith.constant 0 : index
    %c0_0 = arith.constant 0 : index
    %c0_1 = arith.constant 0 : index
    %1 = vector.load %arg5[%c0, %c0_0, %c0_1] : memref<12x12x8xf32, #tpu.memory_space<vmem>>, vector<12x12x8xf32>
    tpu.vector_store %arg5[%c0, %c0_0, %c0_1], %0 {strides = array<i32>} : memref<12x12x8xf32, #tpu.memory_space<vmem>>, vector<12x12x8xf32>,
    %c0_2 = arith.constant 0 : index
    %c0_3 = arith.constant 0 : index
    %c0_4 = arith.constant 0 : index
    %c0_5 = arith.constant 0 : index
    %2 = vector.load %arg2[%c0_2, %c0_3, %c0_4, %c0_5] : memref<1x10x10x8xbf16, #tpu.memory_space<vmem>>, vector<1x10x10x8xbf16>
    %3 = vector.shape_cast %2 : vector<1x10x10x8xbf16> to vector<10x10x8xbf16>
    %4 = arith.extf %3 : vector<10x10x8xbf16> to vector<10x10x8xf32>
    %c1 = arith.constant 1 : index
    %c1_6 = arith.constant 1 : index
    %c0_7 = arith.constant 0 : index
    %5 = vector.load %arg5[%c1, %c1_6, %c0_7] : memref<12x12x8xf32, #tpu.memory_space<vmem>>, vector<10x10x8xf32>
    tpu.vector_store %arg5[%c1, %c1_6, %c0_7], %4 {strides = array<i32>} : memref<12x12x8xf32, #tpu.memory_space<vmem>>, vector<10x10x8xf32>,
    %c0_8 = arith.constant 0 : index
    %c0_9 = arith.constant 0 : index
    %c0_10 = arith.constant 0 : index
    %6 = vector.load %arg3[%c0_8, %c0_9, %c0_10] : memref<3x3x8xf32, #tpu.memory_space<vmem>>, vector<3x3x8xf32>
    %c0_11 = arith.constant 0 : index
    %c0_12 = arith.constant 0 : index
    %c0_13 = arith.constant 0 : index
    %7 = vector.load %arg5[%c0_11, %c0_12, %c0_13] : memref<12x12x8xf32, #tpu.memory_space<vmem>>, vector<10x10x8xf32>
    %8 = vector.extract_strided_slice %6 {offsets = [0, 0, 0], sizes = [1, 1, 8], strides = [1, 1, 1]} : vector<3x3x8xf32> to vector<1x1x8xf32>
    %9 = vector.shape_cast %8 : vector<1x1x8xf32> to vector<8xf32>
    %10 = vector.shape_cast %9 : vector<8xf32> to vector<1x1x8xf32>
    %11 = vector.broadcast %10 : vector<1x1x8xf32> to vector<10x10x8xf32>
    %12 = arith.mulf %7, %11 : vector<10x10x8xf32>
    %c0_14 = arith.constant 0 : index
    %c1_15 = arith.constant 1 : index
    %c0_16 = arith.constant 0 : index
    %13 = vector.load %arg5[%c0_14, %c1_15, %c0_16] : memref<12x12x8xf32, #tpu.memory_space<vmem>>, vector<10x10x8xf32>
    %14 = vector.extract_strided_slice %6 {offsets = [0, 1, 0], sizes = [1, 1, 8], strides = [1, 1, 1]} : vector<3x3x8xf32> to vector<1x1x8xf32>
    %15 = vector.shape_cast %14 : vector<1x1x8xf32> to vector<8xf32>
    %16 = vector.shape_cast %15 : vector<8xf32> to vector<1x1x8xf32>
    %17 = vector.broadcast %16 : vector<1x1x8xf32> to vector<10x10x8xf32>
    %18 = arith.mulf %13, %17 : vector<10x10x8xf32>
    %19 = arith.addf %12, %18 : vector<10x10x8xf32>
    %c0_17 = arith.constant 0 : index
    %c2 = arith.constant 2 : index
    %c0_18 = arith.constant 0 : index
    %20 = vector.load %arg5[%c0_17, %c2, %c0_18] : memref<12x12x8xf32, #tpu.memory_space<vmem>>, vector<10x10x8xf32>
    %21 = vector.extract_strided_slice %6 {offsets = [0, 2, 0], sizes = [1, 1, 8], strides = [1, 1, 1]} : vector<3x3x8xf32> to vector<1x1x8xf32>
    %22 = vector.shape_cast %21 : vector<1x1x8xf32> to vector<8xf32>
    %23 = vector.shape_cast %22 : vector<8xf32> to vector<1x1x8xf32>
    %24 = vector.broadcast %23 : vector<1x1x8xf32> to vector<10x10x8xf32>
    %25 = arith.mulf %20, %24 : vector<10x10x8xf32>
    %26 = arith.addf %19, %25 : vector<10x10x8xf32>
    %c1_19 = arith.constant 1 : index
    %c0_20 = arith.constant 0 : index
    %c0_21 = arith.constant 0 : index
    %27 = vector.load %arg5[%c1_19, %c0_20, %c0_21] : memref<12x12x8xf32, #tpu.memory_space<vmem>>, vector<10x10x8xf32>
    %28 = vector.extract_strided_slice %6 {offsets = [1, 0, 0], sizes = [1, 1, 8], strides = [1, 1, 1]} : vector<3x3x8xf32> to vector<1x1x8xf32>
    %29 = vector.shape_cast %28 : vector<1x1x8xf32> to vector<8xf32>
    %30 = vector.shape_cast %29 : vector<8xf32> to vector<1x1x8xf32>
    %31 = vector.broadcast %30 : vector<1x1x8xf32> to vector<10x10x8xf32>
    %32 = arith.mulf %27, %31 : vector<10x10x8xf32>
    %33 = arith.addf %26, %32 : vector<10x10x8xf32>
    %c1_22 = arith.constant 1 : index
    %c1_23 = arith.constant 1 : index
    %c0_24 = arith.constant 0 : index
    %34 = vector.load %arg5[%c1_22, %c1_23, %c0_24] : memref<12x12x8xf32, #tpu.memory_space<vmem>>, vector<10x10x8xf32>
    %35 = vector.extract_strided_slice %6 {offsets = [1, 1, 0], sizes = [1, 1, 8], strides = [1, 1, 1]} : vector<3x3x8xf32> to vector<1x1x8xf32>
    %36 = vector.shape_cast %35 : vector<1x1x8xf32> to vector<8xf32>
    %37 = vector.shape_cast %36 : vector<8xf32> to vector<1x1x8xf32>
    %38 = vector.broadcast %37 : vector<1x1x8xf32> to vector<10x10x8xf32>
    %39 = arith.mulf %34, %38 : vector<10x10x8xf32>
    %40 = arith.addf %33, %39 : vector<10x10x8xf32>
    %c1_25 = arith.constant 1 : index
    %c2_26 = arith.constant 2 : index
    %c0_27 = arith.constant 0 : index
    %41 = vector.load %arg5[%c1_25, %c2_26, %c0_27] : memref<12x12x8xf32, #tpu.memory_space<vmem>>, vector<10x10x8xf32>
    %42 = vector.extract_strided_slice %6 {offsets = [1, 2, 0], sizes = [1, 1, 8], strides = [1, 1, 1]} : vector<3x3x8xf32> to vector<1x1x8xf32>
    %43 = vector.shape_cast %42 : vector<1x1x8xf32> to vector<8xf32>
    %44 = vector.shape_cast %43 : vector<8xf32> to vector<1x1x8xf32>
    %45 = vector.broadcast %44 : vector<1x1x8xf32> to vector<10x10x8xf32>
    %46 = arith.mulf %41, %45 : vector<10x10x8xf32>
    %47 = arith.addf %40, %46 : vector<10x10x8xf32>
    %c2_28 = arith.constant 2 : index
    %c0_29 = arith.constant 0 : index
    %c0_30 = arith.constant 0 : index
    %48 = vector.load %arg5[%c2_28, %c0_29, %c0_30] : memref<12x12x8xf32, #tpu.memory_space<vmem>>, vector<10x10x8xf32>
    %49 = vector.extract_strided_slice %6 {offsets = [2, 0, 0], sizes = [1, 1, 8], strides = [1, 1, 1]} : vector<3x3x8xf32> to vector<1x1x8xf32>
    %50 = vector.shape_cast %49 : vector<1x1x8xf32> to vector<8xf32>
    %51 = vector.shape_cast %50 : vector<8xf32> to vector<1x1x8xf32>
    %52 = vector.broadcast %51 : vector<1x1x8xf32> to vector<10x10x8xf32>
    %53 = arith.mulf %48, %52 : vector<10x10x8xf32>
    %54 = arith.addf %47, %53 : vector<10x10x8xf32>
    %c2_31 = arith.constant 2 : index
    %c1_32 = arith.constant 1 : index
    %c0_33 = arith.constant 0 : index
    %55 = vector.load %arg5[%c2_31, %c1_32, %c0_33] : memref<12x12x8xf32, #tpu.memory_space<vmem>>, vector<10x10x8xf32>
    %56 = vector.extract_strided_slice %6 {offsets = [2, 1, 0], sizes = [1, 1, 8], strides = [1, 1, 1]} : vector<3x3x8xf32> to vector<1x1x8xf32>
    %57 = vector.shape_cast %56 : vector<1x1x8xf32> to vector<8xf32>
    %58 = vector.shape_cast %57 : vector<8xf32> to vector<1x1x8xf32>
    %59 = vector.broadcast %58 : vector<1x1x8xf32> to vector<10x10x8xf32>
    %60 = arith.mulf %55, %59 : vector<10x10x8xf32>
    %61 = arith.addf %54, %60 : vector<10x10x8xf32>
    %c2_34 = arith.constant 2 : index
    %c2_35 = arith.constant 2 : index
    %c0_36 = arith.constant 0 : index
    %62 = vector.load %arg5[%c2_34, %c2_35, %c0_36] : memref<12x12x8xf32, #tpu.memory_space<vmem>>, vector<10x10x8xf32>
    %63 = vector.extract_strided_slice %6 {offsets = [2, 2, 0], sizes = [1, 1, 8], strides = [1, 1, 1]} : vector<3x3x8xf32> to vector<1x1x8xf32>
    %64 = vector.shape_cast %63 : vector<1x1x8xf32> to vector<8xf32>
    %65 = vector.shape_cast %64 : vector<8xf32> to vector<1x1x8xf32>
    %66 = vector.broadcast %65 : vector<1x1x8xf32> to vector<10x10x8xf32>
    %67 = arith.mulf %62, %66 : vector<10x10x8xf32>
    %68 = arith.addf %61, %67 : vector<10x10x8xf32>
    %69 = arith.truncf %68 : vector<10x10x8xf32> to vector<10x10x8xbf16>
    %c0_37 = arith.constant 0 : index
    %c0_38 = arith.constant 0 : index
    %c0_39 = arith.constant 0 : index
    %c0_40 = arith.constant 0 : index
    %70 = vector.load %arg4[%c0_37, %c0_38, %c0_39, %c0_40] : memref<1x10x10x8xbf16, #tpu.memory_space<vmem>>, vector<1x10x10x8xbf16>
    %71 = vector.shape_cast %70 : vector<1x10x10x8xbf16> to vector<10x10x8xbf16>
    %72 = vector.shape_cast %69 : vector<10x10x8xbf16> to vector<1x10x10x8xbf16>
    tpu.vector_store %arg4[%c0_37, %c0_38, %c0_39, %c0_40], %72 {strides = array<i32>} : memref<1x10x10x8xbf16, #tpu.memory_space<vmem>>, vector<1x10x10x8xbf16>,
    return
  }
  func.func @transform_0(%arg0: i32, %arg1: i32) -> (i32, i32, i32, i32) {
    %c0_i32 = arith.constant 0 : i32
    %c0_i32_0 = arith.constant 0 : i32
    %c0_i32_1 = arith.constant 0 : i32
    return %arg0, %c0_i32, %c0_i32_0, %arg1 : i32, i32, i32, i32
  }
  func.func @transform_1(%arg0: i32, %arg1: i32) -> (i32, i32, i32) {
    %c0_i32 = arith.constant 0 : i32
    %c0_i32_0 = arith.constant 0 : i32
    %c0_i32_1 = arith.constant 0 : i32
    return %c0_i32, %c0_i32_0, %arg1 : i32, i32, i32
  }
  func.func @transform_2(%arg0: i32, %arg1: i32) -> (i32, i32, i32, i32) {
    %c0_i32 = arith.constant 0 : i32
    %c0_i32_0 = arith.constant 0 : i32
    %c0_i32_1 = arith.constant 0 : i32
    return %arg0, %c0_i32, %c0_i32_0, %arg1 : i32, i32, i32, i32
  }
}

module attributes {stable_mosaic.version = 11 : i64} {
  func.func @_gffn_fuse_kernel(%arg0: i32, %arg1: i32, %arg2: i32, %arg3: memref<200x8xbf16, #tpu.memory_space<vmem>>, %arg4: memref<200x8xbf16, #tpu.memory_space<vmem>>, %arg5: memref<8x8xbf16, #tpu.memory_space<vmem>>, %arg6: memref<200x8xf32, #tpu.memory_space<vmem>>, %arg7: memref<200x8xf32, #tpu.memory_space<vmem>>) attributes {dimension_semantics = [#tpu.dimension_semantics<parallel>, #tpu.dimension_semantics<parallel>, #tpu.dimension_semantics<arbitrary>], iteration_bounds = array<i64: 1, 1, 1>, scalar_prefetch = 0 : i64, scratch_operands = 1 : i64, tpu.core_type = #tpu.core_type<tc>, window_params = [{transform_indices = @transform_0, window_bounds = array<i64: 200, 8>}, {transform_indices = @transform_1, window_bounds = array<i64: 200, 8>}, {transform_indices = @transform_2, window_bounds = array<i64: 8, 8>}, {transform_indices = @transform_3, window_bounds = array<i64: 200, 8>}]} {
    %c0_i32 = arith.constant 0 : i32
    %0 = arith.cmpi eq, %arg2, %c0_i32 : i32
    %1 = arith.extui %0 : i1 to i32
    %c0_i32_0 = arith.constant 0 : i32
    %2 = arith.cmpi ne, %1, %c0_i32_0 : i32
    scf.if %2 {
      %cst_13 = arith.constant 0.000000e+00 : f32
      %23 = vector.broadcast %cst_13 : f32 to vector<200x8xf32>
      %c0_14 = arith.constant 0 : index
      %c0_15 = arith.constant 0 : index
      %24 = vector.load %arg7[%c0_14, %c0_15] : memref<200x8xf32, #tpu.memory_space<vmem>>, vector<200x8xf32>
      tpu.vector_store %arg7[%c0_14, %c0_15], %23 {strides = array<i32>} : memref<200x8xf32, #tpu.memory_space<vmem>>, vector<200x8xf32>,
    } else {
    }
    %c0 = arith.constant 0 : index
    %c0_1 = arith.constant 0 : index
    %3 = vector.load %arg4[%c0, %c0_1] : memref<200x8xbf16, #tpu.memory_space<vmem>>, vector<200x8xbf16>
    %4 = arith.extf %3 : vector<200x8xbf16> to vector<200x8xf32>
    %c0_2 = arith.constant 0 : index
    %c0_3 = arith.constant 0 : index
    %5 = vector.load %arg3[%c0_2, %c0_3] : memref<200x8xbf16, #tpu.memory_space<vmem>>, vector<200x8xbf16>
    %6 = arith.extf %5 : vector<200x8xbf16> to vector<200x8xf32>
    %7 = arith.negf %4 : vector<200x8xf32>
    %8 = math.exp %7 : vector<200x8xf32>
    %cst = arith.constant 1.000000e+00 : f32
    %9 = vector.broadcast %cst : f32 to vector<200x8xf32>
    %10 = arith.addf %9, %8 : vector<200x8xf32>
    %11 = arith.divf %9, %10 : vector<200x8xf32>
    %12 = arith.mulf %4, %11 : vector<200x8xf32>
    %13 = arith.mulf %6, %12 : vector<200x8xf32>
    %c0_4 = arith.constant 0 : index
    %c0_5 = arith.constant 0 : index
    %14 = vector.load %arg7[%c0_4, %c0_5] : memref<200x8xf32, #tpu.memory_space<vmem>>, vector<200x8xf32>
    %15 = arith.truncf %13 : vector<200x8xf32> to vector<200x8xbf16>
    %c0_6 = arith.constant 0 : index
    %c0_7 = arith.constant 0 : index
    %16 = vector.load %arg5[%c0_6, %c0_7] : memref<8x8xbf16, #tpu.memory_space<vmem>>, vector<8x8xbf16>
    %cst_8 = arith.constant dense<0.000000e+00> : vector<200x8xf32>
    %17 = tpu.matmul %15, %16, %cst_8 {dimension_numbers = #tpu.dot_dimension_numbers<[1], [0], [0], [1], [0, 0, 1, 1], [], []>} : vector<200x8xbf16>, vector<8x8xbf16>, vector<200x8xf32> -> vector<200x8xf32>
    %18 = arith.addf %14, %17 : vector<200x8xf32>
    %c0_9 = arith.constant 0 : index
    %c0_10 = arith.constant 0 : index
    %19 = vector.load %arg7[%c0_9, %c0_10] : memref<200x8xf32, #tpu.memory_space<vmem>>, vector<200x8xf32>
    tpu.vector_store %arg7[%c0_9, %c0_10], %18 {strides = array<i32>} : memref<200x8xf32, #tpu.memory_space<vmem>>, vector<200x8xf32>,
    %c0_i32_11 = arith.constant 0 : i32
    %20 = arith.cmpi eq, %arg2, %c0_i32_11 : i32
    %21 = arith.extui %20 : i1 to i32
    %c0_i32_12 = arith.constant 0 : i32
    %22 = arith.cmpi ne, %21, %c0_i32_12 : i32
    scf.if %22 {
      %c0_13 = arith.constant 0 : index
      %c0_14 = arith.constant 0 : index
      %23 = vector.load %arg7[%c0_13, %c0_14] : memref<200x8xf32, #tpu.memory_space<vmem>>, vector<200x8xf32>
      %c0_15 = arith.constant 0 : index
      %c0_16 = arith.constant 0 : index
      %24 = vector.load %arg6[%c0_15, %c0_16] : memref<200x8xf32, #tpu.memory_space<vmem>>, vector<200x8xf32>
      tpu.vector_store %arg6[%c0_15, %c0_16], %23 {strides = array<i32>} : memref<200x8xf32, #tpu.memory_space<vmem>>, vector<200x8xf32>,
    } else {
    }
    return
  }
  func.func @transform_0(%arg0: i32, %arg1: i32, %arg2: i32) -> (i32, i32) {
    %c0_i32 = arith.constant 0 : i32
    return %arg0, %arg2 : i32, i32
  }
  func.func @transform_1(%arg0: i32, %arg1: i32, %arg2: i32) -> (i32, i32) {
    %c0_i32 = arith.constant 0 : i32
    return %arg0, %arg2 : i32, i32
  }
  func.func @transform_2(%arg0: i32, %arg1: i32, %arg2: i32) -> (i32, i32) {
    %c0_i32 = arith.constant 0 : i32
    return %arg2, %arg1 : i32, i32
  }
  func.func @transform_3(%arg0: i32, %arg1: i32, %arg2: i32) -> (i32, i32) {
    %c0_i32 = arith.constant 0 : i32
    return %arg0, %arg1 : i32, i32
  }
}

</mosaic_0001>

<llo_original>
// kernel: mamba_block_forward.18
$region0: #{mamba_block_forward.18}
  #allocation0 [shape = 'u32[]', space=smem, size = 0x4, offset = 0x4, fixed_abs, tag = 'smem constant byte address 0x4 - core index']
  #allocation1 [shape = 'u32[144,128]{1,0:T(1,128)}', space=vmem, size = 0x12000, scoped, tag = 'internal scratch']
  %s0 = inlined_call_operand.vmem [shape: f32[200,8], index: 0, kind: input, shape index: {}]
  %s1 = inlined_call_operand.vmem [shape: f32[1,8], index: 1, kind: input, shape index: {}]
  %s2 = inlined_call_operand.vmem [shape: f32[1,8], index: 2, kind: input, shape index: {}]
  %s3 = inlined_call_operand.vmem [shape: bf16[200,8], index: 3, kind: output, shape index: {}]
  %s4 = sld [smem:[#allocation0]]
  $region22: #{mamba_block_forward.18} parent=0
    _
  %s6 = ssub.s32 1, %s4
  %s7 = scalar_select 0, %s6, %s4
  // Predicated region
  $region2: #{mamba_block_forward.18} parent=0 // pred_check
    _
  $region3: #{mamba_block_forward.18} parent=0 // pred_check_branch
    %9 = sbr.rel (0) target = $region5
  $region4: #{mamba_block_forward.18} parent=0 // pred_region
    _
  $region5: #{mamba_block_forward.18} parent=0 // pred_fallthru
    _
  // Predicated region
  $region6: #{mamba_block_forward.18} parent=0 // pred_check
    _
  $region7: #{mamba_block_forward.18} parent=0 // pred_check_branch
    %11 = sbr.rel (0) target = $region9
  $region8: #{mamba_block_forward.18} parent=0 // pred_region
    _
  $region9: #{mamba_block_forward.18} parent=0 // pred_fallthru
    _
  // Predicated region
  $region10: #{mamba_block_forward.18} parent=0 // pred_check
    _
  $region11: #{mamba_block_forward.18} parent=0 // pred_check_branch
    %13 = sbr.rel (0) target = $region13
  $region12: #{mamba_block_forward.18} parent=0 // pred_region
    _
  $region13: #{mamba_block_forward.18} parent=0 // pred_fallthru
    _
  %v14 = vld [vmem:[%s0] sm:$0xff]
  %v15 = vld [vmem:[%s0 + $0x8] sm:$0xff]
  %v16 = vld [vmem:[%s0 + $0x10] sm:$0xff]
  %v17 = vld [vmem:[%s0 + $0x18] sm:$0xff]
  %v18 = vld [vmem:[%s0 + $0x20] sm:$0xff]
  %v19 = vld [vmem:[%s0 + $0x28] sm:$0xff]
  %v20 = vld [vmem:[%s0 + $0x30] sm:$0xff]
  %v21 = vld [vmem:[%s0 + $0x38] sm:$0xff]
  %v22 = vld [vmem:[%s0 + $0x40] sm:$0xff]
  %v23 = vld [vmem:[%s0 + $0x48] sm:$0xff]
  %v24 = vld [vmem:[%s0 + $0x50] sm:$0xff]
  %v25 = vld [vmem:[%s0 + $0x58] sm:$0xff]
  %v26 = vld [vmem:[%s0 + $0x60] sm:$0xff]
  %v27 = vld [vmem:[%s0 + $0x68] sm:$0xff]
  %v28 = vld [vmem:[%s0 + $0x70] sm:$0xff]
  %v29 = vld [vmem:[%s0 + $0x78] sm:$0xff]
  %v30 = vld [vmem:[%s0 + $0x80] sm:$0xff]
  %v31 = vld [vmem:[%s0 + $0x88] sm:$0xff]
  %v32 = vld [vmem:[%s0 + $0x90] sm:$0xff]
  %v33 = vld [vmem:[%s0 + $0x98] sm:$0xff]
  %v34 = vld [vmem:[%s0 + $0xa0] sm:$0xff]
  %v35 = vld [vmem:[%s0 + $0xa8] sm:$0xff]
  %v36 = vld [vmem:[%s0 + $0xb0] sm:$0xff]
  %v37 = vld [vmem:[%s0 + $0xb8] sm:$0xff]
  %v38 = vld [vmem:[%s0 + $0xc0] sm:$0xff]
  %vm39 = vcmask 64512
  %v40 = vsel %vm39, %v14, 0.0
  %41 = vadd.xlane.f32.xlu0 %v40
  %v42 = vpop.xlane.xlu0 %41
  %v43 = vsel %vm39, %v15, 0.0
  %44 = vadd.xlane.f32.xlu0 %v43
  %v45 = vpop.xlane.xlu0 %44
  %v46 = vsel %vm39, %v16, 0.0
  %47 = vadd.xlane.f32.xlu0 %v46
  %v48 = vpop.xlane.xlu0 %47
  %v49 = vsel %vm39, %v17, 0.0
  %50 = vadd.xlane.f32.xlu0 %v49
  %v51 = vpop.xlane.xlu0 %50
  %v52 = vsel %vm39, %v18, 0.0
  %53 = vadd.xlane.f32.xlu0 %v52
  %v54 = vpop.xlane.xlu0 %53
  %v55 = vsel %vm39, %v19, 0.0
  %56 = vadd.xlane.f32.xlu0 %v55
  %v57 = vpop.xlane.xlu0 %56
  %v58 = vsel %vm39, %v20, 0.0
  %59 = vadd.xlane.f32.xlu0 %v58
  %v60 = vpop.xlane.xlu0 %59
  %v61 = vsel %vm39, %v21, 0.0
  %62 = vadd.xlane.f32.xlu0 %v61
  %v63 = vpop.xlane.xlu0 %62
  %v64 = vsel %vm39, %v22, 0.0
  %65 = vadd.xlane.f32.xlu0 %v64
  %v66 = vpop.xlane.xlu0 %65
  %v67 = vsel %vm39, %v23, 0.0
  %68 = vadd.xlane.f32.xlu0 %v67
  %v69 = vpop.xlane.xlu0 %68
  %v70 = vsel %vm39, %v24, 0.0
  %71 = vadd.xlane.f32.xlu0 %v70
  %v72 = vpop.xlane.xlu0 %71
  %v73 = vsel %vm39, %v25, 0.0
  %74 = vadd.xlane.f32.xlu0 %v73
  %v75 = vpop.xlane.xlu0 %74
  %v76 = vsel %vm39, %v26, 0.0
  %77 = vadd.xlane.f32.xlu0 %v76
  %v78 = vpop.xlane.xlu0 %77
  %v79 = vsel %vm39, %v27, 0.0
  %80 = vadd.xlane.f32.xlu0 %v79
  %v81 = vpop.xlane.xlu0 %80
  %v82 = vsel %vm39, %v28, 0.0
  %83 = vadd.xlane.f32.xlu0 %v82
  %v84 = vpop.xlane.xlu0 %83
  %v85 = vsel %vm39, %v29, 0.0
  %86 = vadd.xlane.f32.xlu0 %v85
  %v87 = vpop.xlane.xlu0 %86
  %v88 = vsel %vm39, %v30, 0.0
  %89 = vadd.xlane.f32.xlu0 %v88
  %v90 = vpop.xlane.xlu0 %89
  %v91 = vsel %vm39, %v31, 0.0
  %92 = vadd.xlane.f32.xlu0 %v91
  %v93 = vpop.xlane.xlu0 %92
  %v94 = vsel %vm39, %v32, 0.0
  %95 = vadd.xlane.f32.xlu0 %v94
  %v96 = vpop.xlane.xlu0 %95
  %v97 = vsel %vm39, %v33, 0.0
  %98 = vadd.xlane.f32.xlu0 %v97
  %v99 = vpop.xlane.xlu0 %98
  %v100 = vsel %vm39, %v34, 0.0
  %101 = vadd.xlane.f32.xlu0 %v100
  %v102 = vpop.xlane.xlu0 %101
  %v103 = vsel %vm39, %v35, 0.0
  %104 = vadd.xlane.f32.xlu0 %v103
  %v105 = vpop.xlane.xlu0 %104
  %v106 = vsel %vm39, %v36, 0.0
  %107 = vadd.xlane.f32.xlu0 %v106
  %v108 = vpop.xlane.xlu0 %107
  %v109 = vsel %vm39, %v37, 0.0
  %110 = vadd.xlane.f32.xlu0 %v109
  %v111 = vpop.xlane.xlu0 %110
  %v112 = vsel %vm39, %v38, 0.0
  %113 = vadd.xlane.f32.xlu0 %v112
  %v114 = vpop.xlane.xlu0 %113
  %v115 = vrcp.pop 8.0
  %v116 = vmul.f32 %v42, %v115
  %v117 = vmul.f32 %v45, %v115
  %v118 = vmul.f32 %v48, %v115
  %v119 = vmul.f32 %v51, %v115
  %v120 = vmul.f32 %v54, %v115
  %v121 = vmul.f32 %v57, %v115
  %v122 = vmul.f32 %v60, %v115
  %v123 = vmul.f32 %v63, %v115
  %v124 = vmul.f32 %v66, %v115
  %v125 = vmul.f32 %v69, %v115
  %v126 = vmul.f32 %v72, %v115
  %v127 = vmul.f32 %v75, %v115
  %v128 = vmul.f32 %v78, %v115
  %v129 = vmul.f32 %v81, %v115
  %v130 = vmul.f32 %v84, %v115
  %v131 = vmul.f32 %v87, %v115
  %v132 = vmul.f32 %v90, %v115
  %v133 = vmul.f32 %v93, %v115
  %v134 = vmul.f32 %v96, %v115
  %v135 = vmul.f32 %v99, %v115
  %v136 = vmul.f32 %v102, %v115
  %v137 = vmul.f32 %v105, %v115
  %v138 = vmul.f32 %v108, %v115
  %v139 = vmul.f32 %v111, %v115
  %v140 = vmul.f32 %v114, %v115
  %v141 = vsub.f32 %v14, %v116
  %v142 = vsub.f32 %v15, %v117
  %v143 = vsub.f32 %v16, %v118
  %v144 = vsub.f32 %v17, %v119
  %v145 = vsub.f32 %v18, %v120
  %v146 = vsub.f32 %v19, %v121
  %v147 = vsub.f32 %v20, %v122
  %v148 = vsub.f32 %v21, %v123
  %v149 = vsub.f32 %v22, %v124
  %v150 = vsub.f32 %v23, %v125
  %v151 = vsub.f32 %v24, %v126
  %v152 = vsub.f32 %v25, %v127
  %v153 = vsub.f32 %v26, %v128
  %v154 = vsub.f32 %v27, %v129
  %v155 = vsub.f32 %v28, %v130
  %v156 = vsub.f32 %v29, %v131
  %v157 = vsub.f32 %v30, %v132
  %v158 = vsub.f32 %v31, %v133
  %v159 = vsub.f32 %v32, %v134
  %v160 = vsub.f32 %v33, %v135
  %v161 = vsub.f32 %v34, %v136
  %v162 = vsub.f32 %v35, %v137
  %v163 = vsub.f32 %v36, %v138
  %v164 = vsub.f32 %v37, %v139
  %v165 = vsub.f32 %v38, %v140
  %v166 = vmul.f32 %v141, %v141
  %v167 = vmul.f32 %v142, %v142
  %v168 = vmul.f32 %v143, %v143
  %v169 = vmul.f32 %v144, %v144
  %v170 = vmul.f32 %v145, %v145
  %v171 = vmul.f32 %v146, %v146
  %v172 = vmul.f32 %v147, %v147
  %v173 = vmul.f32 %v148, %v148
  %v174 = vmul.f32 %v149, %v149
  %v175 = vmul.f32 %v150, %v150
  %v176 = vmul.f32 %v151, %v151
  %v177 = vmul.f32 %v152, %v152
  %v178 = vmul.f32 %v153, %v153
  %v179 = vmul.f32 %v154, %v154
  %v180 = vmul.f32 %v155, %v155
  %v181 = vmul.f32 %v156, %v156
  %v182 = vmul.f32 %v157, %v157
  %v183 = vmul.f32 %v158, %v158
  %v184 = vmul.f32 %v159, %v159
  %v185 = vmul.f32 %v160, %v160
  %v186 = vmul.f32 %v161, %v161
  %v187 = vmul.f32 %v162, %v162
  %v188 = vmul.f32 %v163, %v163
  %v189 = vmul.f32 %v164, %v164
  %v190 = vmul.f32 %v165, %v165
  %v191 = vsel %vm39, %v166, 0.0
  %192 = vadd.xlane.f32.xlu0 %v191
  %v193 = vpop.xlane.xlu0 %192
  %v194 = vsel %vm39, %v167, 0.0
  %195 = vadd.xlane.f32.xlu0 %v194
  %v196 = vpop.xlane.xlu0 %195
  %v197 = vsel %vm39, %v168, 0.0
  %198 = vadd.xlane.f32.xlu0 %v197
  %v199 = vpop.xlane.xlu0 %198
  %v200 = vsel %vm39, %v169, 0.0
  %201 = vadd.xlane.f32.xlu0 %v200
  %v202 = vpop.xlane.xlu0 %201
  %v203 = vsel %vm39, %v170, 0.0
  %204 = vadd.xlane.f32.xlu0 %v203
  %v205 = vpop.xlane.xlu0 %204
  %v206 = vsel %vm39, %v171, 0.0
  %207 = vadd.xlane.f32.xlu0 %v206
  %v208 = vpop.xlane.xlu0 %207
  %v209 = vsel %vm39, %v172, 0.0
  %210 = vadd.xlane.f32.xlu0 %v209
  %v211 = vpop.xlane.xlu0 %210
  %v212 = vsel %vm39, %v173, 0.0
  %213 = vadd.xlane.f32.xlu0 %v212
  %v214 = vpop.xlane.xlu0 %213
  %v215 = vsel %vm39, %v174, 0.0
  %216 = vadd.xlane.f32.xlu0 %v215
  %v217 = vpop.xlane.xlu0 %216
  %v218 = vsel %vm39, %v175, 0.0
  %219 = vadd.xlane.f32.xlu0 %v218
  %v220 = vpop.xlane.xlu0 %219
  %v221 = vsel %vm39, %v176, 0.0
  %222 = vadd.xlane.f32.xlu0 %v221
  %v223 = vpop.xlane.xlu0 %222
  %v224 = vsel %vm39, %v177, 0.0
  %225 = vadd.xlane.f32.xlu0 %v224
  %v226 = vpop.xlane.xlu0 %225
  %v227 = vsel %vm39, %v178, 0.0
  %228 = vadd.xlane.f32.xlu0 %v227
  %v229 = vpop.xlane.xlu0 %228
  %v230 = vsel %vm39, %v179, 0.0
  %231 = vadd.xlane.f32.xlu0 %v230
  %v232 = vpop.xlane.xlu0 %231
  %v233 = vsel %vm39, %v180, 0.0
  %234 = vadd.xlane.f32.xlu0 %v233
  %v235 = vpop.xlane.xlu0 %234
  %v236 = vsel %vm39, %v181, 0.0
  %237 = vadd.xlane.f32.xlu0 %v236
  %v238 = vpop.xlane.xlu0 %237
  %v239 = vsel %vm39, %v182, 0.0
  %240 = vadd.xlane.f32.xlu0 %v239
  %v241 = vpop.xlane.xlu0 %240
  %v242 = vsel %vm39, %v183, 0.0
  %243 = vadd.xlane.f32.xlu0 %v242
  %v244 = vpop.xlane.xlu0 %243
  %v245 = vsel %vm39, %v184, 0.0
  %246 = vadd.xlane.f32.xlu0 %v245
  %v247 = vpop.xlane.xlu0 %246
  %v248 = vsel %vm39, %v185, 0.0
  %249 = vadd.xlane.f32.xlu0 %v248
  %v250 = vpop.xlane.xlu0 %249
  %v251 = vsel %vm39, %v186, 0.0
  %252 = vadd.xlane.f32.xlu0 %v251
  %v253 = vpop.xlane.xlu0 %252
  %v254 = vsel %vm39, %v187, 0.0
  %255 = vadd.xlane.f32.xlu0 %v254
  %v256 = vpop.xlane.xlu0 %255
  %v257 = vsel %vm39, %v188, 0.0
  %258 = vadd.xlane.f32.xlu0 %v257
  %v259 = vpop.xlane.xlu0 %258
  %v260 = vsel %vm39, %v189, 0.0
  %261 = vadd.xlane.f32.xlu0 %v260
  %v262 = vpop.xlane.xlu0 %261
  %v263 = vsel %vm39, %v190, 0.0
  %264 = vadd.xlane.f32.xlu0 %v263
  %v265 = vpop.xlane.xlu0 %264
  %v266 = vmul.f32 %v193, %v115
  %v267 = vmul.f32 %v196, %v115
  %v268 = vmul.f32 %v199, %v115
  %v269 = vmul.f32 %v202, %v115
  %v270 = vmul.f32 %v205, %v115
  %v271 = vmul.f32 %v208, %v115
  %v272 = vmul.f32 %v211, %v115
  %v273 = vmul.f32 %v214, %v115
  %v274 = vmul.f32 %v217, %v115
  %v275 = vmul.f32 %v220, %v115
  %v276 = vmul.f32 %v223, %v115
  %v277 = vmul.f32 %v226, %v115
  %v278 = vmul.f32 %v229, %v115
  %v279 = vmul.f32 %v232, %v115
  %v280 = vmul.f32 %v235, %v115
  %v281 = vmul.f32 %v238, %v115
  %v282 = vmul.f32 %v241, %v115
  %v283 = vmul.f32 %v244, %v115
  %v284 = vmul.f32 %v247, %v115
  %v285 = vmul.f32 %v250, %v115
  %v286 = vmul.f32 %v253, %v115
  %v287 = vmul.f32 %v256, %v115
  %v288 = vmul.f32 %v259, %v115
  %v289 = vmul.f32 %v262, %v115
  %v290 = vmul.f32 %v265, %v115
  %v291 = vadd.f32 %v266, 1e-05
  %v292 = vadd.f32 %v267, 1e-05
  %v293 = vadd.f32 %v268, 1e-05
  %v294 = vadd.f32 %v269, 1e-05
  %v295 = vadd.f32 %v270, 1e-05
  %v296 = vadd.f32 %v271, 1e-05
  %v297 = vadd.f32 %v272, 1e-05
  %v298 = vadd.f32 %v273, 1e-05
  %v299 = vadd.f32 %v274, 1e-05
  %v300 = vadd.f32 %v275, 1e-05
  %v301 = vadd.f32 %v276, 1e-05
  %v302 = vadd.f32 %v277, 1e-05
  %v303 = vadd.f32 %v278, 1e-05
  %v304 = vadd.f32 %v279, 1e-05
  %v305 = vadd.f32 %v280, 1e-05
  %v306 = vadd.f32 %v281, 1e-05
  %v307 = vadd.f32 %v282, 1e-05
  %v308 = vadd.f32 %v283, 1e-05
  %v309 = vadd.f32 %v284, 1e-05
  %v310 = vadd.f32 %v285, 1e-05
  %v311 = vadd.f32 %v286, 1e-05
  %v312 = vadd.f32 %v287, 1e-05
  %v313 = vadd.f32 %v288, 1e-05
  %v314 = vadd.f32 %v289, 1e-05
  %v315 = vadd.f32 %v290, 1e-05
  %v316 = vrsqrt.pop %v291
  %v317 = vrsqrt.pop %v292
  %v318 = vrsqrt.pop %v293
  %v319 = vrsqrt.pop %v294
  %v320 = vrsqrt.pop %v295
  %v321 = vrsqrt.pop %v296
  %v322 = vrsqrt.pop %v297
  %v323 = vrsqrt.pop %v298
  %v324 = vrsqrt.pop %v299
  %v325 = vrsqrt.pop %v300
  %v326 = vrsqrt.pop %v301
  %v327 = vrsqrt.pop %v302
  %v328 = vrsqrt.pop %v303
  %v329 = vrsqrt.pop %v304
  %v330 = vrsqrt.pop %v305
  %v331 = vrsqrt.pop %v306
  %v332 = vrsqrt.pop %v307
  %v333 = vrsqrt.pop %v308
  %v334 = vrsqrt.pop %v309
  %v335 = vrsqrt.pop %v310
  %v336 = vrsqrt.pop %v311
  %v337 = vrsqrt.pop %v312
  %v338 = vrsqrt.pop %v313
  %v339 = vrsqrt.pop %v314
  %v340 = vrsqrt.pop %v315
  %v341 = vmul.f32 %v141, %v316
  %v342 = vmul.f32 %v142, %v317
  %v343 = vmul.f32 %v143, %v318
  %v344 = vmul.f32 %v144, %v319
  %v345 = vmul.f32 %v145, %v320
  %v346 = vmul.f32 %v146, %v321
  %v347 = vmul.f32 %v147, %v322
  %v348 = vmul.f32 %v148, %v323
  %v349 = vmul.f32 %v149, %v324
  %v350 = vmul.f32 %v150, %v325
  %v351 = vmul.f32 %v151, %v326
  %v352 = vmul.f32 %v152, %v327
  %v353 = vmul.f32 %v153, %v328
  %v354 = vmul.f32 %v154, %v329
  %v355 = vmul.f32 %v155, %v330
  %v356 = vmul.f32 %v156, %v331
  %v357 = vmul.f32 %v157, %v332
  %v358 = vmul.f32 %v158, %v333
  %v359 = vmul.f32 %v159, %v334
  %v360 = vmul.f32 %v160, %v335
  %v361 = vmul.f32 %v161, %v336
  %v362 = vmul.f32 %v162, %v337
  %v363 = vmul.f32 %v163, %v338
  %v364 = vmul.f32 %v164, %v339
  %v365 = vmul.f32 %v165, %v340
  %v366 = vld [vmem:[%s1] sm:$0x1]
  %v368 = vlaneseq
  %v369 = vshrl.u32 %v368, 7
  %v370 = vsub.s32 0, %v369
  %v371 = vrot.slane %v366, %v370
  %v373 = vmul.f32 %v341, %v371
  %v374 = vmul.f32 %v342, %v371
  %v375 = vmul.f32 %v343, %v371
  %v376 = vmul.f32 %v344, %v371
  %v377 = vmul.f32 %v345, %v371
  %v378 = vmul.f32 %v346, %v371
  %v379 = vmul.f32 %v347, %v371
  %v380 = vmul.f32 %v348, %v371
  %v381 = vmul.f32 %v349, %v371
  %v382 = vmul.f32 %v350, %v371
  %v383 = vmul.f32 %v351, %v371
  %v384 = vmul.f32 %v352, %v371
  %v385 = vmul.f32 %v353, %v371
  %v386 = vmul.f32 %v354, %v371
  %v387 = vmul.f32 %v355, %v371
  %v388 = vmul.f32 %v356, %v371
  %v389 = vmul.f32 %v357, %v371
  %v390 = vmul.f32 %v358, %v371
  %v391 = vmul.f32 %v359, %v371
  %v392 = vmul.f32 %v360, %v371
  %v393 = vmul.f32 %v361, %v371
  %v394 = vmul.f32 %v362, %v371
  %v395 = vmul.f32 %v363, %v371
  %v396 = vmul.f32 %v364, %v371
  %v397 = vmul.f32 %v365, %v371
  %v398 = vld [vmem:[%s2] sm:$0x1]
  %v400 = vlaneseq
  %v401 = vshrl.u32 %v400, 7
  %v402 = vsub.s32 0, %v401
  %v403 = vrot.slane %v398, %v402
  %v405 = vadd.f32 %v373, %v403
  %v406 = vadd.f32 %v374, %v403
  %v407 = vadd.f32 %v375, %v403
  %v408 = vadd.f32 %v376, %v403
  %v409 = vadd.f32 %v377, %v403
  %v410 = vadd.f32 %v378, %v403
  %v411 = vadd.f32 %v379, %v403
  %v412 = vadd.f32 %v380, %v403
  %v413 = vadd.f32 %v381, %v403
  %v414 = vadd.f32 %v382, %v403
  %v415 = vadd.f32 %v383, %v403
  %v416 = vadd.f32 %v384, %v403
  %v417 = vadd.f32 %v385, %v403
  %v418 = vadd.f32 %v386, %v403
  %v419 = vadd.f32 %v387, %v403
  %v420 = vadd.f32 %v388, %v403
  %v421 = vadd.f32 %v389, %v403
  %v422 = vadd.f32 %v390, %v403
  %v423 = vadd.f32 %v391, %v403
  %v424 = vadd.f32 %v392, %v403
  %v425 = vadd.f32 %v393, %v403
  %v426 = vadd.f32 %v394, %v403
  %v427 = vadd.f32 %v395, %v403
  %v428 = vadd.f32 %v396, %v403
  %v429 = vadd.f32 %v397, %v403
  %v430 = vpack.c.bf16 %v406, %v405
  %v431 = vpack.c.bf16 %v408, %v407
  %v432 = vpack.c.bf16 %v410, %v409
  %v433 = vpack.c.bf16 %v412, %v411
  %v434 = vpack.c.bf16 %v414, %v413
  %v435 = vpack.c.bf16 %v416, %v415
  %v436 = vpack.c.bf16 %v418, %v417
  %v437 = vpack.c.bf16 %v420, %v419
  %v438 = vpack.c.bf16 %v422, %v421
  %v439 = vpack.c.bf16 %v424, %v423
  %v440 = vpack.c.bf16 %v426, %v425
  %v441 = vpack.c.bf16 %v428, %v427
  %v442 = vpack.c.bf16 %v429, %v429
  %v456 = vunpack.c.l.b16 %v430
  %v457 = vunpack.c.h.b16 %v430
  %v458 = vunpack.c.l.b16 %v431
  %v459 = vunpack.c.h.b16 %v431
  %v460 = vunpack.c.l.b16 %v432
  %v461 = vunpack.c.h.b16 %v432
  %v462 = vunpack.c.l.b16 %v433
  %v463 = vunpack.c.h.b16 %v433
  %v464 = vunpack.c.l.b16 %v434
  %v465 = vunpack.c.h.b16 %v434
  %v466 = vunpack.c.l.b16 %v435
  %v467 = vunpack.c.h.b16 %v435
  %v468 = vunpack.c.l.b16 %v436
  %v469 = vunpack.c.h.b16 %v436
  %v470 = vunpack.c.l.b16 %v437
  %v471 = vunpack.c.h.b16 %v437
  %v472 = vunpack.c.l.b16 %v438
  %v473 = vunpack.c.h.b16 %v438
  %v474 = vunpack.c.l.b16 %v439
  %v475 = vunpack.c.h.b16 %v439
  %v476 = vunpack.c.l.b16 %v440
  %v477 = vunpack.c.h.b16 %v440
  %v478 = vunpack.c.l.b16 %v441
  %v479 = vunpack.c.h.b16 %v441
  %v480 = vunpack.c.l.b16 %v442
  %v481 = vpack.c.b16 %v456, %v456
  %v482 = vpack.c.b16 %v457, %v457
  %v483 = vpack.c.b16 %v458, %v458
  %v484 = vpack.c.b16 %v459, %v459
  %v485 = vpack.c.b16 %v460, %v460
  %v486 = vpack.c.b16 %v461, %v461
  %v487 = vpack.c.b16 %v462, %v462
  %v488 = vpack.c.b16 %v463, %v463
  %v489 = vpack.c.b16 %v464, %v464
  %v490 = vpack.c.b16 %v465, %v465
  %v491 = vpack.c.b16 %v466, %v466
  %v492 = vpack.c.b16 %v467, %v467
  %v493 = vpack.c.b16 %v468, %v468
  %v494 = vpack.c.b16 %v469, %v469
  %v495 = vpack.c.b16 %v470, %v470
  %v496 = vpack.c.b16 %v471, %v471
  %v497 = vpack.c.b16 %v472, %v472
  %v498 = vpack.c.b16 %v473, %v473
  %v499 = vpack.c.b16 %v474, %v474
  %v500 = vpack.c.b16 %v475, %v475
  %v501 = vpack.c.b16 %v476, %v476
  %v502 = vpack.c.b16 %v477, %v477
  %v503 = vpack.c.b16 %v478, %v478
  %v504 = vpack.c.b16 %v479, %v479
  %v505 = vpack.c.b16 %v480, %v480
  %vm531 = vcmask 60416
  %532 = vst.msk [vmem:[%s3] sm:$0xf] %vm531, %v481
  %533 = vst.msk [vmem:[%s3 + $0x4] sm:$0xf] %vm531, %v482
  %534 = vst.msk [vmem:[%s3 + $0x8] sm:$0xf] %vm531, %v483
  %535 = vst.msk [vmem:[%s3 + $0xc] sm:$0xf] %vm531, %v484
  %536 = vst.msk [vmem:[%s3 + $0x10] sm:$0xf] %vm531, %v485
  %537 = vst.msk [vmem:[%s3 + $0x14] sm:$0xf] %vm531, %v486
  %538 = vst.msk [vmem:[%s3 + $0x18] sm:$0xf] %vm531, %v487
  %539 = vst.msk [vmem:[%s3 + $0x1c] sm:$0xf] %vm531, %v488
  %540 = vst.msk [vmem:[%s3 + $0x20] sm:$0xf] %vm531, %v489
  %541 = vst.msk [vmem:[%s3 + $0x24] sm:$0xf] %vm531, %v490
  %542 = vst.msk [vmem:[%s3 + $0x28] sm:$0xf] %vm531, %v491
  %543 = vst.msk [vmem:[%s3 + $0x2c] sm:$0xf] %vm531, %v492
  %544 = vst.msk [vmem:[%s3 + $0x30] sm:$0xf] %vm531, %v493
  %545 = vst.msk [vmem:[%s3 + $0x34] sm:$0xf] %vm531, %v494
  %546 = vst.msk [vmem:[%s3 + $0x38] sm:$0xf] %vm531, %v495
  %547 = vst.msk [vmem:[%s3 + $0x3c] sm:$0xf] %vm531, %v496
  %548 = vst.msk [vmem:[%s3 + $0x40] sm:$0xf] %vm531, %v497
  %549 = vst.msk [vmem:[%s3 + $0x44] sm:$0xf] %vm531, %v498
  %550 = vst.msk [vmem:[%s3 + $0x48] sm:$0xf] %vm531, %v499
  %551 = vst.msk [vmem:[%s3 + $0x4c] sm:$0xf] %vm531, %v500
  %552 = vst.msk [vmem:[%s3 + $0x50] sm:$0xf] %vm531, %v501
  %553 = vst.msk [vmem:[%s3 + $0x54] sm:$0xf] %vm531, %v502
  %554 = vst.msk [vmem:[%s3 + $0x58] sm:$0xf] %vm531, %v503
  %555 = vst.msk [vmem:[%s3 + $0x5c] sm:$0xf] %vm531, %v504
  %556 = vst.msk [vmem:[%s3 + $0x60] sm:$0xf] %vm531, %v505
  // Predicated region
  $region14: #{mamba_block_forward.18} parent=0 // pred_check
    _
  $region15: #{mamba_block_forward.18} parent=0 // pred_check_branch
    %558 = sbr.rel (0) target = $region17
  $region16: #{mamba_block_forward.18} parent=0 // pred_region
    _
  $region17: #{mamba_block_forward.18} parent=0 // pred_fallthru
    _
  // Predicated region
  $region18: #{mamba_block_forward.18} parent=0 // pred_check
    _
  $region19: #{mamba_block_forward.18} parent=0 // pred_check_branch
    %560 = sbr.rel (0) target = $region21
  $region20: #{mamba_block_forward.18} parent=0 // pred_region
    _
  $region21: #{mamba_block_forward.18} parent=0 // pred_fallthru
    _

// kernel: mamba_block_forward.20
$region0: #{mamba_block_forward.20}
  #allocation0 [shape = 'u32[]', space=smem, size = 0x4, offset = 0x4, fixed_abs, tag = 'smem constant byte address 0x4 - core index']
  #allocation1 [shape = 'u32[144,128]{1,0:T(1,128)}', space=vmem, size = 0x12000, scoped, tag = 'internal scratch']
  #allocation2 [shape = 'f32[200,8]{1,0:T(8,128)}', space=vmem, size = 0x19000, scoped, tag = 'scratch operand']
  %s0 = inlined_call_operand.vmem [shape: bf16[200,8], index: 0, kind: input, shape index: {}]
  %s1 = inlined_call_operand.vmem [shape: bf16[8,8], index: 1, kind: input, shape index: {}]
  %s2 = inlined_call_operand.vmem [shape: bf16[200,8], index: 2, kind: output, shape index: {}]
  %s3 = sld [smem:[#allocation0]]
  $region26: #{mamba_block_forward.20} parent=0
    _
  %s5 = ssub.s32 1, %s3
  %s6 = scalar_select 0, %s5, %s3
  // Predicated region
  $region2: #{mamba_block_forward.20} parent=0 // pred_check
    _
  $region3: #{mamba_block_forward.20} parent=0 // pred_check_branch
    %8 = sbr.rel (0) target = $region5
  $region4: #{mamba_block_forward.20} parent=0 // pred_region
    _
  $region5: #{mamba_block_forward.20} parent=0 // pred_fallthru
    _
  // Predicated region
  $region6: #{mamba_block_forward.20} parent=0 // pred_check
    _
  $region7: #{mamba_block_forward.20} parent=0 // pred_check_branch
    %10 = sbr.rel (0) target = $region9
  $region8: #{mamba_block_forward.20} parent=0 // pred_region
    _
  $region9: #{mamba_block_forward.20} parent=0 // pred_fallthru
    _
  %p12 = scmp.eq.s32.totalorder 0, 0
  // Predicated region
  $region10: #{mamba_block_forward.20} parent=0 // pred_check
    %p13 = pneg %p12
  $region11: #{mamba_block_forward.20} parent=0 // pred_check_branch
    %15 = sbr.rel (%p13) target = $region13
  $region12: #{mamba_block_forward.20} parent=0 // pred_region
    %vm16 = vcmask 64512
    %17 = vst.msk [vmem:[#allocation2] sm:$0xff] %vm16, 0.0
    %18 = vst.msk [vmem:[#allocation2 + $0x8] sm:$0xff] %vm16, 0.0
    %19 = vst.msk [vmem:[#allocation2 + $0x10] sm:$0xff] %vm16, 0.0
    %20 = vst.msk [vmem:[#allocation2 + $0x18] sm:$0xff] %vm16, 0.0
    %21 = vst.msk [vmem:[#allocation2 + $0x20] sm:$0xff] %vm16, 0.0
    %22 = vst.msk [vmem:[#allocation2 + $0x28] sm:$0xff] %vm16, 0.0
    %23 = vst.msk [vmem:[#allocation2 + $0x30] sm:$0xff] %vm16, 0.0
    %24 = vst.msk [vmem:[#allocation2 + $0x38] sm:$0xff] %vm16, 0.0
    %25 = vst.msk [vmem:[#allocation2 + $0x40] sm:$0xff] %vm16, 0.0
    %26 = vst.msk [vmem:[#allocation2 + $0x48] sm:$0xff] %vm16, 0.0
    %27 = vst.msk [vmem:[#allocation2 + $0x50] sm:$0xff] %vm16, 0.0
    %28 = vst.msk [vmem:[#allocation2 + $0x58] sm:$0xff] %vm16, 0.0
    %29 = vst.msk [vmem:[#allocation2 + $0x60] sm:$0xff] %vm16, 0.0
    %30 = vst.msk [vmem:[#allocation2 + $0x68] sm:$0xff] %vm16, 0.0
    %31 = vst.msk [vmem:[#allocation2 + $0x70] sm:$0xff] %vm16, 0.0
    %32 = vst.msk [vmem:[#allocation2 + $0x78] sm:$0xff] %vm16, 0.0
    %33 = vst.msk [vmem:[#allocation2 + $0x80] sm:$0xff] %vm16, 0.0
    %34 = vst.msk [vmem:[#allocation2 + $0x88] sm:$0xff] %vm16, 0.0
    %35 = vst.msk [vmem:[#allocation2 + $0x90] sm:$0xff] %vm16, 0.0
    %36 = vst.msk [vmem:[#allocation2 + $0x98] sm:$0xff] %vm16, 0.0
    %37 = vst.msk [vmem:[#allocation2 + $0xa0] sm:$0xff] %vm16, 0.0
    %38 = vst.msk [vmem:[#allocation2 + $0xa8] sm:$0xff] %vm16, 0.0
    %39 = vst.msk [vmem:[#allocation2 + $0xb0] sm:$0xff] %vm16, 0.0
    %40 = vst.msk [vmem:[#allocation2 + $0xb8] sm:$0xff] %vm16, 0.0
    %41 = vst.msk [vmem:[#allocation2 + $0xc0] sm:$0xff] %vm16, 0.0
  $region13: #{mamba_block_forward.20} parent=0 // pred_fallthru
    _
  %v42 = vld [vmem:[#allocation2] sm:$0xff]
  %v43 = vld [vmem:[#allocation2 + $0x8] sm:$0xff]
  %v44 = vld [vmem:[#allocation2 + $0x10] sm:$0xff]
  %v45 = vld [vmem:[#allocation2 + $0x18] sm:$0xff]
  %v46 = vld [vmem:[#allocation2 + $0x20] sm:$0xff]
  %v47 = vld [vmem:[#allocation2 + $0x28] sm:$0xff]
  %v48 = vld [vmem:[#allocation2 + $0x30] sm:$0xff]
  %v49 = vld [vmem:[#allocation2 + $0x38] sm:$0xff]
  %v50 = vld [vmem:[#allocation2 + $0x40] sm:$0xff]
  %v51 = vld [vmem:[#allocation2 + $0x48] sm:$0xff]
  %v52 = vld [vmem:[#allocation2 + $0x50] sm:$0xff]
  %v53 = vld [vmem:[#allocation2 + $0x58] sm:$0xff]
  %v54 = vld [vmem:[#allocation2 + $0x60] sm:$0xff]
  %v55 = vld [vmem:[#allocation2 + $0x68] sm:$0xff]
  %v56 = vld [vmem:[#allocation2 + $0x70] sm:$0xff]
  %v57 = vld [vmem:[#allocation2 + $0x78] sm:$0xff]
  %v58 = vld [vmem:[#allocation2 + $0x80] sm:$0xff]
  %v59 = vld [vmem:[#allocation2 + $0x88] sm:$0xff]
  %v60 = vld [vmem:[#allocation2 + $0x90] sm:$0xff]
  %v61 = vld [vmem:[#allocation2 + $0x98] sm:$0xff]
  %v62 = vld [vmem:[#allocation2 + $0xa0] sm:$0xff]
  %v63 = vld [vmem:[#allocation2 + $0xa8] sm:$0xff]
  %v64 = vld [vmem:[#allocation2 + $0xb0] sm:$0xff]
  %v65 = vld [vmem:[#allocation2 + $0xb8] sm:$0xff]
  %v66 = vld [vmem:[#allocation2 + $0xc0] sm:$0xff]
  %v67 = vld [vmem:[%s0] sm:$0xf]
  %v68 = vld [vmem:[%s0 + $0x4] sm:$0xf]
  %v69 = vld [vmem:[%s0 + $0x8] sm:$0xf]
  %v70 = vld [vmem:[%s0 + $0xc] sm:$0xf]
  %v71 = vld [vmem:[%s0 + $0x10] sm:$0xf]
  %v72 = vld [vmem:[%s0 + $0x14] sm:$0xf]
  %v73 = vld [vmem:[%s0 + $0x18] sm:$0xf]
  %v74 = vld [vmem:[%s0 + $0x1c] sm:$0xf]
  %v75 = vld [vmem:[%s0 + $0x20] sm:$0xf]
  %v76 = vld [vmem:[%s0 + $0x24] sm:$0xf]
  %v77 = vld [vmem:[%s0 + $0x28] sm:$0xf]
  %v78 = vld [vmem:[%s0 + $0x2c] sm:$0xf]
  %v79 = vld [vmem:[%s0 + $0x30] sm:$0xf]
  %v80 = vld [vmem:[%s0 + $0x34] sm:$0xf]
  %v81 = vld [vmem:[%s0 + $0x38] sm:$0xf]
  %v82 = vld [vmem:[%s0 + $0x3c] sm:$0xf]
  %v83 = vld [vmem:[%s0 + $0x40] sm:$0xf]
  %v84 = vld [vmem:[%s0 + $0x44] sm:$0xf]
  %v85 = vld [vmem:[%s0 + $0x48] sm:$0xf]
  %v86 = vld [vmem:[%s0 + $0x4c] sm:$0xf]
  %v87 = vld [vmem:[%s0 + $0x50] sm:$0xf]
  %v88 = vld [vmem:[%s0 + $0x54] sm:$0xf]
  %v89 = vld [vmem:[%s0 + $0x58] sm:$0xf]
  %v90 = vld [vmem:[%s0 + $0x5c] sm:$0xf]
  %v91 = vld [vmem:[%s0 + $0x60] sm:$0xf]
  %v92 = vld [vmem:[%s1] sm:$0xf]
  %v118 = vunpack.c.l.b16 %v67
  %v119 = vunpack.c.l.b16 %v68
  %v120 = vunpack.c.l.b16 %v69
  %v121 = vunpack.c.l.b16 %v70
  %v122 = vunpack.c.l.b16 %v71
  %v123 = vunpack.c.l.b16 %v72
  %v124 = vunpack.c.l.b16 %v73
  %v125 = vunpack.c.l.b16 %v74
  %v126 = vunpack.c.l.b16 %v75
  %v127 = vunpack.c.l.b16 %v76
  %v128 = vunpack.c.l.b16 %v77
  %v129 = vunpack.c.l.b16 %v78
  %v130 = vunpack.c.l.b16 %v79
  %v131 = vunpack.c.l.b16 %v80
  %v132 = vunpack.c.l.b16 %v81
  %v133 = vunpack.c.l.b16 %v82
  %v134 = vunpack.c.l.b16 %v83
  %v135 = vunpack.c.l.b16 %v84
  %v136 = vunpack.c.l.b16 %v85
  %v137 = vunpack.c.l.b16 %v86
  %v138 = vunpack.c.l.b16 %v87
  %v139 = vunpack.c.l.b16 %v88
  %v140 = vunpack.c.l.b16 %v89
  %v141 = vunpack.c.l.b16 %v90
  %v142 = vunpack.c.l.b16 %v91
  %v143 = vpack.c.b16 %v119, %v118
  %v144 = vpack.c.b16 %v121, %v120
  %v145 = vpack.c.b16 %v123, %v122
  %v146 = vpack.c.b16 %v125, %v124
  %v147 = vpack.c.b16 %v127, %v126
  %v148 = vpack.c.b16 %v129, %v128
  %v149 = vpack.c.b16 %v131, %v130
  %v150 = vpack.c.b16 %v133, %v132
  %v151 = vpack.c.b16 %v135, %v134
  %v152 = vpack.c.b16 %v137, %v136
  %v153 = vpack.c.b16 %v139, %v138
  %v154 = vpack.c.b16 %v141, %v140
  %v155 = vpack.c.b16 %v142, %v142
  %vm156 = vcmask 64512
  %v158 = vsel %vm156, %v143, 0
  %v161 = vsel %vm156, %v144, 0
  %v164 = vsel %vm156, %v145, 0
  %v167 = vsel %vm156, %v146, 0
  %v170 = vsel %vm156, %v147, 0
  %v173 = vsel %vm156, %v148, 0
  %v176 = vsel %vm156, %v149, 0
  %v179 = vsel %vm156, %v150, 0
  %v182 = vsel %vm156, %v151, 0
  %v185 = vsel %vm156, %v152, 0
  %v188 = vsel %vm156, %v153, 0
  %v191 = vsel %vm156, %v154, 0
  %v194 = vsel %vm156, %v155, 0
  %vm196 = vcmask 1043456
  %v198 = vsel %vm196, %v92, 0
  %200 = vmatprep.subr.bf16.mxu0 0
  %201 = vmatpush1.bf16.msra.mxu0 %v198
  %202 = vmatprep.subr.bf16.mxu0 0
  %203 = vmatpush1.bf16.msra.mxu0 0
  %204 = vmatprep.subr.bf16.mxu0 0
  %205 = vmatpush1.bf16.msra.mxu0 0
  %206 = vmatprep.subr.bf16.mxu0 0
  %207 = vmatpush1.bf16.msra.mxu0 0
  %208 = vmatprep.subr.bf16.mxu0 0
  %209 = vmatpush1.bf16.msra.mxu0 0
  %210 = vmatprep.subr.bf16.mxu0 0
  %211 = vmatpush1.bf16.msra.mxu0 0
  %212 = vmatprep.subr.bf16.mxu0 0
  %213 = vmatpush1.bf16.msra.mxu0 0
  %214 = vmatprep.subr.bf16.mxu0 0
  %215 = vmatpush1.bf16.msra.mxu0 0
  %216 = vmatprep.subr.bf16.mxu0 0
  %217 = vmatpush1.bf16.msra.mxu0 0
  %218 = vmatprep.subr.bf16.mxu0 0
  %219 = vmatpush1.bf16.msra.mxu0 0
  %220 = vmatprep.subr.bf16.mxu0 0
  %221 = vmatpush1.bf16.msra.mxu0 0
  %222 = vmatprep.subr.bf16.mxu0 0
  %223 = vmatpush1.bf16.msra.mxu0 0
  %224 = vmatprep.subr.bf16.mxu0 0
  %225 = vmatpush1.bf16.msra.mxu0 0
  %226 = vmatprep.subr.bf16.mxu0 0
  %227 = vmatpush1.bf16.msra.mxu0 0
  %228 = vmatprep.subr.bf16.mxu0 0
  %229 = vmatpush1.bf16.msra.mxu0 0
  %230 = vmatprep.subr.bf16.mxu0 0
  %231 = vmatpush1.bf16.msra.mxu0 0
  %232 = vmatprep.mubr.bf16.mxu0 0
  %233 = vmatmul.mubr.bf16.gmra.mrb[0].mxu0 %v158
  %v234 = vpop.f32.mrb[0].mxu0
  %v235 = vadd.f32 0.0, %v234
  %v236 = vpop.f32.mrb[0].mxu0
  %v237 = vpop.f32.mrb[0].mxu0
  %v238 = vadd.f32 0.0, %v237
  %v239 = vpop.f32.mrb[0].mxu0
  %240 = vmatprep.mubr.bf16.mxu0 0
  %241 = vmatmul.mubr.bf16.gmra.mrb[0].mxu0 %v161
  %v242 = vpop.f32.mrb[0].mxu0
  %v243 = vadd.f32 0.0, %v242
  %v244 = vpop.f32.mrb[0].mxu0
  %v245 = vpop.f32.mrb[0].mxu0
  %v246 = vadd.f32 0.0, %v245
  %v247 = vpop.f32.mrb[0].mxu0
  %248 = vmatprep.mubr.bf16.mxu0 0
  %249 = vmatmul.mubr.bf16.gmra.mrb[0].mxu0 %v164
  %v250 = vpop.f32.mrb[0].mxu0
  %v251 = vadd.f32 0.0, %v250
  %v252 = vpop.f32.mrb[0].mxu0
  %v253 = vpop.f32.mrb[0].mxu0
  %v254 = vadd.f32 0.0, %v253
  %v255 = vpop.f32.mrb[0].mxu0
  %256 = vmatprep.mubr.bf16.mxu0 0
  %257 = vmatmul.mubr.bf16.gmra.mrb[0].mxu0 %v167
  %v258 = vpop.f32.mrb[0].mxu0
  %v259 = vadd.f32 0.0, %v258
  %v260 = vpop.f32.mrb[0].mxu0
  %v261 = vpop.f32.mrb[0].mxu0
  %v262 = vadd.f32 0.0, %v261
  %v263 = vpop.f32.mrb[0].mxu0
  %264 = vmatprep.mubr.bf16.mxu0 0
  %265 = vmatmul.mubr.bf16.gmra.mrb[0].mxu0 %v170
  %v266 = vpop.f32.mrb[0].mxu0
  %v267 = vadd.f32 0.0, %v266
  %v268 = vpop.f32.mrb[0].mxu0
  %v269 = vpop.f32.mrb[0].mxu0
  %v270 = vadd.f32 0.0, %v269
  %v271 = vpop.f32.mrb[0].mxu0
  %272 = vmatprep.mubr.bf16.mxu0 0
  %273 = vmatmul.mubr.bf16.gmra.mrb[0].mxu0 %v173
  %v274 = vpop.f32.mrb[0].mxu0
  %v275 = vadd.f32 0.0, %v274
  %v276 = vpop.f32.mrb[0].mxu0
  %v277 = vpop.f32.mrb[0].mxu0
  %v278 = vadd.f32 0.0, %v277
  %v279 = vpop.f32.mrb[0].mxu0
  %280 = vmatprep.mubr.bf16.mxu0 0
  %281 = vmatmul.mubr.bf16.gmra.mrb[0].mxu0 %v176
  %v282 = vpop.f32.mrb[0].mxu0
  %v283 = vadd.f32 0.0, %v282
  %v284 = vpop.f32.mrb[0].mxu0
  %v285 = vpop.f32.mrb[0].mxu0
  %v286 = vadd.f32 0.0, %v285
  %v287 = vpop.f32.mrb[0].mxu0
  %288 = vmatprep.mubr.bf16.mxu0 0
  %289 = vmatmul.mubr.bf16.gmra.mrb[0].mxu0 %v179
  %v290 = vpop.f32.mrb[0].mxu0
  %v291 = vadd.f32 0.0, %v290
  %v292 = vpop.f32.mrb[0].mxu0
  %v293 = vpop.f32.mrb[0].mxu0
  %v294 = vadd.f32 0.0, %v293
  %v295 = vpop.f32.mrb[0].mxu0
  %296 = vmatprep.mubr.bf16.mxu0 0
  %297 = vmatmul.mubr.bf16.gmra.mrb[0].mxu0 %v182
  %v298 = vpop.f32.mrb[0].mxu0
  %v299 = vadd.f32 0.0, %v298
  %v300 = vpop.f32.mrb[0].mxu0
  %v301 = vpop.f32.mrb[0].mxu0
  %v302 = vadd.f32 0.0, %v301
  %v303 = vpop.f32.mrb[0].mxu0
  %304 = vmatprep.mubr.bf16.mxu0 0
  %305 = vmatmul.mubr.bf16.gmra.mrb[0].mxu0 %v185
  %v306 = vpop.f32.mrb[0].mxu0
  %v307 = vadd.f32 0.0, %v306
  %v308 = vpop.f32.mrb[0].mxu0
  %v309 = vpop.f32.mrb[0].mxu0
  %v310 = vadd.f32 0.0, %v309
  %v311 = vpop.f32.mrb[0].mxu0
  %312 = vmatprep.mubr.bf16.mxu0 0
  %313 = vmatmul.mubr.bf16.gmra.mrb[0].mxu0 %v188
  %v314 = vpop.f32.mrb[0].mxu0
  %v315 = vadd.f32 0.0, %v314
  %v316 = vpop.f32.mrb[0].mxu0
  %v317 = vpop.f32.mrb[0].mxu0
  %v318 = vadd.f32 0.0, %v317
  %v319 = vpop.f32.mrb[0].mxu0
  %320 = vmatprep.mubr.bf16.mxu0 0
  %321 = vmatmul.mubr.bf16.gmra.mrb[0].mxu0 %v191
  %v322 = vpop.f32.mrb[0].mxu0
  %v323 = vadd.f32 0.0, %v322
  %v324 = vpop.f32.mrb[0].mxu0
  %v325 = vpop.f32.mrb[0].mxu0
  %v326 = vadd.f32 0.0, %v325
  %v327 = vpop.f32.mrb[0].mxu0
  %328 = vmatprep.mubr.bf16.mxu0 0
  %329 = vmatmul.mubr.bf16.gmra.mrb[0].mxu0 %v194
  %v330 = vpop.f32.mrb[0].mxu0
  %v331 = vadd.f32 0.0, %v330
  %v332 = vpop.f32.mrb[0].mxu0
  %v333 = vpop.f32.mrb[0].mxu0
  %v334 = vpop.f32.mrb[0].mxu0
  %335 = vdwg.mxu0
  %v336 = vadd.f32 %v42, %v235
  %v337 = vadd.f32 %v43, %v238
  %v338 = vadd.f32 %v44, %v243
  %v339 = vadd.f32 %v45, %v246
  %v340 = vadd.f32 %v46, %v251
  %v341 = vadd.f32 %v47, %v254
  %v342 = vadd.f32 %v48, %v259
  %v343 = vadd.f32 %v49, %v262
  %v344 = vadd.f32 %v50, %v267
  %v345 = vadd.f32 %v51, %v270
  %v346 = vadd.f32 %v52, %v275
  %v347 = vadd.f32 %v53, %v278
  %v348 = vadd.f32 %v54, %v283
  %v349 = vadd.f32 %v55, %v286
  %v350 = vadd.f32 %v56, %v291
  %v351 = vadd.f32 %v57, %v294
  %v352 = vadd.f32 %v58, %v299
  %v353 = vadd.f32 %v59, %v302
  %v354 = vadd.f32 %v60, %v307
  %v355 = vadd.f32 %v61, %v310
  %v356 = vadd.f32 %v62, %v315
  %v357 = vadd.f32 %v63, %v318
  %v358 = vadd.f32 %v64, %v323
  %v359 = vadd.f32 %v65, %v326
  %v360 = vadd.f32 %v66, %v331
  %361 = vst.msk [vmem:[#allocation2] sm:$0xff] %vm156, %v336
  %362 = vst.msk [vmem:[#allocation2 + $0x8] sm:$0xff] %vm156, %v337
  %363 = vst.msk [vmem:[#allocation2 + $0x10] sm:$0xff] %vm156, %v338
  %364 = vst.msk [vmem:[#allocation2 + $0x18] sm:$0xff] %vm156, %v339
  %365 = vst.msk [vmem:[#allocation2 + $0x20] sm:$0xff] %vm156, %v340
  %366 = vst.msk [vmem:[#allocation2 + $0x28] sm:$0xff] %vm156, %v341
  %367 = vst.msk [vmem:[#allocation2 + $0x30] sm:$0xff] %vm156, %v342
  %368 = vst.msk [vmem:[#allocation2 + $0x38] sm:$0xff] %vm156, %v343
  %369 = vst.msk [vmem:[#allocation2 + $0x40] sm:$0xff] %vm156, %v344
  %370 = vst.msk [vmem:[#allocation2 + $0x48] sm:$0xff] %vm156, %v345
  %371 = vst.msk [vmem:[#allocation2 + $0x50] sm:$0xff] %vm156, %v346
  %372 = vst.msk [vmem:[#allocation2 + $0x58] sm:$0xff] %vm156, %v347
  %373 = vst.msk [vmem:[#allocation2 + $0x60] sm:$0xff] %vm156, %v348
  %374 = vst.msk [vmem:[#allocation2 + $0x68] sm:$0xff] %vm156, %v349
  %375 = vst.msk [vmem:[#allocation2 + $0x70] sm:$0xff] %vm156, %v350
  %376 = vst.msk [vmem:[#allocation2 + $0x78] sm:$0xff] %vm156, %v351
  %377 = vst.msk [vmem:[#allocation2 + $0x80] sm:$0xff] %vm156, %v352
  %378 = vst.msk [vmem:[#allocation2 + $0x88] sm:$0xff] %vm156, %v353
  %379 = vst.msk [vmem:[#allocation2 + $0x90] sm:$0xff] %vm156, %v354
  %380 = vst.msk [vmem:[#allocation2 + $0x98] sm:$0xff] %vm156, %v355
  %381 = vst.msk [vmem:[#allocation2 + $0xa0] sm:$0xff] %vm156, %v356
  %382 = vst.msk [vmem:[#allocation2 + $0xa8] sm:$0xff] %vm156, %v357
  %383 = vst.msk [vmem:[#allocation2 + $0xb0] sm:$0xff] %vm156, %v358
  %384 = vst.msk [vmem:[#allocation2 + $0xb8] sm:$0xff] %vm156, %v359
  %385 = vst.msk [vmem:[#allocation2 + $0xc0] sm:$0xff] %vm156, %v360
  // Predicated region
  $region14: #{mamba_block_forward.20} parent=0 // pred_check
    %p386 = pneg %p12
  $region15: #{mamba_block_forward.20} parent=0 // pred_check_branch
    %388 = sbr.rel (%p386) target = $region17
  $region16: #{mamba_block_forward.20} parent=0 // pred_region
    %v389 = vld [vmem:[#allocation2] sm:$0xff]
    %v390 = vld [vmem:[#allocation2 + $0x8] sm:$0xff]
    %v391 = vld [vmem:[#allocation2 + $0x10] sm:$0xff]
    %v392 = vld [vmem:[#allocation2 + $0x18] sm:$0xff]
    %v393 = vld [vmem:[#allocation2 + $0x20] sm:$0xff]
    %v394 = vld [vmem:[#allocation2 + $0x28] sm:$0xff]
    %v395 = vld [vmem:[#allocation2 + $0x30] sm:$0xff]
    %v396 = vld [vmem:[#allocation2 + $0x38] sm:$0xff]
    %v397 = vld [vmem:[#allocation2 + $0x40] sm:$0xff]
    %v398 = vld [vmem:[#allocation2 + $0x48] sm:$0xff]
    %v399 = vld [vmem:[#allocation2 + $0x50] sm:$0xff]
    %v400 = vld [vmem:[#allocation2 + $0x58] sm:$0xff]
    %v401 = vld [vmem:[#allocation2 + $0x60] sm:$0xff]
    %v402 = vld [vmem:[#allocation2 + $0x68] sm:$0xff]
    %v403 = vld [vmem:[#allocation2 + $0x70] sm:$0xff]
    %v404 = vld [vmem:[#allocation2 + $0x78] sm:$0xff]
    %v405 = vld [vmem:[#allocation2 + $0x80] sm:$0xff]
    %v406 = vld [vmem:[#allocation2 + $0x88] sm:$0xff]
    %v407 = vld [vmem:[#allocation2 + $0x90] sm:$0xff]
    %v408 = vld [vmem:[#allocation2 + $0x98] sm:$0xff]
    %v409 = vld [vmem:[#allocation2 + $0xa0] sm:$0xff]
    %v410 = vld [vmem:[#allocation2 + $0xa8] sm:$0xff]
    %v411 = vld [vmem:[#allocation2 + $0xb0] sm:$0xff]
    %v412 = vld [vmem:[#allocation2 + $0xb8] sm:$0xff]
    %v413 = vld [vmem:[#allocation2 + $0xc0] sm:$0xff]
    %v414 = vpack.c.bf16 %v390, %v389
    %v415 = vpack.c.bf16 %v392, %v391
    %v416 = vpack.c.bf16 %v394, %v393
    %v417 = vpack.c.bf16 %v396, %v395
    %v418 = vpack.c.bf16 %v398, %v397
    %v419 = vpack.c.bf16 %v400, %v399
    %v420 = vpack.c.bf16 %v402, %v401
    %v421 = vpack.c.bf16 %v404, %v403
    %v422 = vpack.c.bf16 %v406, %v405
    %v423 = vpack.c.bf16 %v408, %v407
    %v424 = vpack.c.bf16 %v410, %v409
    %v425 = vpack.c.bf16 %v412, %v411
    %v426 = vpack.c.bf16 %v413, %v413
    %v440 = vunpack.c.l.b16 %v414
    %v441 = vunpack.c.h.b16 %v414
    %v442 = vunpack.c.l.b16 %v415
    %v443 = vunpack.c.h.b16 %v415
    %v444 = vunpack.c.l.b16 %v416
    %v445 = vunpack.c.h.b16 %v416
    %v446 = vunpack.c.l.b16 %v417
    %v447 = vunpack.c.h.b16 %v417
    %v448 = vunpack.c.l.b16 %v418
    %v449 = vunpack.c.h.b16 %v418
    %v450 = vunpack.c.l.b16 %v419
    %v451 = vunpack.c.h.b16 %v419
    %v452 = vunpack.c.l.b16 %v420
    %v453 = vunpack.c.h.b16 %v420
    %v454 = vunpack.c.l.b16 %v421
    %v455 = vunpack.c.h.b16 %v421
    %v456 = vunpack.c.l.b16 %v422
    %v457 = vunpack.c.h.b16 %v422
    %v458 = vunpack.c.l.b16 %v423
    %v459 = vunpack.c.h.b16 %v423
    %v460 = vunpack.c.l.b16 %v424
    %v461 = vunpack.c.h.b16 %v424
    %v462 = vunpack.c.l.b16 %v425
    %v463 = vunpack.c.h.b16 %v425
    %v464 = vunpack.c.l.b16 %v426
    %v465 = vpack.c.b16 %v440, %v440
    %v466 = vpack.c.b16 %v441, %v441
    %v467 = vpack.c.b16 %v442, %v442
    %v468 = vpack.c.b16 %v443, %v443
    %v469 = vpack.c.b16 %v444, %v444
    %v470 = vpack.c.b16 %v445, %v445
    %v471 = vpack.c.b16 %v446, %v446
    %v472 = vpack.c.b16 %v447, %v447
    %v473 = vpack.c.b16 %v448, %v448
    %v474 = vpack.c.b16 %v449, %v449
    %v475 = vpack.c.b16 %v450, %v450
    %v476 = vpack.c.b16 %v451, %v451
    %v477 = vpack.c.b16 %v452, %v452
    %v478 = vpack.c.b16 %v453, %v453
    %v479 = vpack.c.b16 %v454, %v454
    %v480 = vpack.c.b16 %v455, %v455
    %v481 = vpack.c.b16 %v456, %v456
    %v482 = vpack.c.b16 %v457, %v457
    %v483 = vpack.c.b16 %v458, %v458
    %v484 = vpack.c.b16 %v459, %v459
    %v485 = vpack.c.b16 %v460, %v460
    %v486 = vpack.c.b16 %v461, %v461
    %v487 = vpack.c.b16 %v462, %v462
    %v488 = vpack.c.b16 %v463, %v463
    %v489 = vpack.c.b16 %v464, %v464
    %vm515 = vcmask 60416
    %516 = vst.msk [vmem:[%s2] sm:$0xf] %vm515, %v465
    %517 = vst.msk [vmem:[%s2 + $0x4] sm:$0xf] %vm515, %v466
    %518 = vst.msk [vmem:[%s2 + $0x8] sm:$0xf] %vm515, %v467
    %519 = vst.msk [vmem:[%s2 + $0xc] sm:$0xf] %vm515, %v468
    %520 = vst.msk [vmem:[%s2 + $0x10] sm:$0xf] %vm515, %v469
    %521 = vst.msk [vmem:[%s2 + $0x14] sm:$0xf] %vm515, %v470
    %522 = vst.msk [vmem:[%s2 + $0x18] sm:$0xf] %vm515, %v471
    %523 = vst.msk [vmem:[%s2 + $0x1c] sm:$0xf] %vm515, %v472
    %524 = vst.msk [vmem:[%s2 + $0x20] sm:$0xf] %vm515, %v473
    %525 = vst.msk [vmem:[%s2 + $0x24] sm:$0xf] %vm515, %v474
    %526 = vst.msk [vmem:[%s2 + $0x28] sm:$0xf] %vm515, %v475
    %527 = vst.msk [vmem:[%s2 + $0x2c] sm:$0xf] %vm515, %v476
    %528 = vst.msk [vmem:[%s2 + $0x30] sm:$0xf] %vm515, %v477
    %529 = vst.msk [vmem:[%s2 + $0x34] sm:$0xf] %vm515, %v478
    %530 = vst.msk [vmem:[%s2 + $0x38] sm:$0xf] %vm515, %v479
    %531 = vst.msk [vmem:[%s2 + $0x3c] sm:$0xf] %vm515, %v480
    %532 = vst.msk [vmem:[%s2 + $0x40] sm:$0xf] %vm515, %v481
    %533 = vst.msk [vmem:[%s2 + $0x44] sm:$0xf] %vm515, %v482
    %534 = vst.msk [vmem:[%s2 + $0x48] sm:$0xf] %vm515, %v483
    %535 = vst.msk [vmem:[%s2 + $0x4c] sm:$0xf] %vm515, %v484
    %536 = vst.msk [vmem:[%s2 + $0x50] sm:$0xf] %vm515, %v485
    %537 = vst.msk [vmem:[%s2 + $0x54] sm:$0xf] %vm515, %v486
    %538 = vst.msk [vmem:[%s2 + $0x58] sm:$0xf] %vm515, %v487
    %539 = vst.msk [vmem:[%s2 + $0x5c] sm:$0xf] %vm515, %v488
    %540 = vst.msk [vmem:[%s2 + $0x60] sm:$0xf] %vm515, %v489
  $region17: #{mamba_block_forward.20} parent=0 // pred_fallthru
    _
  // Predicated region
  $region18: #{mamba_block_forward.20} parent=0 // pred_check
    _
  $region19: #{mamba_block_forward.20} parent=0 // pred_check_branch
    %542 = sbr.rel (0) target = $region21
  $region20: #{mamba_block_forward.20} parent=0 // pred_region
    _
  $region21: #{mamba_block_forward.20} parent=0 // pred_fallthru
    _
  // Predicated region
  $region22: #{mamba_block_forward.20} parent=0 // pred_check
    _
  $region23: #{mamba_block_forward.20} parent=0 // pred_check_branch
    %544 = sbr.rel (0) target = $region25
  $region24: #{mamba_block_forward.20} parent=0 // pred_region
    _
  $region25: #{mamba_block_forward.20} parent=0 // pred_fallthru
    _

// kernel: mamba_block_forward.21
$region0: #{mamba_block_forward.21}
  #allocation0 [shape = 'u32[]', space=smem, size = 0x4, offset = 0x4, fixed_abs, tag = 'smem constant byte address 0x4 - core index']
  #allocation1 [shape = 'u32[144,128]{1,0:T(1,128)}', space=vmem, size = 0x12000, scoped, tag = 'internal scratch']
  #allocation2 [shape = 'f32[103,8]{1,0:T(8,128)}', space=vmem, size = 0xd000, scoped, tag = 'scratch operand']
  %s0 = inlined_call_operand.vmem [shape: bf16[2,100,8], index: 0, kind: input, shape index: {}]
  %s1 = inlined_call_operand.vmem [shape: f32[4,8], index: 1, kind: input, shape index: {}]
  %s2 = inlined_call_operand.vmem [shape: f32[1,8], index: 2, kind: input, shape index: {}]
  %s3 = inlined_call_operand.vmem [shape: bf16[2,100,8], index: 3, kind: output, shape index: {}]
  %s4 = sld [smem:[#allocation0]]
  $region45: #{mamba_block_forward.21} parent=0
    _
  %s6 = ssub.s32 1, %s4
  %s7 = scalar_select 0, %s6, %s4
  loop: start=0, step=1, limit=4
  $region2: #{mamba_block_forward.21} parent=0 // loop_pre_header
    _
  $region3: #{mamba_block_forward.21} parent=0 // loop_header
    %s9 = sphi 0, %s13
    %p10 = scmp.ge.s32.totalorder %s9, 4
    %s16 = sphi 0, %s28
    %s17 = sphi 0, %s24
    %s18 = sphi 0, %s16
    %s19 = sphi 0, %s17
    %s20 = sphi 0, %s18
    %s21 = sphi 0, %s19
    %s33 = sphi 0, %s35
    %s36 = sphi 0, %s33
    %s37 = sphi 0, %s36
    %s53 = sphi 0, %s37
    %s59 = sphi 0, %s61
    %s62 = sphi 0, %s59
    %s63 = sphi 0, %s62
    %s79 = sphi 0, %s63
    %s85 = sphi 0, %s87
    %s88 = sphi 0, %s85
    %s89 = sphi 0, %s88
    %s105 = sphi 0, %s89
    %s113 = sphi 0, %s115
    %s116 = sphi 0, %s113
    %s117 = sphi 0, %s116
    %s133 = sphi 0, %s117
  $region4: #{mamba_block_forward.21} parent=0 // loop_header_branch
    %12 = sbr.rel (%p10) target = $region8
  $region5: #{mamba_block_forward.21} parent=0 // loop_body
    %s14 = ssub.s32 %s9, 1
    %s15 = ssub.s32 %s9, 2
    %s22 = sadd.s32 1, %s17
    %p23 = scmp.ge.s32.totalorder %s22, 1
    %s24 = scalar_select %p23, 0, %s22
    %s25 = sadd.s32 1, %s16
    %s26 = scalar_select %p23, %s25, %s16
    %p27 = scmp.ge.s32.totalorder %s26, 2
    %s28 = scalar_select %p27, 0, %s26
    %s29 = ssub.s32 %s16, %s28
    %s30 = ssub.s32 %s17, %s24
    %s31 = sor.u32 %s29, %s30
    %p32 = scmp.eq.s32.totalorder %s31, 0
    %s34 = sadd.s32 %s33, 1
    %s35 = scalar_select %p32, %s33, %s34
    %p38 = pneg %p32
    %p39 = scmp.eq.s32.totalorder %s9, 1
    %p40 = por %p38, %p39
    %p41 = scmp.ne.s32.totalorder %s33, %s36
    %p42 = scmp.eq.s32.totalorder %s9, 0
    %p43 = por %p41, %p42
    %p44 = scmp.ne.s32.totalorder %s33, %s36
    %p45 = scmp.eq.s32.totalorder %s14, 1
    %p46 = por %p44, %p45
    %p47 = scmp.ne.s32.totalorder %s36, %s37
    %p48 = scmp.eq.s32.totalorder %s14, 0
    %p49 = por %p47, %p48
    %p50 = scmp.ne.s32.totalorder %s36, %s37
    %p51 = scmp.eq.s32.totalorder %s15, 1
    %p52 = por %p50, %p51
    %p54 = scmp.ne.s32.totalorder %s37, %s53
    %p55 = scmp.eq.s32.totalorder %s15, 0
    %p56 = por %p54, %p55
    %s57 = ssub.s32 %s17, %s24
    %p58 = scmp.eq.s32.totalorder %s57, 0
    %s60 = sadd.s32 %s59, 1
    %s61 = scalar_select %p58, %s59, %s60
    %p64 = pneg %p58
    %p65 = scmp.eq.s32.totalorder %s9, 1
    %p66 = por %p64, %p65
    %p67 = scmp.ne.s32.totalorder %s59, %s62
    %p68 = scmp.eq.s32.totalorder %s9, 0
    %p69 = por %p67, %p68
    %p70 = scmp.ne.s32.totalorder %s59, %s62
    %p71 = scmp.eq.s32.totalorder %s14, 1
    %p72 = por %p70, %p71
    %p73 = scmp.ne.s32.totalorder %s62, %s63
    %p74 = scmp.eq.s32.totalorder %s14, 0
    %p75 = por %p73, %p74
    %p76 = scmp.ne.s32.totalorder %s62, %s63
    %p77 = scmp.eq.s32.totalorder %s15, 1
    %p78 = por %p76, %p77
    %p80 = scmp.ne.s32.totalorder %s63, %s79
    %p81 = scmp.eq.s32.totalorder %s15, 0
    %p82 = por %p80, %p81
    %s83 = ssub.s32 %s17, %s24
    %p84 = scmp.eq.s32.totalorder %s83, 0
    %s86 = sadd.s32 %s85, 1
    %s87 = scalar_select %p84, %s85, %s86
    %p90 = pneg %p84
    %p91 = scmp.eq.s32.totalorder %s9, 1
    %p92 = por %p90, %p91
    %p93 = scmp.ne.s32.totalorder %s85, %s88
    %p94 = scmp.eq.s32.totalorder %s9, 0
    %p95 = por %p93, %p94
    %p96 = scmp.ne.s32.totalorder %s85, %s88
    %p97 = scmp.eq.s32.totalorder %s14, 1
    %p98 = por %p96, %p97
    %p99 = scmp.ne.s32.totalorder %s88, %s89
    %p100 = scmp.eq.s32.totalorder %s14, 0
    %p101 = por %p99, %p100
    %p102 = scmp.ne.s32.totalorder %s88, %s89
    %p103 = scmp.eq.s32.totalorder %s15, 1
    %p104 = por %p102, %p103
    %p106 = scmp.ne.s32.totalorder %s89, %s105
    %p107 = scmp.eq.s32.totalorder %s15, 0
    %p108 = por %p106, %p107
    %s109 = ssub.s32 %s16, %s28
    %s110 = ssub.s32 %s17, %s24
    %s111 = sor.u32 %s109, %s110
    %p112 = scmp.eq.s32.totalorder %s111, 0
    %s114 = sadd.s32 %s113, 1
    %s115 = scalar_select %p112, %s113, %s114
    %p118 = pneg %p112
    %p119 = scmp.eq.s32.totalorder %s9, 1
    %p120 = por %p118, %p119
    %p121 = scmp.ne.s32.totalorder %s113, %s116
    %p122 = scmp.eq.s32.totalorder %s9, 0
    %p123 = por %p121, %p122
    %p124 = scmp.ne.s32.totalorder %s113, %s116
    %p125 = scmp.eq.s32.totalorder %s14, 1
    %p126 = por %p124, %p125
    %p127 = scmp.ne.s32.totalorder %s116, %s117
    %p128 = scmp.eq.s32.totalorder %s14, 0
    %p129 = por %p127, %p128
    %p130 = scmp.ne.s32.totalorder %s116, %s117
    %p131 = scmp.eq.s32.totalorder %s15, 1
    %p132 = por %p130, %p131
    %p134 = scmp.ne.s32.totalorder %s117, %s133
    %p135 = scmp.eq.s32.totalorder %s15, 0
    %p136 = por %p134, %p135
    %p137 = scmp.le.s32.totalorder 1, %s9
    %p138 = scmp.lt.s32.totalorder %s9, 3
    %p139 = pnand %p137, %p138
    %p140 = pneg %p139
    // Predicated region
    $region9: #{mamba_block_forward.21} parent=5 // pred_check
      _
    $region10: #{mamba_block_forward.21} parent=5 // pred_check_branch
      %142 = sbr.rel (%p139) target = $region12
    $region11: #{mamba_block_forward.21} parent=5 // pred_region
      %s143 = ssub.s32 %s9, 1
      // Predicated region
      $region13: #{mamba_block_forward.21} parent=11 // pred_check
        %p144 = pneg %p75
      $region14: #{mamba_block_forward.21} parent=11 // pred_check_branch
        %146 = sbr.rel (%p144) target = $region16
      $region15: #{mamba_block_forward.21} parent=11 // pred_region
        %p147 = scmp.lt.s32.totalorder %s19, 0
        %s148 = scalar_select %p147, %s19, 0
        %s149 = smul.addr %s148, 4
        %s150 = scalar_lea.vmem %s1, %s149
      $region16: #{mamba_block_forward.21} parent=11 // pred_fallthru
        _
      // Predicated region
      $region17: #{mamba_block_forward.21} parent=11 // pred_check
        %p151 = pneg %p101
      $region18: #{mamba_block_forward.21} parent=11 // pred_check_branch
        %153 = sbr.rel (%p151) target = $region20
      $region19: #{mamba_block_forward.21} parent=11 // pred_region
        %p154 = scmp.lt.s32.totalorder %s19, 0
        %s155 = scalar_select %p154, %s19, 0
        %s156 = scalar_lea.vmem %s2, %s155
      $region20: #{mamba_block_forward.21} parent=11 // pred_fallthru
        _
    $region12: #{mamba_block_forward.21} parent=5 // pred_fallthru
      _
    %p157 = scmp.lt.s32.totalorder %s9, 2
    // Predicated region
    $region21: #{mamba_block_forward.21} parent=5 // pred_check
      %p158 = pneg %p157
    $region22: #{mamba_block_forward.21} parent=5 // pred_check_branch
      %160 = sbr.rel (%p158) target = $region24
    $region23: #{mamba_block_forward.21} parent=5 // pred_region
      // Predicated region
      $region25: #{mamba_block_forward.21} parent=23 // pred_check
        %p161 = pneg %p43
      $region26: #{mamba_block_forward.21} parent=23 // pred_check_branch
        %163 = sbr.rel (%p161) target = $region28
      $region27: #{mamba_block_forward.21} parent=23 // pred_region
        %p164 = scmp.lt.s32.totalorder %s16, 1
        %s165 = scalar_select %p164, %s16, 1
        %p166 = scmp.lt.s32.totalorder %s17, 0
        %s167 = scalar_select %p166, %s17, 0
        %s168 = smul.addr %s165, 13
        %s169 = sadd.s32 %s167, %s168
        %s170 = smul.addr %s169, 4
        %s171 = scalar_lea.vmem %s0, %s170
      $region28: #{mamba_block_forward.21} parent=23 // pred_fallthru
        _
    $region24: #{mamba_block_forward.21} parent=5 // pred_fallthru
      _
    %p172 = scmp.le.s32.totalorder 1, %s9
    %p173 = scmp.lt.s32.totalorder %s9, 3
    %p174 = pnand %p172, %p173
    %p175 = pneg %p174
    // Predicated region
    $region29: #{mamba_block_forward.21} parent=5 // pred_check
      _
    $region30: #{mamba_block_forward.21} parent=5 // pred_check_branch
      %177 = sbr.rel (%p174) target = $region32
    $region31: #{mamba_block_forward.21} parent=5 // pred_region
      %s178 = ssub.s32 %s9, 1
      %p179 = scmp.lt.s32.totalorder %s18, 1
      %s180 = scalar_select %p179, %s18, 1
      %p181 = scmp.lt.s32.totalorder %s19, 0
      %s182 = scalar_select %p181, %s19, 0
      %s183 = smul.addr %s180, 13
      %s184 = sadd.s32 %s182, %s183
      %s185 = smul.addr %s184, 4
      %s186 = scalar_lea.vmem %s0, %s185
      %p187 = pneg %p49
      %p188 = pneg %p46
      %p189 = scmp.lt.s32.totalorder %s19, 0
      %s190 = scalar_select %p189, %s19, 0
      %s191 = smul.addr %s190, 4
      %s192 = scalar_lea.vmem %s1, %s191
      %p193 = pneg %p75
      %p194 = pneg %p72
      %p195 = scmp.lt.s32.totalorder %s19, 0
      %s196 = scalar_select %p195, %s19, 0
      %s197 = scalar_lea.vmem %s2, %s196
      %p198 = pneg %p101
      %p199 = pneg %p98
      %p200 = pneg %p129
      %p201 = pneg %p126
      %p202 = scmp.lt.s32.totalorder %s18, 1
      %s203 = scalar_select %p202, %s18, 1
      %p204 = scmp.lt.s32.totalorder %s19, 0
      %s205 = scalar_select %p204, %s19, 0
      %s206 = smul.addr %s203, 13
      %s207 = sadd.s32 %s205, %s206
      %s208 = smul.addr %s207, 4
      %s209 = scalar_lea.vmem %s3, %s208
      %p210 = scmp.lt.s32.totalorder %s18, 1
      %s211 = scalar_select %p210, %s18, 1
      %p212 = scmp.lt.s32.totalorder %s19, 0
      %s213 = scalar_select %p212, %s19, 0
      %s214 = smul.addr %s211, 13
      %s215 = sadd.s32 %s213, %s214
      %s216 = smul.addr %s215, 4
      %s217 = scalar_lea.vmem %s0, %s216
      %p218 = scmp.lt.s32.totalorder %s19, 0
      %s219 = scalar_select %p218, %s19, 0
      %s220 = smul.addr %s219, 4
      %s221 = scalar_lea.vmem %s1, %s220
      %p222 = scmp.lt.s32.totalorder %s19, 0
      %s223 = scalar_select %p222, %s19, 0
      %s224 = scalar_lea.vmem %s2, %s223
      %p225 = scmp.lt.s32.totalorder %s18, 1
      %s226 = scalar_select %p225, %s18, 1
      %p227 = scmp.lt.s32.totalorder %s19, 0
      %s228 = scalar_select %p227, %s19, 0
      %s229 = smul.addr %s226, 13
      %s230 = sadd.s32 %s228, %s229
      %s231 = smul.addr %s230, 4
      %s232 = scalar_lea.vmem %s3, %s231
      %vm233 = vcmask 59392
      %234 = vst.msk [vmem:[#allocation2] sm:$0x7] %vm233, 0.0
      %v235 = vld [vmem:[%s217] sm:$0xf]
      %v236 = vld [vmem:[%s217 + $0x4] sm:$0xf]
      %v237 = vld [vmem:[%s217 + $0x8] sm:$0xf]
      %v238 = vld [vmem:[%s217 + $0xc] sm:$0xf]
      %v239 = vld [vmem:[%s217 + $0x10] sm:$0xf]
      %v240 = vld [vmem:[%s217 + $0x14] sm:$0xf]
      %v241 = vld [vmem:[%s217 + $0x18] sm:$0xf]
      %v242 = vld [vmem:[%s217 + $0x1c] sm:$0xf]
      %v243 = vld [vmem:[%s217 + $0x20] sm:$0xf]
      %v244 = vld [vmem:[%s217 + $0x24] sm:$0xf]
      %v245 = vld [vmem:[%s217 + $0x28] sm:$0xf]
      %v246 = vld [vmem:[%s217 + $0x2c] sm:$0xf]
      %v247 = vld [vmem:[%s217 + $0x30] sm:$0x3]
      %v248 = vunpack.c.l.bf16 %v235
      %v249 = vunpack.c.l.bf16 %v236
      %v250 = vunpack.c.l.bf16 %v237
      %v251 = vunpack.c.l.bf16 %v238
      %v252 = vunpack.c.l.bf16 %v239
      %v253 = vunpack.c.l.bf16 %v240
      %v254 = vunpack.c.l.bf16 %v241
      %v255 = vunpack.c.l.bf16 %v242
      %v256 = vunpack.c.l.bf16 %v243
      %v257 = vunpack.c.l.bf16 %v244
      %v258 = vunpack.c.l.bf16 %v245
      %v259 = vunpack.c.l.bf16 %v246
      %v260 = vunpack.c.l.bf16 %v247
      %vm261 = vcmask 64512
      %262 = vst.msk [vmem:[#allocation2 + $0x3] sm:$0xff] %vm261, %v248
      %263 = vst.msk [vmem:[#allocation2 + $0xb] sm:$0xff] %vm261, %v249
      %264 = vst.msk [vmem:[#allocation2 + $0x13] sm:$0xff] %vm261, %v250
      %265 = vst.msk [vmem:[#allocation2 + $0x1b] sm:$0xff] %vm261, %v251
      %266 = vst.msk [vmem:[#allocation2 + $0x23] sm:$0xff] %vm261, %v252
      %267 = vst.msk [vmem:[#allocation2 + $0x2b] sm:$0xff] %vm261, %v253
      %268 = vst.msk [vmem:[#allocation2 + $0x33] sm:$0xff] %vm261, %v254
      %269 = vst.msk [vmem:[#allocation2 + $0x3b] sm:$0xff] %vm261, %v255
      %270 = vst.msk [vmem:[#allocation2 + $0x43] sm:$0xff] %vm261, %v256
      %271 = vst.msk [vmem:[#allocation2 + $0x4b] sm:$0xff] %vm261, %v257
      %272 = vst.msk [vmem:[#allocation2 + $0x53] sm:$0xff] %vm261, %v258
      %273 = vst.msk [vmem:[#allocation2 + $0x5b] sm:$0xff] %vm261, %v259
      %vm274 = vcmask 60416
      %275 = vst.msk [vmem:[#allocation2 + $0x63] sm:$0xf] %vm274, %v260
      %v276 = vld [vmem:[%s221] sm:$0xf]
      %v277 = vld [vmem:[#allocation2] sm:$0xff]
      %v278 = vld [vmem:[#allocation2 + $0x8] sm:$0xff]
      %v279 = vld [vmem:[#allocation2 + $0x10] sm:$0xff]
      %v280 = vld [vmem:[#allocation2 + $0x18] sm:$0xff]
      %v281 = vld [vmem:[#allocation2 + $0x20] sm:$0xff]
      %v282 = vld [vmem:[#allocation2 + $0x28] sm:$0xff]
      %v283 = vld [vmem:[#allocation2 + $0x30] sm:$0xff]
      %v284 = vld [vmem:[#allocation2 + $0x38] sm:$0xff]
      %v285 = vld [vmem:[#allocation2 + $0x40] sm:$0xff]
      %v286 = vld [vmem:[#allocation2 + $0x48] sm:$0xff]
      %v287 = vld [vmem:[#allocation2 + $0x50] sm:$0xff]
      %v288 = vld [vmem:[#allocation2 + $0x58] sm:$0xff]
      %v289 = vld [vmem:[#allocation2 + $0x60] sm:$0xf]
      %v290 = vlaneseq
      %v291 = vshrl.u32 %v290, 7
      %v292 = vsub.s32 0, %v291
      %v293 = vrot.slane %v276, %v292
      %v294 = vmul.f32 %v277, %v293
      %v295 = vmul.f32 %v278, %v293
      %v296 = vmul.f32 %v279, %v293
      %v297 = vmul.f32 %v280, %v293
      %v298 = vmul.f32 %v281, %v293
      %v299 = vmul.f32 %v282, %v293
      %v300 = vmul.f32 %v283, %v293
      %v301 = vmul.f32 %v284, %v293
      %v302 = vmul.f32 %v285, %v293
      %v303 = vmul.f32 %v286, %v293
      %v304 = vmul.f32 %v287, %v293
      %v305 = vmul.f32 %v288, %v293
      %v306 = vmul.f32 %v289, %v293
      %v307 = vld [vmem:[#allocation2 + $0x1] sm:$0xff]
      %v308 = vld [vmem:[#allocation2 + $0x9] sm:$0xff]
      %v309 = vld [vmem:[#allocation2 + $0x11] sm:$0xff]
      %v310 = vld [vmem:[#allocation2 + $0x19] sm:$0xff]
      %v311 = vld [vmem:[#allocation2 + $0x21] sm:$0xff]
      %v312 = vld [vmem:[#allocation2 + $0x29] sm:$0xff]
      %v313 = vld [vmem:[#allocation2 + $0x31] sm:$0xff]
      %v314 = vld [vmem:[#allocation2 + $0x39] sm:$0xff]
      %v315 = vld [vmem:[#allocation2 + $0x41] sm:$0xff]
      %v316 = vld [vmem:[#allocation2 + $0x49] sm:$0xff]
      %v317 = vld [vmem:[#allocation2 + $0x51] sm:$0xff]
      %v318 = vld [vmem:[#allocation2 + $0x59] sm:$0xff]
      %v319 = vld [vmem:[#allocation2 + $0x61] sm:$0xf]
      %v320 = vlaneseq
      %v321 = vshrl.u32 %v320, 7
      %v322 = vsub.s32 1, %v321
      %v323 = vrot.slane %v276, %v322
      %v324 = vmul.f32 %v307, %v323
      %v325 = vmul.f32 %v308, %v323
      %v326 = vmul.f32 %v309, %v323
      %v327 = vmul.f32 %v310, %v323
      %v328 = vmul.f32 %v311, %v323
      %v329 = vmul.f32 %v312, %v323
      %v330 = vmul.f32 %v313, %v323
      %v331 = vmul.f32 %v314, %v323
      %v332 = vmul.f32 %v315, %v323
      %v333 = vmul.f32 %v316, %v323
      %v334 = vmul.f32 %v317, %v323
      %v335 = vmul.f32 %v318, %v323
      %v336 = vmul.f32 %v319, %v323
      %v337 = vadd.f32 %v294, %v324
      %v338 = vadd.f32 %v295, %v325
      %v339 = vadd.f32 %v296, %v326
      %v340 = vadd.f32 %v297, %v327
      %v341 = vadd.f32 %v298, %v328
      %v342 = vadd.f32 %v299, %v329
      %v343 = vadd.f32 %v300, %v330
      %v344 = vadd.f32 %v301, %v331
      %v345 = vadd.f32 %v302, %v332
      %v346 = vadd.f32 %v303, %v333
      %v347 = vadd.f32 %v304, %v334
      %v348 = vadd.f32 %v305, %v335
      %v349 = vadd.f32 %v306, %v336
      %v350 = vld [vmem:[#allocation2 + $0x2] sm:$0xff]
      %v351 = vld [vmem:[#allocation2 + $0xa] sm:$0xff]
      %v352 = vld [vmem:[#allocation2 + $0x12] sm:$0xff]
      %v353 = vld [vmem:[#allocation2 + $0x1a] sm:$0xff]
      %v354 = vld [vmem:[#allocation2 + $0x22] sm:$0xff]
      %v355 = vld [vmem:[#allocation2 + $0x2a] sm:$0xff]
      %v356 = vld [vmem:[#allocation2 + $0x32] sm:$0xff]
      %v357 = vld [vmem:[#allocation2 + $0x3a] sm:$0xff]
      %v358 = vld [vmem:[#allocation2 + $0x42] sm:$0xff]
      %v359 = vld [vmem:[#allocation2 + $0x4a] sm:$0xff]
      %v360 = vld [vmem:[#allocation2 + $0x52] sm:$0xff]
      %v361 = vld [vmem:[#allocation2 + $0x5a] sm:$0xff]
      %v362 = vld [vmem:[#allocation2 + $0x62] sm:$0xf]
      %v363 = vlaneseq
      %v364 = vshrl.u32 %v363, 7
      %v365 = vsub.s32 2, %v364
      %v366 = vrot.slane %v276, %v365
      %v367 = vmul.f32 %v350, %v366
      %v368 = vmul.f32 %v351, %v366
      %v369 = vmul.f32 %v352, %v366
      %v370 = vmul.f32 %v353, %v366
      %v371 = vmul.f32 %v354, %v366
      %v372 = vmul.f32 %v355, %v366
      %v373 = vmul.f32 %v356, %v366
      %v374 = vmul.f32 %v357, %v366
      %v375 = vmul.f32 %v358, %v366
      %v376 = vmul.f32 %v359, %v366
      %v377 = vmul.f32 %v360, %v366
      %v378 = vmul.f32 %v361, %v366
      %v379 = vmul.f32 %v362, %v366
      %v380 = vadd.f32 %v337, %v367
      %v381 = vadd.f32 %v338, %v368
      %v382 = vadd.f32 %v339, %v369
      %v383 = vadd.f32 %v340, %v370
      %v384 = vadd.f32 %v341, %v371
      %v385 = vadd.f32 %v342, %v372
      %v386 = vadd.f32 %v343, %v373
      %v387 = vadd.f32 %v344, %v374
      %v388 = vadd.f32 %v345, %v375
      %v389 = vadd.f32 %v346, %v376
      %v390 = vadd.f32 %v347, %v377
      %v391 = vadd.f32 %v348, %v378
      %v392 = vadd.f32 %v349, %v379
      %v393 = vld [vmem:[#allocation2 + $0x3] sm:$0xff]
      %v394 = vld [vmem:[#allocation2 + $0xb] sm:$0xff]
      %v395 = vld [vmem:[#allocation2 + $0x13] sm:$0xff]
      %v396 = vld [vmem:[#allocation2 + $0x1b] sm:$0xff]
      %v397 = vld [vmem:[#allocation2 + $0x23] sm:$0xff]
      %v398 = vld [vmem:[#allocation2 + $0x2b] sm:$0xff]
      %v399 = vld [vmem:[#allocation2 + $0x33] sm:$0xff]
      %v400 = vld [vmem:[#allocation2 + $0x3b] sm:$0xff]
      %v401 = vld [vmem:[#allocation2 + $0x43] sm:$0xff]
      %v402 = vld [vmem:[#allocation2 + $0x4b] sm:$0xff]
      %v403 = vld [vmem:[#allocation2 + $0x53] sm:$0xff]
      %v404 = vld [vmem:[#allocation2 + $0x5b] sm:$0xff]
      %v405 = vld [vmem:[#allocation2 + $0x63] sm:$0xf]
      %v406 = vlaneseq
      %v407 = vshrl.u32 %v406, 7
      %v408 = vsub.s32 3, %v407
      %v409 = vrot.slane %v276, %v408
      %v410 = vmul.f32 %v393, %v409
      %v411 = vmul.f32 %v394, %v409
      %v412 = vmul.f32 %v395, %v409
      %v413 = vmul.f32 %v396, %v409
      %v414 = vmul.f32 %v397, %v409
      %v415 = vmul.f32 %v398, %v409
      %v416 = vmul.f32 %v399, %v409
      %v417 = vmul.f32 %v400, %v409
      %v418 = vmul.f32 %v401, %v409
      %v419 = vmul.f32 %v402, %v409
      %v420 = vmul.f32 %v403, %v409
      %v421 = vmul.f32 %v404, %v409
      %v422 = vmul.f32 %v405, %v409
      %v423 = vadd.f32 %v380, %v410
      %v424 = vadd.f32 %v381, %v411
      %v425 = vadd.f32 %v382, %v412
      %v426 = vadd.f32 %v383, %v413
      %v427 = vadd.f32 %v384, %v414
      %v428 = vadd.f32 %v385, %v415
      %v429 = vadd.f32 %v386, %v416
      %v430 = vadd.f32 %v387, %v417
      %v431 = vadd.f32 %v388, %v418
      %v432 = vadd.f32 %v389, %v419
      %v433 = vadd.f32 %v390, %v420
      %v434 = vadd.f32 %v391, %v421
      %v435 = vadd.f32 %v392, %v422
      %v436 = vld [vmem:[%s224] sm:$0x1]
      %v438 = vlaneseq
      %v439 = vshrl.u32 %v438, 7
      %v440 = vsub.s32 0, %v439
      %v441 = vrot.slane %v436, %v440
      %v443 = vadd.f32 %v423, %v441
      %v444 = vadd.f32 %v424, %v441
      %v445 = vadd.f32 %v425, %v441
      %v446 = vadd.f32 %v426, %v441
      %v447 = vadd.f32 %v427, %v441
      %v448 = vadd.f32 %v428, %v441
      %v449 = vadd.f32 %v429, %v441
      %v450 = vadd.f32 %v430, %v441
      %v451 = vadd.f32 %v431, %v441
      %v452 = vadd.f32 %v432, %v441
      %v453 = vadd.f32 %v433, %v441
      %v454 = vadd.f32 %v434, %v441
      %v455 = vadd.f32 %v435, %v441
      %v456 = vxor.u32 %v443, 2147483648
      %v457 = vxor.u32 %v444, 2147483648
      %v458 = vxor.u32 %v445, 2147483648
      %v459 = vxor.u32 %v446, 2147483648
      %v460 = vxor.u32 %v447, 2147483648
      %v461 = vxor.u32 %v448, 2147483648
      %v462 = vxor.u32 %v449, 2147483648
      %v463 = vxor.u32 %v450, 2147483648
      %v464 = vxor.u32 %v451, 2147483648
      %v465 = vxor.u32 %v452, 2147483648
      %v466 = vxor.u32 %v453, 2147483648
      %v467 = vxor.u32 %v454, 2147483648
      %v468 = vxor.u32 %v455, 2147483648
      %v469 = vmul.f32 %v456, 1.442695
      %v470 = vpow.pop %v469
      %v471 = vmul.f32 %v457, 1.442695
      %v472 = vpow.pop %v471
      %v473 = vmul.f32 %v458, 1.442695
      %v474 = vpow.pop %v473
      %v475 = vmul.f32 %v459, 1.442695
      %v476 = vpow.pop %v475
      %v477 = vmul.f32 %v460, 1.442695
      %v478 = vpow.pop %v477
      %v479 = vmul.f32 %v461, 1.442695
      %v480 = vpow.pop %v479
      %v481 = vmul.f32 %v462, 1.442695
      %v482 = vpow.pop %v481
      %v483 = vmul.f32 %v463, 1.442695
      %v484 = vpow.pop %v483
      %v485 = vmul.f32 %v464, 1.442695
      %v486 = vpow.pop %v485
      %v487 = vmul.f32 %v465, 1.442695
      %v488 = vpow.pop %v487
      %v489 = vmul.f32 %v466, 1.442695
      %v490 = vpow.pop %v489
      %v491 = vmul.f32 %v467, 1.442695
      %v492 = vpow.pop %v491
      %v493 = vmul.f32 %v468, 1.442695
      %v494 = vpow.pop %v493
      %v495 = vadd.f32 %v470, 1.0
      %v496 = vadd.f32 %v472, 1.0
      %v497 = vadd.f32 %v474, 1.0
      %v498 = vadd.f32 %v476, 1.0
      %v499 = vadd.f32 %v478, 1.0
      %v500 = vadd.f32 %v480, 1.0
      %v501 = vadd.f32 %v482, 1.0
      %v502 = vadd.f32 %v484, 1.0
      %v503 = vadd.f32 %v486, 1.0
      %v504 = vadd.f32 %v488, 1.0
      %v505 = vadd.f32 %v490, 1.0
      %v506 = vadd.f32 %v492, 1.0
      %v507 = vadd.f32 %v494, 1.0
      %v508 = vrcp.pop %v495
      %v509 = vmul.f32 1.0, %v508
      %v510 = vrcp.pop %v496
      %v511 = vmul.f32 1.0, %v510
      %v512 = vrcp.pop %v497
      %v513 = vmul.f32 1.0, %v512
      %v514 = vrcp.pop %v498
      %v515 = vmul.f32 1.0, %v514
      %v516 = vrcp.pop %v499
      %v517 = vmul.f32 1.0, %v516
      %v518 = vrcp.pop %v500
      %v519 = vmul.f32 1.0, %v518
      %v520 = vrcp.pop %v501
      %v521 = vmul.f32 1.0, %v520
      %v522 = vrcp.pop %v502
      %v523 = vmul.f32 1.0, %v522
      %v524 = vrcp.pop %v503
      %v525 = vmul.f32 1.0, %v524
      %v526 = vrcp.pop %v504
      %v527 = vmul.f32 1.0, %v526
      %v528 = vrcp.pop %v505
      %v529 = vmul.f32 1.0, %v528
      %v530 = vrcp.pop %v506
      %v531 = vmul.f32 1.0, %v530
      %v532 = vrcp.pop %v507
      %v533 = vmul.f32 1.0, %v532
      %v534 = vmul.f32 %v443, %v509
      %v535 = vmul.f32 %v444, %v511
      %v536 = vmul.f32 %v445, %v513
      %v537 = vmul.f32 %v446, %v515
      %v538 = vmul.f32 %v447, %v517
      %v539 = vmul.f32 %v448, %v519
      %v540 = vmul.f32 %v449, %v521
      %v541 = vmul.f32 %v450, %v523
      %v542 = vmul.f32 %v451, %v525
      %v543 = vmul.f32 %v452, %v527
      %v544 = vmul.f32 %v453, %v529
      %v545 = vmul.f32 %v454, %v531
      %v546 = vmul.f32 %v455, %v533
      %v547 = vpack.c.bf16 %v535, %v534
      %v548 = vpack.c.bf16 %v537, %v536
      %v549 = vpack.c.bf16 %v539, %v538
      %v550 = vpack.c.bf16 %v541, %v540
      %v551 = vpack.c.bf16 %v543, %v542
      %v552 = vpack.c.bf16 %v545, %v544
      %v553 = vpack.c.bf16 %v546, %v546
      %v561 = vunpack.c.l.b16 %v547
      %v562 = vunpack.c.h.b16 %v547
      %v563 = vunpack.c.l.b16 %v548
      %v564 = vunpack.c.h.b16 %v548
      %v565 = vunpack.c.l.b16 %v549
      %v566 = vunpack.c.h.b16 %v549
      %v567 = vunpack.c.l.b16 %v550
      %v568 = vunpack.c.h.b16 %v550
      %v569 = vunpack.c.l.b16 %v551
      %v570 = vunpack.c.h.b16 %v551
      %v571 = vunpack.c.l.b16 %v552
      %v572 = vunpack.c.h.b16 %v552
      %v573 = vunpack.c.l.b16 %v553
      %v574 = vpack.c.b16 %v561, %v561
      %v575 = vpack.c.b16 %v562, %v562
      %v576 = vpack.c.b16 %v563, %v563
      %v577 = vpack.c.b16 %v564, %v564
      %v578 = vpack.c.b16 %v565, %v565
      %v579 = vpack.c.b16 %v566, %v566
      %v580 = vpack.c.b16 %v567, %v567
      %v581 = vpack.c.b16 %v568, %v568
      %v582 = vpack.c.b16 %v569, %v569
      %v583 = vpack.c.b16 %v570, %v570
      %v584 = vpack.c.b16 %v571, %v571
      %v585 = vpack.c.b16 %v572, %v572
      %v586 = vpack.c.b16 %v573, %v573
      %600 = vst.msk [vmem:[%s232] sm:$0xf] %vm274, %v574
      %601 = vst.msk [vmem:[%s232 + $0x4] sm:$0xf] %vm274, %v575
      %602 = vst.msk [vmem:[%s232 + $0x8] sm:$0xf] %vm274, %v576
      %603 = vst.msk [vmem:[%s232 + $0xc] sm:$0xf] %vm274, %v577
      %604 = vst.msk [vmem:[%s232 + $0x10] sm:$0xf] %vm274, %v578
      %605 = vst.msk [vmem:[%s232 + $0x14] sm:$0xf] %vm274, %v579
      %606 = vst.msk [vmem:[%s232 + $0x18] sm:$0xf] %vm274, %v580
      %607 = vst.msk [vmem:[%s232 + $0x1c] sm:$0xf] %vm274, %v581
      %608 = vst.msk [vmem:[%s232 + $0x20] sm:$0xf] %vm274, %v582
      %609 = vst.msk [vmem:[%s232 + $0x24] sm:$0xf] %vm274, %v583
      %610 = vst.msk [vmem:[%s232 + $0x28] sm:$0xf] %vm274, %v584
      %611 = vst.msk [vmem:[%s232 + $0x2c] sm:$0xf] %vm274, %v585
      %vm612 = vcmask 58368
      %613 = vst.msk [vmem:[%s232 + $0x30] sm:$0x3] %vm612, %v586
      %p614 = scmp.lt.s32.totalorder %s18, 1
      %s615 = scalar_select %p614, %s18, 1
      %p616 = scmp.lt.s32.totalorder %s19, 0
      %s617 = scalar_select %p616, %s19, 0
      %s618 = smul.addr %s615, 13
      %s619 = sadd.s32 %s617, %s618
      %s620 = smul.addr %s619, 4
      %s621 = scalar_lea.vmem %s3, %s620
      // Predicated region
      $region33: #{mamba_block_forward.21} parent=31 // pred_check
        %p622 = pneg %p126
      $region34: #{mamba_block_forward.21} parent=31 // pred_check_branch
        %624 = sbr.rel (%p622) target = $region36
      $region35: #{mamba_block_forward.21} parent=31 // pred_region
        _
      $region36: #{mamba_block_forward.21} parent=31 // pred_fallthru
        _
    $region32: #{mamba_block_forward.21} parent=5 // pred_fallthru
      _
    %p625 = scmp.le.s32.totalorder 2, %s9
    // Predicated region
    $region37: #{mamba_block_forward.21} parent=5 // pred_check
      %p626 = pneg %p625
    $region38: #{mamba_block_forward.21} parent=5 // pred_check_branch
      %628 = sbr.rel (%p626) target = $region40
    $region39: #{mamba_block_forward.21} parent=5 // pred_region
      %s629 = ssub.s32 %s9, 2
      // Predicated region
      $region41: #{mamba_block_forward.21} parent=39 // pred_check
        %p630 = pneg %p132
      $region42: #{mamba_block_forward.21} parent=39 // pred_check_branch
        %632 = sbr.rel (%p630) target = $region44
      $region43: #{mamba_block_forward.21} parent=39 // pred_region
        %p633 = scmp.lt.s32.totalorder %s20, 1
        %s634 = scalar_select %p633, %s20, 1
        %p635 = scmp.lt.s32.totalorder %s21, 0
        %s636 = scalar_select %p635, %s21, 0
        %s637 = smul.addr %s634, 13
        %s638 = sadd.s32 %s636, %s637
        %s639 = smul.addr %s638, 4
        %s640 = scalar_lea.vmem %s3, %s639
      $region44: #{mamba_block_forward.21} parent=39 // pred_fallthru
        _
    $region40: #{mamba_block_forward.21} parent=5 // pred_fallthru
      _
  $region6: #{mamba_block_forward.21} parent=0 // loop_footer
    %s13 = sadd.s32 1, %s9
  $region7: #{mamba_block_forward.21} parent=0 // loop_footer_branch
    %8 = sbr.rel target = $region3
  $region8: #{mamba_block_forward.21} parent=0 // loop_exit
    _

// kernel: mamba_block_forward.23
$region0: #{mamba_block_forward.23}
  #allocation0 [shape = 'u32[]', space=smem, size = 0x4, offset = 0x4, fixed_abs, tag = 'smem constant byte address 0x4 - core index']
  #allocation1 [shape = 'u32[144,128]{1,0:T(1,128)}', space=vmem, size = 0x12000, scoped, tag = 'internal scratch']
  %s0 = inlined_call_operand.vmem [shape: bf16[200,8], index: 0, kind: input, shape index: {}]
  %s1 = inlined_call_operand.vmem [shape: f32[1,8], index: 1, kind: input, shape index: {}]
  %s2 = inlined_call_operand.vmem [shape: f32[1,8], index: 2, kind: input, shape index: {}]
  %s3 = inlined_call_operand.vmem [shape: bf16[8,8], index: 3, kind: input, shape index: {}]
  %s4 = inlined_call_operand.vmem [shape: bf16[200,8], index: 4, kind: output, shape index: {}]
  %s5 = sld [smem:[#allocation0]]
  $region26: #{mamba_block_forward.23} parent=0
    _
  %s7 = ssub.s32 1, %s5
  %s8 = scalar_select 0, %s7, %s5
  // Predicated region
  $region2: #{mamba_block_forward.23} parent=0 // pred_check
    _
  $region3: #{mamba_block_forward.23} parent=0 // pred_check_branch
    %10 = sbr.rel (0) target = $region5
  $region4: #{mamba_block_forward.23} parent=0 // pred_region
    _
  $region5: #{mamba_block_forward.23} parent=0 // pred_fallthru
    _
  // Predicated region
  $region6: #{mamba_block_forward.23} parent=0 // pred_check
    _
  $region7: #{mamba_block_forward.23} parent=0 // pred_check_branch
    %12 = sbr.rel (0) target = $region9
  $region8: #{mamba_block_forward.23} parent=0 // pred_region
    _
  $region9: #{mamba_block_forward.23} parent=0 // pred_fallthru
    _
  // Predicated region
  $region10: #{mamba_block_forward.23} parent=0 // pred_check
    _
  $region11: #{mamba_block_forward.23} parent=0 // pred_check_branch
    %14 = sbr.rel (0) target = $region13
  $region12: #{mamba_block_forward.23} parent=0 // pred_region
    _
  $region13: #{mamba_block_forward.23} parent=0 // pred_fallthru
    _
  // Predicated region
  $region14: #{mamba_block_forward.23} parent=0 // pred_check
    _
  $region15: #{mamba_block_forward.23} parent=0 // pred_check_branch
    %16 = sbr.rel (0) target = $region17
  $region16: #{mamba_block_forward.23} parent=0 // pred_region
    _
  $region17: #{mamba_block_forward.23} parent=0 // pred_fallthru
    _
  %v18 = vld [vmem:[%s0] sm:$0xf]
  %v19 = vld [vmem:[%s0 + $0x4] sm:$0xf]
  %v20 = vld [vmem:[%s0 + $0x8] sm:$0xf]
  %v21 = vld [vmem:[%s0 + $0xc] sm:$0xf]
  %v22 = vld [vmem:[%s0 + $0x10] sm:$0xf]
  %v23 = vld [vmem:[%s0 + $0x14] sm:$0xf]
  %v24 = vld [vmem:[%s0 + $0x18] sm:$0xf]
  %v25 = vld [vmem:[%s0 + $0x1c] sm:$0xf]
  %v26 = vld [vmem:[%s0 + $0x20] sm:$0xf]
  %v27 = vld [vmem:[%s0 + $0x24] sm:$0xf]
  %v28 = vld [vmem:[%s0 + $0x28] sm:$0xf]
  %v29 = vld [vmem:[%s0 + $0x2c] sm:$0xf]
  %v30 = vld [vmem:[%s0 + $0x30] sm:$0xf]
  %v31 = vld [vmem:[%s0 + $0x34] sm:$0xf]
  %v32 = vld [vmem:[%s0 + $0x38] sm:$0xf]
  %v33 = vld [vmem:[%s0 + $0x3c] sm:$0xf]
  %v34 = vld [vmem:[%s0 + $0x40] sm:$0xf]
  %v35 = vld [vmem:[%s0 + $0x44] sm:$0xf]
  %v36 = vld [vmem:[%s0 + $0x48] sm:$0xf]
  %v37 = vld [vmem:[%s0 + $0x4c] sm:$0xf]
  %v38 = vld [vmem:[%s0 + $0x50] sm:$0xf]
  %v39 = vld [vmem:[%s0 + $0x54] sm:$0xf]
  %v40 = vld [vmem:[%s0 + $0x58] sm:$0xf]
  %v41 = vld [vmem:[%s0 + $0x5c] sm:$0xf]
  %v42 = vld [vmem:[%s0 + $0x60] sm:$0xf]
  %v43 = vunpack.c.l.bf16 %v18
  %v44 = vunpack.c.l.bf16 %v19
  %v45 = vunpack.c.l.bf16 %v20
  %v46 = vunpack.c.l.bf16 %v21
  %v47 = vunpack.c.l.bf16 %v22
  %v48 = vunpack.c.l.bf16 %v23
  %v49 = vunpack.c.l.bf16 %v24
  %v50 = vunpack.c.l.bf16 %v25
  %v51 = vunpack.c.l.bf16 %v26
  %v52 = vunpack.c.l.bf16 %v27
  %v53 = vunpack.c.l.bf16 %v28
  %v54 = vunpack.c.l.bf16 %v29
  %v55 = vunpack.c.l.bf16 %v30
  %v56 = vunpack.c.l.bf16 %v31
  %v57 = vunpack.c.l.bf16 %v32
  %v58 = vunpack.c.l.bf16 %v33
  %v59 = vunpack.c.l.bf16 %v34
  %v60 = vunpack.c.l.bf16 %v35
  %v61 = vunpack.c.l.bf16 %v36
  %v62 = vunpack.c.l.bf16 %v37
  %v63 = vunpack.c.l.bf16 %v38
  %v64 = vunpack.c.l.bf16 %v39
  %v65 = vunpack.c.l.bf16 %v40
  %v66 = vunpack.c.l.bf16 %v41
  %v67 = vunpack.c.l.bf16 %v42
  %vm68 = vcmask 64512
  %v69 = vsel %vm68, %v43, 0.0
  %70 = vadd.xlane.f32.xlu0 %v69
  %v71 = vpop.xlane.xlu0 %70
  %v72 = vsel %vm68, %v44, 0.0
  %73 = vadd.xlane.f32.xlu0 %v72
  %v74 = vpop.xlane.xlu0 %73
  %v75 = vsel %vm68, %v45, 0.0
  %76 = vadd.xlane.f32.xlu0 %v75
  %v77 = vpop.xlane.xlu0 %76
  %v78 = vsel %vm68, %v46, 0.0
  %79 = vadd.xlane.f32.xlu0 %v78
  %v80 = vpop.xlane.xlu0 %79
  %v81 = vsel %vm68, %v47, 0.0
  %82 = vadd.xlane.f32.xlu0 %v81
  %v83 = vpop.xlane.xlu0 %82
  %v84 = vsel %vm68, %v48, 0.0
  %85 = vadd.xlane.f32.xlu0 %v84
  %v86 = vpop.xlane.xlu0 %85
  %v87 = vsel %vm68, %v49, 0.0
  %88 = vadd.xlane.f32.xlu0 %v87
  %v89 = vpop.xlane.xlu0 %88
  %v90 = vsel %vm68, %v50, 0.0
  %91 = vadd.xlane.f32.xlu0 %v90
  %v92 = vpop.xlane.xlu0 %91
  %v93 = vsel %vm68, %v51, 0.0
  %94 = vadd.xlane.f32.xlu0 %v93
  %v95 = vpop.xlane.xlu0 %94
  %v96 = vsel %vm68, %v52, 0.0
  %97 = vadd.xlane.f32.xlu0 %v96
  %v98 = vpop.xlane.xlu0 %97
  %v99 = vsel %vm68, %v53, 0.0
  %100 = vadd.xlane.f32.xlu0 %v99
  %v101 = vpop.xlane.xlu0 %100
  %v102 = vsel %vm68, %v54, 0.0
  %103 = vadd.xlane.f32.xlu0 %v102
  %v104 = vpop.xlane.xlu0 %103
  %v105 = vsel %vm68, %v55, 0.0
  %106 = vadd.xlane.f32.xlu0 %v105
  %v107 = vpop.xlane.xlu0 %106
  %v108 = vsel %vm68, %v56, 0.0
  %109 = vadd.xlane.f32.xlu0 %v108
  %v110 = vpop.xlane.xlu0 %109
  %v111 = vsel %vm68, %v57, 0.0
  %112 = vadd.xlane.f32.xlu0 %v111
  %v113 = vpop.xlane.xlu0 %112
  %v114 = vsel %vm68, %v58, 0.0
  %115 = vadd.xlane.f32.xlu0 %v114
  %v116 = vpop.xlane.xlu0 %115
  %v117 = vsel %vm68, %v59, 0.0
  %118 = vadd.xlane.f32.xlu0 %v117
  %v119 = vpop.xlane.xlu0 %118
  %v120 = vsel %vm68, %v60, 0.0
  %121 = vadd.xlane.f32.xlu0 %v120
  %v122 = vpop.xlane.xlu0 %121
  %v123 = vsel %vm68, %v61, 0.0
  %124 = vadd.xlane.f32.xlu0 %v123
  %v125 = vpop.xlane.xlu0 %124
  %v126 = vsel %vm68, %v62, 0.0
  %127 = vadd.xlane.f32.xlu0 %v126
  %v128 = vpop.xlane.xlu0 %127
  %v129 = vsel %vm68, %v63, 0.0
  %130 = vadd.xlane.f32.xlu0 %v129
  %v131 = vpop.xlane.xlu0 %130
  %v132 = vsel %vm68, %v64, 0.0
  %133 = vadd.xlane.f32.xlu0 %v132
  %v134 = vpop.xlane.xlu0 %133
  %v135 = vsel %vm68, %v65, 0.0
  %136 = vadd.xlane.f32.xlu0 %v135
  %v137 = vpop.xlane.xlu0 %136
  %v138 = vsel %vm68, %v66, 0.0
  %139 = vadd.xlane.f32.xlu0 %v138
  %v140 = vpop.xlane.xlu0 %139
  %v141 = vsel %vm68, %v67, 0.0
  %142 = vadd.xlane.f32.xlu0 %v141
  %v143 = vpop.xlane.xlu0 %142
  %v144 = vrcp.pop 8.0
  %v145 = vmul.f32 %v71, %v144
  %v146 = vmul.f32 %v74, %v144
  %v147 = vmul.f32 %v77, %v144
  %v148 = vmul.f32 %v80, %v144
  %v149 = vmul.f32 %v83, %v144
  %v150 = vmul.f32 %v86, %v144
  %v151 = vmul.f32 %v89, %v144
  %v152 = vmul.f32 %v92, %v144
  %v153 = vmul.f32 %v95, %v144
  %v154 = vmul.f32 %v98, %v144
  %v155 = vmul.f32 %v101, %v144
  %v156 = vmul.f32 %v104, %v144
  %v157 = vmul.f32 %v107, %v144
  %v158 = vmul.f32 %v110, %v144
  %v159 = vmul.f32 %v113, %v144
  %v160 = vmul.f32 %v116, %v144
  %v161 = vmul.f32 %v119, %v144
  %v162 = vmul.f32 %v122, %v144
  %v163 = vmul.f32 %v125, %v144
  %v164 = vmul.f32 %v128, %v144
  %v165 = vmul.f32 %v131, %v144
  %v166 = vmul.f32 %v134, %v144
  %v167 = vmul.f32 %v137, %v144
  %v168 = vmul.f32 %v140, %v144
  %v169 = vmul.f32 %v143, %v144
  %v170 = vsub.f32 %v43, %v145
  %v171 = vsub.f32 %v44, %v146
  %v172 = vsub.f32 %v45, %v147
  %v173 = vsub.f32 %v46, %v148
  %v174 = vsub.f32 %v47, %v149
  %v175 = vsub.f32 %v48, %v150
  %v176 = vsub.f32 %v49, %v151
  %v177 = vsub.f32 %v50, %v152
  %v178 = vsub.f32 %v51, %v153
  %v179 = vsub.f32 %v52, %v154
  %v180 = vsub.f32 %v53, %v155
  %v181 = vsub.f32 %v54, %v156
  %v182 = vsub.f32 %v55, %v157
  %v183 = vsub.f32 %v56, %v158
  %v184 = vsub.f32 %v57, %v159
  %v185 = vsub.f32 %v58, %v160
  %v186 = vsub.f32 %v59, %v161
  %v187 = vsub.f32 %v60, %v162
  %v188 = vsub.f32 %v61, %v163
  %v189 = vsub.f32 %v62, %v164
  %v190 = vsub.f32 %v63, %v165
  %v191 = vsub.f32 %v64, %v166
  %v192 = vsub.f32 %v65, %v167
  %v193 = vsub.f32 %v66, %v168
  %v194 = vsub.f32 %v67, %v169
  %v195 = vmul.f32 %v170, %v170
  %v196 = vmul.f32 %v171, %v171
  %v197 = vmul.f32 %v172, %v172
  %v198 = vmul.f32 %v173, %v173
  %v199 = vmul.f32 %v174, %v174
  %v200 = vmul.f32 %v175, %v175
  %v201 = vmul.f32 %v176, %v176
  %v202 = vmul.f32 %v177, %v177
  %v203 = vmul.f32 %v178, %v178
  %v204 = vmul.f32 %v179, %v179
  %v205 = vmul.f32 %v180, %v180
  %v206 = vmul.f32 %v181, %v181
  %v207 = vmul.f32 %v182, %v182
  %v208 = vmul.f32 %v183, %v183
  %v209 = vmul.f32 %v184, %v184
  %v210 = vmul.f32 %v185, %v185
  %v211 = vmul.f32 %v186, %v186
  %v212 = vmul.f32 %v187, %v187
  %v213 = vmul.f32 %v188, %v188
  %v214 = vmul.f32 %v189, %v189
  %v215 = vmul.f32 %v190, %v190
  %v216 = vmul.f32 %v191, %v191
  %v217 = vmul.f32 %v192, %v192
  %v218 = vmul.f32 %v193, %v193
  %v219 = vmul.f32 %v194, %v194
  %v220 = vsel %vm68, %v195, 0.0
  %221 = vadd.xlane.f32.xlu0 %v220
  %v222 = vpop.xlane.xlu0 %221
  %v223 = vsel %vm68, %v196, 0.0
  %224 = vadd.xlane.f32.xlu0 %v223
  %v225 = vpop.xlane.xlu0 %224
  %v226 = vsel %vm68, %v197, 0.0
  %227 = vadd.xlane.f32.xlu0 %v226
  %v228 = vpop.xlane.xlu0 %227
  %v229 = vsel %vm68, %v198, 0.0
  %230 = vadd.xlane.f32.xlu0 %v229
  %v231 = vpop.xlane.xlu0 %230
  %v232 = vsel %vm68, %v199, 0.0
  %233 = vadd.xlane.f32.xlu0 %v232
  %v234 = vpop.xlane.xlu0 %233
  %v235 = vsel %vm68, %v200, 0.0
  %236 = vadd.xlane.f32.xlu0 %v235
  %v237 = vpop.xlane.xlu0 %236
  %v238 = vsel %vm68, %v201, 0.0
  %239 = vadd.xlane.f32.xlu0 %v238
  %v240 = vpop.xlane.xlu0 %239
  %v241 = vsel %vm68, %v202, 0.0
  %242 = vadd.xlane.f32.xlu0 %v241
  %v243 = vpop.xlane.xlu0 %242
  %v244 = vsel %vm68, %v203, 0.0
  %245 = vadd.xlane.f32.xlu0 %v244
  %v246 = vpop.xlane.xlu0 %245
  %v247 = vsel %vm68, %v204, 0.0
  %248 = vadd.xlane.f32.xlu0 %v247
  %v249 = vpop.xlane.xlu0 %248
  %v250 = vsel %vm68, %v205, 0.0
  %251 = vadd.xlane.f32.xlu0 %v250
  %v252 = vpop.xlane.xlu0 %251
  %v253 = vsel %vm68, %v206, 0.0
  %254 = vadd.xlane.f32.xlu0 %v253
  %v255 = vpop.xlane.xlu0 %254
  %v256 = vsel %vm68, %v207, 0.0
  %257 = vadd.xlane.f32.xlu0 %v256
  %v258 = vpop.xlane.xlu0 %257
  %v259 = vsel %vm68, %v208, 0.0
  %260 = vadd.xlane.f32.xlu0 %v259
  %v261 = vpop.xlane.xlu0 %260
  %v262 = vsel %vm68, %v209, 0.0
  %263 = vadd.xlane.f32.xlu0 %v262
  %v264 = vpop.xlane.xlu0 %263
  %v265 = vsel %vm68, %v210, 0.0
  %266 = vadd.xlane.f32.xlu0 %v265
  %v267 = vpop.xlane.xlu0 %266
  %v268 = vsel %vm68, %v211, 0.0
  %269 = vadd.xlane.f32.xlu0 %v268
  %v270 = vpop.xlane.xlu0 %269
  %v271 = vsel %vm68, %v212, 0.0
  %272 = vadd.xlane.f32.xlu0 %v271
  %v273 = vpop.xlane.xlu0 %272
  %v274 = vsel %vm68, %v213, 0.0
  %275 = vadd.xlane.f32.xlu0 %v274
  %v276 = vpop.xlane.xlu0 %275
  %v277 = vsel %vm68, %v214, 0.0
  %278 = vadd.xlane.f32.xlu0 %v277
  %v279 = vpop.xlane.xlu0 %278
  %v280 = vsel %vm68, %v215, 0.0
  %281 = vadd.xlane.f32.xlu0 %v280
  %v282 = vpop.xlane.xlu0 %281
  %v283 = vsel %vm68, %v216, 0.0
  %284 = vadd.xlane.f32.xlu0 %v283
  %v285 = vpop.xlane.xlu0 %284
  %v286 = vsel %vm68, %v217, 0.0
  %287 = vadd.xlane.f32.xlu0 %v286
  %v288 = vpop.xlane.xlu0 %287
  %v289 = vsel %vm68, %v218, 0.0
  %290 = vadd.xlane.f32.xlu0 %v289
  %v291 = vpop.xlane.xlu0 %290
  %v292 = vsel %vm68, %v219, 0.0
  %293 = vadd.xlane.f32.xlu0 %v292
  %v294 = vpop.xlane.xlu0 %293
  %v295 = vmul.f32 %v222, %v144
  %v296 = vmul.f32 %v225, %v144
  %v297 = vmul.f32 %v228, %v144
  %v298 = vmul.f32 %v231, %v144
  %v299 = vmul.f32 %v234, %v144
  %v300 = vmul.f32 %v237, %v144
  %v301 = vmul.f32 %v240, %v144
  %v302 = vmul.f32 %v243, %v144
  %v303 = vmul.f32 %v246, %v144
  %v304 = vmul.f32 %v249, %v144
  %v305 = vmul.f32 %v252, %v144
  %v306 = vmul.f32 %v255, %v144
  %v307 = vmul.f32 %v258, %v144
  %v308 = vmul.f32 %v261, %v144
  %v309 = vmul.f32 %v264, %v144
  %v310 = vmul.f32 %v267, %v144
  %v311 = vmul.f32 %v270, %v144
  %v312 = vmul.f32 %v273, %v144
  %v313 = vmul.f32 %v276, %v144
  %v314 = vmul.f32 %v279, %v144
  %v315 = vmul.f32 %v282, %v144
  %v316 = vmul.f32 %v285, %v144
  %v317 = vmul.f32 %v288, %v144
  %v318 = vmul.f32 %v291, %v144
  %v319 = vmul.f32 %v294, %v144
  %v320 = vadd.f32 %v295, 1e-05
  %v321 = vadd.f32 %v296, 1e-05
  %v322 = vadd.f32 %v297, 1e-05
  %v323 = vadd.f32 %v298, 1e-05
  %v324 = vadd.f32 %v299, 1e-05
  %v325 = vadd.f32 %v300, 1e-05
  %v326 = vadd.f32 %v301, 1e-05
  %v327 = vadd.f32 %v302, 1e-05
  %v328 = vadd.f32 %v303, 1e-05
  %v329 = vadd.f32 %v304, 1e-05
  %v330 = vadd.f32 %v305, 1e-05
  %v331 = vadd.f32 %v306, 1e-05
  %v332 = vadd.f32 %v307, 1e-05
  %v333 = vadd.f32 %v308, 1e-05
  %v334 = vadd.f32 %v309, 1e-05
  %v335 = vadd.f32 %v310, 1e-05
  %v336 = vadd.f32 %v311, 1e-05
  %v337 = vadd.f32 %v312, 1e-05
  %v338 = vadd.f32 %v313, 1e-05
  %v339 = vadd.f32 %v314, 1e-05
  %v340 = vadd.f32 %v315, 1e-05
  %v341 = vadd.f32 %v316, 1e-05
  %v342 = vadd.f32 %v317, 1e-05
  %v343 = vadd.f32 %v318, 1e-05
  %v344 = vadd.f32 %v319, 1e-05
  %v345 = vrsqrt.pop %v320
  %v346 = vrsqrt.pop %v321
  %v347 = vrsqrt.pop %v322
  %v348 = vrsqrt.pop %v323
  %v349 = vrsqrt.pop %v324
  %v350 = vrsqrt.pop %v325
  %v351 = vrsqrt.pop %v326
  %v352 = vrsqrt.pop %v327
  %v353 = vrsqrt.pop %v328
  %v354 = vrsqrt.pop %v329
  %v355 = vrsqrt.pop %v330
  %v356 = vrsqrt.pop %v331
  %v357 = vrsqrt.pop %v332
  %v358 = vrsqrt.pop %v333
  %v359 = vrsqrt.pop %v334
  %v360 = vrsqrt.pop %v335
  %v361 = vrsqrt.pop %v336
  %v362 = vrsqrt.pop %v337
  %v363 = vrsqrt.pop %v338
  %v364 = vrsqrt.pop %v339
  %v365 = vrsqrt.pop %v340
  %v366 = vrsqrt.pop %v341
  %v367 = vrsqrt.pop %v342
  %v368 = vrsqrt.pop %v343
  %v369 = vrsqrt.pop %v344
  %v370 = vmul.f32 %v170, %v345
  %v371 = vmul.f32 %v171, %v346
  %v372 = vmul.f32 %v172, %v347
  %v373 = vmul.f32 %v173, %v348
  %v374 = vmul.f32 %v174, %v349
  %v375 = vmul.f32 %v175, %v350
  %v376 = vmul.f32 %v176, %v351
  %v377 = vmul.f32 %v177, %v352
  %v378 = vmul.f32 %v178, %v353
  %v379 = vmul.f32 %v179, %v354
  %v380 = vmul.f32 %v180, %v355
  %v381 = vmul.f32 %v181, %v356
  %v382 = vmul.f32 %v182, %v357
  %v383 = vmul.f32 %v183, %v358
  %v384 = vmul.f32 %v184, %v359
  %v385 = vmul.f32 %v185, %v360
  %v386 = vmul.f32 %v186, %v361
  %v387 = vmul.f32 %v187, %v362
  %v388 = vmul.f32 %v188, %v363
  %v389 = vmul.f32 %v189, %v364
  %v390 = vmul.f32 %v190, %v365
  %v391 = vmul.f32 %v191, %v366
  %v392 = vmul.f32 %v192, %v367
  %v393 = vmul.f32 %v193, %v368
  %v394 = vmul.f32 %v194, %v369
  %v395 = vld [vmem:[%s1] sm:$0x1]
  %v397 = vlaneseq
  %v398 = vshrl.u32 %v397, 7
  %v399 = vsub.s32 0, %v398
  %v400 = vrot.slane %v395, %v399
  %v402 = vmul.f32 %v370, %v400
  %v403 = vmul.f32 %v371, %v400
  %v404 = vmul.f32 %v372, %v400
  %v405 = vmul.f32 %v373, %v400
  %v406 = vmul.f32 %v374, %v400
  %v407 = vmul.f32 %v375, %v400
  %v408 = vmul.f32 %v376, %v400
  %v409 = vmul.f32 %v377, %v400
  %v410 = vmul.f32 %v378, %v400
  %v411 = vmul.f32 %v379, %v400
  %v412 = vmul.f32 %v380, %v400
  %v413 = vmul.f32 %v381, %v400
  %v414 = vmul.f32 %v382, %v400
  %v415 = vmul.f32 %v383, %v400
  %v416 = vmul.f32 %v384, %v400
  %v417 = vmul.f32 %v385, %v400
  %v418 = vmul.f32 %v386, %v400
  %v419 = vmul.f32 %v387, %v400
  %v420 = vmul.f32 %v388, %v400
  %v421 = vmul.f32 %v389, %v400
  %v422 = vmul.f32 %v390, %v400
  %v423 = vmul.f32 %v391, %v400
  %v424 = vmul.f32 %v392, %v400
  %v425 = vmul.f32 %v393, %v400
  %v426 = vmul.f32 %v394, %v400
  %v427 = vld [vmem:[%s2] sm:$0x1]
  %v429 = vlaneseq
  %v430 = vshrl.u32 %v429, 7
  %v431 = vsub.s32 0, %v430
  %v432 = vrot.slane %v427, %v431
  %v434 = vadd.f32 %v402, %v432
  %v435 = vadd.f32 %v403, %v432
  %v436 = vadd.f32 %v404, %v432
  %v437 = vadd.f32 %v405, %v432
  %v438 = vadd.f32 %v406, %v432
  %v439 = vadd.f32 %v407, %v432
  %v440 = vadd.f32 %v408, %v432
  %v441 = vadd.f32 %v409, %v432
  %v442 = vadd.f32 %v410, %v432
  %v443 = vadd.f32 %v411, %v432
  %v444 = vadd.f32 %v412, %v432
  %v445 = vadd.f32 %v413, %v432
  %v446 = vadd.f32 %v414, %v432
  %v447 = vadd.f32 %v415, %v432
  %v448 = vadd.f32 %v416, %v432
  %v449 = vadd.f32 %v417, %v432
  %v450 = vadd.f32 %v418, %v432
  %v451 = vadd.f32 %v419, %v432
  %v452 = vadd.f32 %v420, %v432
  %v453 = vadd.f32 %v421, %v432
  %v454 = vadd.f32 %v422, %v432
  %v455 = vadd.f32 %v423, %v432
  %v456 = vadd.f32 %v424, %v432
  %v457 = vadd.f32 %v425, %v432
  %v458 = vadd.f32 %v426, %v432
  %v459 = vpack.c.bf16 %v435, %v434
  %v460 = vpack.c.bf16 %v437, %v436
  %v461 = vpack.c.bf16 %v439, %v438
  %v462 = vpack.c.bf16 %v441, %v440
  %v463 = vpack.c.bf16 %v443, %v442
  %v464 = vpack.c.bf16 %v445, %v444
  %v465 = vpack.c.bf16 %v447, %v446
  %v466 = vpack.c.bf16 %v449, %v448
  %v467 = vpack.c.bf16 %v451, %v450
  %v468 = vpack.c.bf16 %v453, %v452
  %v469 = vpack.c.bf16 %v455, %v454
  %v470 = vpack.c.bf16 %v457, %v456
  %v471 = vpack.c.bf16 %v458, %v458
  %v472 = vld [vmem:[%s3] sm:$0xf]
  %v474 = vsel %vm68, %v459, 0
  %v477 = vsel %vm68, %v460, 0
  %v480 = vsel %vm68, %v461, 0
  %v483 = vsel %vm68, %v462, 0
  %v486 = vsel %vm68, %v463, 0
  %v489 = vsel %vm68, %v464, 0
  %v492 = vsel %vm68, %v465, 0
  %v495 = vsel %vm68, %v466, 0
  %v498 = vsel %vm68, %v467, 0
  %v501 = vsel %vm68, %v468, 0
  %v504 = vsel %vm68, %v469, 0
  %v507 = vsel %vm68, %v470, 0
  %v510 = vsel %vm68, %v471, 0
  %vm512 = vcmask 1043456
  %v514 = vsel %vm512, %v472, 0
  %516 = vmatprep.subr.bf16.mxu0 0
  %517 = vmatpush1.bf16.msra.mxu0 %v514
  %518 = vmatprep.subr.bf16.mxu0 0
  %519 = vmatpush1.bf16.msra.mxu0 0
  %520 = vmatprep.subr.bf16.mxu0 0
  %521 = vmatpush1.bf16.msra.mxu0 0
  %522 = vmatprep.subr.bf16.mxu0 0
  %523 = vmatpush1.bf16.msra.mxu0 0
  %524 = vmatprep.subr.bf16.mxu0 0
  %525 = vmatpush1.bf16.msra.mxu0 0
  %526 = vmatprep.subr.bf16.mxu0 0
  %527 = vmatpush1.bf16.msra.mxu0 0
  %528 = vmatprep.subr.bf16.mxu0 0
  %529 = vmatpush1.bf16.msra.mxu0 0
  %530 = vmatprep.subr.bf16.mxu0 0
  %531 = vmatpush1.bf16.msra.mxu0 0
  %532 = vmatprep.subr.bf16.mxu0 0
  %533 = vmatpush1.bf16.msra.mxu0 0
  %534 = vmatprep.subr.bf16.mxu0 0
  %535 = vmatpush1.bf16.msra.mxu0 0
  %536 = vmatprep.subr.bf16.mxu0 0
  %537 = vmatpush1.bf16.msra.mxu0 0
  %538 = vmatprep.subr.bf16.mxu0 0
  %539 = vmatpush1.bf16.msra.mxu0 0
  %540 = vmatprep.subr.bf16.mxu0 0
  %541 = vmatpush1.bf16.msra.mxu0 0
  %542 = vmatprep.subr.bf16.mxu0 0
  %543 = vmatpush1.bf16.msra.mxu0 0
  %544 = vmatprep.subr.bf16.mxu0 0
  %545 = vmatpush1.bf16.msra.mxu0 0
  %546 = vmatprep.subr.bf16.mxu0 0
  %547 = vmatpush1.bf16.msra.mxu0 0
  %548 = vmatprep.mubr.bf16.mxu0 0
  %549 = vmatmul.mubr.bf16.gmra.mrb[0].mxu0 %v474
  %v550 = vpop.f32.mrb[0].mxu0
  %v551 = vadd.f32 0.0, %v550
  %v552 = vpop.f32.mrb[0].mxu0
  %v553 = vpop.f32.mrb[0].mxu0
  %v554 = vadd.f32 0.0, %v553
  %v555 = vpop.f32.mrb[0].mxu0
  %556 = vmatprep.mubr.bf16.mxu0 0
  %557 = vmatmul.mubr.bf16.gmra.mrb[0].mxu0 %v477
  %v558 = vpop.f32.mrb[0].mxu0
  %v559 = vadd.f32 0.0, %v558
  %v560 = vpop.f32.mrb[0].mxu0
  %v561 = vpop.f32.mrb[0].mxu0
  %v562 = vadd.f32 0.0, %v561
  %v563 = vpop.f32.mrb[0].mxu0
  %564 = vmatprep.mubr.bf16.mxu0 0
  %565 = vmatmul.mubr.bf16.gmra.mrb[0].mxu0 %v480
  %v566 = vpop.f32.mrb[0].mxu0
  %v567 = vadd.f32 0.0, %v566
  %v568 = vpop.f32.mrb[0].mxu0
  %v569 = vpop.f32.mrb[0].mxu0
  %v570 = vadd.f32 0.0, %v569
  %v571 = vpop.f32.mrb[0].mxu0
  %572 = vmatprep.mubr.bf16.mxu0 0
  %573 = vmatmul.mubr.bf16.gmra.mrb[0].mxu0 %v483
  %v574 = vpop.f32.mrb[0].mxu0
  %v575 = vadd.f32 0.0, %v574
  %v576 = vpop.f32.mrb[0].mxu0
  %v577 = vpop.f32.mrb[0].mxu0
  %v578 = vadd.f32 0.0, %v577
  %v579 = vpop.f32.mrb[0].mxu0
  %580 = vmatprep.mubr.bf16.mxu0 0
  %581 = vmatmul.mubr.bf16.gmra.mrb[0].mxu0 %v486
  %v582 = vpop.f32.mrb[0].mxu0
  %v583 = vadd.f32 0.0, %v582
  %v584 = vpop.f32.mrb[0].mxu0
  %v585 = vpop.f32.mrb[0].mxu0
  %v586 = vadd.f32 0.0, %v585
  %v587 = vpop.f32.mrb[0].mxu0
  %588 = vmatprep.mubr.bf16.mxu0 0
  %589 = vmatmul.mubr.bf16.gmra.mrb[0].mxu0 %v489
  %v590 = vpop.f32.mrb[0].mxu0
  %v591 = vadd.f32 0.0, %v590
  %v592 = vpop.f32.mrb[0].mxu0
  %v593 = vpop.f32.mrb[0].mxu0
  %v594 = vadd.f32 0.0, %v593
  %v595 = vpop.f32.mrb[0].mxu0
  %596 = vmatprep.mubr.bf16.mxu0 0
  %597 = vmatmul.mubr.bf16.gmra.mrb[0].mxu0 %v492
  %v598 = vpop.f32.mrb[0].mxu0
  %v599 = vadd.f32 0.0, %v598
  %v600 = vpop.f32.mrb[0].mxu0
  %v601 = vpop.f32.mrb[0].mxu0
  %v602 = vadd.f32 0.0, %v601
  %v603 = vpop.f32.mrb[0].mxu0
  %604 = vmatprep.mubr.bf16.mxu0 0
  %605 = vmatmul.mubr.bf16.gmra.mrb[0].mxu0 %v495
  %v606 = vpop.f32.mrb[0].mxu0
  %v607 = vadd.f32 0.0, %v606
  %v608 = vpop.f32.mrb[0].mxu0
  %v609 = vpop.f32.mrb[0].mxu0
  %v610 = vadd.f32 0.0, %v609
  %v611 = vpop.f32.mrb[0].mxu0
  %612 = vmatprep.mubr.bf16.mxu0 0
  %613 = vmatmul.mubr.bf16.gmra.mrb[0].mxu0 %v498
  %v614 = vpop.f32.mrb[0].mxu0
  %v615 = vadd.f32 0.0, %v614
  %v616 = vpop.f32.mrb[0].mxu0
  %v617 = vpop.f32.mrb[0].mxu0
  %v618 = vadd.f32 0.0, %v617
  %v619 = vpop.f32.mrb[0].mxu0
  %620 = vmatprep.mubr.bf16.mxu0 0
  %621 = vmatmul.mubr.bf16.gmra.mrb[0].mxu0 %v501
  %v622 = vpop.f32.mrb[0].mxu0
  %v623 = vadd.f32 0.0, %v622
  %v624 = vpop.f32.mrb[0].mxu0
  %v625 = vpop.f32.mrb[0].mxu0
  %v626 = vadd.f32 0.0, %v625
  %v627 = vpop.f32.mrb[0].mxu0
  %628 = vmatprep.mubr.bf16.mxu0 0
  %629 = vmatmul.mubr.bf16.gmra.mrb[0].mxu0 %v504
  %v630 = vpop.f32.mrb[0].mxu0
  %v631 = vadd.f32 0.0, %v630
  %v632 = vpop.f32.mrb[0].mxu0
  %v633 = vpop.f32.mrb[0].mxu0
  %v634 = vadd.f32 0.0, %v633
  %v635 = vpop.f32.mrb[0].mxu0
  %636 = vmatprep.mubr.bf16.mxu0 0
  %637 = vmatmul.mubr.bf16.gmra.mrb[0].mxu0 %v507
  %v638 = vpop.f32.mrb[0].mxu0
  %v639 = vadd.f32 0.0, %v638
  %v640 = vpop.f32.mrb[0].mxu0
  %v641 = vpop.f32.mrb[0].mxu0
  %v642 = vadd.f32 0.0, %v641
  %v643 = vpop.f32.mrb[0].mxu0
  %644 = vmatprep.mubr.bf16.mxu0 0
  %645 = vmatmul.mubr.bf16.gmra.mrb[0].mxu0 %v510
  %v646 = vpop.f32.mrb[0].mxu0
  %v647 = vadd.f32 0.0, %v646
  %v648 = vpop.f32.mrb[0].mxu0
  %v649 = vpop.f32.mrb[0].mxu0
  %v650 = vpop.f32.mrb[0].mxu0
  %651 = vdwg.mxu0
  %v652 = vpack.c.bf16 %v554, %v551
  %v653 = vpack.c.bf16 %v562, %v559
  %v654 = vpack.c.bf16 %v570, %v567
  %v655 = vpack.c.bf16 %v578, %v575
  %v656 = vpack.c.bf16 %v586, %v583
  %v657 = vpack.c.bf16 %v594, %v591
  %v658 = vpack.c.bf16 %v602, %v599
  %v659 = vpack.c.bf16 %v610, %v607
  %v660 = vpack.c.bf16 %v618, %v615
  %v661 = vpack.c.bf16 %v626, %v623
  %v662 = vpack.c.bf16 %v634, %v631
  %v663 = vpack.c.bf16 %v642, %v639
  %v664 = vpack.c.bf16 %v647, %v647
  %v678 = vunpack.c.l.b16 %v652
  %v679 = vunpack.c.h.b16 %v652
  %v680 = vunpack.c.l.b16 %v653
  %v681 = vunpack.c.h.b16 %v653
  %v682 = vunpack.c.l.b16 %v654
  %v683 = vunpack.c.h.b16 %v654
  %v684 = vunpack.c.l.b16 %v655
  %v685 = vunpack.c.h.b16 %v655
  %v686 = vunpack.c.l.b16 %v656
  %v687 = vunpack.c.h.b16 %v656
  %v688 = vunpack.c.l.b16 %v657
  %v689 = vunpack.c.h.b16 %v657
  %v690 = vunpack.c.l.b16 %v658
  %v691 = vunpack.c.h.b16 %v658
  %v692 = vunpack.c.l.b16 %v659
  %v693 = vunpack.c.h.b16 %v659
  %v694 = vunpack.c.l.b16 %v660
  %v695 = vunpack.c.h.b16 %v660
  %v696 = vunpack.c.l.b16 %v661
  %v697 = vunpack.c.h.b16 %v661
  %v698 = vunpack.c.l.b16 %v662
  %v699 = vunpack.c.h.b16 %v662
  %v700 = vunpack.c.l.b16 %v663
  %v701 = vunpack.c.h.b16 %v663
  %v702 = vunpack.c.l.b16 %v664
  %v703 = vpack.c.b16 %v678, %v678
  %v704 = vpack.c.b16 %v679, %v679
  %v705 = vpack.c.b16 %v680, %v680
  %v706 = vpack.c.b16 %v681, %v681
  %v707 = vpack.c.b16 %v682, %v682
  %v708 = vpack.c.b16 %v683, %v683
  %v709 = vpack.c.b16 %v684, %v684
  %v710 = vpack.c.b16 %v685, %v685
  %v711 = vpack.c.b16 %v686, %v686
  %v712 = vpack.c.b16 %v687, %v687
  %v713 = vpack.c.b16 %v688, %v688
  %v714 = vpack.c.b16 %v689, %v689
  %v715 = vpack.c.b16 %v690, %v690
  %v716 = vpack.c.b16 %v691, %v691
  %v717 = vpack.c.b16 %v692, %v692
  %v718 = vpack.c.b16 %v693, %v693
  %v719 = vpack.c.b16 %v694, %v694
  %v720 = vpack.c.b16 %v695, %v695
  %v721 = vpack.c.b16 %v696, %v696
  %v722 = vpack.c.b16 %v697, %v697
  %v723 = vpack.c.b16 %v698, %v698
  %v724 = vpack.c.b16 %v699, %v699
  %v725 = vpack.c.b16 %v700, %v700
  %v726 = vpack.c.b16 %v701, %v701
  %v727 = vpack.c.b16 %v702, %v702
  %vm753 = vcmask 60416
  %754 = vst.msk [vmem:[%s4] sm:$0xf] %vm753, %v703
  %755 = vst.msk [vmem:[%s4 + $0x4] sm:$0xf] %vm753, %v704
  %756 = vst.msk [vmem:[%s4 + $0x8] sm:$0xf] %vm753, %v705
  %757 = vst.msk [vmem:[%s4 + $0xc] sm:$0xf] %vm753, %v706
  %758 = vst.msk [vmem:[%s4 + $0x10] sm:$0xf] %vm753, %v707
  %759 = vst.msk [vmem:[%s4 + $0x14] sm:$0xf] %vm753, %v708
  %760 = vst.msk [vmem:[%s4 + $0x18] sm:$0xf] %vm753, %v709
  %761 = vst.msk [vmem:[%s4 + $0x1c] sm:$0xf] %vm753, %v710
  %762 = vst.msk [vmem:[%s4 + $0x20] sm:$0xf] %vm753, %v711
  %763 = vst.msk [vmem:[%s4 + $0x24] sm:$0xf] %vm753, %v712
  %764 = vst.msk [vmem:[%s4 + $0x28] sm:$0xf] %vm753, %v713
  %765 = vst.msk [vmem:[%s4 + $0x2c] sm:$0xf] %vm753, %v714
  %766 = vst.msk [vmem:[%s4 + $0x30] sm:$0xf] %vm753, %v715
  %767 = vst.msk [vmem:[%s4 + $0x34] sm:$0xf] %vm753, %v716
  %768 = vst.msk [vmem:[%s4 + $0x38] sm:$0xf] %vm753, %v717
  %769 = vst.msk [vmem:[%s4 + $0x3c] sm:$0xf] %vm753, %v718
  %770 = vst.msk [vmem:[%s4 + $0x40] sm:$0xf] %vm753, %v719
  %771 = vst.msk [vmem:[%s4 + $0x44] sm:$0xf] %vm753, %v720
  %772 = vst.msk [vmem:[%s4 + $0x48] sm:$0xf] %vm753, %v721
  %773 = vst.msk [vmem:[%s4 + $0x4c] sm:$0xf] %vm753, %v722
  %774 = vst.msk [vmem:[%s4 + $0x50] sm:$0xf] %vm753, %v723
  %775 = vst.msk [vmem:[%s4 + $0x54] sm:$0xf] %vm753, %v724
  %776 = vst.msk [vmem:[%s4 + $0x58] sm:$0xf] %vm753, %v725
  %777 = vst.msk [vmem:[%s4 + $0x5c] sm:$0xf] %vm753, %v726
  %778 = vst.msk [vmem:[%s4 + $0x60] sm:$0xf] %vm753, %v727
  // Predicated region
  $region18: #{mamba_block_forward.23} parent=0 // pred_check
    _
  $region19: #{mamba_block_forward.23} parent=0 // pred_check_branch
    %780 = sbr.rel (0) target = $region21
  $region20: #{mamba_block_forward.23} parent=0 // pred_region
    _
  $region21: #{mamba_block_forward.23} parent=0 // pred_fallthru
    _
  // Predicated region
  $region22: #{mamba_block_forward.23} parent=0 // pred_check
    _
  $region23: #{mamba_block_forward.23} parent=0 // pred_check_branch
    %782 = sbr.rel (0) target = $region25
  $region24: #{mamba_block_forward.23} parent=0 // pred_region
    _
  $region25: #{mamba_block_forward.23} parent=0 // pred_fallthru
    _

// kernel: mamba_block_forward.26
$region0: #{mamba_block_forward.26}
  #allocation0 [shape = 'u32[]', space=smem, size = 0x4, offset = 0x4, fixed_abs, tag = 'smem constant byte address 0x4 - core index']
  #allocation1 [shape = 'u32[144,128]{1,0:T(1,128)}', space=vmem, size = 0x12000, scoped, tag = 'internal scratch']
  #allocation2 [shape = 'f32[28,8]{1,0:T(8,128)}', space=vmem, size = 0x4000, scoped, tag = 'scratch operand']
  %s0 = inlined_call_operand.vmem [shape: bf16[8,25,8], index: 0, kind: input, shape index: {}]
  %s1 = inlined_call_operand.vmem [shape: f32[4,8], index: 1, kind: input, shape index: {}]
  %s2 = inlined_call_operand.vmem [shape: f32[1,8], index: 2, kind: input, shape index: {}]
  %s3 = inlined_call_operand.vmem [shape: bf16[8,25,8], index: 3, kind: output, shape index: {}]
  %s4 = sld [smem:[#allocation0]]
  $region45: #{mamba_block_forward.26} parent=0
    _
  %s6 = ssub.s32 1, %s4
  %s7 = scalar_select 0, %s6, %s4
  loop: start=0, step=1, limit=10
  $region2: #{mamba_block_forward.26} parent=0 // loop_pre_header
    _
  $region3: #{mamba_block_forward.26} parent=0 // loop_header
    %s9 = sphi 0, %s13
    %p10 = scmp.ge.s32.totalorder %s9, 10
    %s16 = sphi 0, %s28
    %s17 = sphi 0, %s24
    %s18 = sphi 0, %s16
    %s19 = sphi 0, %s17
    %s20 = sphi 0, %s18
    %s21 = sphi 0, %s19
    %s33 = sphi 0, %s35
    %s36 = sphi 0, %s33
    %s37 = sphi 0, %s36
    %s53 = sphi 0, %s37
    %s59 = sphi 0, %s61
    %s62 = sphi 0, %s59
    %s63 = sphi 0, %s62
    %s79 = sphi 0, %s63
    %s85 = sphi 0, %s87
    %s88 = sphi 0, %s85
    %s89 = sphi 0, %s88
    %s105 = sphi 0, %s89
    %s113 = sphi 0, %s115
    %s116 = sphi 0, %s113
    %s117 = sphi 0, %s116
    %s133 = sphi 0, %s117
  $region4: #{mamba_block_forward.26} parent=0 // loop_header_branch
    %12 = sbr.rel (%p10) target = $region8
  $region5: #{mamba_block_forward.26} parent=0 // loop_body
    %s14 = ssub.s32 %s9, 1
    %s15 = ssub.s32 %s9, 2
    %s22 = sadd.s32 1, %s17
    %p23 = scmp.ge.s32.totalorder %s22, 1
    %s24 = scalar_select %p23, 0, %s22
    %s25 = sadd.s32 1, %s16
    %s26 = scalar_select %p23, %s25, %s16
    %p27 = scmp.ge.s32.totalorder %s26, 8
    %s28 = scalar_select %p27, 0, %s26
    %s29 = ssub.s32 %s16, %s28
    %s30 = ssub.s32 %s17, %s24
    %s31 = sor.u32 %s29, %s30
    %p32 = scmp.eq.s32.totalorder %s31, 0
    %s34 = sadd.s32 %s33, 1
    %s35 = scalar_select %p32, %s33, %s34
    %p38 = pneg %p32
    %p39 = scmp.eq.s32.totalorder %s9, 7
    %p40 = por %p38, %p39
    %p41 = scmp.ne.s32.totalorder %s33, %s36
    %p42 = scmp.eq.s32.totalorder %s9, 0
    %p43 = por %p41, %p42
    %p44 = scmp.ne.s32.totalorder %s33, %s36
    %p45 = scmp.eq.s32.totalorder %s14, 7
    %p46 = por %p44, %p45
    %p47 = scmp.ne.s32.totalorder %s36, %s37
    %p48 = scmp.eq.s32.totalorder %s14, 0
    %p49 = por %p47, %p48
    %p50 = scmp.ne.s32.totalorder %s36, %s37
    %p51 = scmp.eq.s32.totalorder %s15, 7
    %p52 = por %p50, %p51
    %p54 = scmp.ne.s32.totalorder %s37, %s53
    %p55 = scmp.eq.s32.totalorder %s15, 0
    %p56 = por %p54, %p55
    %s57 = ssub.s32 %s17, %s24
    %p58 = scmp.eq.s32.totalorder %s57, 0
    %s60 = sadd.s32 %s59, 1
    %s61 = scalar_select %p58, %s59, %s60
    %p64 = pneg %p58
    %p65 = scmp.eq.s32.totalorder %s9, 7
    %p66 = por %p64, %p65
    %p67 = scmp.ne.s32.totalorder %s59, %s62
    %p68 = scmp.eq.s32.totalorder %s9, 0
    %p69 = por %p67, %p68
    %p70 = scmp.ne.s32.totalorder %s59, %s62
    %p71 = scmp.eq.s32.totalorder %s14, 7
    %p72 = por %p70, %p71
    %p73 = scmp.ne.s32.totalorder %s62, %s63
    %p74 = scmp.eq.s32.totalorder %s14, 0
    %p75 = por %p73, %p74
    %p76 = scmp.ne.s32.totalorder %s62, %s63
    %p77 = scmp.eq.s32.totalorder %s15, 7
    %p78 = por %p76, %p77
    %p80 = scmp.ne.s32.totalorder %s63, %s79
    %p81 = scmp.eq.s32.totalorder %s15, 0
    %p82 = por %p80, %p81
    %s83 = ssub.s32 %s17, %s24
    %p84 = scmp.eq.s32.totalorder %s83, 0
    %s86 = sadd.s32 %s85, 1
    %s87 = scalar_select %p84, %s85, %s86
    %p90 = pneg %p84
    %p91 = scmp.eq.s32.totalorder %s9, 7
    %p92 = por %p90, %p91
    %p93 = scmp.ne.s32.totalorder %s85, %s88
    %p94 = scmp.eq.s32.totalorder %s9, 0
    %p95 = por %p93, %p94
    %p96 = scmp.ne.s32.totalorder %s85, %s88
    %p97 = scmp.eq.s32.totalorder %s14, 7
    %p98 = por %p96, %p97
    %p99 = scmp.ne.s32.totalorder %s88, %s89
    %p100 = scmp.eq.s32.totalorder %s14, 0
    %p101 = por %p99, %p100
    %p102 = scmp.ne.s32.totalorder %s88, %s89
    %p103 = scmp.eq.s32.totalorder %s15, 7
    %p104 = por %p102, %p103
    %p106 = scmp.ne.s32.totalorder %s89, %s105
    %p107 = scmp.eq.s32.totalorder %s15, 0
    %p108 = por %p106, %p107
    %s109 = ssub.s32 %s16, %s28
    %s110 = ssub.s32 %s17, %s24
    %s111 = sor.u32 %s109, %s110
    %p112 = scmp.eq.s32.totalorder %s111, 0
    %s114 = sadd.s32 %s113, 1
    %s115 = scalar_select %p112, %s113, %s114
    %p118 = pneg %p112
    %p119 = scmp.eq.s32.totalorder %s9, 7
    %p120 = por %p118, %p119
    %p121 = scmp.ne.s32.totalorder %s113, %s116
    %p122 = scmp.eq.s32.totalorder %s9, 0
    %p123 = por %p121, %p122
    %p124 = scmp.ne.s32.totalorder %s113, %s116
    %p125 = scmp.eq.s32.totalorder %s14, 7
    %p126 = por %p124, %p125
    %p127 = scmp.ne.s32.totalorder %s116, %s117
    %p128 = scmp.eq.s32.totalorder %s14, 0
    %p129 = por %p127, %p128
    %p130 = scmp.ne.s32.totalorder %s116, %s117
    %p131 = scmp.eq.s32.totalorder %s15, 7
    %p132 = por %p130, %p131
    %p134 = scmp.ne.s32.totalorder %s117, %s133
    %p135 = scmp.eq.s32.totalorder %s15, 0
    %p136 = por %p134, %p135
    %p137 = scmp.le.s32.totalorder 1, %s9
    %p138 = scmp.lt.s32.totalorder %s9, 9
    %p139 = pnand %p137, %p138
    %p140 = pneg %p139
    // Predicated region
    $region9: #{mamba_block_forward.26} parent=5 // pred_check
      _
    $region10: #{mamba_block_forward.26} parent=5 // pred_check_branch
      %142 = sbr.rel (%p139) target = $region12
    $region11: #{mamba_block_forward.26} parent=5 // pred_region
      %s143 = ssub.s32 %s9, 1
      // Predicated region
      $region13: #{mamba_block_forward.26} parent=11 // pred_check
        %p144 = pneg %p75
      $region14: #{mamba_block_forward.26} parent=11 // pred_check_branch
        %146 = sbr.rel (%p144) target = $region16
      $region15: #{mamba_block_forward.26} parent=11 // pred_region
        %p147 = scmp.lt.s32.totalorder %s19, 0
        %s148 = scalar_select %p147, %s19, 0
        %s149 = smul.addr %s148, 4
        %s150 = scalar_lea.vmem %s1, %s149
      $region16: #{mamba_block_forward.26} parent=11 // pred_fallthru
        _
      // Predicated region
      $region17: #{mamba_block_forward.26} parent=11 // pred_check
        %p151 = pneg %p101
      $region18: #{mamba_block_forward.26} parent=11 // pred_check_branch
        %153 = sbr.rel (%p151) target = $region20
      $region19: #{mamba_block_forward.26} parent=11 // pred_region
        %p154 = scmp.lt.s32.totalorder %s19, 0
        %s155 = scalar_select %p154, %s19, 0
        %s156 = scalar_lea.vmem %s2, %s155
      $region20: #{mamba_block_forward.26} parent=11 // pred_fallthru
        _
    $region12: #{mamba_block_forward.26} parent=5 // pred_fallthru
      _
    %p157 = scmp.lt.s32.totalorder %s9, 8
    // Predicated region
    $region21: #{mamba_block_forward.26} parent=5 // pred_check
      %p158 = pneg %p157
    $region22: #{mamba_block_forward.26} parent=5 // pred_check_branch
      %160 = sbr.rel (%p158) target = $region24
    $region23: #{mamba_block_forward.26} parent=5 // pred_region
      // Predicated region
      $region25: #{mamba_block_forward.26} parent=23 // pred_check
        %p161 = pneg %p43
      $region26: #{mamba_block_forward.26} parent=23 // pred_check_branch
        %163 = sbr.rel (%p161) target = $region28
      $region27: #{mamba_block_forward.26} parent=23 // pred_region
        %p164 = scmp.lt.s32.totalorder %s16, 7
        %s165 = scalar_select %p164, %s16, 7
        %p166 = scmp.lt.s32.totalorder %s17, 0
        %s167 = scalar_select %p166, %s17, 0
        %s168 = smul.addr %s165, 4
        %s169 = sadd.s32 %s167, %s168
        %s170 = smul.addr %s169, 4
        %s171 = scalar_lea.vmem %s0, %s170
      $region28: #{mamba_block_forward.26} parent=23 // pred_fallthru
        _
    $region24: #{mamba_block_forward.26} parent=5 // pred_fallthru
      _
    %p172 = scmp.le.s32.totalorder 1, %s9
    %p173 = scmp.lt.s32.totalorder %s9, 9
    %p174 = pnand %p172, %p173
    %p175 = pneg %p174
    // Predicated region
    $region29: #{mamba_block_forward.26} parent=5 // pred_check
      _
    $region30: #{mamba_block_forward.26} parent=5 // pred_check_branch
      %177 = sbr.rel (%p174) target = $region32
    $region31: #{mamba_block_forward.26} parent=5 // pred_region
      %s178 = ssub.s32 %s9, 1
      %p179 = scmp.lt.s32.totalorder %s18, 7
      %s180 = scalar_select %p179, %s18, 7
      %p181 = scmp.lt.s32.totalorder %s19, 0
      %s182 = scalar_select %p181, %s19, 0
      %s183 = smul.addr %s180, 4
      %s184 = sadd.s32 %s182, %s183
      %s185 = smul.addr %s184, 4
      %s186 = scalar_lea.vmem %s0, %s185
      %p187 = pneg %p49
      %p188 = pneg %p46
      %p189 = scmp.lt.s32.totalorder %s19, 0
      %s190 = scalar_select %p189, %s19, 0
      %s191 = smul.addr %s190, 4
      %s192 = scalar_lea.vmem %s1, %s191
      %p193 = pneg %p75
      %p194 = pneg %p72
      %p195 = scmp.lt.s32.totalorder %s19, 0
      %s196 = scalar_select %p195, %s19, 0
      %s197 = scalar_lea.vmem %s2, %s196
      %p198 = pneg %p101
      %p199 = pneg %p98
      %p200 = pneg %p129
      %p201 = pneg %p126
      %p202 = scmp.lt.s32.totalorder %s18, 7
      %s203 = scalar_select %p202, %s18, 7
      %p204 = scmp.lt.s32.totalorder %s19, 0
      %s205 = scalar_select %p204, %s19, 0
      %s206 = smul.addr %s203, 4
      %s207 = sadd.s32 %s205, %s206
      %s208 = smul.addr %s207, 4
      %s209 = scalar_lea.vmem %s3, %s208
      %p210 = scmp.lt.s32.totalorder %s18, 7
      %s211 = scalar_select %p210, %s18, 7
      %p212 = scmp.lt.s32.totalorder %s19, 0
      %s213 = scalar_select %p212, %s19, 0
      %s214 = smul.addr %s211, 4
      %s215 = sadd.s32 %s213, %s214
      %s216 = smul.addr %s215, 4
      %s217 = scalar_lea.vmem %s0, %s216
      %p218 = scmp.lt.s32.totalorder %s19, 0
      %s219 = scalar_select %p218, %s19, 0
      %s220 = smul.addr %s219, 4
      %s221 = scalar_lea.vmem %s1, %s220
      %p222 = scmp.lt.s32.totalorder %s19, 0
      %s223 = scalar_select %p222, %s19, 0
      %s224 = scalar_lea.vmem %s2, %s223
      %p225 = scmp.lt.s32.totalorder %s18, 7
      %s226 = scalar_select %p225, %s18, 7
      %p227 = scmp.lt.s32.totalorder %s19, 0
      %s228 = scalar_select %p227, %s19, 0
      %s229 = smul.addr %s226, 4
      %s230 = sadd.s32 %s228, %s229
      %s231 = smul.addr %s230, 4
      %s232 = scalar_lea.vmem %s3, %s231
      %vm233 = vcmask 59392
      %234 = vst.msk [vmem:[#allocation2] sm:$0x7] %vm233, 0.0
      %v235 = vld [vmem:[%s217] sm:$0xf]
      %v236 = vld [vmem:[%s217 + $0x4] sm:$0xf]
      %v237 = vld [vmem:[%s217 + $0x8] sm:$0xf]
      %v238 = vld [vmem:[%s217 + $0xc] sm:$0x1]
      %v239 = vunpack.c.l.bf16 %v235
      %v240 = vunpack.c.l.bf16 %v236
      %v241 = vunpack.c.l.bf16 %v237
      %v242 = vunpack.c.l.bf16 %v238
      %vm243 = vcmask 64512
      %244 = vst.msk [vmem:[#allocation2 + $0x3] sm:$0xff] %vm243, %v239
      %245 = vst.msk [vmem:[#allocation2 + $0xb] sm:$0xff] %vm243, %v240
      %246 = vst.msk [vmem:[#allocation2 + $0x13] sm:$0xff] %vm243, %v241
      %vm247 = vcmask 57344
      %248 = vst.msk [vmem:[#allocation2 + $0x1b] sm:$0x1] %vm247, %v242
      %v249 = vld [vmem:[%s221] sm:$0xf]
      %v250 = vld [vmem:[#allocation2] sm:$0xff]
      %v251 = vld [vmem:[#allocation2 + $0x8] sm:$0xff]
      %v252 = vld [vmem:[#allocation2 + $0x10] sm:$0xff]
      %v253 = vld [vmem:[#allocation2 + $0x18] sm:$0x1]
      %v254 = vlaneseq
      %v255 = vshrl.u32 %v254, 7
      %v256 = vsub.s32 0, %v255
      %v257 = vrot.slane %v249, %v256
      %v258 = vmul.f32 %v250, %v257
      %v259 = vmul.f32 %v251, %v257
      %v260 = vmul.f32 %v252, %v257
      %v261 = vmul.f32 %v253, %v257
      %v262 = vld [vmem:[#allocation2 + $0x1] sm:$0xff]
      %v263 = vld [vmem:[#allocation2 + $0x9] sm:$0xff]
      %v264 = vld [vmem:[#allocation2 + $0x11] sm:$0xff]
      %v265 = vld [vmem:[#allocation2 + $0x19] sm:$0x1]
      %v266 = vlaneseq
      %v267 = vshrl.u32 %v266, 7
      %v268 = vsub.s32 1, %v267
      %v269 = vrot.slane %v249, %v268
      %v270 = vmul.f32 %v262, %v269
      %v271 = vmul.f32 %v263, %v269
      %v272 = vmul.f32 %v264, %v269
      %v273 = vmul.f32 %v265, %v269
      %v274 = vadd.f32 %v258, %v270
      %v275 = vadd.f32 %v259, %v271
      %v276 = vadd.f32 %v260, %v272
      %v277 = vadd.f32 %v261, %v273
      %v278 = vld [vmem:[#allocation2 + $0x2] sm:$0xff]
      %v279 = vld [vmem:[#allocation2 + $0xa] sm:$0xff]
      %v280 = vld [vmem:[#allocation2 + $0x12] sm:$0xff]
      %v281 = vld [vmem:[#allocation2 + $0x1a] sm:$0x1]
      %v282 = vlaneseq
      %v283 = vshrl.u32 %v282, 7
      %v284 = vsub.s32 2, %v283
      %v285 = vrot.slane %v249, %v284
      %v286 = vmul.f32 %v278, %v285
      %v287 = vmul.f32 %v279, %v285
      %v288 = vmul.f32 %v280, %v285
      %v289 = vmul.f32 %v281, %v285
      %v290 = vadd.f32 %v274, %v286
      %v291 = vadd.f32 %v275, %v287
      %v292 = vadd.f32 %v276, %v288
      %v293 = vadd.f32 %v277, %v289
      %v294 = vld [vmem:[#allocation2 + $0x3] sm:$0xff]
      %v295 = vld [vmem:[#allocation2 + $0xb] sm:$0xff]
      %v296 = vld [vmem:[#allocation2 + $0x13] sm:$0xff]
      %v297 = vld [vmem:[#allocation2 + $0x1b] sm:$0x1]
      %v298 = vlaneseq
      %v299 = vshrl.u32 %v298, 7
      %v300 = vsub.s32 3, %v299
      %v301 = vrot.slane %v249, %v300
      %v302 = vmul.f32 %v294, %v301
      %v303 = vmul.f32 %v295, %v301
      %v304 = vmul.f32 %v296, %v301
      %v305 = vmul.f32 %v297, %v301
      %v306 = vadd.f32 %v290, %v302
      %v307 = vadd.f32 %v291, %v303
      %v308 = vadd.f32 %v292, %v304
      %v309 = vadd.f32 %v293, %v305
      %v310 = vld [vmem:[%s224] sm:$0x1]
      %v312 = vlaneseq
      %v313 = vshrl.u32 %v312, 7
      %v314 = vsub.s32 0, %v313
      %v315 = vrot.slane %v310, %v314
      %v317 = vadd.f32 %v306, %v315
      %v318 = vadd.f32 %v307, %v315
      %v319 = vadd.f32 %v308, %v315
      %v320 = vadd.f32 %v309, %v315
      %v321 = vxor.u32 %v317, 2147483648
      %v322 = vxor.u32 %v318, 2147483648
      %v323 = vxor.u32 %v319, 2147483648
      %v324 = vxor.u32 %v320, 2147483648
      %v325 = vmul.f32 %v321, 1.442695
      %v326 = vpow.pop %v325
      %v327 = vmul.f32 %v322, 1.442695
      %v328 = vpow.pop %v327
      %v329 = vmul.f32 %v323, 1.442695
      %v330 = vpow.pop %v329
      %v331 = vmul.f32 %v324, 1.442695
      %v332 = vpow.pop %v331
      %v333 = vadd.f32 %v326, 1.0
      %v334 = vadd.f32 %v328, 1.0
      %v335 = vadd.f32 %v330, 1.0
      %v336 = vadd.f32 %v332, 1.0
      %v337 = vrcp.pop %v333
      %v338 = vmul.f32 1.0, %v337
      %v339 = vrcp.pop %v334
      %v340 = vmul.f32 1.0, %v339
      %v341 = vrcp.pop %v335
      %v342 = vmul.f32 1.0, %v341
      %v343 = vrcp.pop %v336
      %v344 = vmul.f32 1.0, %v343
      %v345 = vmul.f32 %v317, %v338
      %v346 = vmul.f32 %v318, %v340
      %v347 = vmul.f32 %v319, %v342
      %v348 = vmul.f32 %v320, %v344
      %v349 = vpack.c.bf16 %v346, %v345
      %v350 = vpack.c.bf16 %v348, %v347
      %v353 = vunpack.c.l.b16 %v349
      %v354 = vunpack.c.h.b16 %v349
      %v355 = vunpack.c.l.b16 %v350
      %v356 = vunpack.c.h.b16 %v350
      %v357 = vpack.c.b16 %v353, %v353
      %v358 = vpack.c.b16 %v354, %v354
      %v359 = vpack.c.b16 %v355, %v355
      %v360 = vpack.c.b16 %v356, %v356
      %vm365 = vcmask 60416
      %366 = vst.msk [vmem:[%s232] sm:$0xf] %vm365, %v357
      %367 = vst.msk [vmem:[%s232 + $0x4] sm:$0xf] %vm365, %v358
      %368 = vst.msk [vmem:[%s232 + $0x8] sm:$0xf] %vm365, %v359
      %vm369 = vcmask 57344
      %vm370 = vsmask.f32 256
      %vm371 = vmand %vm369, %vm370
      %v372 = vld [vmem:[%s232 + $0xc] sm:$0x1]
      %v373 = vsel %vm371, %v360, %v372
      %374 = vst [vmem:[%s232 + $0xc] sm:$0x1] %v373
      %p375 = scmp.lt.s32.totalorder %s18, 7
      %s376 = scalar_select %p375, %s18, 7
      %p377 = scmp.lt.s32.totalorder %s19, 0
      %s378 = scalar_select %p377, %s19, 0
      %s379 = smul.addr %s376, 4
      %s380 = sadd.s32 %s378, %s379
      %s381 = smul.addr %s380, 4
      %s382 = scalar_lea.vmem %s3, %s381
      // Predicated region
      $region33: #{mamba_block_forward.26} parent=31 // pred_check
        %p383 = pneg %p126
      $region34: #{mamba_block_forward.26} parent=31 // pred_check_branch
        %385 = sbr.rel (%p383) target = $region36
      $region35: #{mamba_block_forward.26} parent=31 // pred_region
        _
      $region36: #{mamba_block_forward.26} parent=31 // pred_fallthru
        _
    $region32: #{mamba_block_forward.26} parent=5 // pred_fallthru
      _
    %p386 = scmp.le.s32.totalorder 2, %s9
    // Predicated region
    $region37: #{mamba_block_forward.26} parent=5 // pred_check
      %p387 = pneg %p386
    $region38: #{mamba_block_forward.26} parent=5 // pred_check_branch
      %389 = sbr.rel (%p387) target = $region40
    $region39: #{mamba_block_forward.26} parent=5 // pred_region
      %s390 = ssub.s32 %s9, 2
      // Predicated region
      $region41: #{mamba_block_forward.26} parent=39 // pred_check
        %p391 = pneg %p132
      $region42: #{mamba_block_forward.26} parent=39 // pred_check_branch
        %393 = sbr.rel (%p391) target = $region44
      $region43: #{mamba_block_forward.26} parent=39 // pred_region
        %p394 = scmp.lt.s32.totalorder %s20, 7
        %s395 = scalar_select %p394, %s20, 7
        %p396 = scmp.lt.s32.totalorder %s21, 0
        %s397 = scalar_select %p396, %s21, 0
        %s398 = smul.addr %s395, 4
        %s399 = sadd.s32 %s397, %s398
        %s400 = smul.addr %s399, 4
        %s401 = scalar_lea.vmem %s3, %s400
      $region44: #{mamba_block_forward.26} parent=39 // pred_fallthru
        _
    $region40: #{mamba_block_forward.26} parent=5 // pred_fallthru
      _
  $region6: #{mamba_block_forward.26} parent=0 // loop_footer
    %s13 = sadd.s32 1, %s9
  $region7: #{mamba_block_forward.26} parent=0 // loop_footer_branch
    %8 = sbr.rel target = $region3
  $region8: #{mamba_block_forward.26} parent=0 // loop_exit
    _

// kernel: mamba_block_forward.22
$region0: #{mamba_block_forward.22}
  #allocation0 [shape = 'u32[]', space=smem, size = 0x4, offset = 0x4, fixed_abs, tag = 'smem constant byte address 0x4 - core index']
  #allocation1 [shape = 'u32[144,128]{1,0:T(1,128)}', space=vmem, size = 0x12000, scoped, tag = 'internal scratch']
  #allocation2 [shape = 'f32[8,8]{1,0:T(8,128)}', space=vmem, size = 0x1000, scoped, tag = 'scratch operand']
  #allocation3 [shape = 'f32[800,8]{1,0:T(8,128)}', space=vmem, size = 0x64000, scoped, tag = 'scratch operand']
  #allocation4 [shape = 'f32[800,8]{1,0:T(8,128)}', space=vmem, size = 0x64000, scoped, tag = 'scratch operand']
  #allocation5 [shape = 'f32[800,8]{1,0:T(8,128)}', space=vmem, size = 0x64000, scoped, tag = 'scratch operand']
  %s0 = inlined_call_operand.vmem [shape: bf16[2,100,8], index: 0, kind: input, shape index: {}]
  %s1 = inlined_call_operand.vmem [shape: bf16[2,100,8], index: 1, kind: input, shape index: {}]
  %s2 = inlined_call_operand.vmem [shape: bf16[8,8], index: 2, kind: input, shape index: {}]
  %s3 = inlined_call_operand.vmem [shape: f32[1,8], index: 3, kind: input, shape index: {}]
  %s4 = inlined_call_operand.vmem [shape: bf16[8,8], index: 4, kind: input, shape index: {}]
  %s5 = inlined_call_operand.vmem [shape: bf16[8,8], index: 5, kind: input, shape index: {}]
  %s6 = inlined_call_operand.vmem [shape: f32[8,8], index: 6, kind: input, shape index: {}]
  %s7 = inlined_call_operand.vmem [shape: f32[1,8], index: 7, kind: input, shape index: {}]
  %s8 = inlined_call_operand.vmem [shape: bf16[2,100,8], index: 8, kind: output, shape index: {}]
  %s9 = sld [smem:[#allocation0]]
  $region76: #{mamba_block_forward.22} parent=0
    _
  %s11 = ssub.s32 1, %s9
  %s12 = scalar_select 0, %s11, %s9
  loop: start=0, step=1, limit=4
  $region2: #{mamba_block_forward.22} parent=0 // loop_pre_header
    _
  $region3: #{mamba_block_forward.22} parent=0 // loop_header
    %s14 = sphi 0, %s18
    %p15 = scmp.ge.s32.totalorder %s14, 4
    %s21 = sphi 0, %s33
    %s22 = sphi 0, %s29
    %s23 = sphi 0, %s21
    %s24 = sphi 0, %s22
    %s25 = sphi 0, %s23
    %s26 = sphi 0, %s24
    %s38 = sphi 0, %s40
    %s41 = sphi 0, %s38
    %s42 = sphi 0, %s41
    %s58 = sphi 0, %s42
    %s66 = sphi 0, %s68
    %s69 = sphi 0, %s66
    %s70 = sphi 0, %s69
    %s86 = sphi 0, %s70
    %s90 = sphi 0, %s90
    %s92 = sphi 0, %s90
    %s93 = sphi 0, %s92
    %s107 = sphi 0, %s93
    %s111 = sphi 0, %s111
    %s113 = sphi 0, %s111
    %s114 = sphi 0, %s113
    %s128 = sphi 0, %s114
    %s132 = sphi 0, %s132
    %s134 = sphi 0, %s132
    %s135 = sphi 0, %s134
    %s149 = sphi 0, %s135
    %s153 = sphi 0, %s153
    %s155 = sphi 0, %s153
    %s156 = sphi 0, %s155
    %s170 = sphi 0, %s156
    %s174 = sphi 0, %s174
    %s176 = sphi 0, %s174
    %s177 = sphi 0, %s176
    %s191 = sphi 0, %s177
    %s195 = sphi 0, %s195
    %s197 = sphi 0, %s195
    %s198 = sphi 0, %s197
    %s212 = sphi 0, %s198
    %s220 = sphi 0, %s222
    %s223 = sphi 0, %s220
    %s224 = sphi 0, %s223
    %s240 = sphi 0, %s224
  $region4: #{mamba_block_forward.22} parent=0 // loop_header_branch
    %17 = sbr.rel (%p15) target = $region8
  $region5: #{mamba_block_forward.22} parent=0 // loop_body
    %s19 = ssub.s32 %s14, 1
    %s20 = ssub.s32 %s14, 2
    %s27 = sadd.s32 1, %s22
    %p28 = scmp.ge.s32.totalorder %s27, 1
    %s29 = scalar_select %p28, 0, %s27
    %s30 = sadd.s32 1, %s21
    %s31 = scalar_select %p28, %s30, %s21
    %p32 = scmp.ge.s32.totalorder %s31, 2
    %s33 = scalar_select %p32, 0, %s31
    %s34 = ssub.s32 %s21, %s33
    %s35 = ssub.s32 %s22, %s29
    %s36 = sor.u32 %s34, %s35
    %p37 = scmp.eq.s32.totalorder %s36, 0
    %s39 = sadd.s32 %s38, 1
    %s40 = scalar_select %p37, %s38, %s39
    %p43 = pneg %p37
    %p44 = scmp.eq.s32.totalorder %s14, 1
    %p45 = por %p43, %p44
    %p46 = scmp.ne.s32.totalorder %s38, %s41
    %p47 = scmp.eq.s32.totalorder %s14, 0
    %p48 = por %p46, %p47
    %p49 = scmp.ne.s32.totalorder %s38, %s41
    %p50 = scmp.eq.s32.totalorder %s19, 1
    %p51 = por %p49, %p50
    %p52 = scmp.ne.s32.totalorder %s41, %s42
    %p53 = scmp.eq.s32.totalorder %s19, 0
    %p54 = por %p52, %p53
    %p55 = scmp.ne.s32.totalorder %s41, %s42
    %p56 = scmp.eq.s32.totalorder %s20, 1
    %p57 = por %p55, %p56
    %p59 = scmp.ne.s32.totalorder %s42, %s58
    %p60 = scmp.eq.s32.totalorder %s20, 0
    %p61 = por %p59, %p60
    %s62 = ssub.s32 %s21, %s33
    %s63 = ssub.s32 %s22, %s29
    %s64 = sor.u32 %s62, %s63
    %p65 = scmp.eq.s32.totalorder %s64, 0
    %s67 = sadd.s32 %s66, 1
    %s68 = scalar_select %p65, %s66, %s67
    %p71 = pneg %p65
    %p72 = scmp.eq.s32.totalorder %s14, 1
    %p73 = por %p71, %p72
    %p74 = scmp.ne.s32.totalorder %s66, %s69
    %p75 = scmp.eq.s32.totalorder %s14, 0
    %p76 = por %p74, %p75
    %p77 = scmp.ne.s32.totalorder %s66, %s69
    %p78 = scmp.eq.s32.totalorder %s19, 1
    %p79 = por %p77, %p78
    %p80 = scmp.ne.s32.totalorder %s69, %s70
    %p81 = scmp.eq.s32.totalorder %s19, 0
    %p82 = por %p80, %p81
    %p83 = scmp.ne.s32.totalorder %s69, %s70
    %p84 = scmp.eq.s32.totalorder %s20, 1
    %p85 = por %p83, %p84
    %p87 = scmp.ne.s32.totalorder %s70, %s86
    %p88 = scmp.eq.s32.totalorder %s20, 0
    %p89 = por %p87, %p88
    %s91 = sadd.s32 %s90, 1
    %p94 = scmp.eq.s32.totalorder %s14, 1
    %p95 = scmp.ne.s32.totalorder %s90, %s92
    %p96 = scmp.eq.s32.totalorder %s14, 0
    %p97 = por %p95, %p96
    %p98 = scmp.ne.s32.totalorder %s90, %s92
    %p99 = scmp.eq.s32.totalorder %s19, 1
    %p100 = por %p98, %p99
    %p101 = scmp.ne.s32.totalorder %s92, %s93
    %p102 = scmp.eq.s32.totalorder %s19, 0
    %p103 = por %p101, %p102
    %p104 = scmp.ne.s32.totalorder %s92, %s93
    %p105 = scmp.eq.s32.totalorder %s20, 1
    %p106 = por %p104, %p105
    %p108 = scmp.ne.s32.totalorder %s93, %s107
    %p109 = scmp.eq.s32.totalorder %s20, 0
    %p110 = por %p108, %p109
    %s112 = sadd.s32 %s111, 1
    %p115 = scmp.eq.s32.totalorder %s14, 1
    %p116 = scmp.ne.s32.totalorder %s111, %s113
    %p117 = scmp.eq.s32.totalorder %s14, 0
    %p118 = por %p116, %p117
    %p119 = scmp.ne.s32.totalorder %s111, %s113
    %p120 = scmp.eq.s32.totalorder %s19, 1
    %p121 = por %p119, %p120
    %p122 = scmp.ne.s32.totalorder %s113, %s114
    %p123 = scmp.eq.s32.totalorder %s19, 0
    %p124 = por %p122, %p123
    %p125 = scmp.ne.s32.totalorder %s113, %s114
    %p126 = scmp.eq.s32.totalorder %s20, 1
    %p127 = por %p125, %p126
    %p129 = scmp.ne.s32.totalorder %s114, %s128
    %p130 = scmp.eq.s32.totalorder %s20, 0
    %p131 = por %p129, %p130
    %s133 = sadd.s32 %s132, 1
    %p136 = scmp.eq.s32.totalorder %s14, 1
    %p137 = scmp.ne.s32.totalorder %s132, %s134
    %p138 = scmp.eq.s32.totalorder %s14, 0
    %p139 = por %p137, %p138
    %p140 = scmp.ne.s32.totalorder %s132, %s134
    %p141 = scmp.eq.s32.totalorder %s19, 1
    %p142 = por %p140, %p141
    %p143 = scmp.ne.s32.totalorder %s134, %s135
    %p144 = scmp.eq.s32.totalorder %s19, 0
    %p145 = por %p143, %p144
    %p146 = scmp.ne.s32.totalorder %s134, %s135
    %p147 = scmp.eq.s32.totalorder %s20, 1
    %p148 = por %p146, %p147
    %p150 = scmp.ne.s32.totalorder %s135, %s149
    %p151 = scmp.eq.s32.totalorder %s20, 0
    %p152 = por %p150, %p151
    %s154 = sadd.s32 %s153, 1
    %p157 = scmp.eq.s32.totalorder %s14, 1
    %p158 = scmp.ne.s32.totalorder %s153, %s155
    %p159 = scmp.eq.s32.totalorder %s14, 0
    %p160 = por %p158, %p159
    %p161 = scmp.ne.s32.totalorder %s153, %s155
    %p162 = scmp.eq.s32.totalorder %s19, 1
    %p163 = por %p161, %p162
    %p164 = scmp.ne.s32.totalorder %s155, %s156
    %p165 = scmp.eq.s32.totalorder %s19, 0
    %p166 = por %p164, %p165
    %p167 = scmp.ne.s32.totalorder %s155, %s156
    %p168 = scmp.eq.s32.totalorder %s20, 1
    %p169 = por %p167, %p168
    %p171 = scmp.ne.s32.totalorder %s156, %s170
    %p172 = scmp.eq.s32.totalorder %s20, 0
    %p173 = por %p171, %p172
    %s175 = sadd.s32 %s174, 1
    %p178 = scmp.eq.s32.totalorder %s14, 1
    %p179 = scmp.ne.s32.totalorder %s174, %s176
    %p180 = scmp.eq.s32.totalorder %s14, 0
    %p181 = por %p179, %p180
    %p182 = scmp.ne.s32.totalorder %s174, %s176
    %p183 = scmp.eq.s32.totalorder %s19, 1
    %p184 = por %p182, %p183
    %p185 = scmp.ne.s32.totalorder %s176, %s177
    %p186 = scmp.eq.s32.totalorder %s19, 0
    %p187 = por %p185, %p186
    %p188 = scmp.ne.s32.totalorder %s176, %s177
    %p189 = scmp.eq.s32.totalorder %s20, 1
    %p190 = por %p188, %p189
    %p192 = scmp.ne.s32.totalorder %s177, %s191
    %p193 = scmp.eq.s32.totalorder %s20, 0
    %p194 = por %p192, %p193
    %s196 = sadd.s32 %s195, 1
    %p199 = scmp.eq.s32.totalorder %s14, 1
    %p200 = scmp.ne.s32.totalorder %s195, %s197
    %p201 = scmp.eq.s32.totalorder %s14, 0
    %p202 = por %p200, %p201
    %p203 = scmp.ne.s32.totalorder %s195, %s197
    %p204 = scmp.eq.s32.totalorder %s19, 1
    %p205 = por %p203, %p204
    %p206 = scmp.ne.s32.totalorder %s197, %s198
    %p207 = scmp.eq.s32.totalorder %s19, 0
    %p208 = por %p206, %p207
    %p209 = scmp.ne.s32.totalorder %s197, %s198
    %p210 = scmp.eq.s32.totalorder %s20, 1
    %p211 = por %p209, %p210
    %p213 = scmp.ne.s32.totalorder %s198, %s212
    %p214 = scmp.eq.s32.totalorder %s20, 0
    %p215 = por %p213, %p214
    %s216 = ssub.s32 %s21, %s33
    %s217 = ssub.s32 %s22, %s29
    %s218 = sor.u32 %s216, %s217
    %p219 = scmp.eq.s32.totalorder %s218, 0
    %s221 = sadd.s32 %s220, 1
    %s222 = scalar_select %p219, %s220, %s221
    %p225 = pneg %p219
    %p226 = scmp.eq.s32.totalorder %s14, 1
    %p227 = por %p225, %p226
    %p228 = scmp.ne.s32.totalorder %s220, %s223
    %p229 = scmp.eq.s32.totalorder %s14, 0
    %p230 = por %p228, %p229
    %p231 = scmp.ne.s32.totalorder %s220, %s223
    %p232 = scmp.eq.s32.totalorder %s19, 1
    %p233 = por %p231, %p232
    %p234 = scmp.ne.s32.totalorder %s223, %s224
    %p235 = scmp.eq.s32.totalorder %s19, 0
    %p236 = por %p234, %p235
    %p237 = scmp.ne.s32.totalorder %s223, %s224
    %p238 = scmp.eq.s32.totalorder %s20, 1
    %p239 = por %p237, %p238
    %p241 = scmp.ne.s32.totalorder %s224, %s240
    %p242 = scmp.eq.s32.totalorder %s20, 0
    %p243 = por %p241, %p242
    %p244 = scmp.le.s32.totalorder 1, %s14
    %p245 = scmp.lt.s32.totalorder %s14, 3
    %p246 = pnand %p244, %p245
    %p247 = pneg %p246
    // Predicated region
    $region9: #{mamba_block_forward.22} parent=5 // pred_check
      _
    $region10: #{mamba_block_forward.22} parent=5 // pred_check_branch
      %249 = sbr.rel (%p246) target = $region12
    $region11: #{mamba_block_forward.22} parent=5 // pred_region
      %s250 = ssub.s32 %s14, 1
      // Predicated region
      $region13: #{mamba_block_forward.22} parent=11 // pred_check
        %p251 = pneg %p103
      $region14: #{mamba_block_forward.22} parent=11 // pred_check_branch
        %253 = sbr.rel (%p251) target = $region16
      $region15: #{mamba_block_forward.22} parent=11 // pred_region
        _
      $region16: #{mamba_block_forward.22} parent=11 // pred_fallthru
        _
      // Predicated region
      $region17: #{mamba_block_forward.22} parent=11 // pred_check
        %p254 = pneg %p124
      $region18: #{mamba_block_forward.22} parent=11 // pred_check_branch
        %256 = sbr.rel (%p254) target = $region20
      $region19: #{mamba_block_forward.22} parent=11 // pred_region
        _
      $region20: #{mamba_block_forward.22} parent=11 // pred_fallthru
        _
      // Predicated region
      $region21: #{mamba_block_forward.22} parent=11 // pred_check
        %p257 = pneg %p145
      $region22: #{mamba_block_forward.22} parent=11 // pred_check_branch
        %259 = sbr.rel (%p257) target = $region24
      $region23: #{mamba_block_forward.22} parent=11 // pred_region
        _
      $region24: #{mamba_block_forward.22} parent=11 // pred_fallthru
        _
      // Predicated region
      $region25: #{mamba_block_forward.22} parent=11 // pred_check
        %p260 = pneg %p166
      $region26: #{mamba_block_forward.22} parent=11 // pred_check_branch
        %262 = sbr.rel (%p260) target = $region28
      $region27: #{mamba_block_forward.22} parent=11 // pred_region
        _
      $region28: #{mamba_block_forward.22} parent=11 // pred_fallthru
        _
      // Predicated region
      $region29: #{mamba_block_forward.22} parent=11 // pred_check
        %p263 = pneg %p187
      $region30: #{mamba_block_forward.22} parent=11 // pred_check_branch
        %265 = sbr.rel (%p263) target = $region32
      $region31: #{mamba_block_forward.22} parent=11 // pred_region
        _
      $region32: #{mamba_block_forward.22} parent=11 // pred_fallthru
        _
      // Predicated region
      $region33: #{mamba_block_forward.22} parent=11 // pred_check
        %p266 = pneg %p208
      $region34: #{mamba_block_forward.22} parent=11 // pred_check_branch
        %268 = sbr.rel (%p266) target = $region36
      $region35: #{mamba_block_forward.22} parent=11 // pred_region
        _
      $region36: #{mamba_block_forward.22} parent=11 // pred_fallthru
        _
    $region12: #{mamba_block_forward.22} parent=5 // pred_fallthru
      _
    %p269 = scmp.lt.s32.totalorder %s14, 2
    // Predicated region
    $region37: #{mamba_block_forward.22} parent=5 // pred_check
      %p270 = pneg %p269
    $region38: #{mamba_block_forward.22} parent=5 // pred_check_branch
      %272 = sbr.rel (%p270) target = $region40
    $region39: #{mamba_block_forward.22} parent=5 // pred_region
      // Predicated region
      $region41: #{mamba_block_forward.22} parent=39 // pred_check
        %p273 = pneg %p48
      $region42: #{mamba_block_forward.22} parent=39 // pred_check_branch
        %275 = sbr.rel (%p273) target = $region44
      $region43: #{mamba_block_forward.22} parent=39 // pred_region
        %s276 = smul.u32 13, %s22
        %p277 = scmp.lt.s32.totalorder %s21, 1
        %s278 = scalar_select %p277, %s21, 1
        %p279 = scmp.lt.s32.totalorder %s276, 12
        %s280 = scalar_select %p279, %s276, 12
        %s281 = smul.addr %s278, 13
        %s282 = sadd.s32 %s280, %s281
        %s283 = smul.addr %s282, 4
        %s284 = scalar_lea.vmem %s0, %s283
        %s285 = smul.u32 13, %s22
      $region44: #{mamba_block_forward.22} parent=39 // pred_fallthru
        _
      // Predicated region
      $region45: #{mamba_block_forward.22} parent=39 // pred_check
        %p286 = pneg %p76
      $region46: #{mamba_block_forward.22} parent=39 // pred_check_branch
        %288 = sbr.rel (%p286) target = $region48
      $region47: #{mamba_block_forward.22} parent=39 // pred_region
        %s289 = smul.u32 13, %s22
        %p290 = scmp.lt.s32.totalorder %s21, 1
        %s291 = scalar_select %p290, %s21, 1
        %p292 = scmp.lt.s32.totalorder %s289, 12
        %s293 = scalar_select %p292, %s289, 12
        %s294 = smul.addr %s291, 13
        %s295 = sadd.s32 %s293, %s294
        %s296 = smul.addr %s295, 4
        %s297 = scalar_lea.vmem %s1, %s296
        %s298 = smul.u32 13, %s22
      $region48: #{mamba_block_forward.22} parent=39 // pred_fallthru
        _
    $region40: #{mamba_block_forward.22} parent=5 // pred_fallthru
      _
    %p299 = scmp.le.s32.totalorder 1, %s14
    %p300 = scmp.lt.s32.totalorder %s14, 3
    %p301 = pnand %p299, %p300
    %p302 = pneg %p301
    // Predicated region
    $region49: #{mamba_block_forward.22} parent=5 // pred_check
      _
    $region50: #{mamba_block_forward.22} parent=5 // pred_check_branch
      %304 = sbr.rel (%p301) target = $region52
    $region51: #{mamba_block_forward.22} parent=5 // pred_region
      %s305 = ssub.s32 %s14, 1
      %s306 = smul.u32 13, %s24
      %p307 = scmp.lt.s32.totalorder %s23, 1
      %s308 = scalar_select %p307, %s23, 1
      %p309 = scmp.lt.s32.totalorder %s306, 12
      %s310 = scalar_select %p309, %s306, 12
      %s311 = smul.addr %s308, 13
      %s312 = sadd.s32 %s310, %s311
      %s313 = smul.addr %s312, 4
      %s314 = scalar_lea.vmem %s0, %s313
      %p315 = pneg %p54
      %p316 = pneg %p51
      %s317 = smul.u32 13, %s24
      %p318 = scmp.lt.s32.totalorder %s23, 1
      %s319 = scalar_select %p318, %s23, 1
      %p320 = scmp.lt.s32.totalorder %s317, 12
      %s321 = scalar_select %p320, %s317, 12
      %s322 = smul.addr %s319, 13
      %s323 = sadd.s32 %s321, %s322
      %s324 = smul.addr %s323, 4
      %s325 = scalar_lea.vmem %s1, %s324
      %p326 = pneg %p82
      %p327 = pneg %p79
      %p328 = pneg %p103
      %p329 = pneg %p100
      %p330 = pneg %p124
      %p331 = pneg %p121
      %p332 = pneg %p145
      %p333 = pneg %p142
      %p334 = pneg %p166
      %p335 = pneg %p163
      %p336 = pneg %p187
      %p337 = pneg %p184
      %p338 = pneg %p208
      %p339 = pneg %p205
      %p340 = pneg %p236
      %p341 = pneg %p233
      %s342 = smul.u32 13, %s24
      %p343 = scmp.lt.s32.totalorder %s23, 1
      %s344 = scalar_select %p343, %s23, 1
      %p345 = scmp.lt.s32.totalorder %s342, 12
      %s346 = scalar_select %p345, %s342, 12
      %s347 = smul.addr %s344, 13
      %s348 = sadd.s32 %s346, %s347
      %s349 = smul.addr %s348, 4
      %s350 = scalar_lea.vmem %s8, %s349
      %s351 = smul.u32 13, %s24
      %p352 = scmp.lt.s32.totalorder %s23, 1
      %s353 = scalar_select %p352, %s23, 1
      %p354 = scmp.lt.s32.totalorder %s351, 12
      %s355 = scalar_select %p354, %s351, 12
      %s356 = smul.addr %s353, 13
      %s357 = sadd.s32 %s355, %s356
      %s358 = smul.addr %s357, 4
      %s359 = scalar_lea.vmem %s0, %s358
      %s360 = smul.u32 13, %s24
      %s361 = smul.u32 13, %s24
      %p362 = scmp.lt.s32.totalorder %s23, 1
      %s363 = scalar_select %p362, %s23, 1
      %p364 = scmp.lt.s32.totalorder %s361, 12
      %s365 = scalar_select %p364, %s361, 12
      %s366 = smul.addr %s363, 13
      %s367 = sadd.s32 %s365, %s366
      %s368 = smul.addr %s367, 4
      %s369 = scalar_lea.vmem %s1, %s368
      %s370 = smul.u32 13, %s24
      %s371 = smul.u32 13, %s24
      %p372 = scmp.lt.s32.totalorder %s23, 1
      %s373 = scalar_select %p372, %s23, 1
      %p374 = scmp.lt.s32.totalorder %s371, 12
      %s375 = scalar_select %p374, %s371, 12
      %s376 = smul.addr %s373, 13
      %s377 = sadd.s32 %s375, %s376
      %s378 = smul.addr %s377, 4
      %s379 = scalar_lea.vmem %s8, %s378
      %s380 = smul.u32 13, %s24
      %p382 = scmp.eq.s32.totalorder %s24, 0
      // Predicated region
      $region53: #{mamba_block_forward.22} parent=51 // pred_check
        %p383 = pneg %p382
      $region54: #{mamba_block_forward.22} parent=51 // pred_check_branch
        %385 = sbr.rel (%p383) target = $region56
      $region55: #{mamba_block_forward.22} parent=51 // pred_region
        %vm386 = vcmask 64512
        %387 = vst.msk [vmem:[#allocation2] sm:$0xff] %vm386, 0.0
      $region56: #{mamba_block_forward.22} parent=51 // pred_fallthru
        _
      %v388 = vld [vmem:[%s359] sm:$0xf]
      %v389 = vld [vmem:[%s359 + $0x4] sm:$0xf]
      %v390 = vld [vmem:[%s359 + $0x8] sm:$0xf]
      %v391 = vld [vmem:[%s359 + $0xc] sm:$0xf]
      %v392 = vld [vmem:[%s359 + $0x10] sm:$0xf]
      %v393 = vld [vmem:[%s359 + $0x14] sm:$0xf]
      %v394 = vld [vmem:[%s359 + $0x18] sm:$0xf]
      %v395 = vld [vmem:[%s359 + $0x1c] sm:$0xf]
      %v396 = vld [vmem:[%s359 + $0x20] sm:$0xf]
      %v397 = vld [vmem:[%s359 + $0x24] sm:$0xf]
      %v398 = vld [vmem:[%s359 + $0x28] sm:$0xf]
      %v399 = vld [vmem:[%s359 + $0x2c] sm:$0xf]
      %v400 = vld [vmem:[%s359 + $0x30] sm:$0x3]
      %v401 = vunpack.c.l.bf16 %v388
      %v402 = vunpack.c.l.bf16 %v389
      %v403 = vunpack.c.l.bf16 %v390
      %v404 = vunpack.c.l.bf16 %v391
      %v405 = vunpack.c.l.bf16 %v392
      %v406 = vunpack.c.l.bf16 %v393
      %v407 = vunpack.c.l.bf16 %v394
      %v408 = vunpack.c.l.bf16 %v395
      %v409 = vunpack.c.l.bf16 %v396
      %v410 = vunpack.c.l.bf16 %v397
      %v411 = vunpack.c.l.bf16 %v398
      %v412 = vunpack.c.l.bf16 %v399
      %v413 = vunpack.c.l.bf16 %v400
      %v414 = vld [vmem:[%s369] sm:$0xf]
      %v415 = vld [vmem:[%s369 + $0x4] sm:$0xf]
      %v416 = vld [vmem:[%s369 + $0x8] sm:$0xf]
      %v417 = vld [vmem:[%s369 + $0xc] sm:$0xf]
      %v418 = vld [vmem:[%s369 + $0x10] sm:$0xf]
      %v419 = vld [vmem:[%s369 + $0x14] sm:$0xf]
      %v420 = vld [vmem:[%s369 + $0x18] sm:$0xf]
      %v421 = vld [vmem:[%s369 + $0x1c] sm:$0xf]
      %v422 = vld [vmem:[%s369 + $0x20] sm:$0xf]
      %v423 = vld [vmem:[%s369 + $0x24] sm:$0xf]
      %v424 = vld [vmem:[%s369 + $0x28] sm:$0xf]
      %v425 = vld [vmem:[%s369 + $0x2c] sm:$0xf]
      %v426 = vld [vmem:[%s369 + $0x30] sm:$0x3]
      %v427 = vunpack.c.l.bf16 %v414
      %v428 = vunpack.c.l.bf16 %v415
      %v429 = vunpack.c.l.bf16 %v416
      %v430 = vunpack.c.l.bf16 %v417
      %v431 = vunpack.c.l.bf16 %v418
      %v432 = vunpack.c.l.bf16 %v419
      %v433 = vunpack.c.l.bf16 %v420
      %v434 = vunpack.c.l.bf16 %v421
      %v435 = vunpack.c.l.bf16 %v422
      %v436 = vunpack.c.l.bf16 %v423
      %v437 = vunpack.c.l.bf16 %v424
      %v438 = vunpack.c.l.bf16 %v425
      %v439 = vunpack.c.l.bf16 %v426
      %v440 = vld [vmem:[%s2] sm:$0xf]
      %v441 = vld [vmem:[%s3] sm:$0x1]
      %v443 = vlaneseq
      %v444 = vshrl.u32 %v443, 7
      %v445 = vsub.s32 0, %v444
      %v446 = vrot.slane %v441, %v445
      %v461 = vunpack.c.l.b16 %v388
      %v462 = vunpack.c.l.b16 %v389
      %v463 = vunpack.c.l.b16 %v390
      %v464 = vunpack.c.l.b16 %v391
      %v465 = vunpack.c.l.b16 %v392
      %v466 = vunpack.c.l.b16 %v393
      %v467 = vunpack.c.l.b16 %v394
      %v468 = vunpack.c.l.b16 %v395
      %v469 = vunpack.c.l.b16 %v396
      %v470 = vunpack.c.l.b16 %v397
      %v471 = vunpack.c.l.b16 %v398
      %v472 = vunpack.c.l.b16 %v399
      %v473 = vunpack.c.l.b16 %v400
      %v474 = vpack.c.b16 %v462, %v461
      %v475 = vpack.c.b16 %v464, %v463
      %v476 = vpack.c.b16 %v466, %v465
      %v477 = vpack.c.b16 %v468, %v467
      %v478 = vpack.c.b16 %v470, %v469
      %v479 = vpack.c.b16 %v472, %v471
      %v480 = vpack.c.b16 %v473, %v473
      %vm481 = vcmask 64512
      %v483 = vsel %vm481, %v474, 0
      %v486 = vsel %vm481, %v475, 0
      %v489 = vsel %vm481, %v476, 0
      %v492 = vsel %vm481, %v477, 0
      %v495 = vsel %vm481, %v478, 0
      %v498 = vsel %vm481, %v479, 0
      %v501 = vsel %vm481, %v480, 0
      %vm503 = vcmask 1043456
      %v505 = vsel %vm503, %v440, 0
      %507 = vmatprep.subr.bf16.mxu0 0
      %508 = vmatpush1.bf16.msra.mxu0 %v505
      %509 = vmatprep.subr.bf16.mxu0 0
      %510 = vmatpush1.bf16.msra.mxu0 0
      %511 = vmatprep.subr.bf16.mxu0 0
      %512 = vmatpush1.bf16.msra.mxu0 0
      %513 = vmatprep.subr.bf16.mxu0 0
      %514 = vmatpush1.bf16.msra.mxu0 0
      %515 = vmatprep.subr.bf16.mxu0 0
      %516 = vmatpush1.bf16.msra.mxu0 0
      %517 = vmatprep.subr.bf16.mxu0 0
      %518 = vmatpush1.bf16.msra.mxu0 0
      %519 = vmatprep.subr.bf16.mxu0 0
      %520 = vmatpush1.bf16.msra.mxu0 0
      %521 = vmatprep.subr.bf16.mxu0 0
      %522 = vmatpush1.bf16.msra.mxu0 0
      %523 = vmatprep.subr.bf16.mxu0 0
      %524 = vmatpush1.bf16.msra.mxu0 0
      %525 = vmatprep.subr.bf16.mxu0 0
      %526 = vmatpush1.bf16.msra.mxu0 0
      %527 = vmatprep.subr.bf16.mxu0 0
      %528 = vmatpush1.bf16.msra.mxu0 0
      %529 = vmatprep.subr.bf16.mxu0 0
      %530 = vmatpush1.bf16.msra.mxu0 0
      %531 = vmatprep.subr.bf16.mxu0 0
      %532 = vmatpush1.bf16.msra.mxu0 0
      %533 = vmatprep.subr.bf16.mxu0 0
      %534 = vmatpush1.bf16.msra.mxu0 0
      %535 = vmatprep.subr.bf16.mxu0 0
      %536 = vmatpush1.bf16.msra.mxu0 0
      %537 = vmatprep.subr.bf16.mxu0 0
      %538 = vmatpush1.bf16.msra.mxu0 0
      %539 = vmatprep.mubr.bf16.mxu0 0
      %540 = vmatmul.mubr.bf16.gmra.mrb[0].mxu0 %v483
      %v541 = vpop.f32.mrb[0].mxu0
      %v542 = vadd.f32 %v446, %v541
      %v543 = vpop.f32.mrb[0].mxu0
      %v544 = vpop.f32.mrb[0].mxu0
      %v545 = vadd.f32 %v446, %v544
      %v546 = vpop.f32.mrb[0].mxu0
      %547 = vmatprep.mubr.bf16.mxu0 0
      %548 = vmatmul.mubr.bf16.gmra.mrb[0].mxu0 %v486
      %v549 = vpop.f32.mrb[0].mxu0
      %v550 = vadd.f32 %v446, %v549
      %v551 = vpop.f32.mrb[0].mxu0
      %v552 = vpop.f32.mrb[0].mxu0
      %v553 = vadd.f32 %v446, %v552
      %v554 = vpop.f32.mrb[0].mxu0
      %555 = vmatprep.mubr.bf16.mxu0 0
      %556 = vmatmul.mubr.bf16.gmra.mrb[0].mxu0 %v489
      %v557 = vpop.f32.mrb[0].mxu0
      %v558 = vadd.f32 %v446, %v557
      %v559 = vpop.f32.mrb[0].mxu0
      %v560 = vpop.f32.mrb[0].mxu0
      %v561 = vadd.f32 %v446, %v560
      %v562 = vpop.f32.mrb[0].mxu0
      %563 = vmatprep.mubr.bf16.mxu0 0
      %564 = vmatmul.mubr.bf16.gmra.mrb[0].mxu0 %v492
      %v565 = vpop.f32.mrb[0].mxu0
      %v566 = vadd.f32 %v446, %v565
      %v567 = vpop.f32.mrb[0].mxu0
      %v568 = vpop.f32.mrb[0].mxu0
      %v569 = vadd.f32 %v446, %v568
      %v570 = vpop.f32.mrb[0].mxu0
      %571 = vmatprep.mubr.bf16.mxu0 0
      %572 = vmatmul.mubr.bf16.gmra.mrb[0].mxu0 %v495
      %v573 = vpop.f32.mrb[0].mxu0
      %v574 = vadd.f32 %v446, %v573
      %v575 = vpop.f32.mrb[0].mxu0
      %v576 = vpop.f32.mrb[0].mxu0
      %v577 = vadd.f32 %v446, %v576
      %v578 = vpop.f32.mrb[0].mxu0
      %579 = vmatprep.mubr.bf16.mxu0 0
      %580 = vmatmul.mubr.bf16.gmra.mrb[0].mxu0 %v498
      %v581 = vpop.f32.mrb[0].mxu0
      %v582 = vadd.f32 %v446, %v581
      %v583 = vpop.f32.mrb[0].mxu0
      %v584 = vpop.f32.mrb[0].mxu0
      %v585 = vadd.f32 %v446, %v584
      %v586 = vpop.f32.mrb[0].mxu0
      %587 = vmatprep.mubr.bf16.mxu0 0
      %588 = vmatmul.mubr.bf16.gmra.mrb[0].mxu0 %v501
      %v589 = vpop.f32.mrb[0].mxu0
      %v590 = vadd.f32 %v446, %v589
      %v591 = vpop.f32.mrb[0].mxu0
      %v592 = vpop.f32.mrb[0].mxu0
      %v593 = vpop.f32.mrb[0].mxu0
      %594 = vdwg.mxu0
      %v595 = vmax.f32 %v542, 0.0
      %v596 = vmax.f32 %v545, 0.0
      %v597 = vmax.f32 %v550, 0.0
      %v598 = vmax.f32 %v553, 0.0
      %v599 = vmax.f32 %v558, 0.0
      %v600 = vmax.f32 %v561, 0.0
      %v601 = vmax.f32 %v566, 0.0
      %v602 = vmax.f32 %v569, 0.0
      %v603 = vmax.f32 %v574, 0.0
      %v604 = vmax.f32 %v577, 0.0
      %v605 = vmax.f32 %v582, 0.0
      %v606 = vmax.f32 %v585, 0.0
      %v607 = vmax.f32 %v590, 0.0
      %v608 = vand.u32 2147483647, %v542
      %v609 = vand.u32 2147483647, %v545
      %v610 = vand.u32 2147483647, %v550
      %v611 = vand.u32 2147483647, %v553
      %v612 = vand.u32 2147483647, %v558
      %v613 = vand.u32 2147483647, %v561
      %v614 = vand.u32 2147483647, %v566
      %v615 = vand.u32 2147483647, %v569
      %v616 = vand.u32 2147483647, %v574
      %v617 = vand.u32 2147483647, %v577
      %v618 = vand.u32 2147483647, %v582
      %v619 = vand.u32 2147483647, %v585
      %v620 = vand.u32 2147483647, %v590
      %v621 = vsub.f32 0.0, %v608
      %v622 = vsub.f32 0.0, %v609
      %v623 = vsub.f32 0.0, %v610
      %v624 = vsub.f32 0.0, %v611
      %v625 = vsub.f32 0.0, %v612
      %v626 = vsub.f32 0.0, %v613
      %v627 = vsub.f32 0.0, %v614
      %v628 = vsub.f32 0.0, %v615
      %v629 = vsub.f32 0.0, %v616
      %v630 = vsub.f32 0.0, %v617
      %v631 = vsub.f32 0.0, %v618
      %v632 = vsub.f32 0.0, %v619
      %v633 = vsub.f32 0.0, %v620
      %v634 = vmul.f32 %v621, 1.442695
      %v635 = vpow.pop %v634
      %v636 = vmul.f32 %v622, 1.442695
      %v637 = vpow.pop %v636
      %v638 = vmul.f32 %v623, 1.442695
      %v639 = vpow.pop %v638
      %v640 = vmul.f32 %v624, 1.442695
      %v641 = vpow.pop %v640
      %v642 = vmul.f32 %v625, 1.442695
      %v643 = vpow.pop %v642
      %v644 = vmul.f32 %v626, 1.442695
      %v645 = vpow.pop %v644
      %v646 = vmul.f32 %v627, 1.442695
      %v647 = vpow.pop %v646
      %v648 = vmul.f32 %v628, 1.442695
      %v649 = vpow.pop %v648
      %v650 = vmul.f32 %v629, 1.442695
      %v651 = vpow.pop %v650
      %v652 = vmul.f32 %v630, 1.442695
      %v653 = vpow.pop %v652
      %v654 = vmul.f32 %v631, 1.442695
      %v655 = vpow.pop %v654
      %v656 = vmul.f32 %v632, 1.442695
      %v657 = vpow.pop %v656
      %v658 = vmul.f32 %v633, 1.442695
      %v659 = vpow.pop %v658
      %v660 = vadd.f32 %v635, 1.0
      %v661 = vlog2.pop %v660
      %v662 = vmul.f32 %v661, 0.6931472
      %v663 = vmul.f32 -0.5, %v635
      %v664 = vadd.f32 %v663, 1.0
      %v665 = vmul.f32 %v664, %v635
      %v666 = vand.u32 2147483647, %v635
      %vm667 = vcmp.lt.f32.partialorder %v666, 0.0004427343
      %v668 = vsel %vm667, %v665, %v662
      %v669 = vadd.f32 %v637, 1.0
      %v670 = vlog2.pop %v669
      %v671 = vmul.f32 %v670, 0.6931472
      %v672 = vmul.f32 -0.5, %v637
      %v673 = vadd.f32 %v672, 1.0
      %v674 = vmul.f32 %v673, %v637
      %v675 = vand.u32 2147483647, %v637
      %vm676 = vcmp.lt.f32.partialorder %v675, 0.0004427343
      %v677 = vsel %vm676, %v674, %v671
      %v678 = vadd.f32 %v639, 1.0
      %v679 = vlog2.pop %v678
      %v680 = vmul.f32 %v679, 0.6931472
      %v681 = vmul.f32 -0.5, %v639
      %v682 = vadd.f32 %v681, 1.0
      %v683 = vmul.f32 %v682, %v639
      %v684 = vand.u32 2147483647, %v639
      %vm685 = vcmp.lt.f32.partialorder %v684, 0.0004427343
      %v686 = vsel %vm685, %v683, %v680
      %v687 = vadd.f32 %v641, 1.0
      %v688 = vlog2.pop %v687
      %v689 = vmul.f32 %v688, 0.6931472
      %v690 = vmul.f32 -0.5, %v641
      %v691 = vadd.f32 %v690, 1.0
      %v692 = vmul.f32 %v691, %v641
      %v693 = vand.u32 2147483647, %v641
      %vm694 = vcmp.lt.f32.partialorder %v693, 0.0004427343
      %v695 = vsel %vm694, %v692, %v689
      %v696 = vadd.f32 %v643, 1.0
      %v697 = vlog2.pop %v696
      %v698 = vmul.f32 %v697, 0.6931472
      %v699 = vmul.f32 -0.5, %v643
      %v700 = vadd.f32 %v699, 1.0
      %v701 = vmul.f32 %v700, %v643
      %v702 = vand.u32 2147483647, %v643
      %vm703 = vcmp.lt.f32.partialorder %v702, 0.0004427343
      %v704 = vsel %vm703, %v701, %v698
      %v705 = vadd.f32 %v645, 1.0
      %v706 = vlog2.pop %v705
      %v707 = vmul.f32 %v706, 0.6931472
      %v708 = vmul.f32 -0.5, %v645
      %v709 = vadd.f32 %v708, 1.0
      %v710 = vmul.f32 %v709, %v645
      %v711 = vand.u32 2147483647, %v645
      %vm712 = vcmp.lt.f32.partialorder %v711, 0.0004427343
      %v713 = vsel %vm712, %v710, %v707
      %v714 = vadd.f32 %v647, 1.0
      %v715 = vlog2.pop %v714
      %v716 = vmul.f32 %v715, 0.6931472
      %v717 = vmul.f32 -0.5, %v647
      %v718 = vadd.f32 %v717, 1.0
      %v719 = vmul.f32 %v718, %v647
      %v720 = vand.u32 2147483647, %v647
      %vm721 = vcmp.lt.f32.partialorder %v720, 0.0004427343
      %v722 = vsel %vm721, %v719, %v716
      %v723 = vadd.f32 %v649, 1.0
      %v724 = vlog2.pop %v723
      %v725 = vmul.f32 %v724, 0.6931472
      %v726 = vmul.f32 -0.5, %v649
      %v727 = vadd.f32 %v726, 1.0
      %v728 = vmul.f32 %v727, %v649
      %v729 = vand.u32 2147483647, %v649
      %vm730 = vcmp.lt.f32.partialorder %v729, 0.0004427343
      %v731 = vsel %vm730, %v728, %v725
      %v732 = vadd.f32 %v651, 1.0
      %v733 = vlog2.pop %v732
      %v734 = vmul.f32 %v733, 0.6931472
      %v735 = vmul.f32 -0.5, %v651
      %v736 = vadd.f32 %v735, 1.0
      %v737 = vmul.f32 %v736, %v651
      %v738 = vand.u32 2147483647, %v651
      %vm739 = vcmp.lt.f32.partialorder %v738, 0.0004427343
      %v740 = vsel %vm739, %v737, %v734
      %v741 = vadd.f32 %v653, 1.0
      %v742 = vlog2.pop %v741
      %v743 = vmul.f32 %v742, 0.6931472
      %v744 = vmul.f32 -0.5, %v653
      %v745 = vadd.f32 %v744, 1.0
      %v746 = vmul.f32 %v745, %v653
      %v747 = vand.u32 2147483647, %v653
      %vm748 = vcmp.lt.f32.partialorder %v747, 0.0004427343
      %v749 = vsel %vm748, %v746, %v743
      %v750 = vadd.f32 %v655, 1.0
      %v751 = vlog2.pop %v750
      %v752 = vmul.f32 %v751, 0.6931472
      %v753 = vmul.f32 -0.5, %v655
      %v754 = vadd.f32 %v753, 1.0
      %v755 = vmul.f32 %v754, %v655
      %v756 = vand.u32 2147483647, %v655
      %vm757 = vcmp.lt.f32.partialorder %v756, 0.0004427343
      %v758 = vsel %vm757, %v755, %v752
      %v759 = vadd.f32 %v657, 1.0
      %v760 = vlog2.pop %v759
      %v761 = vmul.f32 %v760, 0.6931472
      %v762 = vmul.f32 -0.5, %v657
      %v763 = vadd.f32 %v762, 1.0
      %v764 = vmul.f32 %v763, %v657
      %v765 = vand.u32 2147483647, %v657
      %vm766 = vcmp.lt.f32.partialorder %v765, 0.0004427343
      %v767 = vsel %vm766, %v764, %v761
      %v768 = vadd.f32 %v659, 1.0
      %v769 = vlog2.pop %v768
      %v770 = vmul.f32 %v769, 0.6931472
      %v771 = vmul.f32 -0.5, %v659
      %v772 = vadd.f32 %v771, 1.0
      %v773 = vmul.f32 %v772, %v659
      %v774 = vand.u32 2147483647, %v659
      %vm775 = vcmp.lt.f32.partialorder %v774, 0.0004427343
      %v776 = vsel %vm775, %v773, %v770
      %v777 = vadd.f32 %v595, %v668
      %v778 = vadd.f32 %v596, %v677
      %v779 = vadd.f32 %v597, %v686
      %v780 = vadd.f32 %v598, %v695
      %v781 = vadd.f32 %v599, %v704
      %v782 = vadd.f32 %v600, %v713
      %v783 = vadd.f32 %v601, %v722
      %v784 = vadd.f32 %v602, %v731
      %v785 = vadd.f32 %v603, %v740
      %v786 = vadd.f32 %v604, %v749
      %v787 = vadd.f32 %v605, %v758
      %v788 = vadd.f32 %v606, %v767
      %v789 = vadd.f32 %v607, %v776
      %v790 = vld [vmem:[%s4] sm:$0xf]
      %v792 = vsel %vm503, %v790, 0
      %794 = vmatprep.subr.bf16.mxu0 0
      %795 = vmatpush1.bf16.msra.mxu0 %v792
      %796 = vmatprep.subr.bf16.mxu0 0
      %797 = vmatpush1.bf16.msra.mxu0 0
      %798 = vmatprep.subr.bf16.mxu0 0
      %799 = vmatpush1.bf16.msra.mxu0 0
      %800 = vmatprep.subr.bf16.mxu0 0
      %801 = vmatpush1.bf16.msra.mxu0 0
      %802 = vmatprep.subr.bf16.mxu0 0
      %803 = vmatpush1.bf16.msra.mxu0 0
      %804 = vmatprep.subr.bf16.mxu0 0
      %805 = vmatpush1.bf16.msra.mxu0 0
      %806 = vmatprep.subr.bf16.mxu0 0
      %807 = vmatpush1.bf16.msra.mxu0 0
      %808 = vmatprep.subr.bf16.mxu0 0
      %809 = vmatpush1.bf16.msra.mxu0 0
      %810 = vmatprep.subr.bf16.mxu0 0
      %811 = vmatpush1.bf16.msra.mxu0 0
      %812 = vmatprep.subr.bf16.mxu0 0
      %813 = vmatpush1.bf16.msra.mxu0 0
      %814 = vmatprep.subr.bf16.mxu0 0
      %815 = vmatpush1.bf16.msra.mxu0 0
      %816 = vmatprep.subr.bf16.mxu0 0
      %817 = vmatpush1.bf16.msra.mxu0 0
      %818 = vmatprep.subr.bf16.mxu0 0
      %819 = vmatpush1.bf16.msra.mxu0 0
      %820 = vmatprep.subr.bf16.mxu0 0
      %821 = vmatpush1.bf16.msra.mxu0 0
      %822 = vmatprep.subr.bf16.mxu0 0
      %823 = vmatpush1.bf16.msra.mxu0 0
      %824 = vmatprep.subr.bf16.mxu0 0
      %825 = vmatpush1.bf16.msra.mxu0 0
      %826 = vmatprep.mubr.bf16.mxu0 0
      %827 = vmatmul.mubr.bf16.gmra.mrb[0].mxu0 %v483
      %v828 = vpop.f32.mrb[0].mxu0
      %v829 = vadd.f32 0.0, %v828
      %v830 = vpop.f32.mrb[0].mxu0
      %v831 = vpop.f32.mrb[0].mxu0
      %v832 = vadd.f32 0.0, %v831
      %v833 = vpop.f32.mrb[0].mxu0
      %834 = vmatprep.mubr.bf16.mxu0 0
      %835 = vmatmul.mubr.bf16.gmra.mrb[0].mxu0 %v486
      %v836 = vpop.f32.mrb[0].mxu0
      %v837 = vadd.f32 0.0, %v836
      %v838 = vpop.f32.mrb[0].mxu0
      %v839 = vpop.f32.mrb[0].mxu0
      %v840 = vadd.f32 0.0, %v839
      %v841 = vpop.f32.mrb[0].mxu0
      %842 = vmatprep.mubr.bf16.mxu0 0
      %843 = vmatmul.mubr.bf16.gmra.mrb[0].mxu0 %v489
      %v844 = vpop.f32.mrb[0].mxu0
      %v845 = vadd.f32 0.0, %v844
      %v846 = vpop.f32.mrb[0].mxu0
      %v847 = vpop.f32.mrb[0].mxu0
      %v848 = vadd.f32 0.0, %v847
      %v849 = vpop.f32.mrb[0].mxu0
      %850 = vmatprep.mubr.bf16.mxu0 0
      %851 = vmatmul.mubr.bf16.gmra.mrb[0].mxu0 %v492
      %v852 = vpop.f32.mrb[0].mxu0
      %v853 = vadd.f32 0.0, %v852
      %v854 = vpop.f32.mrb[0].mxu0
      %v855 = vpop.f32.mrb[0].mxu0
      %v856 = vadd.f32 0.0, %v855
      %v857 = vpop.f32.mrb[0].mxu0
      %858 = vmatprep.mubr.bf16.mxu0 0
      %859 = vmatmul.mubr.bf16.gmra.mrb[0].mxu0 %v495
      %v860 = vpop.f32.mrb[0].mxu0
      %v861 = vadd.f32 0.0, %v860
      %v862 = vpop.f32.mrb[0].mxu0
      %v863 = vpop.f32.mrb[0].mxu0
      %v864 = vadd.f32 0.0, %v863
      %v865 = vpop.f32.mrb[0].mxu0
      %866 = vmatprep.mubr.bf16.mxu0 0
      %867 = vmatmul.mubr.bf16.gmra.mrb[0].mxu0 %v498
      %v868 = vpop.f32.mrb[0].mxu0
      %v869 = vadd.f32 0.0, %v868
      %v870 = vpop.f32.mrb[0].mxu0
      %v871 = vpop.f32.mrb[0].mxu0
      %v872 = vadd.f32 0.0, %v871
      %v873 = vpop.f32.mrb[0].mxu0
      %874 = vmatprep.mubr.bf16.mxu0 0
      %875 = vmatmul.mubr.bf16.gmra.mrb[0].mxu0 %v501
      %v876 = vpop.f32.mrb[0].mxu0
      %v877 = vadd.f32 0.0, %v876
      %v878 = vpop.f32.mrb[0].mxu0
      %v879 = vpop.f32.mrb[0].mxu0
      %v880 = vpop.f32.mrb[0].mxu0
      %881 = vdwg.mxu0
      %v882 = vld [vmem:[%s5] sm:$0xf]
      %v884 = vsel %vm503, %v882, 0
      %886 = vmatprep.subr.bf16.mxu0 0
      %887 = vmatpush1.bf16.msra.mxu0 %v884
      %888 = vmatprep.subr.bf16.mxu0 0
      %889 = vmatpush1.bf16.msra.mxu0 0
      %890 = vmatprep.subr.bf16.mxu0 0
      %891 = vmatpush1.bf16.msra.mxu0 0
      %892 = vmatprep.subr.bf16.mxu0 0
      %893 = vmatpush1.bf16.msra.mxu0 0
      %894 = vmatprep.subr.bf16.mxu0 0
      %895 = vmatpush1.bf16.msra.mxu0 0
      %896 = vmatprep.subr.bf16.mxu0 0
      %897 = vmatpush1.bf16.msra.mxu0 0
      %898 = vmatprep.subr.bf16.mxu0 0
      %899 = vmatpush1.bf16.msra.mxu0 0
      %900 = vmatprep.subr.bf16.mxu0 0
      %901 = vmatpush1.bf16.msra.mxu0 0
      %902 = vmatprep.subr.bf16.mxu0 0
      %903 = vmatpush1.bf16.msra.mxu0 0
      %904 = vmatprep.subr.bf16.mxu0 0
      %905 = vmatpush1.bf16.msra.mxu0 0
      %906 = vmatprep.subr.bf16.mxu0 0
      %907 = vmatpush1.bf16.msra.mxu0 0
      %908 = vmatprep.subr.bf16.mxu0 0
      %909 = vmatpush1.bf16.msra.mxu0 0
      %910 = vmatprep.subr.bf16.mxu0 0
      %911 = vmatpush1.bf16.msra.mxu0 0
      %912 = vmatprep.subr.bf16.mxu0 0
      %913 = vmatpush1.bf16.msra.mxu0 0
      %914 = vmatprep.subr.bf16.mxu0 0
      %915 = vmatpush1.bf16.msra.mxu0 0
      %916 = vmatprep.subr.bf16.mxu0 0
      %917 = vmatpush1.bf16.msra.mxu0 0
      %918 = vmatprep.mubr.bf16.mxu0 0
      %919 = vmatmul.mubr.bf16.gmra.mrb[0].mxu0 %v483
      %v920 = vpop.f32.mrb[0].mxu0
      %v921 = vadd.f32 0.0, %v920
      %v922 = vpop.f32.mrb[0].mxu0
      %v923 = vpop.f32.mrb[0].mxu0
      %v924 = vadd.f32 0.0, %v923
      %v925 = vpop.f32.mrb[0].mxu0
      %926 = vmatprep.mubr.bf16.mxu0 0
      %927 = vmatmul.mubr.bf16.gmra.mrb[0].mxu0 %v486
      %v928 = vpop.f32.mrb[0].mxu0
      %v929 = vadd.f32 0.0, %v928
      %v930 = vpop.f32.mrb[0].mxu0
      %v931 = vpop.f32.mrb[0].mxu0
      %v932 = vadd.f32 0.0, %v931
      %v933 = vpop.f32.mrb[0].mxu0
      %934 = vmatprep.mubr.bf16.mxu0 0
      %935 = vmatmul.mubr.bf16.gmra.mrb[0].mxu0 %v489
      %v936 = vpop.f32.mrb[0].mxu0
      %v937 = vadd.f32 0.0, %v936
      %v938 = vpop.f32.mrb[0].mxu0
      %v939 = vpop.f32.mrb[0].mxu0
      %v940 = vadd.f32 0.0, %v939
      %v941 = vpop.f32.mrb[0].mxu0
      %942 = vmatprep.mubr.bf16.mxu0 0
      %943 = vmatmul.mubr.bf16.gmra.mrb[0].mxu0 %v492
      %v944 = vpop.f32.mrb[0].mxu0
      %v945 = vadd.f32 0.0, %v944
      %v946 = vpop.f32.mrb[0].mxu0
      %v947 = vpop.f32.mrb[0].mxu0
      %v948 = vadd.f32 0.0, %v947
      %v949 = vpop.f32.mrb[0].mxu0
      %950 = vmatprep.mubr.bf16.mxu0 0
      %951 = vmatmul.mubr.bf16.gmra.mrb[0].mxu0 %v495
      %v952 = vpop.f32.mrb[0].mxu0
      %v953 = vadd.f32 0.0, %v952
      %v954 = vpop.f32.mrb[0].mxu0
      %v955 = vpop.f32.mrb[0].mxu0
      %v956 = vadd.f32 0.0, %v955
      %v957 = vpop.f32.mrb[0].mxu0
      %958 = vmatprep.mubr.bf16.mxu0 0
      %959 = vmatmul.mubr.bf16.gmra.mrb[0].mxu0 %v498
      %v960 = vpop.f32.mrb[0].mxu0
      %v961 = vadd.f32 0.0, %v960
      %v962 = vpop.f32.mrb[0].mxu0
      %v963 = vpop.f32.mrb[0].mxu0
      %v964 = vadd.f32 0.0, %v963
      %v965 = vpop.f32.mrb[0].mxu0
      %966 = vmatprep.mubr.bf16.mxu0 0
      %967 = vmatmul.mubr.bf16.gmra.mrb[0].mxu0 %v501
      %v968 = vpop.f32.mrb[0].mxu0
      %v969 = vadd.f32 0.0, %v968
      %v970 = vpop.f32.mrb[0].mxu0
      %v971 = vpop.f32.mrb[0].mxu0
      %v972 = vpop.f32.mrb[0].mxu0
      %973 = vdwg.mxu0
      %v974 = vmul.f32 %v777, %v401
      %v975 = vmul.f32 %v778, %v402
      %v976 = vmul.f32 %v779, %v403
      %v977 = vmul.f32 %v780, %v404
      %v978 = vmul.f32 %v781, %v405
      %v979 = vmul.f32 %v782, %v406
      %v980 = vmul.f32 %v783, %v407
      %v981 = vmul.f32 %v784, %v408
      %v982 = vmul.f32 %v785, %v409
      %v983 = vmul.f32 %v786, %v410
      %v984 = vmul.f32 %v787, %v411
      %v985 = vmul.f32 %v788, %v412
      %v986 = vmul.f32 %v789, %v413
      %v987 = vld [vmem:[%s6] sm:$0x1]
      %v988 = vlaneseq
      %v989 = vshrl.u32 %v988, 7
      %v990 = vsub.s32 0, %v989
      %v991 = vrot.slane %v987, %v990
      %v992 = vmul.f32 %v777, %v991
      %v993 = vmul.f32 %v778, %v991
      %v994 = vmul.f32 %v779, %v991
      %v995 = vmul.f32 %v780, %v991
      %v996 = vmul.f32 %v781, %v991
      %v997 = vmul.f32 %v782, %v991
      %v998 = vmul.f32 %v783, %v991
      %v999 = vmul.f32 %v784, %v991
      %v1000 = vmul.f32 %v785, %v991
      %v1001 = vmul.f32 %v786, %v991
      %v1002 = vmul.f32 %v787, %v991
      %v1003 = vmul.f32 %v788, %v991
      %v1004 = vmul.f32 %v789, %v991
      %v1005 = vmul.f32 %v992, 1.442695
      %v1006 = vpow.pop %v1005
      %v1007 = vmul.f32 %v993, 1.442695
      %v1008 = vpow.pop %v1007
      %v1009 = vmul.f32 %v994, 1.442695
      %v1010 = vpow.pop %v1009
      %v1011 = vmul.f32 %v995, 1.442695
      %v1012 = vpow.pop %v1011
      %v1013 = vmul.f32 %v996, 1.442695
      %v1014 = vpow.pop %v1013
      %v1015 = vmul.f32 %v997, 1.442695
      %v1016 = vpow.pop %v1015
      %v1017 = vmul.f32 %v998, 1.442695
      %v1018 = vpow.pop %v1017
      %v1019 = vmul.f32 %v999, 1.442695
      %v1020 = vpow.pop %v1019
      %v1021 = vmul.f32 %v1000, 1.442695
      %v1022 = vpow.pop %v1021
      %v1023 = vmul.f32 %v1001, 1.442695
      %v1024 = vpow.pop %v1023
      %v1025 = vmul.f32 %v1002, 1.442695
      %v1026 = vpow.pop %v1025
      %v1027 = vmul.f32 %v1003, 1.442695
      %v1028 = vpow.pop %v1027
      %v1029 = vmul.f32 %v1004, 1.442695
      %v1030 = vpow.pop %v1029
      %1031 = vst.msk [vmem:[#allocation3] sm:$0xff] %vm481, %v1006
      %1032 = vst.msk [vmem:[#allocation3 + $0x8] sm:$0xff] %vm481, %v1008
      %1033 = vst.msk [vmem:[#allocation3 + $0x10] sm:$0xff] %vm481, %v1010
      %1034 = vst.msk [vmem:[#allocation3 + $0x18] sm:$0xff] %vm481, %v1012
      %1035 = vst.msk [vmem:[#allocation3 + $0x20] sm:$0xff] %vm481, %v1014
      %1036 = vst.msk [vmem:[#allocation3 + $0x28] sm:$0xff] %vm481, %v1016
      %1037 = vst.msk [vmem:[#allocation3 + $0x30] sm:$0xff] %vm481, %v1018
      %1038 = vst.msk [vmem:[#allocation3 + $0x38] sm:$0xff] %vm481, %v1020
      %1039 = vst.msk [vmem:[#allocation3 + $0x40] sm:$0xff] %vm481, %v1022
      %1040 = vst.msk [vmem:[#allocation3 + $0x48] sm:$0xff] %vm481, %v1024
      %1041 = vst.msk [vmem:[#allocation3 + $0x50] sm:$0xff] %vm481, %v1026
      %1042 = vst.msk [vmem:[#allocation3 + $0x58] sm:$0xff] %vm481, %v1028
      %vm1043 = vcmask 60416
      %1044 = vst.msk [vmem:[#allocation3 + $0x60] sm:$0xf] %vm1043, %v1030
      %1046 = vset.pattern.permute.xlu0 0
      %1047 = vperm.xlu0 %1046, %v829
      %v1048 = vpop.permute.xlu0 %1047
      %1051 = vset.pattern.permute.xlu0 0
      %1052 = vperm.xlu0 %1051, %v832
      %v1053 = vpop.permute.xlu0 %1052
      %1056 = vset.pattern.permute.xlu0 0
      %1057 = vperm.xlu0 %1056, %v837
      %v1058 = vpop.permute.xlu0 %1057
      %1061 = vset.pattern.permute.xlu0 0
      %1062 = vperm.xlu0 %1061, %v840
      %v1063 = vpop.permute.xlu0 %1062
      %1066 = vset.pattern.permute.xlu0 0
      %1067 = vperm.xlu0 %1066, %v845
      %v1068 = vpop.permute.xlu0 %1067
      %1071 = vset.pattern.permute.xlu0 0
      %1072 = vperm.xlu0 %1071, %v848
      %v1073 = vpop.permute.xlu0 %1072
      %1076 = vset.pattern.permute.xlu0 0
      %1077 = vperm.xlu0 %1076, %v853
      %v1078 = vpop.permute.xlu0 %1077
      %1081 = vset.pattern.permute.xlu0 0
      %1082 = vperm.xlu0 %1081, %v856
      %v1083 = vpop.permute.xlu0 %1082
      %1086 = vset.pattern.permute.xlu0 0
      %1087 = vperm.xlu0 %1086, %v861
      %v1088 = vpop.permute.xlu0 %1087
      %1091 = vset.pattern.permute.xlu0 0
      %1092 = vperm.xlu0 %1091, %v864
      %v1093 = vpop.permute.xlu0 %1092
      %1096 = vset.pattern.permute.xlu0 0
      %1097 = vperm.xlu0 %1096, %v869
      %v1098 = vpop.permute.xlu0 %1097
      %1101 = vset.pattern.permute.xlu0 0
      %1102 = vperm.xlu0 %1101, %v872
      %v1103 = vpop.permute.xlu0 %1102
      %1106 = vset.pattern.permute.xlu0 0
      %1107 = vperm.xlu0 %1106, %v877
      %v1108 = vpop.permute.xlu0 %1107
      %v1110 = vmul.f32 %v974, %v1048
      %v1111 = vmul.f32 %v975, %v1053
      %v1112 = vmul.f32 %v976, %v1058
      %v1113 = vmul.f32 %v977, %v1063
      %v1114 = vmul.f32 %v978, %v1068
      %v1115 = vmul.f32 %v979, %v1073
      %v1116 = vmul.f32 %v980, %v1078
      %v1117 = vmul.f32 %v981, %v1083
      %v1118 = vmul.f32 %v982, %v1088
      %v1119 = vmul.f32 %v983, %v1093
      %v1120 = vmul.f32 %v984, %v1098
      %v1121 = vmul.f32 %v985, %v1103
      %v1122 = vmul.f32 %v986, %v1108
      %1123 = vst.msk [vmem:[#allocation4] sm:$0xff] %vm481, %v1110
      %1124 = vst.msk [vmem:[#allocation4 + $0x8] sm:$0xff] %vm481, %v1111
      %1125 = vst.msk [vmem:[#allocation4 + $0x10] sm:$0xff] %vm481, %v1112
      %1126 = vst.msk [vmem:[#allocation4 + $0x18] sm:$0xff] %vm481, %v1113
      %1127 = vst.msk [vmem:[#allocation4 + $0x20] sm:$0xff] %vm481, %v1114
      %1128 = vst.msk [vmem:[#allocation4 + $0x28] sm:$0xff] %vm481, %v1115
      %1129 = vst.msk [vmem:[#allocation4 + $0x30] sm:$0xff] %vm481, %v1116
      %1130 = vst.msk [vmem:[#allocation4 + $0x38] sm:$0xff] %vm481, %v1117
      %1131 = vst.msk [vmem:[#allocation4 + $0x40] sm:$0xff] %vm481, %v1118
      %1132 = vst.msk [vmem:[#allocation4 + $0x48] sm:$0xff] %vm481, %v1119
      %1133 = vst.msk [vmem:[#allocation4 + $0x50] sm:$0xff] %vm481, %v1120
      %1134 = vst.msk [vmem:[#allocation4 + $0x58] sm:$0xff] %vm481, %v1121
      %1135 = vst.msk [vmem:[#allocation4 + $0x60] sm:$0xf] %vm1043, %v1122
      %v1136 = vld [vmem:[%s6 + $0x1] sm:$0x1]
      %v1137 = vlaneseq
      %v1138 = vshrl.u32 %v1137, 7
      %v1139 = vsub.s32 0, %v1138
      %v1140 = vrot.slane %v1136, %v1139
      %v1141 = vmul.f32 %v777, %v1140
      %v1142 = vmul.f32 %v778, %v1140
      %v1143 = vmul.f32 %v779, %v1140
      %v1144 = vmul.f32 %v780, %v1140
      %v1145 = vmul.f32 %v781, %v1140
      %v1146 = vmul.f32 %v782, %v1140
      %v1147 = vmul.f32 %v783, %v1140
      %v1148 = vmul.f32 %v784, %v1140
      %v1149 = vmul.f32 %v785, %v1140
      %v1150 = vmul.f32 %v786, %v1140
      %v1151 = vmul.f32 %v787, %v1140
      %v1152 = vmul.f32 %v788, %v1140
      %v1153 = vmul.f32 %v789, %v1140
      %v1154 = vmul.f32 %v1141, 1.442695
      %v1155 = vpow.pop %v1154
      %v1156 = vmul.f32 %v1142, 1.442695
      %v1157 = vpow.pop %v1156
      %v1158 = vmul.f32 %v1143, 1.442695
      %v1159 = vpow.pop %v1158
      %v1160 = vmul.f32 %v1144, 1.442695
      %v1161 = vpow.pop %v1160
      %v1162 = vmul.f32 %v1145, 1.442695
      %v1163 = vpow.pop %v1162
      %v1164 = vmul.f32 %v1146, 1.442695
      %v1165 = vpow.pop %v1164
      %v1166 = vmul.f32 %v1147, 1.442695
      %v1167 = vpow.pop %v1166
      %v1168 = vmul.f32 %v1148, 1.442695
      %v1169 = vpow.pop %v1168
      %v1170 = vmul.f32 %v1149, 1.442695
      %v1171 = vpow.pop %v1170
      %v1172 = vmul.f32 %v1150, 1.442695
      %v1173 = vpow.pop %v1172
      %v1174 = vmul.f32 %v1151, 1.442695
      %v1175 = vpow.pop %v1174
      %v1176 = vmul.f32 %v1152, 1.442695
      %v1177 = vpow.pop %v1176
      %v1178 = vmul.f32 %v1153, 1.442695
      %v1179 = vpow.pop %v1178
      %1180 = vst.msk [vmem:[#allocation3 + $0x64] sm:$0xff] %vm481, %v1155
      %1181 = vst.msk [vmem:[#allocation3 + $0x6c] sm:$0xff] %vm481, %v1157
      %1182 = vst.msk [vmem:[#allocation3 + $0x74] sm:$0xff] %vm481, %v1159
      %1183 = vst.msk [vmem:[#allocation3 + $0x7c] sm:$0xff] %vm481, %v1161
      %1184 = vst.msk [vmem:[#allocation3 + $0x84] sm:$0xff] %vm481, %v1163
      %1185 = vst.msk [vmem:[#allocation3 + $0x8c] sm:$0xff] %vm481, %v1165
      %1186 = vst.msk [vmem:[#allocation3 + $0x94] sm:$0xff] %vm481, %v1167
      %1187 = vst.msk [vmem:[#allocation3 + $0x9c] sm:$0xff] %vm481, %v1169
      %1188 = vst.msk [vmem:[#allocation3 + $0xa4] sm:$0xff] %vm481, %v1171
      %1189 = vst.msk [vmem:[#allocation3 + $0xac] sm:$0xff] %vm481, %v1173
      %1190 = vst.msk [vmem:[#allocation3 + $0xb4] sm:$0xff] %vm481, %v1175
      %1191 = vst.msk [vmem:[#allocation3 + $0xbc] sm:$0xff] %vm481, %v1177
      %1192 = vst.msk [vmem:[#allocation3 + $0xc4] sm:$0xf] %vm1043, %v1179
      %1193 = vset.pattern.permute.xlu0 1
      %1194 = vperm.xlu0 %1193, %v829
      %v1195 = vpop.permute.xlu0 %1194
      %1197 = vset.pattern.permute.xlu0 1
      %1198 = vperm.xlu0 %1197, %v832
      %v1199 = vpop.permute.xlu0 %1198
      %1201 = vset.pattern.permute.xlu0 1
      %1202 = vperm.xlu0 %1201, %v837
      %v1203 = vpop.permute.xlu0 %1202
      %1205 = vset.pattern.permute.xlu0 1
      %1206 = vperm.xlu0 %1205, %v840
      %v1207 = vpop.permute.xlu0 %1206
      %1209 = vset.pattern.permute.xlu0 1
      %1210 = vperm.xlu0 %1209, %v845
      %v1211 = vpop.permute.xlu0 %1210
      %1213 = vset.pattern.permute.xlu0 1
      %1214 = vperm.xlu0 %1213, %v848
      %v1215 = vpop.permute.xlu0 %1214
      %1217 = vset.pattern.permute.xlu0 1
      %1218 = vperm.xlu0 %1217, %v853
      %v1219 = vpop.permute.xlu0 %1218
      %1221 = vset.pattern.permute.xlu0 1
      %1222 = vperm.xlu0 %1221, %v856
      %v1223 = vpop.permute.xlu0 %1222
      %1225 = vset.pattern.permute.xlu0 1
      %1226 = vperm.xlu0 %1225, %v861
      %v1227 = vpop.permute.xlu0 %1226
      %1229 = vset.pattern.permute.xlu0 1
      %1230 = vperm.xlu0 %1229, %v864
      %v1231 = vpop.permute.xlu0 %1230
      %1233 = vset.pattern.permute.xlu0 1
      %1234 = vperm.xlu0 %1233, %v869
      %v1235 = vpop.permute.xlu0 %1234
      %1237 = vset.pattern.permute.xlu0 1
      %1238 = vperm.xlu0 %1237, %v872
      %v1239 = vpop.permute.xlu0 %1238
      %1241 = vset.pattern.permute.xlu0 1
      %1242 = vperm.xlu0 %1241, %v877
      %v1243 = vpop.permute.xlu0 %1242
      %v1245 = vmul.f32 %v974, %v1195
      %v1246 = vmul.f32 %v975, %v1199
      %v1247 = vmul.f32 %v976, %v1203
      %v1248 = vmul.f32 %v977, %v1207
      %v1249 = vmul.f32 %v978, %v1211
      %v1250 = vmul.f32 %v979, %v1215
      %v1251 = vmul.f32 %v980, %v1219
      %v1252 = vmul.f32 %v981, %v1223
      %v1253 = vmul.f32 %v982, %v1227
      %v1254 = vmul.f32 %v983, %v1231
      %v1255 = vmul.f32 %v984, %v1235
      %v1256 = vmul.f32 %v985, %v1239
      %v1257 = vmul.f32 %v986, %v1243
      %1258 = vst.msk [vmem:[#allocation4 + $0x64] sm:$0xff] %vm481, %v1245
      %1259 = vst.msk [vmem:[#allocation4 + $0x6c] sm:$0xff] %vm481, %v1246
      %1260 = vst.msk [vmem:[#allocation4 + $0x74] sm:$0xff] %vm481, %v1247
      %1261 = vst.msk [vmem:[#allocation4 + $0x7c] sm:$0xff] %vm481, %v1248
      %1262 = vst.msk [vmem:[#allocation4 + $0x84] sm:$0xff] %vm481, %v1249
      %1263 = vst.msk [vmem:[#allocation4 + $0x8c] sm:$0xff] %vm481, %v1250
      %1264 = vst.msk [vmem:[#allocation4 + $0x94] sm:$0xff] %vm481, %v1251
      %1265 = vst.msk [vmem:[#allocation4 + $0x9c] sm:$0xff] %vm481, %v1252
      %1266 = vst.msk [vmem:[#allocation4 + $0xa4] sm:$0xff] %vm481, %v1253
      %1267 = vst.msk [vmem:[#allocation4 + $0xac] sm:$0xff] %vm481, %v1254
      %1268 = vst.msk [vmem:[#allocation4 + $0xb4] sm:$0xff] %vm481, %v1255
      %1269 = vst.msk [vmem:[#allocation4 + $0xbc] sm:$0xff] %vm481, %v1256
      %1270 = vst.msk [vmem:[#allocation4 + $0xc4] sm:$0xf] %vm1043, %v1257
      %v1271 = vld [vmem:[%s6 + $0x2] sm:$0x1]
      %v1272 = vlaneseq
      %v1273 = vshrl.u32 %v1272, 7
      %v1274 = vsub.s32 0, %v1273
      %v1275 = vrot.slane %v1271, %v1274
      %v1276 = vmul.f32 %v777, %v1275
      %v1277 = vmul.f32 %v778, %v1275
      %v1278 = vmul.f32 %v779, %v1275
      %v1279 = vmul.f32 %v780, %v1275
      %v1280 = vmul.f32 %v781, %v1275
      %v1281 = vmul.f32 %v782, %v1275
      %v1282 = vmul.f32 %v783, %v1275
      %v1283 = vmul.f32 %v784, %v1275
      %v1284 = vmul.f32 %v785, %v1275
      %v1285 = vmul.f32 %v786, %v1275
      %v1286 = vmul.f32 %v787, %v1275
      %v1287 = vmul.f32 %v788, %v1275
      %v1288 = vmul.f32 %v789, %v1275
      %v1289 = vmul.f32 %v1276, 1.442695
      %v1290 = vpow.pop %v1289
      %v1291 = vmul.f32 %v1277, 1.442695
      %v1292 = vpow.pop %v1291
      %v1293 = vmul.f32 %v1278, 1.442695
      %v1294 = vpow.pop %v1293
      %v1295 = vmul.f32 %v1279, 1.442695
      %v1296 = vpow.pop %v1295
      %v1297 = vmul.f32 %v1280, 1.442695
      %v1298 = vpow.pop %v1297
      %v1299 = vmul.f32 %v1281, 1.442695
      %v1300 = vpow.pop %v1299
      %v1301 = vmul.f32 %v1282, 1.442695
      %v1302 = vpow.pop %v1301
      %v1303 = vmul.f32 %v1283, 1.442695
      %v1304 = vpow.pop %v1303
      %v1305 = vmul.f32 %v1284, 1.442695
      %v1306 = vpow.pop %v1305
      %v1307 = vmul.f32 %v1285, 1.442695
      %v1308 = vpow.pop %v1307
      %v1309 = vmul.f32 %v1286, 1.442695
      %v1310 = vpow.pop %v1309
      %v1311 = vmul.f32 %v1287, 1.442695
      %v1312 = vpow.pop %v1311
      %v1313 = vmul.f32 %v1288, 1.442695
      %v1314 = vpow.pop %v1313
      %1315 = vst.msk [vmem:[#allocation3 + $0xc8] sm:$0xff] %vm481, %v1290
      %1316 = vst.msk [vmem:[#allocation3 + $0xd0] sm:$0xff] %vm481, %v1292
      %1317 = vst.msk [vmem:[#allocation3 + $0xd8] sm:$0xff] %vm481, %v1294
      %1318 = vst.msk [vmem:[#allocation3 + $0xe0] sm:$0xff] %vm481, %v1296
      %1319 = vst.msk [vmem:[#allocation3 + $0xe8] sm:$0xff] %vm481, %v1298
      %1320 = vst.msk [vmem:[#allocation3 + $0xf0] sm:$0xff] %vm481, %v1300
      %1321 = vst.msk [vmem:[#allocation3 + $0xf8] sm:$0xff] %vm481, %v1302
      %1322 = vst.msk [vmem:[#allocation3 + $0x100] sm:$0xff] %vm481, %v1304
      %1323 = vst.msk [vmem:[#allocation3 + $0x108] sm:$0xff] %vm481, %v1306
      %1324 = vst.msk [vmem:[#allocation3 + $0x110] sm:$0xff] %vm481, %v1308
      %1325 = vst.msk [vmem:[#allocation3 + $0x118] sm:$0xff] %vm481, %v1310
      %1326 = vst.msk [vmem:[#allocation3 + $0x120] sm:$0xff] %vm481, %v1312
      %1327 = vst.msk [vmem:[#allocation3 + $0x128] sm:$0xf] %vm1043, %v1314
      %1328 = vset.pattern.permute.xlu0 2
      %1329 = vperm.xlu0 %1328, %v829
      %v1330 = vpop.permute.xlu0 %1329
      %1332 = vset.pattern.permute.xlu0 2
      %1333 = vperm.xlu0 %1332, %v832
      %v1334 = vpop.permute.xlu0 %1333
      %1336 = vset.pattern.permute.xlu0 2
      %1337 = vperm.xlu0 %1336, %v837
      %v1338 = vpop.permute.xlu0 %1337
      %1340 = vset.pattern.permute.xlu0 2
      %1341 = vperm.xlu0 %1340, %v840
      %v1342 = vpop.permute.xlu0 %1341
      %1344 = vset.pattern.permute.xlu0 2
      %1345 = vperm.xlu0 %1344, %v845
      %v1346 = vpop.permute.xlu0 %1345
      %1348 = vset.pattern.permute.xlu0 2
      %1349 = vperm.xlu0 %1348, %v848
      %v1350 = vpop.permute.xlu0 %1349
      %1352 = vset.pattern.permute.xlu0 2
      %1353 = vperm.xlu0 %1352, %v853
      %v1354 = vpop.permute.xlu0 %1353
      %1356 = vset.pattern.permute.xlu0 2
      %1357 = vperm.xlu0 %1356, %v856
      %v1358 = vpop.permute.xlu0 %1357
      %1360 = vset.pattern.permute.xlu0 2
      %1361 = vperm.xlu0 %1360, %v861
      %v1362 = vpop.permute.xlu0 %1361
      %1364 = vset.pattern.permute.xlu0 2
      %1365 = vperm.xlu0 %1364, %v864
      %v1366 = vpop.permute.xlu0 %1365
      %1368 = vset.pattern.permute.xlu0 2
      %1369 = vperm.xlu0 %1368, %v869
      %v1370 = vpop.permute.xlu0 %1369
      %1372 = vset.pattern.permute.xlu0 2
      %1373 = vperm.xlu0 %1372, %v872
      %v1374 = vpop.permute.xlu0 %1373
      %1376 = vset.pattern.permute.xlu0 2
      %1377 = vperm.xlu0 %1376, %v877
      %v1378 = vpop.permute.xlu0 %1377
      %v1380 = vmul.f32 %v974, %v1330
      %v1381 = vmul.f32 %v975, %v1334
      %v1382 = vmul.f32 %v976, %v1338
      %v1383 = vmul.f32 %v977, %v1342
      %v1384 = vmul.f32 %v978, %v1346
      %v1385 = vmul.f32 %v979, %v1350
      %v1386 = vmul.f32 %v980, %v1354
      %v1387 = vmul.f32 %v981, %v1358
      %v1388 = vmul.f32 %v982, %v1362
      %v1389 = vmul.f32 %v983, %v1366
      %v1390 = vmul.f32 %v984, %v1370
      %v1391 = vmul.f32 %v985, %v1374
      %v1392 = vmul.f32 %v986, %v1378
      %1393 = vst.msk [vmem:[#allocation4 + $0xc8] sm:$0xff] %vm481, %v1380
      %1394 = vst.msk [vmem:[#allocation4 + $0xd0] sm:$0xff] %vm481, %v1381
      %1395 = vst.msk [vmem:[#allocation4 + $0xd8] sm:$0xff] %vm481, %v1382
      %1396 = vst.msk [vmem:[#allocation4 + $0xe0] sm:$0xff] %vm481, %v1383
      %1397 = vst.msk [vmem:[#allocation4 + $0xe8] sm:$0xff] %vm481, %v1384
      %1398 = vst.msk [vmem:[#allocation4 + $0xf0] sm:$0xff] %vm481, %v1385
      %1399 = vst.msk [vmem:[#allocation4 + $0xf8] sm:$0xff] %vm481, %v1386
      %1400 = vst.msk [vmem:[#allocation4 + $0x100] sm:$0xff] %vm481, %v1387
      %1401 = vst.msk [vmem:[#allocation4 + $0x108] sm:$0xff] %vm481, %v1388
      %1402 = vst.msk [vmem:[#allocation4 + $0x110] sm:$0xff] %vm481, %v1389
      %1403 = vst.msk [vmem:[#allocation4 + $0x118] sm:$0xff] %vm481, %v1390
      %1404 = vst.msk [vmem:[#allocation4 + $0x120] sm:$0xff] %vm481, %v1391
      %1405 = vst.msk [vmem:[#allocation4 + $0x128] sm:$0xf] %vm1043, %v1392
      %v1406 = vld [vmem:[%s6 + $0x3] sm:$0x1]
      %v1407 = vlaneseq
      %v1408 = vshrl.u32 %v1407, 7
      %v1409 = vsub.s32 0, %v1408
      %v1410 = vrot.slane %v1406, %v1409
      %v1411 = vmul.f32 %v777, %v1410
      %v1412 = vmul.f32 %v778, %v1410
      %v1413 = vmul.f32 %v779, %v1410
      %v1414 = vmul.f32 %v780, %v1410
      %v1415 = vmul.f32 %v781, %v1410
      %v1416 = vmul.f32 %v782, %v1410
      %v1417 = vmul.f32 %v783, %v1410
      %v1418 = vmul.f32 %v784, %v1410
      %v1419 = vmul.f32 %v785, %v1410
      %v1420 = vmul.f32 %v786, %v1410
      %v1421 = vmul.f32 %v787, %v1410
      %v1422 = vmul.f32 %v788, %v1410
      %v1423 = vmul.f32 %v789, %v1410
      %v1424 = vmul.f32 %v1411, 1.442695
      %v1425 = vpow.pop %v1424
      %v1426 = vmul.f32 %v1412, 1.442695
      %v1427 = vpow.pop %v1426
      %v1428 = vmul.f32 %v1413, 1.442695
      %v1429 = vpow.pop %v1428
      %v1430 = vmul.f32 %v1414, 1.442695
      %v1431 = vpow.pop %v1430
      %v1432 = vmul.f32 %v1415, 1.442695
      %v1433 = vpow.pop %v1432
      %v1434 = vmul.f32 %v1416, 1.442695
      %v1435 = vpow.pop %v1434
      %v1436 = vmul.f32 %v1417, 1.442695
      %v1437 = vpow.pop %v1436
      %v1438 = vmul.f32 %v1418, 1.442695
      %v1439 = vpow.pop %v1438
      %v1440 = vmul.f32 %v1419, 1.442695
      %v1441 = vpow.pop %v1440
      %v1442 = vmul.f32 %v1420, 1.442695
      %v1443 = vpow.pop %v1442
      %v1444 = vmul.f32 %v1421, 1.442695
      %v1445 = vpow.pop %v1444
      %v1446 = vmul.f32 %v1422, 1.442695
      %v1447 = vpow.pop %v1446
      %v1448 = vmul.f32 %v1423, 1.442695
      %v1449 = vpow.pop %v1448
      %1450 = vst.msk [vmem:[#allocation3 + $0x12c] sm:$0xff] %vm481, %v1425
      %1451 = vst.msk [vmem:[#allocation3 + $0x134] sm:$0xff] %vm481, %v1427
      %1452 = vst.msk [vmem:[#allocation3 + $0x13c] sm:$0xff] %vm481, %v1429
      %1453 = vst.msk [vmem:[#allocation3 + $0x144] sm:$0xff] %vm481, %v1431
      %1454 = vst.msk [vmem:[#allocation3 + $0x14c] sm:$0xff] %vm481, %v1433
      %1455 = vst.msk [vmem:[#allocation3 + $0x154] sm:$0xff] %vm481, %v1435
      %1456 = vst.msk [vmem:[#allocation3 + $0x15c] sm:$0xff] %vm481, %v1437
      %1457 = vst.msk [vmem:[#allocation3 + $0x164] sm:$0xff] %vm481, %v1439
      %1458 = vst.msk [vmem:[#allocation3 + $0x16c] sm:$0xff] %vm481, %v1441
      %1459 = vst.msk [vmem:[#allocation3 + $0x174] sm:$0xff] %vm481, %v1443
      %1460 = vst.msk [vmem:[#allocation3 + $0x17c] sm:$0xff] %vm481, %v1445
      %1461 = vst.msk [vmem:[#allocation3 + $0x184] sm:$0xff] %vm481, %v1447
      %1462 = vst.msk [vmem:[#allocation3 + $0x18c] sm:$0xf] %vm1043, %v1449
      %1463 = vset.pattern.permute.xlu0 3
      %1464 = vperm.xlu0 %1463, %v829
      %v1465 = vpop.permute.xlu0 %1464
      %1467 = vset.pattern.permute.xlu0 3
      %1468 = vperm.xlu0 %1467, %v832
      %v1469 = vpop.permute.xlu0 %1468
      %1471 = vset.pattern.permute.xlu0 3
      %1472 = vperm.xlu0 %1471, %v837
      %v1473 = vpop.permute.xlu0 %1472
      %1475 = vset.pattern.permute.xlu0 3
      %1476 = vperm.xlu0 %1475, %v840
      %v1477 = vpop.permute.xlu0 %1476
      %1479 = vset.pattern.permute.xlu0 3
      %1480 = vperm.xlu0 %1479, %v845
      %v1481 = vpop.permute.xlu0 %1480
      %1483 = vset.pattern.permute.xlu0 3
      %1484 = vperm.xlu0 %1483, %v848
      %v1485 = vpop.permute.xlu0 %1484
      %1487 = vset.pattern.permute.xlu0 3
      %1488 = vperm.xlu0 %1487, %v853
      %v1489 = vpop.permute.xlu0 %1488
      %1491 = vset.pattern.permute.xlu0 3
      %1492 = vperm.xlu0 %1491, %v856
      %v1493 = vpop.permute.xlu0 %1492
      %1495 = vset.pattern.permute.xlu0 3
      %1496 = vperm.xlu0 %1495, %v861
      %v1497 = vpop.permute.xlu0 %1496
      %1499 = vset.pattern.permute.xlu0 3
      %1500 = vperm.xlu0 %1499, %v864
      %v1501 = vpop.permute.xlu0 %1500
      %1503 = vset.pattern.permute.xlu0 3
      %1504 = vperm.xlu0 %1503, %v869
      %v1505 = vpop.permute.xlu0 %1504
      %1507 = vset.pattern.permute.xlu0 3
      %1508 = vperm.xlu0 %1507, %v872
      %v1509 = vpop.permute.xlu0 %1508
      %1511 = vset.pattern.permute.xlu0 3
      %1512 = vperm.xlu0 %1511, %v877
      %v1513 = vpop.permute.xlu0 %1512
      %v1515 = vmul.f32 %v974, %v1465
      %v1516 = vmul.f32 %v975, %v1469
      %v1517 = vmul.f32 %v976, %v1473
      %v1518 = vmul.f32 %v977, %v1477
      %v1519 = vmul.f32 %v978, %v1481
      %v1520 = vmul.f32 %v979, %v1485
      %v1521 = vmul.f32 %v980, %v1489
      %v1522 = vmul.f32 %v981, %v1493
      %v1523 = vmul.f32 %v982, %v1497
      %v1524 = vmul.f32 %v983, %v1501
      %v1525 = vmul.f32 %v984, %v1505
      %v1526 = vmul.f32 %v985, %v1509
      %v1527 = vmul.f32 %v986, %v1513
      %1528 = vst.msk [vmem:[#allocation4 + $0x12c] sm:$0xff] %vm481, %v1515
      %1529 = vst.msk [vmem:[#allocation4 + $0x134] sm:$0xff] %vm481, %v1516
      %1530 = vst.msk [vmem:[#allocation4 + $0x13c] sm:$0xff] %vm481, %v1517
      %1531 = vst.msk [vmem:[#allocation4 + $0x144] sm:$0xff] %vm481, %v1518
      %1532 = vst.msk [vmem:[#allocation4 + $0x14c] sm:$0xff] %vm481, %v1519
      %1533 = vst.msk [vmem:[#allocation4 + $0x154] sm:$0xff] %vm481, %v1520
      %1534 = vst.msk [vmem:[#allocation4 + $0x15c] sm:$0xff] %vm481, %v1521
      %1535 = vst.msk [vmem:[#allocation4 + $0x164] sm:$0xff] %vm481, %v1522
      %1536 = vst.msk [vmem:[#allocation4 + $0x16c] sm:$0xff] %vm481, %v1523
      %1537 = vst.msk [vmem:[#allocation4 + $0x174] sm:$0xff] %vm481, %v1524
      %1538 = vst.msk [vmem:[#allocation4 + $0x17c] sm:$0xff] %vm481, %v1525
      %1539 = vst.msk [vmem:[#allocation4 + $0x184] sm:$0xff] %vm481, %v1526
      %1540 = vst.msk [vmem:[#allocation4 + $0x18c] sm:$0xf] %vm1043, %v1527
      %v1541 = vld [vmem:[%s6 + $0x4] sm:$0x1]
      %v1542 = vlaneseq
      %v1543 = vshrl.u32 %v1542, 7
      %v1544 = vsub.s32 0, %v1543
      %v1545 = vrot.slane %v1541, %v1544
      %v1546 = vmul.f32 %v777, %v1545
      %v1547 = vmul.f32 %v778, %v1545
      %v1548 = vmul.f32 %v779, %v1545
      %v1549 = vmul.f32 %v780, %v1545
      %v1550 = vmul.f32 %v781, %v1545
      %v1551 = vmul.f32 %v782, %v1545
      %v1552 = vmul.f32 %v783, %v1545
      %v1553 = vmul.f32 %v784, %v1545
      %v1554 = vmul.f32 %v785, %v1545
      %v1555 = vmul.f32 %v786, %v1545
      %v1556 = vmul.f32 %v787, %v1545
      %v1557 = vmul.f32 %v788, %v1545
      %v1558 = vmul.f32 %v789, %v1545
      %v1559 = vmul.f32 %v1546, 1.442695
      %v1560 = vpow.pop %v1559
      %v1561 = vmul.f32 %v1547, 1.442695
      %v1562 = vpow.pop %v1561
      %v1563 = vmul.f32 %v1548, 1.442695
      %v1564 = vpow.pop %v1563
      %v1565 = vmul.f32 %v1549, 1.442695
      %v1566 = vpow.pop %v1565
      %v1567 = vmul.f32 %v1550, 1.442695
      %v1568 = vpow.pop %v1567
      %v1569 = vmul.f32 %v1551, 1.442695
      %v1570 = vpow.pop %v1569
      %v1571 = vmul.f32 %v1552, 1.442695
      %v1572 = vpow.pop %v1571
      %v1573 = vmul.f32 %v1553, 1.442695
      %v1574 = vpow.pop %v1573
      %v1575 = vmul.f32 %v1554, 1.442695
      %v1576 = vpow.pop %v1575
      %v1577 = vmul.f32 %v1555, 1.442695
      %v1578 = vpow.pop %v1577
      %v1579 = vmul.f32 %v1556, 1.442695
      %v1580 = vpow.pop %v1579
      %v1581 = vmul.f32 %v1557, 1.442695
      %v1582 = vpow.pop %v1581
      %v1583 = vmul.f32 %v1558, 1.442695
      %v1584 = vpow.pop %v1583
      %1585 = vst.msk [vmem:[#allocation3 + $0x190] sm:$0xff] %vm481, %v1560
      %1586 = vst.msk [vmem:[#allocation3 + $0x198] sm:$0xff] %vm481, %v1562
      %1587 = vst.msk [vmem:[#allocation3 + $0x1a0] sm:$0xff] %vm481, %v1564
      %1588 = vst.msk [vmem:[#allocation3 + $0x1a8] sm:$0xff] %vm481, %v1566
      %1589 = vst.msk [vmem:[#allocation3 + $0x1b0] sm:$0xff] %vm481, %v1568
      %1590 = vst.msk [vmem:[#allocation3 + $0x1b8] sm:$0xff] %vm481, %v1570
      %1591 = vst.msk [vmem:[#allocation3 + $0x1c0] sm:$0xff] %vm481, %v1572
      %1592 = vst.msk [vmem:[#allocation3 + $0x1c8] sm:$0xff] %vm481, %v1574
      %1593 = vst.msk [vmem:[#allocation3 + $0x1d0] sm:$0xff] %vm481, %v1576
      %1594 = vst.msk [vmem:[#allocation3 + $0x1d8] sm:$0xff] %vm481, %v1578
      %1595 = vst.msk [vmem:[#allocation3 + $0x1e0] sm:$0xff] %vm481, %v1580
      %1596 = vst.msk [vmem:[#allocation3 + $0x1e8] sm:$0xff] %vm481, %v1582
      %1597 = vst.msk [vmem:[#allocation3 + $0x1f0] sm:$0xf] %vm1043, %v1584
      %1598 = vset.pattern.permute.xlu0 4
      %1599 = vperm.xlu0 %1598, %v829
      %v1600 = vpop.permute.xlu0 %1599
      %1602 = vset.pattern.permute.xlu0 4
      %1603 = vperm.xlu0 %1602, %v832
      %v1604 = vpop.permute.xlu0 %1603
      %1606 = vset.pattern.permute.xlu0 4
      %1607 = vperm.xlu0 %1606, %v837
      %v1608 = vpop.permute.xlu0 %1607
      %1610 = vset.pattern.permute.xlu0 4
      %1611 = vperm.xlu0 %1610, %v840
      %v1612 = vpop.permute.xlu0 %1611
      %1614 = vset.pattern.permute.xlu0 4
      %1615 = vperm.xlu0 %1614, %v845
      %v1616 = vpop.permute.xlu0 %1615
      %1618 = vset.pattern.permute.xlu0 4
      %1619 = vperm.xlu0 %1618, %v848
      %v1620 = vpop.permute.xlu0 %1619
      %1622 = vset.pattern.permute.xlu0 4
      %1623 = vperm.xlu0 %1622, %v853
      %v1624 = vpop.permute.xlu0 %1623
      %1626 = vset.pattern.permute.xlu0 4
      %1627 = vperm.xlu0 %1626, %v856
      %v1628 = vpop.permute.xlu0 %1627
      %1630 = vset.pattern.permute.xlu0 4
      %1631 = vperm.xlu0 %1630, %v861
      %v1632 = vpop.permute.xlu0 %1631
      %1634 = vset.pattern.permute.xlu0 4
      %1635 = vperm.xlu0 %1634, %v864
      %v1636 = vpop.permute.xlu0 %1635
      %1638 = vset.pattern.permute.xlu0 4
      %1639 = vperm.xlu0 %1638, %v869
      %v1640 = vpop.permute.xlu0 %1639
      %1642 = vset.pattern.permute.xlu0 4
      %1643 = vperm.xlu0 %1642, %v872
      %v1644 = vpop.permute.xlu0 %1643
      %1646 = vset.pattern.permute.xlu0 4
      %1647 = vperm.xlu0 %1646, %v877
      %v1648 = vpop.permute.xlu0 %1647
      %v1650 = vmul.f32 %v974, %v1600
      %v1651 = vmul.f32 %v975, %v1604
      %v1652 = vmul.f32 %v976, %v1608
      %v1653 = vmul.f32 %v977, %v1612
      %v1654 = vmul.f32 %v978, %v1616
      %v1655 = vmul.f32 %v979, %v1620
      %v1656 = vmul.f32 %v980, %v1624
      %v1657 = vmul.f32 %v981, %v1628
      %v1658 = vmul.f32 %v982, %v1632
      %v1659 = vmul.f32 %v983, %v1636
      %v1660 = vmul.f32 %v984, %v1640
      %v1661 = vmul.f32 %v985, %v1644
      %v1662 = vmul.f32 %v986, %v1648
      %1663 = vst.msk [vmem:[#allocation4 + $0x190] sm:$0xff] %vm481, %v1650
      %1664 = vst.msk [vmem:[#allocation4 + $0x198] sm:$0xff] %vm481, %v1651
      %1665 = vst.msk [vmem:[#allocation4 + $0x1a0] sm:$0xff] %vm481, %v1652
      %1666 = vst.msk [vmem:[#allocation4 + $0x1a8] sm:$0xff] %vm481, %v1653
      %1667 = vst.msk [vmem:[#allocation4 + $0x1b0] sm:$0xff] %vm481, %v1654
      %1668 = vst.msk [vmem:[#allocation4 + $0x1b8] sm:$0xff] %vm481, %v1655
      %1669 = vst.msk [vmem:[#allocation4 + $0x1c0] sm:$0xff] %vm481, %v1656
      %1670 = vst.msk [vmem:[#allocation4 + $0x1c8] sm:$0xff] %vm481, %v1657
      %1671 = vst.msk [vmem:[#allocation4 + $0x1d0] sm:$0xff] %vm481, %v1658
      %1672 = vst.msk [vmem:[#allocation4 + $0x1d8] sm:$0xff] %vm481, %v1659
      %1673 = vst.msk [vmem:[#allocation4 + $0x1e0] sm:$0xff] %vm481, %v1660
      %1674 = vst.msk [vmem:[#allocation4 + $0x1e8] sm:$0xff] %vm481, %v1661
      %1675 = vst.msk [vmem:[#allocation4 + $0x1f0] sm:$0xf] %vm1043, %v1662
      %v1676 = vld [vmem:[%s6 + $0x5] sm:$0x1]
      %v1677 = vlaneseq
      %v1678 = vshrl.u32 %v1677, 7
      %v1679 = vsub.s32 0, %v1678
      %v1680 = vrot.slane %v1676, %v1679
      %v1681 = vmul.f32 %v777, %v1680
      %v1682 = vmul.f32 %v778, %v1680
      %v1683 = vmul.f32 %v779, %v1680
      %v1684 = vmul.f32 %v780, %v1680
      %v1685 = vmul.f32 %v781, %v1680
      %v1686 = vmul.f32 %v782, %v1680
      %v1687 = vmul.f32 %v783, %v1680
      %v1688 = vmul.f32 %v784, %v1680
      %v1689 = vmul.f32 %v785, %v1680
      %v1690 = vmul.f32 %v786, %v1680
      %v1691 = vmul.f32 %v787, %v1680
      %v1692 = vmul.f32 %v788, %v1680
      %v1693 = vmul.f32 %v789, %v1680
      %v1694 = vmul.f32 %v1681, 1.442695
      %v1695 = vpow.pop %v1694
      %v1696 = vmul.f32 %v1682, 1.442695
      %v1697 = vpow.pop %v1696
      %v1698 = vmul.f32 %v1683, 1.442695
      %v1699 = vpow.pop %v1698
      %v1700 = vmul.f32 %v1684, 1.442695
      %v1701 = vpow.pop %v1700
      %v1702 = vmul.f32 %v1685, 1.442695
      %v1703 = vpow.pop %v1702
      %v1704 = vmul.f32 %v1686, 1.442695
      %v1705 = vpow.pop %v1704
      %v1706 = vmul.f32 %v1687, 1.442695
      %v1707 = vpow.pop %v1706
      %v1708 = vmul.f32 %v1688, 1.442695
      %v1709 = vpow.pop %v1708
      %v1710 = vmul.f32 %v1689, 1.442695
      %v1711 = vpow.pop %v1710
      %v1712 = vmul.f32 %v1690, 1.442695
      %v1713 = vpow.pop %v1712
      %v1714 = vmul.f32 %v1691, 1.442695
      %v1715 = vpow.pop %v1714
      %v1716 = vmul.f32 %v1692, 1.442695
      %v1717 = vpow.pop %v1716
      %v1718 = vmul.f32 %v1693, 1.442695
      %v1719 = vpow.pop %v1718
      %1720 = vst.msk [vmem:[#allocation3 + $0x1f4] sm:$0xff] %vm481, %v1695
      %1721 = vst.msk [vmem:[#allocation3 + $0x1fc] sm:$0xff] %vm481, %v1697
      %1722 = vst.msk [vmem:[#allocation3 + $0x204] sm:$0xff] %vm481, %v1699
      %1723 = vst.msk [vmem:[#allocation3 + $0x20c] sm:$0xff] %vm481, %v1701
      %1724 = vst.msk [vmem:[#allocation3 + $0x214] sm:$0xff] %vm481, %v1703
      %1725 = vst.msk [vmem:[#allocation3 + $0x21c] sm:$0xff] %vm481, %v1705
      %1726 = vst.msk [vmem:[#allocation3 + $0x224] sm:$0xff] %vm481, %v1707
      %1727 = vst.msk [vmem:[#allocation3 + $0x22c] sm:$0xff] %vm481, %v1709
      %1728 = vst.msk [vmem:[#allocation3 + $0x234] sm:$0xff] %vm481, %v1711
      %1729 = vst.msk [vmem:[#allocation3 + $0x23c] sm:$0xff] %vm481, %v1713
      %1730 = vst.msk [vmem:[#allocation3 + $0x244] sm:$0xff] %vm481, %v1715
      %1731 = vst.msk [vmem:[#allocation3 + $0x24c] sm:$0xff] %vm481, %v1717
      %1732 = vst.msk [vmem:[#allocation3 + $0x254] sm:$0xf] %vm1043, %v1719
      %1733 = vset.pattern.permute.xlu0 5
      %1734 = vperm.xlu0 %1733, %v829
      %v1735 = vpop.permute.xlu0 %1734
      %1737 = vset.pattern.permute.xlu0 5
      %1738 = vperm.xlu0 %1737, %v832
      %v1739 = vpop.permute.xlu0 %1738
      %1741 = vset.pattern.permute.xlu0 5
      %1742 = vperm.xlu0 %1741, %v837
      %v1743 = vpop.permute.xlu0 %1742
      %1745 = vset.pattern.permute.xlu0 5
      %1746 = vperm.xlu0 %1745, %v840
      %v1747 = vpop.permute.xlu0 %1746
      %1749 = vset.pattern.permute.xlu0 5
      %1750 = vperm.xlu0 %1749, %v845
      %v1751 = vpop.permute.xlu0 %1750
      %1753 = vset.pattern.permute.xlu0 5
      %1754 = vperm.xlu0 %1753, %v848
      %v1755 = vpop.permute.xlu0 %1754
      %1757 = vset.pattern.permute.xlu0 5
      %1758 = vperm.xlu0 %1757, %v853
      %v1759 = vpop.permute.xlu0 %1758
      %1761 = vset.pattern.permute.xlu0 5
      %1762 = vperm.xlu0 %1761, %v856
      %v1763 = vpop.permute.xlu0 %1762
      %1765 = vset.pattern.permute.xlu0 5
      %1766 = vperm.xlu0 %1765, %v861
      %v1767 = vpop.permute.xlu0 %1766
      %1769 = vset.pattern.permute.xlu0 5
      %1770 = vperm.xlu0 %1769, %v864
      %v1771 = vpop.permute.xlu0 %1770
      %1773 = vset.pattern.permute.xlu0 5
      %1774 = vperm.xlu0 %1773, %v869
      %v1775 = vpop.permute.xlu0 %1774
      %1777 = vset.pattern.permute.xlu0 5
      %1778 = vperm.xlu0 %1777, %v872
      %v1779 = vpop.permute.xlu0 %1778
      %1781 = vset.pattern.permute.xlu0 5
      %1782 = vperm.xlu0 %1781, %v877
      %v1783 = vpop.permute.xlu0 %1782
      %v1785 = vmul.f32 %v974, %v1735
      %v1786 = vmul.f32 %v975, %v1739
      %v1787 = vmul.f32 %v976, %v1743
      %v1788 = vmul.f32 %v977, %v1747
      %v1789 = vmul.f32 %v978, %v1751
      %v1790 = vmul.f32 %v979, %v1755
      %v1791 = vmul.f32 %v980, %v1759
      %v1792 = vmul.f32 %v981, %v1763
      %v1793 = vmul.f32 %v982, %v1767
      %v1794 = vmul.f32 %v983, %v1771
      %v1795 = vmul.f32 %v984, %v1775
      %v1796 = vmul.f32 %v985, %v1779
      %v1797 = vmul.f32 %v986, %v1783
      %1798 = vst.msk [vmem:[#allocation4 + $0x1f4] sm:$0xff] %vm481, %v1785
      %1799 = vst.msk [vmem:[#allocation4 + $0x1fc] sm:$0xff] %vm481, %v1786
      %1800 = vst.msk [vmem:[#allocation4 + $0x204] sm:$0xff] %vm481, %v1787
      %1801 = vst.msk [vmem:[#allocation4 + $0x20c] sm:$0xff] %vm481, %v1788
      %1802 = vst.msk [vmem:[#allocation4 + $0x214] sm:$0xff] %vm481, %v1789
      %1803 = vst.msk [vmem:[#allocation4 + $0x21c] sm:$0xff] %vm481, %v1790
      %1804 = vst.msk [vmem:[#allocation4 + $0x224] sm:$0xff] %vm481, %v1791
      %1805 = vst.msk [vmem:[#allocation4 + $0x22c] sm:$0xff] %vm481, %v1792
      %1806 = vst.msk [vmem:[#allocation4 + $0x234] sm:$0xff] %vm481, %v1793
      %1807 = vst.msk [vmem:[#allocation4 + $0x23c] sm:$0xff] %vm481, %v1794
      %1808 = vst.msk [vmem:[#allocation4 + $0x244] sm:$0xff] %vm481, %v1795
      %1809 = vst.msk [vmem:[#allocation4 + $0x24c] sm:$0xff] %vm481, %v1796
      %1810 = vst.msk [vmem:[#allocation4 + $0x254] sm:$0xf] %vm1043, %v1797
      %v1811 = vld [vmem:[%s6 + $0x6] sm:$0x1]
      %v1812 = vlaneseq
      %v1813 = vshrl.u32 %v1812, 7
      %v1814 = vsub.s32 0, %v1813
      %v1815 = vrot.slane %v1811, %v1814
      %v1816 = vmul.f32 %v777, %v1815
      %v1817 = vmul.f32 %v778, %v1815
      %v1818 = vmul.f32 %v779, %v1815
      %v1819 = vmul.f32 %v780, %v1815
      %v1820 = vmul.f32 %v781, %v1815
      %v1821 = vmul.f32 %v782, %v1815
      %v1822 = vmul.f32 %v783, %v1815
      %v1823 = vmul.f32 %v784, %v1815
      %v1824 = vmul.f32 %v785, %v1815
      %v1825 = vmul.f32 %v786, %v1815
      %v1826 = vmul.f32 %v787, %v1815
      %v1827 = vmul.f32 %v788, %v1815
      %v1828 = vmul.f32 %v789, %v1815
      %v1829 = vmul.f32 %v1816, 1.442695
      %v1830 = vpow.pop %v1829
      %v1831 = vmul.f32 %v1817, 1.442695
      %v1832 = vpow.pop %v1831
      %v1833 = vmul.f32 %v1818, 1.442695
      %v1834 = vpow.pop %v1833
      %v1835 = vmul.f32 %v1819, 1.442695
      %v1836 = vpow.pop %v1835
      %v1837 = vmul.f32 %v1820, 1.442695
      %v1838 = vpow.pop %v1837
      %v1839 = vmul.f32 %v1821, 1.442695
      %v1840 = vpow.pop %v1839
      %v1841 = vmul.f32 %v1822, 1.442695
      %v1842 = vpow.pop %v1841
      %v1843 = vmul.f32 %v1823, 1.442695
      %v1844 = vpow.pop %v1843
      %v1845 = vmul.f32 %v1824, 1.442695
      %v1846 = vpow.pop %v1845
      %v1847 = vmul.f32 %v1825, 1.442695
      %v1848 = vpow.pop %v1847
      %v1849 = vmul.f32 %v1826, 1.442695
      %v1850 = vpow.pop %v1849
      %v1851 = vmul.f32 %v1827, 1.442695
      %v1852 = vpow.pop %v1851
      %v1853 = vmul.f32 %v1828, 1.442695
      %v1854 = vpow.pop %v1853
      %1855 = vst.msk [vmem:[#allocation3 + $0x258] sm:$0xff] %vm481, %v1830
      %1856 = vst.msk [vmem:[#allocation3 + $0x260] sm:$0xff] %vm481, %v1832
      %1857 = vst.msk [vmem:[#allocation3 + $0x268] sm:$0xff] %vm481, %v1834
      %1858 = vst.msk [vmem:[#allocation3 + $0x270] sm:$0xff] %vm481, %v1836
      %1859 = vst.msk [vmem:[#allocation3 + $0x278] sm:$0xff] %vm481, %v1838
      %1860 = vst.msk [vmem:[#allocation3 + $0x280] sm:$0xff] %vm481, %v1840
      %1861 = vst.msk [vmem:[#allocation3 + $0x288] sm:$0xff] %vm481, %v1842
      %1862 = vst.msk [vmem:[#allocation3 + $0x290] sm:$0xff] %vm481, %v1844
      %1863 = vst.msk [vmem:[#allocation3 + $0x298] sm:$0xff] %vm481, %v1846
      %1864 = vst.msk [vmem:[#allocation3 + $0x2a0] sm:$0xff] %vm481, %v1848
      %1865 = vst.msk [vmem:[#allocation3 + $0x2a8] sm:$0xff] %vm481, %v1850
      %1866 = vst.msk [vmem:[#allocation3 + $0x2b0] sm:$0xff] %vm481, %v1852
      %1867 = vst.msk [vmem:[#allocation3 + $0x2b8] sm:$0xf] %vm1043, %v1854
      %1868 = vset.pattern.permute.xlu0 6
      %1869 = vperm.xlu0 %1868, %v829
      %v1870 = vpop.permute.xlu0 %1869
      %1872 = vset.pattern.permute.xlu0 6
      %1873 = vperm.xlu0 %1872, %v832
      %v1874 = vpop.permute.xlu0 %1873
      %1876 = vset.pattern.permute.xlu0 6
      %1877 = vperm.xlu0 %1876, %v837
      %v1878 = vpop.permute.xlu0 %1877
      %1880 = vset.pattern.permute.xlu0 6
      %1881 = vperm.xlu0 %1880, %v840
      %v1882 = vpop.permute.xlu0 %1881
      %1884 = vset.pattern.permute.xlu0 6
      %1885 = vperm.xlu0 %1884, %v845
      %v1886 = vpop.permute.xlu0 %1885
      %1888 = vset.pattern.permute.xlu0 6
      %1889 = vperm.xlu0 %1888, %v848
      %v1890 = vpop.permute.xlu0 %1889
      %1892 = vset.pattern.permute.xlu0 6
      %1893 = vperm.xlu0 %1892, %v853
      %v1894 = vpop.permute.xlu0 %1893
      %1896 = vset.pattern.permute.xlu0 6
      %1897 = vperm.xlu0 %1896, %v856
      %v1898 = vpop.permute.xlu0 %1897
      %1900 = vset.pattern.permute.xlu0 6
      %1901 = vperm.xlu0 %1900, %v861
      %v1902 = vpop.permute.xlu0 %1901
      %1904 = vset.pattern.permute.xlu0 6
      %1905 = vperm.xlu0 %1904, %v864
      %v1906 = vpop.permute.xlu0 %1905
      %1908 = vset.pattern.permute.xlu0 6
      %1909 = vperm.xlu0 %1908, %v869
      %v1910 = vpop.permute.xlu0 %1909
      %1912 = vset.pattern.permute.xlu0 6
      %1913 = vperm.xlu0 %1912, %v872
      %v1914 = vpop.permute.xlu0 %1913
      %1916 = vset.pattern.permute.xlu0 6
      %1917 = vperm.xlu0 %1916, %v877
      %v1918 = vpop.permute.xlu0 %1917
      %v1920 = vmul.f32 %v974, %v1870
      %v1921 = vmul.f32 %v975, %v1874
      %v1922 = vmul.f32 %v976, %v1878
      %v1923 = vmul.f32 %v977, %v1882
      %v1924 = vmul.f32 %v978, %v1886
      %v1925 = vmul.f32 %v979, %v1890
      %v1926 = vmul.f32 %v980, %v1894
      %v1927 = vmul.f32 %v981, %v1898
      %v1928 = vmul.f32 %v982, %v1902
      %v1929 = vmul.f32 %v983, %v1906
      %v1930 = vmul.f32 %v984, %v1910
      %v1931 = vmul.f32 %v985, %v1914
      %v1932 = vmul.f32 %v986, %v1918
      %1933 = vst.msk [vmem:[#allocation4 + $0x258] sm:$0xff] %vm481, %v1920
      %1934 = vst.msk [vmem:[#allocation4 + $0x260] sm:$0xff] %vm481, %v1921
      %1935 = vst.msk [vmem:[#allocation4 + $0x268] sm:$0xff] %vm481, %v1922
      %1936 = vst.msk [vmem:[#allocation4 + $0x270] sm:$0xff] %vm481, %v1923
      %1937 = vst.msk [vmem:[#allocation4 + $0x278] sm:$0xff] %vm481, %v1924
      %1938 = vst.msk [vmem:[#allocation4 + $0x280] sm:$0xff] %vm481, %v1925
      %1939 = vst.msk [vmem:[#allocation4 + $0x288] sm:$0xff] %vm481, %v1926
      %1940 = vst.msk [vmem:[#allocation4 + $0x290] sm:$0xff] %vm481, %v1927
      %1941 = vst.msk [vmem:[#allocation4 + $0x298] sm:$0xff] %vm481, %v1928
      %1942 = vst.msk [vmem:[#allocation4 + $0x2a0] sm:$0xff] %vm481, %v1929
      %1943 = vst.msk [vmem:[#allocation4 + $0x2a8] sm:$0xff] %vm481, %v1930
      %1944 = vst.msk [vmem:[#allocation4 + $0x2b0] sm:$0xff] %vm481, %v1931
      %1945 = vst.msk [vmem:[#allocation4 + $0x2b8] sm:$0xf] %vm1043, %v1932
      %v1946 = vld [vmem:[%s6 + $0x7] sm:$0x1]
      %v1947 = vlaneseq
      %v1948 = vshrl.u32 %v1947, 7
      %v1949 = vsub.s32 0, %v1948
      %v1950 = vrot.slane %v1946, %v1949
      %v1951 = vmul.f32 %v777, %v1950
      %v1952 = vmul.f32 %v778, %v1950
      %v1953 = vmul.f32 %v779, %v1950
      %v1954 = vmul.f32 %v780, %v1950
      %v1955 = vmul.f32 %v781, %v1950
      %v1956 = vmul.f32 %v782, %v1950
      %v1957 = vmul.f32 %v783, %v1950
      %v1958 = vmul.f32 %v784, %v1950
      %v1959 = vmul.f32 %v785, %v1950
      %v1960 = vmul.f32 %v786, %v1950
      %v1961 = vmul.f32 %v787, %v1950
      %v1962 = vmul.f32 %v788, %v1950
      %v1963 = vmul.f32 %v789, %v1950
      %v1964 = vmul.f32 %v1951, 1.442695
      %v1965 = vpow.pop %v1964
      %v1966 = vmul.f32 %v1952, 1.442695
      %v1967 = vpow.pop %v1966
      %v1968 = vmul.f32 %v1953, 1.442695
      %v1969 = vpow.pop %v1968
      %v1970 = vmul.f32 %v1954, 1.442695
      %v1971 = vpow.pop %v1970
      %v1972 = vmul.f32 %v1955, 1.442695
      %v1973 = vpow.pop %v1972
      %v1974 = vmul.f32 %v1956, 1.442695
      %v1975 = vpow.pop %v1974
      %v1976 = vmul.f32 %v1957, 1.442695
      %v1977 = vpow.pop %v1976
      %v1978 = vmul.f32 %v1958, 1.442695
      %v1979 = vpow.pop %v1978
      %v1980 = vmul.f32 %v1959, 1.442695
      %v1981 = vpow.pop %v1980
      %v1982 = vmul.f32 %v1960, 1.442695
      %v1983 = vpow.pop %v1982
      %v1984 = vmul.f32 %v1961, 1.442695
      %v1985 = vpow.pop %v1984
      %v1986 = vmul.f32 %v1962, 1.442695
      %v1987 = vpow.pop %v1986
      %v1988 = vmul.f32 %v1963, 1.442695
      %v1989 = vpow.pop %v1988
      %1990 = vst.msk [vmem:[#allocation3 + $0x2bc] sm:$0xff] %vm481, %v1965
      %1991 = vst.msk [vmem:[#allocation3 + $0x2c4] sm:$0xff] %vm481, %v1967
      %1992 = vst.msk [vmem:[#allocation3 + $0x2cc] sm:$0xff] %vm481, %v1969
      %1993 = vst.msk [vmem:[#allocation3 + $0x2d4] sm:$0xff] %vm481, %v1971
      %1994 = vst.msk [vmem:[#allocation3 + $0x2dc] sm:$0xff] %vm481, %v1973
      %1995 = vst.msk [vmem:[#allocation3 + $0x2e4] sm:$0xff] %vm481, %v1975
      %1996 = vst.msk [vmem:[#allocation3 + $0x2ec] sm:$0xff] %vm481, %v1977
      %1997 = vst.msk [vmem:[#allocation3 + $0x2f4] sm:$0xff] %vm481, %v1979
      %1998 = vst.msk [vmem:[#allocation3 + $0x2fc] sm:$0xff] %vm481, %v1981
      %1999 = vst.msk [vmem:[#allocation3 + $0x304] sm:$0xff] %vm481, %v1983
      %2000 = vst.msk [vmem:[#allocation3 + $0x30c] sm:$0xff] %vm481, %v1985
      %2001 = vst.msk [vmem:[#allocation3 + $0x314] sm:$0xff] %vm481, %v1987
      %2002 = vst.msk [vmem:[#allocation3 + $0x31c] sm:$0xf] %vm1043, %v1989
      %2003 = vset.pattern.permute.xlu0 7
      %2004 = vperm.xlu0 %2003, %v829
      %v2005 = vpop.permute.xlu0 %2004
      %2007 = vset.pattern.permute.xlu0 7
      %2008 = vperm.xlu0 %2007, %v832
      %v2009 = vpop.permute.xlu0 %2008
      %2011 = vset.pattern.permute.xlu0 7
      %2012 = vperm.xlu0 %2011, %v837
      %v2013 = vpop.permute.xlu0 %2012
      %2015 = vset.pattern.permute.xlu0 7
      %2016 = vperm.xlu0 %2015, %v840
      %v2017 = vpop.permute.xlu0 %2016
      %2019 = vset.pattern.permute.xlu0 7
      %2020 = vperm.xlu0 %2019, %v845
      %v2021 = vpop.permute.xlu0 %2020
      %2023 = vset.pattern.permute.xlu0 7
      %2024 = vperm.xlu0 %2023, %v848
      %v2025 = vpop.permute.xlu0 %2024
      %2027 = vset.pattern.permute.xlu0 7
      %2028 = vperm.xlu0 %2027, %v853
      %v2029 = vpop.permute.xlu0 %2028
      %2031 = vset.pattern.permute.xlu0 7
      %2032 = vperm.xlu0 %2031, %v856
      %v2033 = vpop.permute.xlu0 %2032
      %2035 = vset.pattern.permute.xlu0 7
      %2036 = vperm.xlu0 %2035, %v861
      %v2037 = vpop.permute.xlu0 %2036
      %2039 = vset.pattern.permute.xlu0 7
      %2040 = vperm.xlu0 %2039, %v864
      %v2041 = vpop.permute.xlu0 %2040
      %2043 = vset.pattern.permute.xlu0 7
      %2044 = vperm.xlu0 %2043, %v869
      %v2045 = vpop.permute.xlu0 %2044
      %2047 = vset.pattern.permute.xlu0 7
      %2048 = vperm.xlu0 %2047, %v872
      %v2049 = vpop.permute.xlu0 %2048
      %2051 = vset.pattern.permute.xlu0 7
      %2052 = vperm.xlu0 %2051, %v877
      %v2053 = vpop.permute.xlu0 %2052
      %v2055 = vmul.f32 %v974, %v2005
      %v2056 = vmul.f32 %v975, %v2009
      %v2057 = vmul.f32 %v976, %v2013
      %v2058 = vmul.f32 %v977, %v2017
      %v2059 = vmul.f32 %v978, %v2021
      %v2060 = vmul.f32 %v979, %v2025
      %v2061 = vmul.f32 %v980, %v2029
      %v2062 = vmul.f32 %v981, %v2033
      %v2063 = vmul.f32 %v982, %v2037
      %v2064 = vmul.f32 %v983, %v2041
      %v2065 = vmul.f32 %v984, %v2045
      %v2066 = vmul.f32 %v985, %v2049
      %v2067 = vmul.f32 %v986, %v2053
      %2068 = vst.msk [vmem:[#allocation4 + $0x2bc] sm:$0xff] %vm481, %v2055
      %2069 = vst.msk [vmem:[#allocation4 + $0x2c4] sm:$0xff] %vm481, %v2056
      %2070 = vst.msk [vmem:[#allocation4 + $0x2cc] sm:$0xff] %vm481, %v2057
      %2071 = vst.msk [vmem:[#allocation4 + $0x2d4] sm:$0xff] %vm481, %v2058
      %2072 = vst.msk [vmem:[#allocation4 + $0x2dc] sm:$0xff] %vm481, %v2059
      %2073 = vst.msk [vmem:[#allocation4 + $0x2e4] sm:$0xff] %vm481, %v2060
      %2074 = vst.msk [vmem:[#allocation4 + $0x2ec] sm:$0xff] %vm481, %v2061
      %2075 = vst.msk [vmem:[#allocation4 + $0x2f4] sm:$0xff] %vm481, %v2062
      %2076 = vst.msk [vmem:[#allocation4 + $0x2fc] sm:$0xff] %vm481, %v2063
      %2077 = vst.msk [vmem:[#allocation4 + $0x304] sm:$0xff] %vm481, %v2064
      %2078 = vst.msk [vmem:[#allocation4 + $0x30c] sm:$0xff] %vm481, %v2065
      %2079 = vst.msk [vmem:[#allocation4 + $0x314] sm:$0xff] %vm481, %v2066
      %2080 = vst.msk [vmem:[#allocation4 + $0x31c] sm:$0xf] %vm1043, %v2067
      %v2081 = vld [vmem:[#allocation2] sm:$0xff]
      loop: start=0, step=1, limit=100
      $region57: #{mamba_block_forward.22} parent=51 // loop_pre_header
        _
      $region58: #{mamba_block_forward.22} parent=51 // loop_header
        %s2083 = sphi 0, %s2087
        %p2084 = scmp.ge.s32.totalorder %s2083, 100
        %v2088 = vphi %v2081, %v2094
      $region59: #{mamba_block_forward.22} parent=51 // loop_header_branch
        %2086 = sbr.rel (%p2084) target = $region63
      $region60: #{mamba_block_forward.22} parent=51 // loop_body
        %s2089 = scalar_lea.vmem [#allocation3], %s2083
        %v2090 = vld [vmem:[%s2089] ss:$100 sm:$0xff]
        %s2091 = scalar_lea.vmem [#allocation4], %s2083
        %v2092 = vld [vmem:[%s2091] ss:$100 sm:$0xff]
        %v2093 = vmul.f32 %v2090, %v2088
        %v2094 = vadd.f32 %v2093, %v2092
        %s2095 = smul.u32 %s2083, 8
        %s2096 = scalar_lea.vmem [#allocation5], %s2095
        %2097 = vst.msk [vmem:[%s2096] sm:$0xff] %vm481, %v2094
      $region61: #{mamba_block_forward.22} parent=51 // loop_footer
        %s2087 = sadd.s32 1, %s2083
      $region62: #{mamba_block_forward.22} parent=51 // loop_footer_branch
        %2082 = sbr.rel target = $region58
      $region63: #{mamba_block_forward.22} parent=51 // loop_exit
        _
      %2098 = vst.msk [vmem:[#allocation2] sm:$0xff] %vm481, %v2088
      %v2099 = vld [vmem:[#allocation5] ss:$8 sm:$0xf]
      %v2100 = vld [vmem:[#allocation5] ss:$8 sm:$0xf0]
      %v2101 = vor.u32 %v2099, %v2100
      %s2102 = scalar_lea.vmem [#allocation5], 64
      %v2103 = vld [vmem:[%s2102] ss:$8 sm:$0xf]
      %v2104 = vld [vmem:[%s2102] ss:$8 sm:$0xf0]
      %v2105 = vor.u32 %v2103, %v2104
      %s2106 = scalar_lea.vmem [#allocation5], 128
      %v2107 = vld [vmem:[%s2106] ss:$8 sm:$0xf]
      %v2108 = vld [vmem:[%s2106] ss:$8 sm:$0xf0]
      %v2109 = vor.u32 %v2107, %v2108
      %s2110 = scalar_lea.vmem [#allocation5], 192
      %v2111 = vld [vmem:[%s2110] ss:$8 sm:$0xf]
      %v2112 = vld [vmem:[%s2110] ss:$8 sm:$0xf0]
      %v2113 = vor.u32 %v2111, %v2112
      %s2114 = scalar_lea.vmem [#allocation5], 256
      %v2115 = vld [vmem:[%s2114] ss:$8 sm:$0xf]
      %v2116 = vld [vmem:[%s2114] ss:$8 sm:$0xf0]
      %v2117 = vor.u32 %v2115, %v2116
      %s2118 = scalar_lea.vmem [#allocation5], 320
      %v2119 = vld [vmem:[%s2118] ss:$8 sm:$0xf]
      %v2120 = vld [vmem:[%s2118] ss:$8 sm:$0xf0]
      %v2121 = vor.u32 %v2119, %v2120
      %s2122 = scalar_lea.vmem [#allocation5], 384
      %v2123 = vld [vmem:[%s2122] ss:$8 sm:$0xf]
      %v2124 = vld [vmem:[%s2122] ss:$8 sm:$0xf0]
      %v2125 = vor.u32 %v2123, %v2124
      %s2126 = scalar_lea.vmem [#allocation5], 448
      %v2127 = vld [vmem:[%s2126] ss:$8 sm:$0xf]
      %v2128 = vld [vmem:[%s2126] ss:$8 sm:$0xf0]
      %v2129 = vor.u32 %v2127, %v2128
      %s2130 = scalar_lea.vmem [#allocation5], 512
      %v2131 = vld [vmem:[%s2130] ss:$8 sm:$0xf]
      %v2132 = vld [vmem:[%s2130] ss:$8 sm:$0xf0]
      %v2133 = vor.u32 %v2131, %v2132
      %s2134 = scalar_lea.vmem [#allocation5], 576
      %v2135 = vld [vmem:[%s2134] ss:$8 sm:$0xf]
      %v2136 = vld [vmem:[%s2134] ss:$8 sm:$0xf0]
      %v2137 = vor.u32 %v2135, %v2136
      %s2138 = scalar_lea.vmem [#allocation5], 640
      %v2139 = vld [vmem:[%s2138] ss:$8 sm:$0xf]
      %v2140 = vld [vmem:[%s2138] ss:$8 sm:$0xf0]
      %v2141 = vor.u32 %v2139, %v2140
      %s2142 = scalar_lea.vmem [#allocation5], 704
      %v2143 = vld [vmem:[%s2142] ss:$8 sm:$0xf]
      %v2144 = vld [vmem:[%s2142] ss:$8 sm:$0xf0]
      %v2145 = vor.u32 %v2143, %v2144
      %s2146 = scalar_lea.vmem [#allocation5], 768
      %v2147 = vld [vmem:[%s2146] ss:$8 sm:$0xf]
      %2149 = vset.pattern.permute.xlu0 0
      %2150 = vperm.xlu0 %2149, %v921
      %v2151 = vpop.permute.xlu0 %2150
      %2154 = vset.pattern.permute.xlu0 0
      %2155 = vperm.xlu0 %2154, %v924
      %v2156 = vpop.permute.xlu0 %2155
      %2159 = vset.pattern.permute.xlu0 0
      %2160 = vperm.xlu0 %2159, %v929
      %v2161 = vpop.permute.xlu0 %2160
      %2164 = vset.pattern.permute.xlu0 0
      %2165 = vperm.xlu0 %2164, %v932
      %v2166 = vpop.permute.xlu0 %2165
      %2169 = vset.pattern.permute.xlu0 0
      %2170 = vperm.xlu0 %2169, %v937
      %v2171 = vpop.permute.xlu0 %2170
      %2174 = vset.pattern.permute.xlu0 0
      %2175 = vperm.xlu0 %2174, %v940
      %v2176 = vpop.permute.xlu0 %2175
      %2179 = vset.pattern.permute.xlu0 0
      %2180 = vperm.xlu0 %2179, %v945
      %v2181 = vpop.permute.xlu0 %2180
      %2184 = vset.pattern.permute.xlu0 0
      %2185 = vperm.xlu0 %2184, %v948
      %v2186 = vpop.permute.xlu0 %2185
      %2189 = vset.pattern.permute.xlu0 0
      %2190 = vperm.xlu0 %2189, %v953
      %v2191 = vpop.permute.xlu0 %2190
      %2194 = vset.pattern.permute.xlu0 0
      %2195 = vperm.xlu0 %2194, %v956
      %v2196 = vpop.permute.xlu0 %2195
      %2199 = vset.pattern.permute.xlu0 0
      %2200 = vperm.xlu0 %2199, %v961
      %v2201 = vpop.permute.xlu0 %2200
      %2204 = vset.pattern.permute.xlu0 0
      %2205 = vperm.xlu0 %2204, %v964
      %v2206 = vpop.permute.xlu0 %2205
      %2209 = vset.pattern.permute.xlu0 0
      %2210 = vperm.xlu0 %2209, %v969
      %v2211 = vpop.permute.xlu0 %2210
      %v2213 = vmul.f32 %v2101, %v2151
      %v2214 = vmul.f32 %v2105, %v2156
      %v2215 = vmul.f32 %v2109, %v2161
      %v2216 = vmul.f32 %v2113, %v2166
      %v2217 = vmul.f32 %v2117, %v2171
      %v2218 = vmul.f32 %v2121, %v2176
      %v2219 = vmul.f32 %v2125, %v2181
      %v2220 = vmul.f32 %v2129, %v2186
      %v2221 = vmul.f32 %v2133, %v2191
      %v2222 = vmul.f32 %v2137, %v2196
      %v2223 = vmul.f32 %v2141, %v2201
      %v2224 = vmul.f32 %v2145, %v2206
      %v2225 = vmul.f32 %v2147, %v2211
      %s2226 = scalar_lea.vmem [#allocation5], 1
      %v2227 = vld [vmem:[%s2226] ss:$8 sm:$0xf]
      %v2228 = vld [vmem:[%s2226] ss:$8 sm:$0xf0]
      %v2229 = vor.u32 %v2227, %v2228
      %s2230 = scalar_lea.vmem [#allocation5], 65
      %v2231 = vld [vmem:[%s2230] ss:$8 sm:$0xf]
      %v2232 = vld [vmem:[%s2230] ss:$8 sm:$0xf0]
      %v2233 = vor.u32 %v2231, %v2232
      %s2234 = scalar_lea.vmem [#allocation5], 129
      %v2235 = vld [vmem:[%s2234] ss:$8 sm:$0xf]
      %v2236 = vld [vmem:[%s2234] ss:$8 sm:$0xf0]
      %v2237 = vor.u32 %v2235, %v2236
      %s2238 = scalar_lea.vmem [#allocation5], 193
      %v2239 = vld [vmem:[%s2238] ss:$8 sm:$0xf]
      %v2240 = vld [vmem:[%s2238] ss:$8 sm:$0xf0]
      %v2241 = vor.u32 %v2239, %v2240
      %s2242 = scalar_lea.vmem [#allocation5], 257
      %v2243 = vld [vmem:[%s2242] ss:$8 sm:$0xf]
      %v2244 = vld [vmem:[%s2242] ss:$8 sm:$0xf0]
      %v2245 = vor.u32 %v2243, %v2244
      %s2246 = scalar_lea.vmem [#allocation5], 321
      %v2247 = vld [vmem:[%s2246] ss:$8 sm:$0xf]
      %v2248 = vld [vmem:[%s2246] ss:$8 sm:$0xf0]
      %v2249 = vor.u32 %v2247, %v2248
      %s2250 = scalar_lea.vmem [#allocation5], 385
      %v2251 = vld [vmem:[%s2250] ss:$8 sm:$0xf]
      %v2252 = vld [vmem:[%s2250] ss:$8 sm:$0xf0]
      %v2253 = vor.u32 %v2251, %v2252
      %s2254 = scalar_lea.vmem [#allocation5], 449
      %v2255 = vld [vmem:[%s2254] ss:$8 sm:$0xf]
      %v2256 = vld [vmem:[%s2254] ss:$8 sm:$0xf0]
      %v2257 = vor.u32 %v2255, %v2256
      %s2258 = scalar_lea.vmem [#allocation5], 513
      %v2259 = vld [vmem:[%s2258] ss:$8 sm:$0xf]
      %v2260 = vld [vmem:[%s2258] ss:$8 sm:$0xf0]
      %v2261 = vor.u32 %v2259, %v2260
      %s2262 = scalar_lea.vmem [#allocation5], 577
      %v2263 = vld [vmem:[%s2262] ss:$8 sm:$0xf]
      %v2264 = vld [vmem:[%s2262] ss:$8 sm:$0xf0]
      %v2265 = vor.u32 %v2263, %v2264
      %s2266 = scalar_lea.vmem [#allocation5], 641
      %v2267 = vld [vmem:[%s2266] ss:$8 sm:$0xf]
      %v2268 = vld [vmem:[%s2266] ss:$8 sm:$0xf0]
      %v2269 = vor.u32 %v2267, %v2268
      %s2270 = scalar_lea.vmem [#allocation5], 705
      %v2271 = vld [vmem:[%s2270] ss:$8 sm:$0xf]
      %v2272 = vld [vmem:[%s2270] ss:$8 sm:$0xf0]
      %v2273 = vor.u32 %v2271, %v2272
      %s2274 = scalar_lea.vmem [#allocation5], 769
      %v2275 = vld [vmem:[%s2274] ss:$8 sm:$0xf]
      %2276 = vset.pattern.permute.xlu0 1
      %2277 = vperm.xlu0 %2276, %v921
      %v2278 = vpop.permute.xlu0 %2277
      %2280 = vset.pattern.permute.xlu0 1
      %2281 = vperm.xlu0 %2280, %v924
      %v2282 = vpop.permute.xlu0 %2281
      %2284 = vset.pattern.permute.xlu0 1
      %2285 = vperm.xlu0 %2284, %v929
      %v2286 = vpop.permute.xlu0 %2285
      %2288 = vset.pattern.permute.xlu0 1
      %2289 = vperm.xlu0 %2288, %v932
      %v2290 = vpop.permute.xlu0 %2289
      %2292 = vset.pattern.permute.xlu0 1
      %2293 = vperm.xlu0 %2292, %v937
      %v2294 = vpop.permute.xlu0 %2293
      %2296 = vset.pattern.permute.xlu0 1
      %2297 = vperm.xlu0 %2296, %v940
      %v2298 = vpop.permute.xlu0 %2297
      %2300 = vset.pattern.permute.xlu0 1
      %2301 = vperm.xlu0 %2300, %v945
      %v2302 = vpop.permute.xlu0 %2301
      %2304 = vset.pattern.permute.xlu0 1
      %2305 = vperm.xlu0 %2304, %v948
      %v2306 = vpop.permute.xlu0 %2305
      %2308 = vset.pattern.permute.xlu0 1
      %2309 = vperm.xlu0 %2308, %v953
      %v2310 = vpop.permute.xlu0 %2309
      %2312 = vset.pattern.permute.xlu0 1
      %2313 = vperm.xlu0 %2312, %v956
      %v2314 = vpop.permute.xlu0 %2313
      %2316 = vset.pattern.permute.xlu0 1
      %2317 = vperm.xlu0 %2316, %v961
      %v2318 = vpop.permute.xlu0 %2317
      %2320 = vset.pattern.permute.xlu0 1
      %2321 = vperm.xlu0 %2320, %v964
      %v2322 = vpop.permute.xlu0 %2321
      %2324 = vset.pattern.permute.xlu0 1
      %2325 = vperm.xlu0 %2324, %v969
      %v2326 = vpop.permute.xlu0 %2325
      %v2328 = vmul.f32 %v2229, %v2278
      %v2329 = vmul.f32 %v2233, %v2282
      %v2330 = vmul.f32 %v2237, %v2286
      %v2331 = vmul.f32 %v2241, %v2290
      %v2332 = vmul.f32 %v2245, %v2294
      %v2333 = vmul.f32 %v2249, %v2298
      %v2334 = vmul.f32 %v2253, %v2302
      %v2335 = vmul.f32 %v2257, %v2306
      %v2336 = vmul.f32 %v2261, %v2310
      %v2337 = vmul.f32 %v2265, %v2314
      %v2338 = vmul.f32 %v2269, %v2318
      %v2339 = vmul.f32 %v2273, %v2322
      %v2340 = vmul.f32 %v2275, %v2326
      %v2341 = vadd.f32 %v2213, %v2328
      %v2342 = vadd.f32 %v2214, %v2329
      %v2343 = vadd.f32 %v2215, %v2330
      %v2344 = vadd.f32 %v2216, %v2331
      %v2345 = vadd.f32 %v2217, %v2332
      %v2346 = vadd.f32 %v2218, %v2333
      %v2347 = vadd.f32 %v2219, %v2334
      %v2348 = vadd.f32 %v2220, %v2335
      %v2349 = vadd.f32 %v2221, %v2336
      %v2350 = vadd.f32 %v2222, %v2337
      %v2351 = vadd.f32 %v2223, %v2338
      %v2352 = vadd.f32 %v2224, %v2339
      %v2353 = vadd.f32 %v2225, %v2340
      %s2354 = scalar_lea.vmem [#allocation5], 2
      %v2355 = vld [vmem:[%s2354] ss:$8 sm:$0xf]
      %v2356 = vld [vmem:[%s2354] ss:$8 sm:$0xf0]
      %v2357 = vor.u32 %v2355, %v2356
      %s2358 = scalar_lea.vmem [#allocation5], 66
      %v2359 = vld [vmem:[%s2358] ss:$8 sm:$0xf]
      %v2360 = vld [vmem:[%s2358] ss:$8 sm:$0xf0]
      %v2361 = vor.u32 %v2359, %v2360
      %s2362 = scalar_lea.vmem [#allocation5], 130
      %v2363 = vld [vmem:[%s2362] ss:$8 sm:$0xf]
      %v2364 = vld [vmem:[%s2362] ss:$8 sm:$0xf0]
      %v2365 = vor.u32 %v2363, %v2364
      %s2366 = scalar_lea.vmem [#allocation5], 194
      %v2367 = vld [vmem:[%s2366] ss:$8 sm:$0xf]
      %v2368 = vld [vmem:[%s2366] ss:$8 sm:$0xf0]
      %v2369 = vor.u32 %v2367, %v2368
      %s2370 = scalar_lea.vmem [#allocation5], 258
      %v2371 = vld [vmem:[%s2370] ss:$8 sm:$0xf]
      %v2372 = vld [vmem:[%s2370] ss:$8 sm:$0xf0]
      %v2373 = vor.u32 %v2371, %v2372
      %s2374 = scalar_lea.vmem [#allocation5], 322
      %v2375 = vld [vmem:[%s2374] ss:$8 sm:$0xf]
      %v2376 = vld [vmem:[%s2374] ss:$8 sm:$0xf0]
      %v2377 = vor.u32 %v2375, %v2376
      %s2378 = scalar_lea.vmem [#allocation5], 386
      %v2379 = vld [vmem:[%s2378] ss:$8 sm:$0xf]
      %v2380 = vld [vmem:[%s2378] ss:$8 sm:$0xf0]
      %v2381 = vor.u32 %v2379, %v2380
      %s2382 = scalar_lea.vmem [#allocation5], 450
      %v2383 = vld [vmem:[%s2382] ss:$8 sm:$0xf]
      %v2384 = vld [vmem:[%s2382] ss:$8 sm:$0xf0]
      %v2385 = vor.u32 %v2383, %v2384
      %s2386 = scalar_lea.vmem [#allocation5], 514
      %v2387 = vld [vmem:[%s2386] ss:$8 sm:$0xf]
      %v2388 = vld [vmem:[%s2386] ss:$8 sm:$0xf0]
      %v2389 = vor.u32 %v2387, %v2388
      %s2390 = scalar_lea.vmem [#allocation5], 578
      %v2391 = vld [vmem:[%s2390] ss:$8 sm:$0xf]
      %v2392 = vld [vmem:[%s2390] ss:$8 sm:$0xf0]
      %v2393 = vor.u32 %v2391, %v2392
      %s2394 = scalar_lea.vmem [#allocation5], 642
      %v2395 = vld [vmem:[%s2394] ss:$8 sm:$0xf]
      %v2396 = vld [vmem:[%s2394] ss:$8 sm:$0xf0]
      %v2397 = vor.u32 %v2395, %v2396
      %s2398 = scalar_lea.vmem [#allocation5], 706
      %v2399 = vld [vmem:[%s2398] ss:$8 sm:$0xf]
      %v2400 = vld [vmem:[%s2398] ss:$8 sm:$0xf0]
      %v2401 = vor.u32 %v2399, %v2400
      %s2402 = scalar_lea.vmem [#allocation5], 770
      %v2403 = vld [vmem:[%s2402] ss:$8 sm:$0xf]
      %2404 = vset.pattern.permute.xlu0 2
      %2405 = vperm.xlu0 %2404, %v921
      %v2406 = vpop.permute.xlu0 %2405
      %2408 = vset.pattern.permute.xlu0 2
      %2409 = vperm.xlu0 %2408, %v924
      %v2410 = vpop.permute.xlu0 %2409
      %2412 = vset.pattern.permute.xlu0 2
      %2413 = vperm.xlu0 %2412, %v929
      %v2414 = vpop.permute.xlu0 %2413
      %2416 = vset.pattern.permute.xlu0 2
      %2417 = vperm.xlu0 %2416, %v932
      %v2418 = vpop.permute.xlu0 %2417
      %2420 = vset.pattern.permute.xlu0 2
      %2421 = vperm.xlu0 %2420, %v937
      %v2422 = vpop.permute.xlu0 %2421
      %2424 = vset.pattern.permute.xlu0 2
      %2425 = vperm.xlu0 %2424, %v940
      %v2426 = vpop.permute.xlu0 %2425
      %2428 = vset.pattern.permute.xlu0 2
      %2429 = vperm.xlu0 %2428, %v945
      %v2430 = vpop.permute.xlu0 %2429
      %2432 = vset.pattern.permute.xlu0 2
      %2433 = vperm.xlu0 %2432, %v948
      %v2434 = vpop.permute.xlu0 %2433
      %2436 = vset.pattern.permute.xlu0 2
      %2437 = vperm.xlu0 %2436, %v953
      %v2438 = vpop.permute.xlu0 %2437
      %2440 = vset.pattern.permute.xlu0 2
      %2441 = vperm.xlu0 %2440, %v956
      %v2442 = vpop.permute.xlu0 %2441
      %2444 = vset.pattern.permute.xlu0 2
      %2445 = vperm.xlu0 %2444, %v961
      %v2446 = vpop.permute.xlu0 %2445
      %2448 = vset.pattern.permute.xlu0 2
      %2449 = vperm.xlu0 %2448, %v964
      %v2450 = vpop.permute.xlu0 %2449
      %2452 = vset.pattern.permute.xlu0 2
      %2453 = vperm.xlu0 %2452, %v969
      %v2454 = vpop.permute.xlu0 %2453
      %v2456 = vmul.f32 %v2357, %v2406
      %v2457 = vmul.f32 %v2361, %v2410
      %v2458 = vmul.f32 %v2365, %v2414
      %v2459 = vmul.f32 %v2369, %v2418
      %v2460 = vmul.f32 %v2373, %v2422
      %v2461 = vmul.f32 %v2377, %v2426
      %v2462 = vmul.f32 %v2381, %v2430
      %v2463 = vmul.f32 %v2385, %v2434
      %v2464 = vmul.f32 %v2389, %v2438
      %v2465 = vmul.f32 %v2393, %v2442
      %v2466 = vmul.f32 %v2397, %v2446
      %v2467 = vmul.f32 %v2401, %v2450
      %v2468 = vmul.f32 %v2403, %v2454
      %v2469 = vadd.f32 %v2341, %v2456
      %v2470 = vadd.f32 %v2342, %v2457
      %v2471 = vadd.f32 %v2343, %v2458
      %v2472 = vadd.f32 %v2344, %v2459
      %v2473 = vadd.f32 %v2345, %v2460
      %v2474 = vadd.f32 %v2346, %v2461
      %v2475 = vadd.f32 %v2347, %v2462
      %v2476 = vadd.f32 %v2348, %v2463
      %v2477 = vadd.f32 %v2349, %v2464
      %v2478 = vadd.f32 %v2350, %v2465
      %v2479 = vadd.f32 %v2351, %v2466
      %v2480 = vadd.f32 %v2352, %v2467
      %v2481 = vadd.f32 %v2353, %v2468
      %s2482 = scalar_lea.vmem [#allocation5], 3
      %v2483 = vld [vmem:[%s2482] ss:$8 sm:$0xf]
      %v2484 = vld [vmem:[%s2482] ss:$8 sm:$0xf0]
      %v2485 = vor.u32 %v2483, %v2484
      %s2486 = scalar_lea.vmem [#allocation5], 67
      %v2487 = vld [vmem:[%s2486] ss:$8 sm:$0xf]
      %v2488 = vld [vmem:[%s2486] ss:$8 sm:$0xf0]
      %v2489 = vor.u32 %v2487, %v2488
      %s2490 = scalar_lea.vmem [#allocation5], 131
      %v2491 = vld [vmem:[%s2490] ss:$8 sm:$0xf]
      %v2492 = vld [vmem:[%s2490] ss:$8 sm:$0xf0]
      %v2493 = vor.u32 %v2491, %v2492
      %s2494 = scalar_lea.vmem [#allocation5], 195
      %v2495 = vld [vmem:[%s2494] ss:$8 sm:$0xf]
      %v2496 = vld [vmem:[%s2494] ss:$8 sm:$0xf0]
      %v2497 = vor.u32 %v2495, %v2496
      %s2498 = scalar_lea.vmem [#allocation5], 259
      %v2499 = vld [vmem:[%s2498] ss:$8 sm:$0xf]
      %v2500 = vld [vmem:[%s2498] ss:$8 sm:$0xf0]
      %v2501 = vor.u32 %v2499, %v2500
      %s2502 = scalar_lea.vmem [#allocation5], 323
      %v2503 = vld [vmem:[%s2502] ss:$8 sm:$0xf]
      %v2504 = vld [vmem:[%s2502] ss:$8 sm:$0xf0]
      %v2505 = vor.u32 %v2503, %v2504
      %s2506 = scalar_lea.vmem [#allocation5], 387
      %v2507 = vld [vmem:[%s2506] ss:$8 sm:$0xf]
      %v2508 = vld [vmem:[%s2506] ss:$8 sm:$0xf0]
      %v2509 = vor.u32 %v2507, %v2508
      %s2510 = scalar_lea.vmem [#allocation5], 451
      %v2511 = vld [vmem:[%s2510] ss:$8 sm:$0xf]
      %v2512 = vld [vmem:[%s2510] ss:$8 sm:$0xf0]
      %v2513 = vor.u32 %v2511, %v2512
      %s2514 = scalar_lea.vmem [#allocation5], 515
      %v2515 = vld [vmem:[%s2514] ss:$8 sm:$0xf]
      %v2516 = vld [vmem:[%s2514] ss:$8 sm:$0xf0]
      %v2517 = vor.u32 %v2515, %v2516
      %s2518 = scalar_lea.vmem [#allocation5], 579
      %v2519 = vld [vmem:[%s2518] ss:$8 sm:$0xf]
      %v2520 = vld [vmem:[%s2518] ss:$8 sm:$0xf0]
      %v2521 = vor.u32 %v2519, %v2520
      %s2522 = scalar_lea.vmem [#allocation5], 643
      %v2523 = vld [vmem:[%s2522] ss:$8 sm:$0xf]
      %v2524 = vld [vmem:[%s2522] ss:$8 sm:$0xf0]
      %v2525 = vor.u32 %v2523, %v2524
      %s2526 = scalar_lea.vmem [#allocation5], 707
      %v2527 = vld [vmem:[%s2526] ss:$8 sm:$0xf]
      %v2528 = vld [vmem:[%s2526] ss:$8 sm:$0xf0]
      %v2529 = vor.u32 %v2527, %v2528
      %s2530 = scalar_lea.vmem [#allocation5], 771
      %v2531 = vld [vmem:[%s2530] ss:$8 sm:$0xf]
      %2532 = vset.pattern.permute.xlu0 3
      %2533 = vperm.xlu0 %2532, %v921
      %v2534 = vpop.permute.xlu0 %2533
      %2536 = vset.pattern.permute.xlu0 3
      %2537 = vperm.xlu0 %2536, %v924
      %v2538 = vpop.permute.xlu0 %2537
      %2540 = vset.pattern.permute.xlu0 3
      %2541 = vperm.xlu0 %2540, %v929
      %v2542 = vpop.permute.xlu0 %2541
      %2544 = vset.pattern.permute.xlu0 3
      %2545 = vperm.xlu0 %2544, %v932
      %v2546 = vpop.permute.xlu0 %2545
      %2548 = vset.pattern.permute.xlu0 3
      %2549 = vperm.xlu0 %2548, %v937
      %v2550 = vpop.permute.xlu0 %2549
      %2552 = vset.pattern.permute.xlu0 3
      %2553 = vperm.xlu0 %2552, %v940
      %v2554 = vpop.permute.xlu0 %2553
      %2556 = vset.pattern.permute.xlu0 3
      %2557 = vperm.xlu0 %2556, %v945
      %v2558 = vpop.permute.xlu0 %2557
      %2560 = vset.pattern.permute.xlu0 3
      %2561 = vperm.xlu0 %2560, %v948
      %v2562 = vpop.permute.xlu0 %2561
      %2564 = vset.pattern.permute.xlu0 3
      %2565 = vperm.xlu0 %2564, %v953
      %v2566 = vpop.permute.xlu0 %2565
      %2568 = vset.pattern.permute.xlu0 3
      %2569 = vperm.xlu0 %2568, %v956
      %v2570 = vpop.permute.xlu0 %2569
      %2572 = vset.pattern.permute.xlu0 3
      %2573 = vperm.xlu0 %2572, %v961
      %v2574 = vpop.permute.xlu0 %2573
      %2576 = vset.pattern.permute.xlu0 3
      %2577 = vperm.xlu0 %2576, %v964
      %v2578 = vpop.permute.xlu0 %2577
      %2580 = vset.pattern.permute.xlu0 3
      %2581 = vperm.xlu0 %2580, %v969
      %v2582 = vpop.permute.xlu0 %2581
      %v2584 = vmul.f32 %v2485, %v2534
      %v2585 = vmul.f32 %v2489, %v2538
      %v2586 = vmul.f32 %v2493, %v2542
      %v2587 = vmul.f32 %v2497, %v2546
      %v2588 = vmul.f32 %v2501, %v2550
      %v2589 = vmul.f32 %v2505, %v2554
      %v2590 = vmul.f32 %v2509, %v2558
      %v2591 = vmul.f32 %v2513, %v2562
      %v2592 = vmul.f32 %v2517, %v2566
      %v2593 = vmul.f32 %v2521, %v2570
      %v2594 = vmul.f32 %v2525, %v2574
      %v2595 = vmul.f32 %v2529, %v2578
      %v2596 = vmul.f32 %v2531, %v2582
      %v2597 = vadd.f32 %v2469, %v2584
      %v2598 = vadd.f32 %v2470, %v2585
      %v2599 = vadd.f32 %v2471, %v2586
      %v2600 = vadd.f32 %v2472, %v2587
      %v2601 = vadd.f32 %v2473, %v2588
      %v2602 = vadd.f32 %v2474, %v2589
      %v2603 = vadd.f32 %v2475, %v2590
      %v2604 = vadd.f32 %v2476, %v2591
      %v2605 = vadd.f32 %v2477, %v2592
      %v2606 = vadd.f32 %v2478, %v2593
      %v2607 = vadd.f32 %v2479, %v2594
      %v2608 = vadd.f32 %v2480, %v2595
      %v2609 = vadd.f32 %v2481, %v2596
      %s2610 = scalar_lea.vmem [#allocation5], 4
      %v2611 = vld [vmem:[%s2610] ss:$8 sm:$0xf]
      %v2612 = vld [vmem:[%s2610] ss:$8 sm:$0xf0]
      %v2613 = vor.u32 %v2611, %v2612
      %s2614 = scalar_lea.vmem [#allocation5], 68
      %v2615 = vld [vmem:[%s2614] ss:$8 sm:$0xf]
      %v2616 = vld [vmem:[%s2614] ss:$8 sm:$0xf0]
      %v2617 = vor.u32 %v2615, %v2616
      %s2618 = scalar_lea.vmem [#allocation5], 132
      %v2619 = vld [vmem:[%s2618] ss:$8 sm:$0xf]
      %v2620 = vld [vmem:[%s2618] ss:$8 sm:$0xf0]
      %v2621 = vor.u32 %v2619, %v2620
      %s2622 = scalar_lea.vmem [#allocation5], 196
      %v2623 = vld [vmem:[%s2622] ss:$8 sm:$0xf]
      %v2624 = vld [vmem:[%s2622] ss:$8 sm:$0xf0]
      %v2625 = vor.u32 %v2623, %v2624
      %s2626 = scalar_lea.vmem [#allocation5], 260
      %v2627 = vld [vmem:[%s2626] ss:$8 sm:$0xf]
      %v2628 = vld [vmem:[%s2626] ss:$8 sm:$0xf0]
      %v2629 = vor.u32 %v2627, %v2628
      %s2630 = scalar_lea.vmem [#allocation5], 324
      %v2631 = vld [vmem:[%s2630] ss:$8 sm:$0xf]
      %v2632 = vld [vmem:[%s2630] ss:$8 sm:$0xf0]
      %v2633 = vor.u32 %v2631, %v2632
      %s2634 = scalar_lea.vmem [#allocation5], 388
      %v2635 = vld [vmem:[%s2634] ss:$8 sm:$0xf]
      %v2636 = vld [vmem:[%s2634] ss:$8 sm:$0xf0]
      %v2637 = vor.u32 %v2635, %v2636
      %s2638 = scalar_lea.vmem [#allocation5], 452
      %v2639 = vld [vmem:[%s2638] ss:$8 sm:$0xf]
      %v2640 = vld [vmem:[%s2638] ss:$8 sm:$0xf0]
      %v2641 = vor.u32 %v2639, %v2640
      %s2642 = scalar_lea.vmem [#allocation5], 516
      %v2643 = vld [vmem:[%s2642] ss:$8 sm:$0xf]
      %v2644 = vld [vmem:[%s2642] ss:$8 sm:$0xf0]
      %v2645 = vor.u32 %v2643, %v2644
      %s2646 = scalar_lea.vmem [#allocation5], 580
      %v2647 = vld [vmem:[%s2646] ss:$8 sm:$0xf]
      %v2648 = vld [vmem:[%s2646] ss:$8 sm:$0xf0]
      %v2649 = vor.u32 %v2647, %v2648
      %s2650 = scalar_lea.vmem [#allocation5], 644
      %v2651 = vld [vmem:[%s2650] ss:$8 sm:$0xf]
      %v2652 = vld [vmem:[%s2650] ss:$8 sm:$0xf0]
      %v2653 = vor.u32 %v2651, %v2652
      %s2654 = scalar_lea.vmem [#allocation5], 708
      %v2655 = vld [vmem:[%s2654] ss:$8 sm:$0xf]
      %v2656 = vld [vmem:[%s2654] ss:$8 sm:$0xf0]
      %v2657 = vor.u32 %v2655, %v2656
      %s2658 = scalar_lea.vmem [#allocation5], 772
      %v2659 = vld [vmem:[%s2658] ss:$8 sm:$0xf]
      %2660 = vset.pattern.permute.xlu0 4
      %2661 = vperm.xlu0 %2660, %v921
      %v2662 = vpop.permute.xlu0 %2661
      %2664 = vset.pattern.permute.xlu0 4
      %2665 = vperm.xlu0 %2664, %v924
      %v2666 = vpop.permute.xlu0 %2665
      %2668 = vset.pattern.permute.xlu0 4
      %2669 = vperm.xlu0 %2668, %v929
      %v2670 = vpop.permute.xlu0 %2669
      %2672 = vset.pattern.permute.xlu0 4
      %2673 = vperm.xlu0 %2672, %v932
      %v2674 = vpop.permute.xlu0 %2673
      %2676 = vset.pattern.permute.xlu0 4
      %2677 = vperm.xlu0 %2676, %v937
      %v2678 = vpop.permute.xlu0 %2677
      %2680 = vset.pattern.permute.xlu0 4
      %2681 = vperm.xlu0 %2680, %v940
      %v2682 = vpop.permute.xlu0 %2681
      %2684 = vset.pattern.permute.xlu0 4
      %2685 = vperm.xlu0 %2684, %v945
      %v2686 = vpop.permute.xlu0 %2685
      %2688 = vset.pattern.permute.xlu0 4
      %2689 = vperm.xlu0 %2688, %v948
      %v2690 = vpop.permute.xlu0 %2689
      %2692 = vset.pattern.permute.xlu0 4
      %2693 = vperm.xlu0 %2692, %v953
      %v2694 = vpop.permute.xlu0 %2693
      %2696 = vset.pattern.permute.xlu0 4
      %2697 = vperm.xlu0 %2696, %v956
      %v2698 = vpop.permute.xlu0 %2697
      %2700 = vset.pattern.permute.xlu0 4
      %2701 = vperm.xlu0 %2700, %v961
      %v2702 = vpop.permute.xlu0 %2701
      %2704 = vset.pattern.permute.xlu0 4
      %2705 = vperm.xlu0 %2704, %v964
      %v2706 = vpop.permute.xlu0 %2705
      %2708 = vset.pattern.permute.xlu0 4
      %2709 = vperm.xlu0 %2708, %v969
      %v2710 = vpop.permute.xlu0 %2709
      %v2712 = vmul.f32 %v2613, %v2662
      %v2713 = vmul.f32 %v2617, %v2666
      %v2714 = vmul.f32 %v2621, %v2670
      %v2715 = vmul.f32 %v2625, %v2674
      %v2716 = vmul.f32 %v2629, %v2678
      %v2717 = vmul.f32 %v2633, %v2682
      %v2718 = vmul.f32 %v2637, %v2686
      %v2719 = vmul.f32 %v2641, %v2690
      %v2720 = vmul.f32 %v2645, %v2694
      %v2721 = vmul.f32 %v2649, %v2698
      %v2722 = vmul.f32 %v2653, %v2702
      %v2723 = vmul.f32 %v2657, %v2706
      %v2724 = vmul.f32 %v2659, %v2710
      %v2725 = vadd.f32 %v2597, %v2712
      %v2726 = vadd.f32 %v2598, %v2713
      %v2727 = vadd.f32 %v2599, %v2714
      %v2728 = vadd.f32 %v2600, %v2715
      %v2729 = vadd.f32 %v2601, %v2716
      %v2730 = vadd.f32 %v2602, %v2717
      %v2731 = vadd.f32 %v2603, %v2718
      %v2732 = vadd.f32 %v2604, %v2719
      %v2733 = vadd.f32 %v2605, %v2720
      %v2734 = vadd.f32 %v2606, %v2721
      %v2735 = vadd.f32 %v2607, %v2722
      %v2736 = vadd.f32 %v2608, %v2723
      %v2737 = vadd.f32 %v2609, %v2724
      %s2738 = scalar_lea.vmem [#allocation5], 5
      %v2739 = vld [vmem:[%s2738] ss:$8 sm:$0xf]
      %v2740 = vld [vmem:[%s2738] ss:$8 sm:$0xf0]
      %v2741 = vor.u32 %v2739, %v2740
      %s2742 = scalar_lea.vmem [#allocation5], 69
      %v2743 = vld [vmem:[%s2742] ss:$8 sm:$0xf]
      %v2744 = vld [vmem:[%s2742] ss:$8 sm:$0xf0]
      %v2745 = vor.u32 %v2743, %v2744
      %s2746 = scalar_lea.vmem [#allocation5], 133
      %v2747 = vld [vmem:[%s2746] ss:$8 sm:$0xf]
      %v2748 = vld [vmem:[%s2746] ss:$8 sm:$0xf0]
      %v2749 = vor.u32 %v2747, %v2748
      %s2750 = scalar_lea.vmem [#allocation5], 197
      %v2751 = vld [vmem:[%s2750] ss:$8 sm:$0xf]
      %v2752 = vld [vmem:[%s2750] ss:$8 sm:$0xf0]
      %v2753 = vor.u32 %v2751, %v2752
      %s2754 = scalar_lea.vmem [#allocation5], 261
      %v2755 = vld [vmem:[%s2754] ss:$8 sm:$0xf]
      %v2756 = vld [vmem:[%s2754] ss:$8 sm:$0xf0]
      %v2757 = vor.u32 %v2755, %v2756
      %s2758 = scalar_lea.vmem [#allocation5], 325
      %v2759 = vld [vmem:[%s2758] ss:$8 sm:$0xf]
      %v2760 = vld [vmem:[%s2758] ss:$8 sm:$0xf0]
      %v2761 = vor.u32 %v2759, %v2760
      %s2762 = scalar_lea.vmem [#allocation5], 389
      %v2763 = vld [vmem:[%s2762] ss:$8 sm:$0xf]
      %v2764 = vld [vmem:[%s2762] ss:$8 sm:$0xf0]
      %v2765 = vor.u32 %v2763, %v2764
      %s2766 = scalar_lea.vmem [#allocation5], 453
      %v2767 = vld [vmem:[%s2766] ss:$8 sm:$0xf]
      %v2768 = vld [vmem:[%s2766] ss:$8 sm:$0xf0]
      %v2769 = vor.u32 %v2767, %v2768
      %s2770 = scalar_lea.vmem [#allocation5], 517
      %v2771 = vld [vmem:[%s2770] ss:$8 sm:$0xf]
      %v2772 = vld [vmem:[%s2770] ss:$8 sm:$0xf0]
      %v2773 = vor.u32 %v2771, %v2772
      %s2774 = scalar_lea.vmem [#allocation5], 581
      %v2775 = vld [vmem:[%s2774] ss:$8 sm:$0xf]
      %v2776 = vld [vmem:[%s2774] ss:$8 sm:$0xf0]
      %v2777 = vor.u32 %v2775, %v2776
      %s2778 = scalar_lea.vmem [#allocation5], 645
      %v2779 = vld [vmem:[%s2778] ss:$8 sm:$0xf]
      %v2780 = vld [vmem:[%s2778] ss:$8 sm:$0xf0]
      %v2781 = vor.u32 %v2779, %v2780
      %s2782 = scalar_lea.vmem [#allocation5], 709
      %v2783 = vld [vmem:[%s2782] ss:$8 sm:$0xf]
      %v2784 = vld [vmem:[%s2782] ss:$8 sm:$0xf0]
      %v2785 = vor.u32 %v2783, %v2784
      %s2786 = scalar_lea.vmem [#allocation5], 773
      %v2787 = vld [vmem:[%s2786] ss:$8 sm:$0xf]
      %2788 = vset.pattern.permute.xlu0 5
      %2789 = vperm.xlu0 %2788, %v921
      %v2790 = vpop.permute.xlu0 %2789
      %2792 = vset.pattern.permute.xlu0 5
      %2793 = vperm.xlu0 %2792, %v924
      %v2794 = vpop.permute.xlu0 %2793
      %2796 = vset.pattern.permute.xlu0 5
      %2797 = vperm.xlu0 %2796, %v929
      %v2798 = vpop.permute.xlu0 %2797
      %2800 = vset.pattern.permute.xlu0 5
      %2801 = vperm.xlu0 %2800, %v932
      %v2802 = vpop.permute.xlu0 %2801
      %2804 = vset.pattern.permute.xlu0 5
      %2805 = vperm.xlu0 %2804, %v937
      %v2806 = vpop.permute.xlu0 %2805
      %2808 = vset.pattern.permute.xlu0 5
      %2809 = vperm.xlu0 %2808, %v940
      %v2810 = vpop.permute.xlu0 %2809
      %2812 = vset.pattern.permute.xlu0 5
      %2813 = vperm.xlu0 %2812, %v945
      %v2814 = vpop.permute.xlu0 %2813
      %2816 = vset.pattern.permute.xlu0 5
      %2817 = vperm.xlu0 %2816, %v948
      %v2818 = vpop.permute.xlu0 %2817
      %2820 = vset.pattern.permute.xlu0 5
      %2821 = vperm.xlu0 %2820, %v953
      %v2822 = vpop.permute.xlu0 %2821
      %2824 = vset.pattern.permute.xlu0 5
      %2825 = vperm.xlu0 %2824, %v956
      %v2826 = vpop.permute.xlu0 %2825
      %2828 = vset.pattern.permute.xlu0 5
      %2829 = vperm.xlu0 %2828, %v961
      %v2830 = vpop.permute.xlu0 %2829
      %2832 = vset.pattern.permute.xlu0 5
      %2833 = vperm.xlu0 %2832, %v964
      %v2834 = vpop.permute.xlu0 %2833
      %2836 = vset.pattern.permute.xlu0 5
      %2837 = vperm.xlu0 %2836, %v969
      %v2838 = vpop.permute.xlu0 %2837
      %v2840 = vmul.f32 %v2741, %v2790
      %v2841 = vmul.f32 %v2745, %v2794
      %v2842 = vmul.f32 %v2749, %v2798
      %v2843 = vmul.f32 %v2753, %v2802
      %v2844 = vmul.f32 %v2757, %v2806
      %v2845 = vmul.f32 %v2761, %v2810
      %v2846 = vmul.f32 %v2765, %v2814
      %v2847 = vmul.f32 %v2769, %v2818
      %v2848 = vmul.f32 %v2773, %v2822
      %v2849 = vmul.f32 %v2777, %v2826
      %v2850 = vmul.f32 %v2781, %v2830
      %v2851 = vmul.f32 %v2785, %v2834
      %v2852 = vmul.f32 %v2787, %v2838
      %v2853 = vadd.f32 %v2725, %v2840
      %v2854 = vadd.f32 %v2726, %v2841
      %v2855 = vadd.f32 %v2727, %v2842
      %v2856 = vadd.f32 %v2728, %v2843
      %v2857 = vadd.f32 %v2729, %v2844
      %v2858 = vadd.f32 %v2730, %v2845
      %v2859 = vadd.f32 %v2731, %v2846
      %v2860 = vadd.f32 %v2732, %v2847
      %v2861 = vadd.f32 %v2733, %v2848
      %v2862 = vadd.f32 %v2734, %v2849
      %v2863 = vadd.f32 %v2735, %v2850
      %v2864 = vadd.f32 %v2736, %v2851
      %v2865 = vadd.f32 %v2737, %v2852
      %s2866 = scalar_lea.vmem [#allocation5], 6
      %v2867 = vld [vmem:[%s2866] ss:$8 sm:$0xf]
      %v2868 = vld [vmem:[%s2866] ss:$8 sm:$0xf0]
      %v2869 = vor.u32 %v2867, %v2868
      %s2870 = scalar_lea.vmem [#allocation5], 70
      %v2871 = vld [vmem:[%s2870] ss:$8 sm:$0xf]
      %v2872 = vld [vmem:[%s2870] ss:$8 sm:$0xf0]
      %v2873 = vor.u32 %v2871, %v2872
      %s2874 = scalar_lea.vmem [#allocation5], 134
      %v2875 = vld [vmem:[%s2874] ss:$8 sm:$0xf]
      %v2876 = vld [vmem:[%s2874] ss:$8 sm:$0xf0]
      %v2877 = vor.u32 %v2875, %v2876
      %s2878 = scalar_lea.vmem [#allocation5], 198
      %v2879 = vld [vmem:[%s2878] ss:$8 sm:$0xf]
      %v2880 = vld [vmem:[%s2878] ss:$8 sm:$0xf0]
      %v2881 = vor.u32 %v2879, %v2880
      %s2882 = scalar_lea.vmem [#allocation5], 262
      %v2883 = vld [vmem:[%s2882] ss:$8 sm:$0xf]
      %v2884 = vld [vmem:[%s2882] ss:$8 sm:$0xf0]
      %v2885 = vor.u32 %v2883, %v2884
      %s2886 = scalar_lea.vmem [#allocation5], 326
      %v2887 = vld [vmem:[%s2886] ss:$8 sm:$0xf]
      %v2888 = vld [vmem:[%s2886] ss:$8 sm:$0xf0]
      %v2889 = vor.u32 %v2887, %v2888
      %s2890 = scalar_lea.vmem [#allocation5], 390
      %v2891 = vld [vmem:[%s2890] ss:$8 sm:$0xf]
      %v2892 = vld [vmem:[%s2890] ss:$8 sm:$0xf0]
      %v2893 = vor.u32 %v2891, %v2892
      %s2894 = scalar_lea.vmem [#allocation5], 454
      %v2895 = vld [vmem:[%s2894] ss:$8 sm:$0xf]
      %v2896 = vld [vmem:[%s2894] ss:$8 sm:$0xf0]
      %v2897 = vor.u32 %v2895, %v2896
      %s2898 = scalar_lea.vmem [#allocation5], 518
      %v2899 = vld [vmem:[%s2898] ss:$8 sm:$0xf]
      %v2900 = vld [vmem:[%s2898] ss:$8 sm:$0xf0]
      %v2901 = vor.u32 %v2899, %v2900
      %s2902 = scalar_lea.vmem [#allocation5], 582
      %v2903 = vld [vmem:[%s2902] ss:$8 sm:$0xf]
      %v2904 = vld [vmem:[%s2902] ss:$8 sm:$0xf0]
      %v2905 = vor.u32 %v2903, %v2904
      %s2906 = scalar_lea.vmem [#allocation5], 646
      %v2907 = vld [vmem:[%s2906] ss:$8 sm:$0xf]
      %v2908 = vld [vmem:[%s2906] ss:$8 sm:$0xf0]
      %v2909 = vor.u32 %v2907, %v2908
      %s2910 = scalar_lea.vmem [#allocation5], 710
      %v2911 = vld [vmem:[%s2910] ss:$8 sm:$0xf]
      %v2912 = vld [vmem:[%s2910] ss:$8 sm:$0xf0]
      %v2913 = vor.u32 %v2911, %v2912
      %s2914 = scalar_lea.vmem [#allocation5], 774
      %v2915 = vld [vmem:[%s2914] ss:$8 sm:$0xf]
      %2916 = vset.pattern.permute.xlu0 6
      %2917 = vperm.xlu0 %2916, %v921
      %v2918 = vpop.permute.xlu0 %2917
      %2920 = vset.pattern.permute.xlu0 6
      %2921 = vperm.xlu0 %2920, %v924
      %v2922 = vpop.permute.xlu0 %2921
      %2924 = vset.pattern.permute.xlu0 6
      %2925 = vperm.xlu0 %2924, %v929
      %v2926 = vpop.permute.xlu0 %2925
      %2928 = vset.pattern.permute.xlu0 6
      %2929 = vperm.xlu0 %2928, %v932
      %v2930 = vpop.permute.xlu0 %2929
      %2932 = vset.pattern.permute.xlu0 6
      %2933 = vperm.xlu0 %2932, %v937
      %v2934 = vpop.permute.xlu0 %2933
      %2936 = vset.pattern.permute.xlu0 6
      %2937 = vperm.xlu0 %2936, %v940
      %v2938 = vpop.permute.xlu0 %2937
      %2940 = vset.pattern.permute.xlu0 6
      %2941 = vperm.xlu0 %2940, %v945
      %v2942 = vpop.permute.xlu0 %2941
      %2944 = vset.pattern.permute.xlu0 6
      %2945 = vperm.xlu0 %2944, %v948
      %v2946 = vpop.permute.xlu0 %2945
      %2948 = vset.pattern.permute.xlu0 6
      %2949 = vperm.xlu0 %2948, %v953
      %v2950 = vpop.permute.xlu0 %2949
      %2952 = vset.pattern.permute.xlu0 6
      %2953 = vperm.xlu0 %2952, %v956
      %v2954 = vpop.permute.xlu0 %2953
      %2956 = vset.pattern.permute.xlu0 6
      %2957 = vperm.xlu0 %2956, %v961
      %v2958 = vpop.permute.xlu0 %2957
      %2960 = vset.pattern.permute.xlu0 6
      %2961 = vperm.xlu0 %2960, %v964
      %v2962 = vpop.permute.xlu0 %2961
      %2964 = vset.pattern.permute.xlu0 6
      %2965 = vperm.xlu0 %2964, %v969
      %v2966 = vpop.permute.xlu0 %2965
      %v2968 = vmul.f32 %v2869, %v2918
      %v2969 = vmul.f32 %v2873, %v2922
      %v2970 = vmul.f32 %v2877, %v2926
      %v2971 = vmul.f32 %v2881, %v2930
      %v2972 = vmul.f32 %v2885, %v2934
      %v2973 = vmul.f32 %v2889, %v2938
      %v2974 = vmul.f32 %v2893, %v2942
      %v2975 = vmul.f32 %v2897, %v2946
      %v2976 = vmul.f32 %v2901, %v2950
      %v2977 = vmul.f32 %v2905, %v2954
      %v2978 = vmul.f32 %v2909, %v2958
      %v2979 = vmul.f32 %v2913, %v2962
      %v2980 = vmul.f32 %v2915, %v2966
      %v2981 = vadd.f32 %v2853, %v2968
      %v2982 = vadd.f32 %v2854, %v2969
      %v2983 = vadd.f32 %v2855, %v2970
      %v2984 = vadd.f32 %v2856, %v2971
      %v2985 = vadd.f32 %v2857, %v2972
      %v2986 = vadd.f32 %v2858, %v2973
      %v2987 = vadd.f32 %v2859, %v2974
      %v2988 = vadd.f32 %v2860, %v2975
      %v2989 = vadd.f32 %v2861, %v2976
      %v2990 = vadd.f32 %v2862, %v2977
      %v2991 = vadd.f32 %v2863, %v2978
      %v2992 = vadd.f32 %v2864, %v2979
      %v2993 = vadd.f32 %v2865, %v2980
      %s2994 = scalar_lea.vmem [#allocation5], 7
      %v2995 = vld [vmem:[%s2994] ss:$8 sm:$0xf]
      %v2996 = vld [vmem:[%s2994] ss:$8 sm:$0xf0]
      %v2997 = vor.u32 %v2995, %v2996
      %s2998 = scalar_lea.vmem [#allocation5], 71
      %v2999 = vld [vmem:[%s2998] ss:$8 sm:$0xf]
      %v3000 = vld [vmem:[%s2998] ss:$8 sm:$0xf0]
      %v3001 = vor.u32 %v2999, %v3000
      %s3002 = scalar_lea.vmem [#allocation5], 135
      %v3003 = vld [vmem:[%s3002] ss:$8 sm:$0xf]
      %v3004 = vld [vmem:[%s3002] ss:$8 sm:$0xf0]
      %v3005 = vor.u32 %v3003, %v3004
      %s3006 = scalar_lea.vmem [#allocation5], 199
      %v3007 = vld [vmem:[%s3006] ss:$8 sm:$0xf]
      %v3008 = vld [vmem:[%s3006] ss:$8 sm:$0xf0]
      %v3009 = vor.u32 %v3007, %v3008
      %s3010 = scalar_lea.vmem [#allocation5], 263
      %v3011 = vld [vmem:[%s3010] ss:$8 sm:$0xf]
      %v3012 = vld [vmem:[%s3010] ss:$8 sm:$0xf0]
      %v3013 = vor.u32 %v3011, %v3012
      %s3014 = scalar_lea.vmem [#allocation5], 327
      %v3015 = vld [vmem:[%s3014] ss:$8 sm:$0xf]
      %v3016 = vld [vmem:[%s3014] ss:$8 sm:$0xf0]
      %v3017 = vor.u32 %v3015, %v3016
      %s3018 = scalar_lea.vmem [#allocation5], 391
      %v3019 = vld [vmem:[%s3018] ss:$8 sm:$0xf]
      %v3020 = vld [vmem:[%s3018] ss:$8 sm:$0xf0]
      %v3021 = vor.u32 %v3019, %v3020
      %s3022 = scalar_lea.vmem [#allocation5], 455
      %v3023 = vld [vmem:[%s3022] ss:$8 sm:$0xf]
      %v3024 = vld [vmem:[%s3022] ss:$8 sm:$0xf0]
      %v3025 = vor.u32 %v3023, %v3024
      %s3026 = scalar_lea.vmem [#allocation5], 519
      %v3027 = vld [vmem:[%s3026] ss:$8 sm:$0xf]
      %v3028 = vld [vmem:[%s3026] ss:$8 sm:$0xf0]
      %v3029 = vor.u32 %v3027, %v3028
      %s3030 = scalar_lea.vmem [#allocation5], 583
      %v3031 = vld [vmem:[%s3030] ss:$8 sm:$0xf]
      %v3032 = vld [vmem:[%s3030] ss:$8 sm:$0xf0]
      %v3033 = vor.u32 %v3031, %v3032
      %s3034 = scalar_lea.vmem [#allocation5], 647
      %v3035 = vld [vmem:[%s3034] ss:$8 sm:$0xf]
      %v3036 = vld [vmem:[%s3034] ss:$8 sm:$0xf0]
      %v3037 = vor.u32 %v3035, %v3036
      %s3038 = scalar_lea.vmem [#allocation5], 711
      %v3039 = vld [vmem:[%s3038] ss:$8 sm:$0xf]
      %v3040 = vld [vmem:[%s3038] ss:$8 sm:$0xf0]
      %v3041 = vor.u32 %v3039, %v3040
      %s3042 = scalar_lea.vmem [#allocation5], 775
      %v3043 = vld [vmem:[%s3042] ss:$8 sm:$0xf]
      %3044 = vset.pattern.permute.xlu0 7
      %3045 = vperm.xlu0 %3044, %v921
      %v3046 = vpop.permute.xlu0 %3045
      %3048 = vset.pattern.permute.xlu0 7
      %3049 = vperm.xlu0 %3048, %v924
      %v3050 = vpop.permute.xlu0 %3049
      %3052 = vset.pattern.permute.xlu0 7
      %3053 = vperm.xlu0 %3052, %v929
      %v3054 = vpop.permute.xlu0 %3053
      %3056 = vset.pattern.permute.xlu0 7
      %3057 = vperm.xlu0 %3056, %v932
      %v3058 = vpop.permute.xlu0 %3057
      %3060 = vset.pattern.permute.xlu0 7
      %3061 = vperm.xlu0 %3060, %v937
      %v3062 = vpop.permute.xlu0 %3061
      %3064 = vset.pattern.permute.xlu0 7
      %3065 = vperm.xlu0 %3064, %v940
      %v3066 = vpop.permute.xlu0 %3065
      %3068 = vset.pattern.permute.xlu0 7
      %3069 = vperm.xlu0 %3068, %v945
      %v3070 = vpop.permute.xlu0 %3069
      %3072 = vset.pattern.permute.xlu0 7
      %3073 = vperm.xlu0 %3072, %v948
      %v3074 = vpop.permute.xlu0 %3073
      %3076 = vset.pattern.permute.xlu0 7
      %3077 = vperm.xlu0 %3076, %v953
      %v3078 = vpop.permute.xlu0 %3077
      %3080 = vset.pattern.permute.xlu0 7
      %3081 = vperm.xlu0 %3080, %v956
      %v3082 = vpop.permute.xlu0 %3081
      %3084 = vset.pattern.permute.xlu0 7
      %3085 = vperm.xlu0 %3084, %v961
      %v3086 = vpop.permute.xlu0 %3085
      %3088 = vset.pattern.permute.xlu0 7
      %3089 = vperm.xlu0 %3088, %v964
      %v3090 = vpop.permute.xlu0 %3089
      %3092 = vset.pattern.permute.xlu0 7
      %3093 = vperm.xlu0 %3092, %v969
      %v3094 = vpop.permute.xlu0 %3093
      %v3096 = vmul.f32 %v2997, %v3046
      %v3097 = vmul.f32 %v3001, %v3050
      %v3098 = vmul.f32 %v3005, %v3054
      %v3099 = vmul.f32 %v3009, %v3058
      %v3100 = vmul.f32 %v3013, %v3062
      %v3101 = vmul.f32 %v3017, %v3066
      %v3102 = vmul.f32 %v3021, %v3070
      %v3103 = vmul.f32 %v3025, %v3074
      %v3104 = vmul.f32 %v3029, %v3078
      %v3105 = vmul.f32 %v3033, %v3082
      %v3106 = vmul.f32 %v3037, %v3086
      %v3107 = vmul.f32 %v3041, %v3090
      %v3108 = vmul.f32 %v3043, %v3094
      %v3109 = vadd.f32 %v2981, %v3096
      %v3110 = vadd.f32 %v2982, %v3097
      %v3111 = vadd.f32 %v2983, %v3098
      %v3112 = vadd.f32 %v2984, %v3099
      %v3113 = vadd.f32 %v2985, %v3100
      %v3114 = vadd.f32 %v2986, %v3101
      %v3115 = vadd.f32 %v2987, %v3102
      %v3116 = vadd.f32 %v2988, %v3103
      %v3117 = vadd.f32 %v2989, %v3104
      %v3118 = vadd.f32 %v2990, %v3105
      %v3119 = vadd.f32 %v2991, %v3106
      %v3120 = vadd.f32 %v2992, %v3107
      %v3121 = vadd.f32 %v2993, %v3108
      %v3122 = vld [vmem:[%s7] sm:$0x1]
      %v3124 = vlaneseq
      %v3125 = vshrl.u32 %v3124, 7
      %v3126 = vsub.s32 0, %v3125
      %v3127 = vrot.slane %v3122, %v3126
      %v3129 = vmul.f32 %v3127, %v401
      %v3130 = vmul.f32 %v3127, %v402
      %v3131 = vmul.f32 %v3127, %v403
      %v3132 = vmul.f32 %v3127, %v404
      %v3133 = vmul.f32 %v3127, %v405
      %v3134 = vmul.f32 %v3127, %v406
      %v3135 = vmul.f32 %v3127, %v407
      %v3136 = vmul.f32 %v3127, %v408
      %v3137 = vmul.f32 %v3127, %v409
      %v3138 = vmul.f32 %v3127, %v410
      %v3139 = vmul.f32 %v3127, %v411
      %v3140 = vmul.f32 %v3127, %v412
      %v3141 = vmul.f32 %v3127, %v413
      %v3142 = vadd.f32 %v3109, %v3129
      %v3143 = vadd.f32 %v3110, %v3130
      %v3144 = vadd.f32 %v3111, %v3131
      %v3145 = vadd.f32 %v3112, %v3132
      %v3146 = vadd.f32 %v3113, %v3133
      %v3147 = vadd.f32 %v3114, %v3134
      %v3148 = vadd.f32 %v3115, %v3135
      %v3149 = vadd.f32 %v3116, %v3136
      %v3150 = vadd.f32 %v3117, %v3137
      %v3151 = vadd.f32 %v3118, %v3138
      %v3152 = vadd.f32 %v3119, %v3139
      %v3153 = vadd.f32 %v3120, %v3140
      %v3154 = vadd.f32 %v3121, %v3141
      %v3155 = vxor.u32 %v427, 2147483648
      %v3156 = vxor.u32 %v428, 2147483648
      %v3157 = vxor.u32 %v429, 2147483648
      %v3158 = vxor.u32 %v430, 2147483648
      %v3159 = vxor.u32 %v431, 2147483648
      %v3160 = vxor.u32 %v432, 2147483648
      %v3161 = vxor.u32 %v433, 2147483648
      %v3162 = vxor.u32 %v434, 2147483648
      %v3163 = vxor.u32 %v435, 2147483648
      %v3164 = vxor.u32 %v436, 2147483648
      %v3165 = vxor.u32 %v437, 2147483648
      %v3166 = vxor.u32 %v438, 2147483648
      %v3167 = vxor.u32 %v439, 2147483648
      %v3168 = vmul.f32 %v3155, 1.442695
      %v3169 = vpow.pop %v3168
      %v3170 = vmul.f32 %v3156, 1.442695
      %v3171 = vpow.pop %v3170
      %v3172 = vmul.f32 %v3157, 1.442695
      %v3173 = vpow.pop %v3172
      %v3174 = vmul.f32 %v3158, 1.442695
      %v3175 = vpow.pop %v3174
      %v3176 = vmul.f32 %v3159, 1.442695
      %v3177 = vpow.pop %v3176
      %v3178 = vmul.f32 %v3160, 1.442695
      %v3179 = vpow.pop %v3178
      %v3180 = vmul.f32 %v3161, 1.442695
      %v3181 = vpow.pop %v3180
      %v3182 = vmul.f32 %v3162, 1.442695
      %v3183 = vpow.pop %v3182
      %v3184 = vmul.f32 %v3163, 1.442695
      %v3185 = vpow.pop %v3184
      %v3186 = vmul.f32 %v3164, 1.442695
      %v3187 = vpow.pop %v3186
      %v3188 = vmul.f32 %v3165, 1.442695
      %v3189 = vpow.pop %v3188
      %v3190 = vmul.f32 %v3166, 1.442695
      %v3191 = vpow.pop %v3190
      %v3192 = vmul.f32 %v3167, 1.442695
      %v3193 = vpow.pop %v3192
      %v3194 = vadd.f32 %v3169, 1.0
      %v3195 = vadd.f32 %v3171, 1.0
      %v3196 = vadd.f32 %v3173, 1.0
      %v3197 = vadd.f32 %v3175, 1.0
      %v3198 = vadd.f32 %v3177, 1.0
      %v3199 = vadd.f32 %v3179, 1.0
      %v3200 = vadd.f32 %v3181, 1.0
      %v3201 = vadd.f32 %v3183, 1.0
      %v3202 = vadd.f32 %v3185, 1.0
      %v3203 = vadd.f32 %v3187, 1.0
      %v3204 = vadd.f32 %v3189, 1.0
      %v3205 = vadd.f32 %v3191, 1.0
      %v3206 = vadd.f32 %v3193, 1.0
      %v3207 = vrcp.pop %v3194
      %v3208 = vmul.f32 1.0, %v3207
      %v3209 = vrcp.pop %v3195
      %v3210 = vmul.f32 1.0, %v3209
      %v3211 = vrcp.pop %v3196
      %v3212 = vmul.f32 1.0, %v3211
      %v3213 = vrcp.pop %v3197
      %v3214 = vmul.f32 1.0, %v3213
      %v3215 = vrcp.pop %v3198
      %v3216 = vmul.f32 1.0, %v3215
      %v3217 = vrcp.pop %v3199
      %v3218 = vmul.f32 1.0, %v3217
      %v3219 = vrcp.pop %v3200
      %v3220 = vmul.f32 1.0, %v3219
      %v3221 = vrcp.pop %v3201
      %v3222 = vmul.f32 1.0, %v3221
      %v3223 = vrcp.pop %v3202
      %v3224 = vmul.f32 1.0, %v3223
      %v3225 = vrcp.pop %v3203
      %v3226 = vmul.f32 1.0, %v3225
      %v3227 = vrcp.pop %v3204
      %v3228 = vmul.f32 1.0, %v3227
      %v3229 = vrcp.pop %v3205
      %v3230 = vmul.f32 1.0, %v3229
      %v3231 = vrcp.pop %v3206
      %v3232 = vmul.f32 1.0, %v3231
      %v3233 = vmul.f32 %v427, %v3208
      %v3234 = vmul.f32 %v428, %v3210
      %v3235 = vmul.f32 %v429, %v3212
      %v3236 = vmul.f32 %v430, %v3214
      %v3237 = vmul.f32 %v431, %v3216
      %v3238 = vmul.f32 %v432, %v3218
      %v3239 = vmul.f32 %v433, %v3220
      %v3240 = vmul.f32 %v434, %v3222
      %v3241 = vmul.f32 %v435, %v3224
      %v3242 = vmul.f32 %v436, %v3226
      %v3243 = vmul.f32 %v437, %v3228
      %v3244 = vmul.f32 %v438, %v3230
      %v3245 = vmul.f32 %v439, %v3232
      %v3246 = vmul.f32 %v3142, %v3233
      %v3247 = vmul.f32 %v3143, %v3234
      %v3248 = vmul.f32 %v3144, %v3235
      %v3249 = vmul.f32 %v3145, %v3236
      %v3250 = vmul.f32 %v3146, %v3237
      %v3251 = vmul.f32 %v3147, %v3238
      %v3252 = vmul.f32 %v3148, %v3239
      %v3253 = vmul.f32 %v3149, %v3240
      %v3254 = vmul.f32 %v3150, %v3241
      %v3255 = vmul.f32 %v3151, %v3242
      %v3256 = vmul.f32 %v3152, %v3243
      %v3257 = vmul.f32 %v3153, %v3244
      %v3258 = vmul.f32 %v3154, %v3245
      %v3259 = vpack.c.bf16 %v3247, %v3246
      %v3260 = vpack.c.bf16 %v3249, %v3248
      %v3261 = vpack.c.bf16 %v3251, %v3250
      %v3262 = vpack.c.bf16 %v3253, %v3252
      %v3263 = vpack.c.bf16 %v3255, %v3254
      %v3264 = vpack.c.bf16 %v3257, %v3256
      %v3265 = vpack.c.bf16 %v3258, %v3258
      %v3273 = vunpack.c.l.b16 %v3259
      %v3274 = vunpack.c.h.b16 %v3259
      %v3275 = vunpack.c.l.b16 %v3260
      %v3276 = vunpack.c.h.b16 %v3260
      %v3277 = vunpack.c.l.b16 %v3261
      %v3278 = vunpack.c.h.b16 %v3261
      %v3279 = vunpack.c.l.b16 %v3262
      %v3280 = vunpack.c.h.b16 %v3262
      %v3281 = vunpack.c.l.b16 %v3263
      %v3282 = vunpack.c.h.b16 %v3263
      %v3283 = vunpack.c.l.b16 %v3264
      %v3284 = vunpack.c.h.b16 %v3264
      %v3285 = vunpack.c.l.b16 %v3265
      %v3286 = vpack.c.b16 %v3273, %v3273
      %v3287 = vpack.c.b16 %v3274, %v3274
      %v3288 = vpack.c.b16 %v3275, %v3275
      %v3289 = vpack.c.b16 %v3276, %v3276
      %v3290 = vpack.c.b16 %v3277, %v3277
      %v3291 = vpack.c.b16 %v3278, %v3278
      %v3292 = vpack.c.b16 %v3279, %v3279
      %v3293 = vpack.c.b16 %v3280, %v3280
      %v3294 = vpack.c.b16 %v3281, %v3281
      %v3295 = vpack.c.b16 %v3282, %v3282
      %v3296 = vpack.c.b16 %v3283, %v3283
      %v3297 = vpack.c.b16 %v3284, %v3284
      %v3298 = vpack.c.b16 %v3285, %v3285
      %3312 = vst.msk [vmem:[%s379] sm:$0xf] %vm1043, %v3286
      %3313 = vst.msk [vmem:[%s379 + $0x4] sm:$0xf] %vm1043, %v3287
      %3314 = vst.msk [vmem:[%s379 + $0x8] sm:$0xf] %vm1043, %v3288
      %3315 = vst.msk [vmem:[%s379 + $0xc] sm:$0xf] %vm1043, %v3289
      %3316 = vst.msk [vmem:[%s379 + $0x10] sm:$0xf] %vm1043, %v3290
      %3317 = vst.msk [vmem:[%s379 + $0x14] sm:$0xf] %vm1043, %v3291
      %3318 = vst.msk [vmem:[%s379 + $0x18] sm:$0xf] %vm1043, %v3292
      %3319 = vst.msk [vmem:[%s379 + $0x1c] sm:$0xf] %vm1043, %v3293
      %3320 = vst.msk [vmem:[%s379 + $0x20] sm:$0xf] %vm1043, %v3294
      %3321 = vst.msk [vmem:[%s379 + $0x24] sm:$0xf] %vm1043, %v3295
      %3322 = vst.msk [vmem:[%s379 + $0x28] sm:$0xf] %vm1043, %v3296
      %3323 = vst.msk [vmem:[%s379 + $0x2c] sm:$0xf] %vm1043, %v3297
      %vm3324 = vcmask 58368
      %3325 = vst.msk [vmem:[%s379 + $0x30] sm:$0x3] %vm3324, %v3298
      %s3326 = smul.u32 13, %s24
      %p3327 = scmp.lt.s32.totalorder %s23, 1
      %s3328 = scalar_select %p3327, %s23, 1
      %p3329 = scmp.lt.s32.totalorder %s3326, 12
      %s3330 = scalar_select %p3329, %s3326, 12
      %s3331 = smul.addr %s3328, 13
      %s3332 = sadd.s32 %s3330, %s3331
      %s3333 = smul.addr %s3332, 4
      %s3334 = scalar_lea.vmem %s8, %s3333
      // Predicated region
      $region64: #{mamba_block_forward.22} parent=51 // pred_check
        %p3335 = pneg %p233
      $region65: #{mamba_block_forward.22} parent=51 // pred_check_branch
        %3337 = sbr.rel (%p3335) target = $region67
      $region66: #{mamba_block_forward.22} parent=51 // pred_region
        %s3338 = smul.u32 13, %s24
      $region67: #{mamba_block_forward.22} parent=51 // pred_fallthru
        _
    $region52: #{mamba_block_forward.22} parent=5 // pred_fallthru
      _
    %p3339 = scmp.le.s32.totalorder 2, %s14
    // Predicated region
    $region68: #{mamba_block_forward.22} parent=5 // pred_check
      %p3340 = pneg %p3339
    $region69: #{mamba_block_forward.22} parent=5 // pred_check_branch
      %3342 = sbr.rel (%p3340) target = $region71
    $region70: #{mamba_block_forward.22} parent=5 // pred_region
      %s3343 = ssub.s32 %s14, 2
      // Predicated region
      $region72: #{mamba_block_forward.22} parent=70 // pred_check
        %p3344 = pneg %p239
      $region73: #{mamba_block_forward.22} parent=70 // pred_check_branch
        %3346 = sbr.rel (%p3344) target = $region75
      $region74: #{mamba_block_forward.22} parent=70 // pred_region
        %s3347 = smul.u32 13, %s26
        %p3348 = scmp.lt.s32.totalorder %s25, 1
        %s3349 = scalar_select %p3348, %s25, 1
        %p3350 = scmp.lt.s32.totalorder %s3347, 12
        %s3351 = scalar_select %p3350, %s3347, 12
        %s3352 = smul.addr %s3349, 13
        %s3353 = sadd.s32 %s3351, %s3352
        %s3354 = smul.addr %s3353, 4
        %s3355 = scalar_lea.vmem %s8, %s3354
      $region75: #{mamba_block_forward.22} parent=70 // pred_fallthru
        _
    $region71: #{mamba_block_forward.22} parent=5 // pred_fallthru
      _
  $region6: #{mamba_block_forward.22} parent=0 // loop_footer
    %s18 = sadd.s32 1, %s14
  $region7: #{mamba_block_forward.22} parent=0 // loop_footer_branch
    %13 = sbr.rel target = $region3
  $region8: #{mamba_block_forward.22} parent=0 // loop_exit
    _

// kernel: mamba_block_forward.27
$region0: #{mamba_block_forward.27}
  #allocation0 [shape = 'u32[]', space=smem, size = 0x4, offset = 0x4, fixed_abs, tag = 'smem constant byte address 0x4 - core index']
  #allocation1 [shape = 'u32[144,128]{1,0:T(1,128)}', space=vmem, size = 0x12000, scoped, tag = 'internal scratch']
  #allocation2 [shape = 'f32[2,8]{1,0:T(2,128)}', space=vmem, size = 0x400, scoped, tag = 'scratch operand']
  #allocation3 [shape = 'f32[50,8]{1,0:T(8,128)}', space=vmem, size = 0x7000, scoped, tag = 'scratch operand']
  #allocation4 [shape = 'f32[50,8]{1,0:T(8,128)}', space=vmem, size = 0x7000, scoped, tag = 'scratch operand']
  #allocation5 [shape = 'f32[50,8]{1,0:T(8,128)}', space=vmem, size = 0x7000, scoped, tag = 'scratch operand']
  %s0 = inlined_call_operand.vmem [shape: bf16[8,25,8], index: 0, kind: input, shape index: {}]
  %s1 = inlined_call_operand.vmem [shape: bf16[8,25,8], index: 1, kind: input, shape index: {}]
  %s2 = inlined_call_operand.vmem [shape: bf16[8,8], index: 2, kind: input, shape index: {}]
  %s3 = inlined_call_operand.vmem [shape: f32[1,8], index: 3, kind: input, shape index: {}]
  %s4 = inlined_call_operand.vmem [shape: bf16[8,2], index: 4, kind: input, shape index: {}]
  %s5 = inlined_call_operand.vmem [shape: bf16[8,2], index: 5, kind: input, shape index: {}]
  %s6 = inlined_call_operand.vmem [shape: f32[2,8], index: 6, kind: input, shape index: {}]
  %s7 = inlined_call_operand.vmem [shape: f32[1,8], index: 7, kind: input, shape index: {}]
  %s8 = inlined_call_operand.vmem [shape: bf16[8,25,8], index: 8, kind: output, shape index: {}]
  %s9 = sld [smem:[#allocation0]]
  $region76: #{mamba_block_forward.27} parent=0
    _
  %s11 = ssub.s32 1, %s9
  %s12 = scalar_select 0, %s11, %s9
  loop: start=0, step=1, limit=10
  $region2: #{mamba_block_forward.27} parent=0 // loop_pre_header
    _
  $region3: #{mamba_block_forward.27} parent=0 // loop_header
    %s14 = sphi 0, %s18
    %p15 = scmp.ge.s32.totalorder %s14, 10
    %s21 = sphi 0, %s33
    %s22 = sphi 0, %s29
    %s23 = sphi 0, %s21
    %s24 = sphi 0, %s22
    %s25 = sphi 0, %s23
    %s26 = sphi 0, %s24
    %s38 = sphi 0, %s40
    %s41 = sphi 0, %s38
    %s42 = sphi 0, %s41
    %s58 = sphi 0, %s42
    %s66 = sphi 0, %s68
    %s69 = sphi 0, %s66
    %s70 = sphi 0, %s69
    %s86 = sphi 0, %s70
    %s90 = sphi 0, %s90
    %s92 = sphi 0, %s90
    %s93 = sphi 0, %s92
    %s107 = sphi 0, %s93
    %s111 = sphi 0, %s111
    %s113 = sphi 0, %s111
    %s114 = sphi 0, %s113
    %s128 = sphi 0, %s114
    %s132 = sphi 0, %s132
    %s134 = sphi 0, %s132
    %s135 = sphi 0, %s134
    %s149 = sphi 0, %s135
    %s153 = sphi 0, %s153
    %s155 = sphi 0, %s153
    %s156 = sphi 0, %s155
    %s170 = sphi 0, %s156
    %s174 = sphi 0, %s174
    %s176 = sphi 0, %s174
    %s177 = sphi 0, %s176
    %s191 = sphi 0, %s177
    %s195 = sphi 0, %s195
    %s197 = sphi 0, %s195
    %s198 = sphi 0, %s197
    %s212 = sphi 0, %s198
    %s220 = sphi 0, %s222
    %s223 = sphi 0, %s220
    %s224 = sphi 0, %s223
    %s240 = sphi 0, %s224
  $region4: #{mamba_block_forward.27} parent=0 // loop_header_branch
    %17 = sbr.rel (%p15) target = $region8
  $region5: #{mamba_block_forward.27} parent=0 // loop_body
    %s19 = ssub.s32 %s14, 1
    %s20 = ssub.s32 %s14, 2
    %s27 = sadd.s32 1, %s22
    %p28 = scmp.ge.s32.totalorder %s27, 1
    %s29 = scalar_select %p28, 0, %s27
    %s30 = sadd.s32 1, %s21
    %s31 = scalar_select %p28, %s30, %s21
    %p32 = scmp.ge.s32.totalorder %s31, 8
    %s33 = scalar_select %p32, 0, %s31
    %s34 = ssub.s32 %s21, %s33
    %s35 = ssub.s32 %s22, %s29
    %s36 = sor.u32 %s34, %s35
    %p37 = scmp.eq.s32.totalorder %s36, 0
    %s39 = sadd.s32 %s38, 1
    %s40 = scalar_select %p37, %s38, %s39
    %p43 = pneg %p37
    %p44 = scmp.eq.s32.totalorder %s14, 7
    %p45 = por %p43, %p44
    %p46 = scmp.ne.s32.totalorder %s38, %s41
    %p47 = scmp.eq.s32.totalorder %s14, 0
    %p48 = por %p46, %p47
    %p49 = scmp.ne.s32.totalorder %s38, %s41
    %p50 = scmp.eq.s32.totalorder %s19, 7
    %p51 = por %p49, %p50
    %p52 = scmp.ne.s32.totalorder %s41, %s42
    %p53 = scmp.eq.s32.totalorder %s19, 0
    %p54 = por %p52, %p53
    %p55 = scmp.ne.s32.totalorder %s41, %s42
    %p56 = scmp.eq.s32.totalorder %s20, 7
    %p57 = por %p55, %p56
    %p59 = scmp.ne.s32.totalorder %s42, %s58
    %p60 = scmp.eq.s32.totalorder %s20, 0
    %p61 = por %p59, %p60
    %s62 = ssub.s32 %s21, %s33
    %s63 = ssub.s32 %s22, %s29
    %s64 = sor.u32 %s62, %s63
    %p65 = scmp.eq.s32.totalorder %s64, 0
    %s67 = sadd.s32 %s66, 1
    %s68 = scalar_select %p65, %s66, %s67
    %p71 = pneg %p65
    %p72 = scmp.eq.s32.totalorder %s14, 7
    %p73 = por %p71, %p72
    %p74 = scmp.ne.s32.totalorder %s66, %s69
    %p75 = scmp.eq.s32.totalorder %s14, 0
    %p76 = por %p74, %p75
    %p77 = scmp.ne.s32.totalorder %s66, %s69
    %p78 = scmp.eq.s32.totalorder %s19, 7
    %p79 = por %p77, %p78
    %p80 = scmp.ne.s32.totalorder %s69, %s70
    %p81 = scmp.eq.s32.totalorder %s19, 0
    %p82 = por %p80, %p81
    %p83 = scmp.ne.s32.totalorder %s69, %s70
    %p84 = scmp.eq.s32.totalorder %s20, 7
    %p85 = por %p83, %p84
    %p87 = scmp.ne.s32.totalorder %s70, %s86
    %p88 = scmp.eq.s32.totalorder %s20, 0
    %p89 = por %p87, %p88
    %s91 = sadd.s32 %s90, 1
    %p94 = scmp.eq.s32.totalorder %s14, 7
    %p95 = scmp.ne.s32.totalorder %s90, %s92
    %p96 = scmp.eq.s32.totalorder %s14, 0
    %p97 = por %p95, %p96
    %p98 = scmp.ne.s32.totalorder %s90, %s92
    %p99 = scmp.eq.s32.totalorder %s19, 7
    %p100 = por %p98, %p99
    %p101 = scmp.ne.s32.totalorder %s92, %s93
    %p102 = scmp.eq.s32.totalorder %s19, 0
    %p103 = por %p101, %p102
    %p104 = scmp.ne.s32.totalorder %s92, %s93
    %p105 = scmp.eq.s32.totalorder %s20, 7
    %p106 = por %p104, %p105
    %p108 = scmp.ne.s32.totalorder %s93, %s107
    %p109 = scmp.eq.s32.totalorder %s20, 0
    %p110 = por %p108, %p109
    %s112 = sadd.s32 %s111, 1
    %p115 = scmp.eq.s32.totalorder %s14, 7
    %p116 = scmp.ne.s32.totalorder %s111, %s113
    %p117 = scmp.eq.s32.totalorder %s14, 0
    %p118 = por %p116, %p117
    %p119 = scmp.ne.s32.totalorder %s111, %s113
    %p120 = scmp.eq.s32.totalorder %s19, 7
    %p121 = por %p119, %p120
    %p122 = scmp.ne.s32.totalorder %s113, %s114
    %p123 = scmp.eq.s32.totalorder %s19, 0
    %p124 = por %p122, %p123
    %p125 = scmp.ne.s32.totalorder %s113, %s114
    %p126 = scmp.eq.s32.totalorder %s20, 7
    %p127 = por %p125, %p126
    %p129 = scmp.ne.s32.totalorder %s114, %s128
    %p130 = scmp.eq.s32.totalorder %s20, 0
    %p131 = por %p129, %p130
    %s133 = sadd.s32 %s132, 1
    %p136 = scmp.eq.s32.totalorder %s14, 7
    %p137 = scmp.ne.s32.totalorder %s132, %s134
    %p138 = scmp.eq.s32.totalorder %s14, 0
    %p139 = por %p137, %p138
    %p140 = scmp.ne.s32.totalorder %s132, %s134
    %p141 = scmp.eq.s32.totalorder %s19, 7
    %p142 = por %p140, %p141
    %p143 = scmp.ne.s32.totalorder %s134, %s135
    %p144 = scmp.eq.s32.totalorder %s19, 0
    %p145 = por %p143, %p144
    %p146 = scmp.ne.s32.totalorder %s134, %s135
    %p147 = scmp.eq.s32.totalorder %s20, 7
    %p148 = por %p146, %p147
    %p150 = scmp.ne.s32.totalorder %s135, %s149
    %p151 = scmp.eq.s32.totalorder %s20, 0
    %p152 = por %p150, %p151
    %s154 = sadd.s32 %s153, 1
    %p157 = scmp.eq.s32.totalorder %s14, 7
    %p158 = scmp.ne.s32.totalorder %s153, %s155
    %p159 = scmp.eq.s32.totalorder %s14, 0
    %p160 = por %p158, %p159
    %p161 = scmp.ne.s32.totalorder %s153, %s155
    %p162 = scmp.eq.s32.totalorder %s19, 7
    %p163 = por %p161, %p162
    %p164 = scmp.ne.s32.totalorder %s155, %s156
    %p165 = scmp.eq.s32.totalorder %s19, 0
    %p166 = por %p164, %p165
    %p167 = scmp.ne.s32.totalorder %s155, %s156
    %p168 = scmp.eq.s32.totalorder %s20, 7
    %p169 = por %p167, %p168
    %p171 = scmp.ne.s32.totalorder %s156, %s170
    %p172 = scmp.eq.s32.totalorder %s20, 0
    %p173 = por %p171, %p172
    %s175 = sadd.s32 %s174, 1
    %p178 = scmp.eq.s32.totalorder %s14, 7
    %p179 = scmp.ne.s32.totalorder %s174, %s176
    %p180 = scmp.eq.s32.totalorder %s14, 0
    %p181 = por %p179, %p180
    %p182 = scmp.ne.s32.totalorder %s174, %s176
    %p183 = scmp.eq.s32.totalorder %s19, 7
    %p184 = por %p182, %p183
    %p185 = scmp.ne.s32.totalorder %s176, %s177
    %p186 = scmp.eq.s32.totalorder %s19, 0
    %p187 = por %p185, %p186
    %p188 = scmp.ne.s32.totalorder %s176, %s177
    %p189 = scmp.eq.s32.totalorder %s20, 7
    %p190 = por %p188, %p189
    %p192 = scmp.ne.s32.totalorder %s177, %s191
    %p193 = scmp.eq.s32.totalorder %s20, 0
    %p194 = por %p192, %p193
    %s196 = sadd.s32 %s195, 1
    %p199 = scmp.eq.s32.totalorder %s14, 7
    %p200 = scmp.ne.s32.totalorder %s195, %s197
    %p201 = scmp.eq.s32.totalorder %s14, 0
    %p202 = por %p200, %p201
    %p203 = scmp.ne.s32.totalorder %s195, %s197
    %p204 = scmp.eq.s32.totalorder %s19, 7
    %p205 = por %p203, %p204
    %p206 = scmp.ne.s32.totalorder %s197, %s198
    %p207 = scmp.eq.s32.totalorder %s19, 0
    %p208 = por %p206, %p207
    %p209 = scmp.ne.s32.totalorder %s197, %s198
    %p210 = scmp.eq.s32.totalorder %s20, 7
    %p211 = por %p209, %p210
    %p213 = scmp.ne.s32.totalorder %s198, %s212
    %p214 = scmp.eq.s32.totalorder %s20, 0
    %p215 = por %p213, %p214
    %s216 = ssub.s32 %s21, %s33
    %s217 = ssub.s32 %s22, %s29
    %s218 = sor.u32 %s216, %s217
    %p219 = scmp.eq.s32.totalorder %s218, 0
    %s221 = sadd.s32 %s220, 1
    %s222 = scalar_select %p219, %s220, %s221
    %p225 = pneg %p219
    %p226 = scmp.eq.s32.totalorder %s14, 7
    %p227 = por %p225, %p226
    %p228 = scmp.ne.s32.totalorder %s220, %s223
    %p229 = scmp.eq.s32.totalorder %s14, 0
    %p230 = por %p228, %p229
    %p231 = scmp.ne.s32.totalorder %s220, %s223
    %p232 = scmp.eq.s32.totalorder %s19, 7
    %p233 = por %p231, %p232
    %p234 = scmp.ne.s32.totalorder %s223, %s224
    %p235 = scmp.eq.s32.totalorder %s19, 0
    %p236 = por %p234, %p235
    %p237 = scmp.ne.s32.totalorder %s223, %s224
    %p238 = scmp.eq.s32.totalorder %s20, 7
    %p239 = por %p237, %p238
    %p241 = scmp.ne.s32.totalorder %s224, %s240
    %p242 = scmp.eq.s32.totalorder %s20, 0
    %p243 = por %p241, %p242
    %p244 = scmp.le.s32.totalorder 1, %s14
    %p245 = scmp.lt.s32.totalorder %s14, 9
    %p246 = pnand %p244, %p245
    %p247 = pneg %p246
    // Predicated region
    $region9: #{mamba_block_forward.27} parent=5 // pred_check
      _
    $region10: #{mamba_block_forward.27} parent=5 // pred_check_branch
      %249 = sbr.rel (%p246) target = $region12
    $region11: #{mamba_block_forward.27} parent=5 // pred_region
      %s250 = ssub.s32 %s14, 1
      // Predicated region
      $region13: #{mamba_block_forward.27} parent=11 // pred_check
        %p251 = pneg %p103
      $region14: #{mamba_block_forward.27} parent=11 // pred_check_branch
        %253 = sbr.rel (%p251) target = $region16
      $region15: #{mamba_block_forward.27} parent=11 // pred_region
        _
      $region16: #{mamba_block_forward.27} parent=11 // pred_fallthru
        _
      // Predicated region
      $region17: #{mamba_block_forward.27} parent=11 // pred_check
        %p254 = pneg %p124
      $region18: #{mamba_block_forward.27} parent=11 // pred_check_branch
        %256 = sbr.rel (%p254) target = $region20
      $region19: #{mamba_block_forward.27} parent=11 // pred_region
        _
      $region20: #{mamba_block_forward.27} parent=11 // pred_fallthru
        _
      // Predicated region
      $region21: #{mamba_block_forward.27} parent=11 // pred_check
        %p257 = pneg %p145
      $region22: #{mamba_block_forward.27} parent=11 // pred_check_branch
        %259 = sbr.rel (%p257) target = $region24
      $region23: #{mamba_block_forward.27} parent=11 // pred_region
        _
      $region24: #{mamba_block_forward.27} parent=11 // pred_fallthru
        _
      // Predicated region
      $region25: #{mamba_block_forward.27} parent=11 // pred_check
        %p260 = pneg %p166
      $region26: #{mamba_block_forward.27} parent=11 // pred_check_branch
        %262 = sbr.rel (%p260) target = $region28
      $region27: #{mamba_block_forward.27} parent=11 // pred_region
        _
      $region28: #{mamba_block_forward.27} parent=11 // pred_fallthru
        _
      // Predicated region
      $region29: #{mamba_block_forward.27} parent=11 // pred_check
        %p263 = pneg %p187
      $region30: #{mamba_block_forward.27} parent=11 // pred_check_branch
        %265 = sbr.rel (%p263) target = $region32
      $region31: #{mamba_block_forward.27} parent=11 // pred_region
        _
      $region32: #{mamba_block_forward.27} parent=11 // pred_fallthru
        _
      // Predicated region
      $region33: #{mamba_block_forward.27} parent=11 // pred_check
        %p266 = pneg %p208
      $region34: #{mamba_block_forward.27} parent=11 // pred_check_branch
        %268 = sbr.rel (%p266) target = $region36
      $region35: #{mamba_block_forward.27} parent=11 // pred_region
        _
      $region36: #{mamba_block_forward.27} parent=11 // pred_fallthru
        _
    $region12: #{mamba_block_forward.27} parent=5 // pred_fallthru
      _
    %p269 = scmp.lt.s32.totalorder %s14, 8
    // Predicated region
    $region37: #{mamba_block_forward.27} parent=5 // pred_check
      %p270 = pneg %p269
    $region38: #{mamba_block_forward.27} parent=5 // pred_check_branch
      %272 = sbr.rel (%p270) target = $region40
    $region39: #{mamba_block_forward.27} parent=5 // pred_region
      // Predicated region
      $region41: #{mamba_block_forward.27} parent=39 // pred_check
        %p273 = pneg %p48
      $region42: #{mamba_block_forward.27} parent=39 // pred_check_branch
        %275 = sbr.rel (%p273) target = $region44
      $region43: #{mamba_block_forward.27} parent=39 // pred_region
        %s276 = smul.u32 4, %s22
        %p277 = scmp.lt.s32.totalorder %s21, 7
        %s278 = scalar_select %p277, %s21, 7
        %p279 = scmp.lt.s32.totalorder %s276, 3
        %s280 = scalar_select %p279, %s276, 3
        %s281 = smul.addr %s278, 4
        %s282 = sadd.s32 %s280, %s281
        %s283 = smul.addr %s282, 4
        %s284 = scalar_lea.vmem %s0, %s283
        %s285 = smul.u32 4, %s22
      $region44: #{mamba_block_forward.27} parent=39 // pred_fallthru
        _
      // Predicated region
      $region45: #{mamba_block_forward.27} parent=39 // pred_check
        %p286 = pneg %p76
      $region46: #{mamba_block_forward.27} parent=39 // pred_check_branch
        %288 = sbr.rel (%p286) target = $region48
      $region47: #{mamba_block_forward.27} parent=39 // pred_region
        %s289 = smul.u32 4, %s22
        %p290 = scmp.lt.s32.totalorder %s21, 7
        %s291 = scalar_select %p290, %s21, 7
        %p292 = scmp.lt.s32.totalorder %s289, 3
        %s293 = scalar_select %p292, %s289, 3
        %s294 = smul.addr %s291, 4
        %s295 = sadd.s32 %s293, %s294
        %s296 = smul.addr %s295, 4
        %s297 = scalar_lea.vmem %s1, %s296
        %s298 = smul.u32 4, %s22
      $region48: #{mamba_block_forward.27} parent=39 // pred_fallthru
        _
    $region40: #{mamba_block_forward.27} parent=5 // pred_fallthru
      _
    %p299 = scmp.le.s32.totalorder 1, %s14
    %p300 = scmp.lt.s32.totalorder %s14, 9
    %p301 = pnand %p299, %p300
    %p302 = pneg %p301
    // Predicated region
    $region49: #{mamba_block_forward.27} parent=5 // pred_check
      _
    $region50: #{mamba_block_forward.27} parent=5 // pred_check_branch
      %304 = sbr.rel (%p301) target = $region52
    $region51: #{mamba_block_forward.27} parent=5 // pred_region
      %s305 = ssub.s32 %s14, 1
      %s306 = smul.u32 4, %s24
      %p307 = scmp.lt.s32.totalorder %s23, 7
      %s308 = scalar_select %p307, %s23, 7
      %p309 = scmp.lt.s32.totalorder %s306, 3
      %s310 = scalar_select %p309, %s306, 3
      %s311 = smul.addr %s308, 4
      %s312 = sadd.s32 %s310, %s311
      %s313 = smul.addr %s312, 4
      %s314 = scalar_lea.vmem %s0, %s313
      %p315 = pneg %p54
      %p316 = pneg %p51
      %s317 = smul.u32 4, %s24
      %p318 = scmp.lt.s32.totalorder %s23, 7
      %s319 = scalar_select %p318, %s23, 7
      %p320 = scmp.lt.s32.totalorder %s317, 3
      %s321 = scalar_select %p320, %s317, 3
      %s322 = smul.addr %s319, 4
      %s323 = sadd.s32 %s321, %s322
      %s324 = smul.addr %s323, 4
      %s325 = scalar_lea.vmem %s1, %s324
      %p326 = pneg %p82
      %p327 = pneg %p79
      %p328 = pneg %p103
      %p329 = pneg %p100
      %p330 = pneg %p124
      %p331 = pneg %p121
      %p332 = pneg %p145
      %p333 = pneg %p142
      %p334 = pneg %p166
      %p335 = pneg %p163
      %p336 = pneg %p187
      %p337 = pneg %p184
      %p338 = pneg %p208
      %p339 = pneg %p205
      %p340 = pneg %p236
      %p341 = pneg %p233
      %s342 = smul.u32 4, %s24
      %p343 = scmp.lt.s32.totalorder %s23, 7
      %s344 = scalar_select %p343, %s23, 7
      %p345 = scmp.lt.s32.totalorder %s342, 3
      %s346 = scalar_select %p345, %s342, 3
      %s347 = smul.addr %s344, 4
      %s348 = sadd.s32 %s346, %s347
      %s349 = smul.addr %s348, 4
      %s350 = scalar_lea.vmem %s8, %s349
      %s351 = smul.u32 4, %s24
      %p352 = scmp.lt.s32.totalorder %s23, 7
      %s353 = scalar_select %p352, %s23, 7
      %p354 = scmp.lt.s32.totalorder %s351, 3
      %s355 = scalar_select %p354, %s351, 3
      %s356 = smul.addr %s353, 4
      %s357 = sadd.s32 %s355, %s356
      %s358 = smul.addr %s357, 4
      %s359 = scalar_lea.vmem %s0, %s358
      %s360 = smul.u32 4, %s24
      %s361 = smul.u32 4, %s24
      %p362 = scmp.lt.s32.totalorder %s23, 7
      %s363 = scalar_select %p362, %s23, 7
      %p364 = scmp.lt.s32.totalorder %s361, 3
      %s365 = scalar_select %p364, %s361, 3
      %s366 = smul.addr %s363, 4
      %s367 = sadd.s32 %s365, %s366
      %s368 = smul.addr %s367, 4
      %s369 = scalar_lea.vmem %s1, %s368
      %s370 = smul.u32 4, %s24
      %s371 = smul.u32 4, %s24
      %p372 = scmp.lt.s32.totalorder %s23, 7
      %s373 = scalar_select %p372, %s23, 7
      %p374 = scmp.lt.s32.totalorder %s371, 3
      %s375 = scalar_select %p374, %s371, 3
      %s376 = smul.addr %s373, 4
      %s377 = sadd.s32 %s375, %s376
      %s378 = smul.addr %s377, 4
      %s379 = scalar_lea.vmem %s8, %s378
      %s380 = smul.u32 4, %s24
      %p382 = scmp.eq.s32.totalorder %s24, 0
      // Predicated region
      $region53: #{mamba_block_forward.27} parent=51 // pred_check
        %p383 = pneg %p382
      $region54: #{mamba_block_forward.27} parent=51 // pred_check_branch
        %385 = sbr.rel (%p383) target = $region56
      $region55: #{mamba_block_forward.27} parent=51 // pred_region
        %vm386 = vcmask 58368
        %387 = vst.msk [vmem:[#allocation2] sm:$0x3] %vm386, 0.0
      $region56: #{mamba_block_forward.27} parent=51 // pred_fallthru
        _
      %v388 = vld [vmem:[%s359] sm:$0xf]
      %v389 = vld [vmem:[%s359 + $0x4] sm:$0xf]
      %v390 = vld [vmem:[%s359 + $0x8] sm:$0xf]
      %v391 = vld [vmem:[%s359 + $0xc] sm:$0x1]
      %v392 = vunpack.c.l.bf16 %v388
      %v393 = vunpack.c.l.bf16 %v389
      %v394 = vunpack.c.l.bf16 %v390
      %v395 = vunpack.c.l.bf16 %v391
      %v396 = vld [vmem:[%s369] sm:$0xf]
      %v397 = vld [vmem:[%s369 + $0x4] sm:$0xf]
      %v398 = vld [vmem:[%s369 + $0x8] sm:$0xf]
      %v399 = vld [vmem:[%s369 + $0xc] sm:$0x1]
      %v400 = vunpack.c.l.bf16 %v396
      %v401 = vunpack.c.l.bf16 %v397
      %v402 = vunpack.c.l.bf16 %v398
      %v403 = vunpack.c.l.bf16 %v399
      %v404 = vld [vmem:[%s2] sm:$0xf]
      %v405 = vld [vmem:[%s3] sm:$0x1]
      %v407 = vlaneseq
      %v408 = vshrl.u32 %v407, 7
      %v409 = vsub.s32 0, %v408
      %v410 = vrot.slane %v405, %v409
      %v416 = vunpack.c.l.b16 %v388
      %v417 = vunpack.c.l.b16 %v389
      %v418 = vunpack.c.l.b16 %v390
      %v419 = vunpack.c.l.b16 %v391
      %v420 = vpack.c.b16 %v417, %v416
      %v421 = vpack.c.b16 %v419, %v418
      %vm422 = vcmask 64512
      %v424 = vsel %vm422, %v420, 0
      %v427 = vsel %vm422, %v421, 0
      %vm429 = vcmask 1043456
      %v431 = vsel %vm429, %v404, 0
      %433 = vmatprep.subr.bf16.mxu0 0
      %434 = vmatpush1.bf16.msra.mxu0 %v431
      %435 = vmatprep.subr.bf16.mxu0 0
      %436 = vmatpush1.bf16.msra.mxu0 0
      %437 = vmatprep.subr.bf16.mxu0 0
      %438 = vmatpush1.bf16.msra.mxu0 0
      %439 = vmatprep.subr.bf16.mxu0 0
      %440 = vmatpush1.bf16.msra.mxu0 0
      %441 = vmatprep.subr.bf16.mxu0 0
      %442 = vmatpush1.bf16.msra.mxu0 0
      %443 = vmatprep.subr.bf16.mxu0 0
      %444 = vmatpush1.bf16.msra.mxu0 0
      %445 = vmatprep.subr.bf16.mxu0 0
      %446 = vmatpush1.bf16.msra.mxu0 0
      %447 = vmatprep.subr.bf16.mxu0 0
      %448 = vmatpush1.bf16.msra.mxu0 0
      %449 = vmatprep.subr.bf16.mxu0 0
      %450 = vmatpush1.bf16.msra.mxu0 0
      %451 = vmatprep.subr.bf16.mxu0 0
      %452 = vmatpush1.bf16.msra.mxu0 0
      %453 = vmatprep.subr.bf16.mxu0 0
      %454 = vmatpush1.bf16.msra.mxu0 0
      %455 = vmatprep.subr.bf16.mxu0 0
      %456 = vmatpush1.bf16.msra.mxu0 0
      %457 = vmatprep.subr.bf16.mxu0 0
      %458 = vmatpush1.bf16.msra.mxu0 0
      %459 = vmatprep.subr.bf16.mxu0 0
      %460 = vmatpush1.bf16.msra.mxu0 0
      %461 = vmatprep.subr.bf16.mxu0 0
      %462 = vmatpush1.bf16.msra.mxu0 0
      %463 = vmatprep.subr.bf16.mxu0 0
      %464 = vmatpush1.bf16.msra.mxu0 0
      %465 = vmatprep.mubr.bf16.mxu0 0
      %466 = vmatmul.mubr.bf16.gmra.mrb[0].mxu0 %v424
      %v467 = vpop.f32.mrb[0].mxu0
      %v468 = vadd.f32 %v410, %v467
      %v469 = vpop.f32.mrb[0].mxu0
      %v470 = vpop.f32.mrb[0].mxu0
      %v471 = vadd.f32 %v410, %v470
      %v472 = vpop.f32.mrb[0].mxu0
      %473 = vmatprep.mubr.bf16.mxu0 0
      %474 = vmatmul.mubr.bf16.gmra.mrb[0].mxu0 %v427
      %v475 = vpop.f32.mrb[0].mxu0
      %v476 = vadd.f32 %v410, %v475
      %v477 = vpop.f32.mrb[0].mxu0
      %v478 = vpop.f32.mrb[0].mxu0
      %v479 = vadd.f32 %v410, %v478
      %v480 = vpop.f32.mrb[0].mxu0
      %481 = vdwg.mxu0
      %v482 = vmax.f32 %v468, 0.0
      %v483 = vmax.f32 %v471, 0.0
      %v484 = vmax.f32 %v476, 0.0
      %v485 = vmax.f32 %v479, 0.0
      %v486 = vand.u32 2147483647, %v468
      %v487 = vand.u32 2147483647, %v471
      %v488 = vand.u32 2147483647, %v476
      %v489 = vand.u32 2147483647, %v479
      %v490 = vsub.f32 0.0, %v486
      %v491 = vsub.f32 0.0, %v487
      %v492 = vsub.f32 0.0, %v488
      %v493 = vsub.f32 0.0, %v489
      %v494 = vmul.f32 %v490, 1.442695
      %v495 = vpow.pop %v494
      %v496 = vmul.f32 %v491, 1.442695
      %v497 = vpow.pop %v496
      %v498 = vmul.f32 %v492, 1.442695
      %v499 = vpow.pop %v498
      %v500 = vmul.f32 %v493, 1.442695
      %v501 = vpow.pop %v500
      %v502 = vadd.f32 %v495, 1.0
      %v503 = vlog2.pop %v502
      %v504 = vmul.f32 %v503, 0.6931472
      %v505 = vmul.f32 -0.5, %v495
      %v506 = vadd.f32 %v505, 1.0
      %v507 = vmul.f32 %v506, %v495
      %v508 = vand.u32 2147483647, %v495
      %vm509 = vcmp.lt.f32.partialorder %v508, 0.0004427343
      %v510 = vsel %vm509, %v507, %v504
      %v511 = vadd.f32 %v497, 1.0
      %v512 = vlog2.pop %v511
      %v513 = vmul.f32 %v512, 0.6931472
      %v514 = vmul.f32 -0.5, %v497
      %v515 = vadd.f32 %v514, 1.0
      %v516 = vmul.f32 %v515, %v497
      %v517 = vand.u32 2147483647, %v497
      %vm518 = vcmp.lt.f32.partialorder %v517, 0.0004427343
      %v519 = vsel %vm518, %v516, %v513
      %v520 = vadd.f32 %v499, 1.0
      %v521 = vlog2.pop %v520
      %v522 = vmul.f32 %v521, 0.6931472
      %v523 = vmul.f32 -0.5, %v499
      %v524 = vadd.f32 %v523, 1.0
      %v525 = vmul.f32 %v524, %v499
      %v526 = vand.u32 2147483647, %v499
      %vm527 = vcmp.lt.f32.partialorder %v526, 0.0004427343
      %v528 = vsel %vm527, %v525, %v522
      %v529 = vadd.f32 %v501, 1.0
      %v530 = vlog2.pop %v529
      %v531 = vmul.f32 %v530, 0.6931472
      %v532 = vmul.f32 -0.5, %v501
      %v533 = vadd.f32 %v532, 1.0
      %v534 = vmul.f32 %v533, %v501
      %v535 = vand.u32 2147483647, %v501
      %vm536 = vcmp.lt.f32.partialorder %v535, 0.0004427343
      %v537 = vsel %vm536, %v534, %v531
      %v538 = vadd.f32 %v482, %v510
      %v539 = vadd.f32 %v483, %v519
      %v540 = vadd.f32 %v484, %v528
      %v541 = vadd.f32 %v485, %v537
      %v542 = vld [vmem:[%s4] sm:$0xf]
      %v544 = vsel %vm429, %v542, 0
      %546 = vmatprep.subr.bf16.mxu0 0
      %547 = vmatpush1.bf16.msra.mxu0 %v544
      %548 = vmatprep.subr.bf16.mxu0 0
      %549 = vmatpush1.bf16.msra.mxu0 0
      %550 = vmatprep.subr.bf16.mxu0 0
      %551 = vmatpush1.bf16.msra.mxu0 0
      %552 = vmatprep.subr.bf16.mxu0 0
      %553 = vmatpush1.bf16.msra.mxu0 0
      %554 = vmatprep.subr.bf16.mxu0 0
      %555 = vmatpush1.bf16.msra.mxu0 0
      %556 = vmatprep.subr.bf16.mxu0 0
      %557 = vmatpush1.bf16.msra.mxu0 0
      %558 = vmatprep.subr.bf16.mxu0 0
      %559 = vmatpush1.bf16.msra.mxu0 0
      %560 = vmatprep.subr.bf16.mxu0 0
      %561 = vmatpush1.bf16.msra.mxu0 0
      %562 = vmatprep.subr.bf16.mxu0 0
      %563 = vmatpush1.bf16.msra.mxu0 0
      %564 = vmatprep.subr.bf16.mxu0 0
      %565 = vmatpush1.bf16.msra.mxu0 0
      %566 = vmatprep.subr.bf16.mxu0 0
      %567 = vmatpush1.bf16.msra.mxu0 0
      %568 = vmatprep.subr.bf16.mxu0 0
      %569 = vmatpush1.bf16.msra.mxu0 0
      %570 = vmatprep.subr.bf16.mxu0 0
      %571 = vmatpush1.bf16.msra.mxu0 0
      %572 = vmatprep.subr.bf16.mxu0 0
      %573 = vmatpush1.bf16.msra.mxu0 0
      %574 = vmatprep.subr.bf16.mxu0 0
      %575 = vmatpush1.bf16.msra.mxu0 0
      %576 = vmatprep.subr.bf16.mxu0 0
      %577 = vmatpush1.bf16.msra.mxu0 0
      %578 = vmatprep.mubr.bf16.mxu0 0
      %579 = vmatmul.mubr.bf16.gmra.mrb[0].mxu0 %v424
      %v580 = vpop.f32.mrb[0].mxu0
      %v581 = vadd.f32 0.0, %v580
      %v582 = vpop.f32.mrb[0].mxu0
      %v583 = vpop.f32.mrb[0].mxu0
      %v584 = vadd.f32 0.0, %v583
      %v585 = vpop.f32.mrb[0].mxu0
      %586 = vmatprep.mubr.bf16.mxu0 0
      %587 = vmatmul.mubr.bf16.gmra.mrb[0].mxu0 %v427
      %v588 = vpop.f32.mrb[0].mxu0
      %v589 = vadd.f32 0.0, %v588
      %v590 = vpop.f32.mrb[0].mxu0
      %v591 = vpop.f32.mrb[0].mxu0
      %v592 = vadd.f32 0.0, %v591
      %v593 = vpop.f32.mrb[0].mxu0
      %594 = vdwg.mxu0
      %v595 = vld [vmem:[%s5] sm:$0xf]
      %v597 = vsel %vm429, %v595, 0
      %599 = vmatprep.subr.bf16.mxu0 0
      %600 = vmatpush1.bf16.msra.mxu0 %v597
      %601 = vmatprep.subr.bf16.mxu0 0
      %602 = vmatpush1.bf16.msra.mxu0 0
      %603 = vmatprep.subr.bf16.mxu0 0
      %604 = vmatpush1.bf16.msra.mxu0 0
      %605 = vmatprep.subr.bf16.mxu0 0
      %606 = vmatpush1.bf16.msra.mxu0 0
      %607 = vmatprep.subr.bf16.mxu0 0
      %608 = vmatpush1.bf16.msra.mxu0 0
      %609 = vmatprep.subr.bf16.mxu0 0
      %610 = vmatpush1.bf16.msra.mxu0 0
      %611 = vmatprep.subr.bf16.mxu0 0
      %612 = vmatpush1.bf16.msra.mxu0 0
      %613 = vmatprep.subr.bf16.mxu0 0
      %614 = vmatpush1.bf16.msra.mxu0 0
      %615 = vmatprep.subr.bf16.mxu0 0
      %616 = vmatpush1.bf16.msra.mxu0 0
      %617 = vmatprep.subr.bf16.mxu0 0
      %618 = vmatpush1.bf16.msra.mxu0 0
      %619 = vmatprep.subr.bf16.mxu0 0
      %620 = vmatpush1.bf16.msra.mxu0 0
      %621 = vmatprep.subr.bf16.mxu0 0
      %622 = vmatpush1.bf16.msra.mxu0 0
      %623 = vmatprep.subr.bf16.mxu0 0
      %624 = vmatpush1.bf16.msra.mxu0 0
      %625 = vmatprep.subr.bf16.mxu0 0
      %626 = vmatpush1.bf16.msra.mxu0 0
      %627 = vmatprep.subr.bf16.mxu0 0
      %628 = vmatpush1.bf16.msra.mxu0 0
      %629 = vmatprep.subr.bf16.mxu0 0
      %630 = vmatpush1.bf16.msra.mxu0 0
      %631 = vmatprep.mubr.bf16.mxu0 0
      %632 = vmatmul.mubr.bf16.gmra.mrb[0].mxu0 %v424
      %v633 = vpop.f32.mrb[0].mxu0
      %v634 = vadd.f32 0.0, %v633
      %v635 = vpop.f32.mrb[0].mxu0
      %v636 = vpop.f32.mrb[0].mxu0
      %v637 = vadd.f32 0.0, %v636
      %v638 = vpop.f32.mrb[0].mxu0
      %639 = vmatprep.mubr.bf16.mxu0 0
      %640 = vmatmul.mubr.bf16.gmra.mrb[0].mxu0 %v427
      %v641 = vpop.f32.mrb[0].mxu0
      %v642 = vadd.f32 0.0, %v641
      %v643 = vpop.f32.mrb[0].mxu0
      %v644 = vpop.f32.mrb[0].mxu0
      %v645 = vadd.f32 0.0, %v644
      %v646 = vpop.f32.mrb[0].mxu0
      %647 = vdwg.mxu0
      %v648 = vmul.f32 %v538, %v392
      %v649 = vmul.f32 %v539, %v393
      %v650 = vmul.f32 %v540, %v394
      %v651 = vmul.f32 %v541, %v395
      %v652 = vld [vmem:[%s6] sm:$0x1]
      %v653 = vlaneseq
      %v654 = vshrl.u32 %v653, 7
      %v655 = vsub.s32 0, %v654
      %v656 = vrot.slane %v652, %v655
      %v657 = vmul.f32 %v538, %v656
      %v658 = vmul.f32 %v539, %v656
      %v659 = vmul.f32 %v540, %v656
      %v660 = vmul.f32 %v541, %v656
      %v661 = vmul.f32 %v657, 1.442695
      %v662 = vpow.pop %v661
      %v663 = vmul.f32 %v658, 1.442695
      %v664 = vpow.pop %v663
      %v665 = vmul.f32 %v659, 1.442695
      %v666 = vpow.pop %v665
      %v667 = vmul.f32 %v660, 1.442695
      %v668 = vpow.pop %v667
      %669 = vst.msk [vmem:[#allocation3] sm:$0xff] %vm422, %v662
      %670 = vst.msk [vmem:[#allocation3 + $0x8] sm:$0xff] %vm422, %v664
      %671 = vst.msk [vmem:[#allocation3 + $0x10] sm:$0xff] %vm422, %v666
      %vm672 = vcmask 57344
      %673 = vst.msk [vmem:[#allocation3 + $0x18] sm:$0x1] %vm672, %v668
      %675 = vset.pattern.permute.xlu0 0
      %676 = vperm.xlu0 %675, %v581
      %v677 = vpop.permute.xlu0 %676
      %680 = vset.pattern.permute.xlu0 0
      %681 = vperm.xlu0 %680, %v584
      %v682 = vpop.permute.xlu0 %681
      %685 = vset.pattern.permute.xlu0 0
      %686 = vperm.xlu0 %685, %v589
      %v687 = vpop.permute.xlu0 %686
      %690 = vset.pattern.permute.xlu0 0
      %691 = vperm.xlu0 %690, %v592
      %v692 = vpop.permute.xlu0 %691
      %v694 = vmul.f32 %v648, %v677
      %v695 = vmul.f32 %v649, %v682
      %v696 = vmul.f32 %v650, %v687
      %v697 = vmul.f32 %v651, %v692
      %698 = vst.msk [vmem:[#allocation4] sm:$0xff] %vm422, %v694
      %699 = vst.msk [vmem:[#allocation4 + $0x8] sm:$0xff] %vm422, %v695
      %700 = vst.msk [vmem:[#allocation4 + $0x10] sm:$0xff] %vm422, %v696
      %701 = vst.msk [vmem:[#allocation4 + $0x18] sm:$0x1] %vm672, %v697
      %v702 = vld [vmem:[%s6 + $0x1] sm:$0x1]
      %v703 = vlaneseq
      %v704 = vshrl.u32 %v703, 7
      %v705 = vsub.s32 0, %v704
      %v706 = vrot.slane %v702, %v705
      %v707 = vmul.f32 %v538, %v706
      %v708 = vmul.f32 %v539, %v706
      %v709 = vmul.f32 %v540, %v706
      %v710 = vmul.f32 %v541, %v706
      %v711 = vmul.f32 %v707, 1.442695
      %v712 = vpow.pop %v711
      %v713 = vmul.f32 %v708, 1.442695
      %v714 = vpow.pop %v713
      %v715 = vmul.f32 %v709, 1.442695
      %v716 = vpow.pop %v715
      %v717 = vmul.f32 %v710, 1.442695
      %v718 = vpow.pop %v717
      %719 = vst.msk [vmem:[#allocation3 + $0x19] sm:$0xff] %vm422, %v712
      %720 = vst.msk [vmem:[#allocation3 + $0x21] sm:$0xff] %vm422, %v714
      %721 = vst.msk [vmem:[#allocation3 + $0x29] sm:$0xff] %vm422, %v716
      %722 = vst.msk [vmem:[#allocation3 + $0x31] sm:$0x1] %vm672, %v718
      %723 = vset.pattern.permute.xlu0 1
      %724 = vperm.xlu0 %723, %v581
      %v725 = vpop.permute.xlu0 %724
      %727 = vset.pattern.permute.xlu0 1
      %728 = vperm.xlu0 %727, %v584
      %v729 = vpop.permute.xlu0 %728
      %731 = vset.pattern.permute.xlu0 1
      %732 = vperm.xlu0 %731, %v589
      %v733 = vpop.permute.xlu0 %732
      %735 = vset.pattern.permute.xlu0 1
      %736 = vperm.xlu0 %735, %v592
      %v737 = vpop.permute.xlu0 %736
      %v739 = vmul.f32 %v648, %v725
      %v740 = vmul.f32 %v649, %v729
      %v741 = vmul.f32 %v650, %v733
      %v742 = vmul.f32 %v651, %v737
      %743 = vst.msk [vmem:[#allocation4 + $0x19] sm:$0xff] %vm422, %v739
      %744 = vst.msk [vmem:[#allocation4 + $0x21] sm:$0xff] %vm422, %v740
      %745 = vst.msk [vmem:[#allocation4 + $0x29] sm:$0xff] %vm422, %v741
      %746 = vst.msk [vmem:[#allocation4 + $0x31] sm:$0x1] %vm672, %v742
      %v747 = vld [vmem:[#allocation2] sm:$0x3]
      loop: start=0, step=1, limit=25
      $region57: #{mamba_block_forward.27} parent=51 // loop_pre_header
        _
      $region58: #{mamba_block_forward.27} parent=51 // loop_header
        %s749 = sphi 0, %s753
        %p750 = scmp.ge.s32.totalorder %s749, 25
        %v754 = vphi %v747, %v760
      $region59: #{mamba_block_forward.27} parent=51 // loop_header_branch
        %752 = sbr.rel (%p750) target = $region63
      $region60: #{mamba_block_forward.27} parent=51 // loop_body
        %s755 = scalar_lea.vmem [#allocation3], %s749
        %v756 = vld [vmem:[%s755] ss:$25 sm:$0x3]
        %s757 = scalar_lea.vmem [#allocation4], %s749
        %v758 = vld [vmem:[%s757] ss:$25 sm:$0x3]
        %v759 = vmul.f32 %v756, %v754
        %v760 = vadd.f32 %v759, %v758
        %s761 = smul.u32 %s749, 2
        %s762 = scalar_lea.vmem [#allocation5], %s761
        %vm763 = vcmask 58368
        %764 = vst.msk [vmem:[%s762] sm:$0x3] %vm763, %v760
      $region61: #{mamba_block_forward.27} parent=51 // loop_footer
        %s753 = sadd.s32 1, %s749
      $region62: #{mamba_block_forward.27} parent=51 // loop_footer_branch
        %748 = sbr.rel target = $region58
      $region63: #{mamba_block_forward.27} parent=51 // loop_exit
        _
      %vm765 = vcmask 58368
      %766 = vst.msk [vmem:[#allocation2] sm:$0x3] %vm765, %v754
      %v767 = vld [vmem:[#allocation5] ss:$2 sm:$0xff]
      %s768 = scalar_lea.vmem [#allocation5], 16
      %v769 = vld [vmem:[%s768] ss:$2 sm:$0xff]
      %s770 = scalar_lea.vmem [#allocation5], 32
      %v771 = vld [vmem:[%s770] ss:$2 sm:$0xff]
      %s772 = scalar_lea.vmem [#allocation5], 48
      %v773 = vld [vmem:[%s772] ss:$2 sm:$0x1]
      %775 = vset.pattern.permute.xlu0 0
      %776 = vperm.xlu0 %775, %v634
      %v777 = vpop.permute.xlu0 %776
      %780 = vset.pattern.permute.xlu0 0
      %781 = vperm.xlu0 %780, %v637
      %v782 = vpop.permute.xlu0 %781
      %785 = vset.pattern.permute.xlu0 0
      %786 = vperm.xlu0 %785, %v642
      %v787 = vpop.permute.xlu0 %786
      %790 = vset.pattern.permute.xlu0 0
      %791 = vperm.xlu0 %790, %v645
      %v792 = vpop.permute.xlu0 %791
      %v794 = vmul.f32 %v767, %v777
      %v795 = vmul.f32 %v769, %v782
      %v796 = vmul.f32 %v771, %v787
      %v797 = vmul.f32 %v773, %v792
      %s798 = scalar_lea.vmem [#allocation5], 1
      %v799 = vld [vmem:[%s798] ss:$2 sm:$0xff]
      %s800 = scalar_lea.vmem [#allocation5], 17
      %v801 = vld [vmem:[%s800] ss:$2 sm:$0xff]
      %s802 = scalar_lea.vmem [#allocation5], 33
      %v803 = vld [vmem:[%s802] ss:$2 sm:$0xff]
      %s804 = scalar_lea.vmem [#allocation5], 49
      %v805 = vld [vmem:[%s804] ss:$2 sm:$0x1]
      %806 = vset.pattern.permute.xlu0 1
      %807 = vperm.xlu0 %806, %v634
      %v808 = vpop.permute.xlu0 %807
      %810 = vset.pattern.permute.xlu0 1
      %811 = vperm.xlu0 %810, %v637
      %v812 = vpop.permute.xlu0 %811
      %814 = vset.pattern.permute.xlu0 1
      %815 = vperm.xlu0 %814, %v642
      %v816 = vpop.permute.xlu0 %815
      %818 = vset.pattern.permute.xlu0 1
      %819 = vperm.xlu0 %818, %v645
      %v820 = vpop.permute.xlu0 %819
      %v822 = vmul.f32 %v799, %v808
      %v823 = vmul.f32 %v801, %v812
      %v824 = vmul.f32 %v803, %v816
      %v825 = vmul.f32 %v805, %v820
      %v826 = vadd.f32 %v794, %v822
      %v827 = vadd.f32 %v795, %v823
      %v828 = vadd.f32 %v796, %v824
      %v829 = vadd.f32 %v797, %v825
      %v830 = vld [vmem:[%s7] sm:$0x1]
      %v832 = vlaneseq
      %v833 = vshrl.u32 %v832, 7
      %v834 = vsub.s32 0, %v833
      %v835 = vrot.slane %v830, %v834
      %v837 = vmul.f32 %v835, %v392
      %v838 = vmul.f32 %v835, %v393
      %v839 = vmul.f32 %v835, %v394
      %v840 = vmul.f32 %v835, %v395
      %v841 = vadd.f32 %v826, %v837
      %v842 = vadd.f32 %v827, %v838
      %v843 = vadd.f32 %v828, %v839
      %v844 = vadd.f32 %v829, %v840
      %v845 = vxor.u32 %v400, 2147483648
      %v846 = vxor.u32 %v401, 2147483648
      %v847 = vxor.u32 %v402, 2147483648
      %v848 = vxor.u32 %v403, 2147483648
      %v849 = vmul.f32 %v845, 1.442695
      %v850 = vpow.pop %v849
      %v851 = vmul.f32 %v846, 1.442695
      %v852 = vpow.pop %v851
      %v853 = vmul.f32 %v847, 1.442695
      %v854 = vpow.pop %v853
      %v855 = vmul.f32 %v848, 1.442695
      %v856 = vpow.pop %v855
      %v857 = vadd.f32 %v850, 1.0
      %v858 = vadd.f32 %v852, 1.0
      %v859 = vadd.f32 %v854, 1.0
      %v860 = vadd.f32 %v856, 1.0
      %v861 = vrcp.pop %v857
      %v862 = vmul.f32 1.0, %v861
      %v863 = vrcp.pop %v858
      %v864 = vmul.f32 1.0, %v863
      %v865 = vrcp.pop %v859
      %v866 = vmul.f32 1.0, %v865
      %v867 = vrcp.pop %v860
      %v868 = vmul.f32 1.0, %v867
      %v869 = vmul.f32 %v400, %v862
      %v870 = vmul.f32 %v401, %v864
      %v871 = vmul.f32 %v402, %v866
      %v872 = vmul.f32 %v403, %v868
      %v873 = vmul.f32 %v841, %v869
      %v874 = vmul.f32 %v842, %v870
      %v875 = vmul.f32 %v843, %v871
      %v876 = vmul.f32 %v844, %v872
      %v877 = vpack.c.bf16 %v874, %v873
      %v878 = vpack.c.bf16 %v876, %v875
      %v881 = vunpack.c.l.b16 %v877
      %v882 = vunpack.c.h.b16 %v877
      %v883 = vunpack.c.l.b16 %v878
      %v884 = vunpack.c.h.b16 %v878
      %v885 = vpack.c.b16 %v881, %v881
      %v886 = vpack.c.b16 %v882, %v882
      %v887 = vpack.c.b16 %v883, %v883
      %v888 = vpack.c.b16 %v884, %v884
      %vm893 = vcmask 60416
      %894 = vst.msk [vmem:[%s379] sm:$0xf] %vm893, %v885
      %895 = vst.msk [vmem:[%s379 + $0x4] sm:$0xf] %vm893, %v886
      %896 = vst.msk [vmem:[%s379 + $0x8] sm:$0xf] %vm893, %v887
      %vm897 = vcmask 57344
      %vm898 = vsmask.f32 256
      %vm899 = vmand %vm897, %vm898
      %v900 = vld [vmem:[%s379 + $0xc] sm:$0x1]
      %v901 = vsel %vm899, %v888, %v900
      %902 = vst [vmem:[%s379 + $0xc] sm:$0x1] %v901
      %s903 = smul.u32 4, %s24
      %p904 = scmp.lt.s32.totalorder %s23, 7
      %s905 = scalar_select %p904, %s23, 7
      %p906 = scmp.lt.s32.totalorder %s903, 3
      %s907 = scalar_select %p906, %s903, 3
      %s908 = smul.addr %s905, 4
      %s909 = sadd.s32 %s907, %s908
      %s910 = smul.addr %s909, 4
      %s911 = scalar_lea.vmem %s8, %s910
      // Predicated region
      $region64: #{mamba_block_forward.27} parent=51 // pred_check
        %p912 = pneg %p233
      $region65: #{mamba_block_forward.27} parent=51 // pred_check_branch
        %914 = sbr.rel (%p912) target = $region67
      $region66: #{mamba_block_forward.27} parent=51 // pred_region
        %s915 = smul.u32 4, %s24
      $region67: #{mamba_block_forward.27} parent=51 // pred_fallthru
        _
    $region52: #{mamba_block_forward.27} parent=5 // pred_fallthru
      _
    %p916 = scmp.le.s32.totalorder 2, %s14
    // Predicated region
    $region68: #{mamba_block_forward.27} parent=5 // pred_check
      %p917 = pneg %p916
    $region69: #{mamba_block_forward.27} parent=5 // pred_check_branch
      %919 = sbr.rel (%p917) target = $region71
    $region70: #{mamba_block_forward.27} parent=5 // pred_region
      %s920 = ssub.s32 %s14, 2
      // Predicated region
      $region72: #{mamba_block_forward.27} parent=70 // pred_check
        %p921 = pneg %p239
      $region73: #{mamba_block_forward.27} parent=70 // pred_check_branch
        %923 = sbr.rel (%p921) target = $region75
      $region74: #{mamba_block_forward.27} parent=70 // pred_region
        %s924 = smul.u32 4, %s26
        %p925 = scmp.lt.s32.totalorder %s25, 7
        %s926 = scalar_select %p925, %s25, 7
        %p927 = scmp.lt.s32.totalorder %s924, 3
        %s928 = scalar_select %p927, %s924, 3
        %s929 = smul.addr %s926, 4
        %s930 = sadd.s32 %s928, %s929
        %s931 = smul.addr %s930, 4
        %s932 = scalar_lea.vmem %s8, %s931
      $region75: #{mamba_block_forward.27} parent=70 // pred_fallthru
        _
    $region71: #{mamba_block_forward.27} parent=5 // pred_fallthru
      _
  $region6: #{mamba_block_forward.27} parent=0 // loop_footer
    %s18 = sadd.s32 1, %s14
  $region7: #{mamba_block_forward.27} parent=0 // loop_footer_branch
    %13 = sbr.rel target = $region3
  $region8: #{mamba_block_forward.27} parent=0 // loop_exit
    _

// kernel: mamba_block_forward.29
$region0: #{mamba_block_forward.29}
  #allocation0 [shape = 'u32[]', space=smem, size = 0x4, offset = 0x4, fixed_abs, tag = 'smem constant byte address 0x4 - core index']
  #allocation1 [shape = 'u32[144,128]{1,0:T(1,128)}', space=vmem, size = 0x12000, scoped, tag = 'internal scratch']
  #allocation2 [shape = 'f32[200,8]{1,0:T(8,128)}', space=vmem, size = 0x19000, scoped, tag = 'scratch operand']
  %s0 = inlined_call_operand.vmem [shape: bf16[200,8], index: 0, kind: input, shape index: {}]
  %s1 = inlined_call_operand.vmem [shape: bf16[8,8], index: 1, kind: input, shape index: {}]
  %s2 = inlined_call_operand.vmem [shape: f32[200,8], index: 2, kind: output, shape index: {}]
  %s3 = sld [smem:[#allocation0]]
  $region26: #{mamba_block_forward.29} parent=0
    _
  %s5 = ssub.s32 1, %s3
  %s6 = scalar_select 0, %s5, %s3
  // Predicated region
  $region2: #{mamba_block_forward.29} parent=0 // pred_check
    _
  $region3: #{mamba_block_forward.29} parent=0 // pred_check_branch
    %8 = sbr.rel (0) target = $region5
  $region4: #{mamba_block_forward.29} parent=0 // pred_region
    _
  $region5: #{mamba_block_forward.29} parent=0 // pred_fallthru
    _
  // Predicated region
  $region6: #{mamba_block_forward.29} parent=0 // pred_check
    _
  $region7: #{mamba_block_forward.29} parent=0 // pred_check_branch
    %10 = sbr.rel (0) target = $region9
  $region8: #{mamba_block_forward.29} parent=0 // pred_region
    _
  $region9: #{mamba_block_forward.29} parent=0 // pred_fallthru
    _
  %p12 = scmp.eq.s32.totalorder 0, 0
  // Predicated region
  $region10: #{mamba_block_forward.29} parent=0 // pred_check
    %p13 = pneg %p12
  $region11: #{mamba_block_forward.29} parent=0 // pred_check_branch
    %15 = sbr.rel (%p13) target = $region13
  $region12: #{mamba_block_forward.29} parent=0 // pred_region
    %vm16 = vcmask 64512
    %17 = vst.msk [vmem:[#allocation2] sm:$0xff] %vm16, 0.0
    %18 = vst.msk [vmem:[#allocation2 + $0x8] sm:$0xff] %vm16, 0.0
    %19 = vst.msk [vmem:[#allocation2 + $0x10] sm:$0xff] %vm16, 0.0
    %20 = vst.msk [vmem:[#allocation2 + $0x18] sm:$0xff] %vm16, 0.0
    %21 = vst.msk [vmem:[#allocation2 + $0x20] sm:$0xff] %vm16, 0.0
    %22 = vst.msk [vmem:[#allocation2 + $0x28] sm:$0xff] %vm16, 0.0
    %23 = vst.msk [vmem:[#allocation2 + $0x30] sm:$0xff] %vm16, 0.0
    %24 = vst.msk [vmem:[#allocation2 + $0x38] sm:$0xff] %vm16, 0.0
    %25 = vst.msk [vmem:[#allocation2 + $0x40] sm:$0xff] %vm16, 0.0
    %26 = vst.msk [vmem:[#allocation2 + $0x48] sm:$0xff] %vm16, 0.0
    %27 = vst.msk [vmem:[#allocation2 + $0x50] sm:$0xff] %vm16, 0.0
    %28 = vst.msk [vmem:[#allocation2 + $0x58] sm:$0xff] %vm16, 0.0
    %29 = vst.msk [vmem:[#allocation2 + $0x60] sm:$0xff] %vm16, 0.0
    %30 = vst.msk [vmem:[#allocation2 + $0x68] sm:$0xff] %vm16, 0.0
    %31 = vst.msk [vmem:[#allocation2 + $0x70] sm:$0xff] %vm16, 0.0
    %32 = vst.msk [vmem:[#allocation2 + $0x78] sm:$0xff] %vm16, 0.0
    %33 = vst.msk [vmem:[#allocation2 + $0x80] sm:$0xff] %vm16, 0.0
    %34 = vst.msk [vmem:[#allocation2 + $0x88] sm:$0xff] %vm16, 0.0
    %35 = vst.msk [vmem:[#allocation2 + $0x90] sm:$0xff] %vm16, 0.0
    %36 = vst.msk [vmem:[#allocation2 + $0x98] sm:$0xff] %vm16, 0.0
    %37 = vst.msk [vmem:[#allocation2 + $0xa0] sm:$0xff] %vm16, 0.0
    %38 = vst.msk [vmem:[#allocation2 + $0xa8] sm:$0xff] %vm16, 0.0
    %39 = vst.msk [vmem:[#allocation2 + $0xb0] sm:$0xff] %vm16, 0.0
    %40 = vst.msk [vmem:[#allocation2 + $0xb8] sm:$0xff] %vm16, 0.0
    %41 = vst.msk [vmem:[#allocation2 + $0xc0] sm:$0xff] %vm16, 0.0
  $region13: #{mamba_block_forward.29} parent=0 // pred_fallthru
    _
  %v42 = vld [vmem:[#allocation2] sm:$0xff]
  %v43 = vld [vmem:[#allocation2 + $0x8] sm:$0xff]
  %v44 = vld [vmem:[#allocation2 + $0x10] sm:$0xff]
  %v45 = vld [vmem:[#allocation2 + $0x18] sm:$0xff]
  %v46 = vld [vmem:[#allocation2 + $0x20] sm:$0xff]
  %v47 = vld [vmem:[#allocation2 + $0x28] sm:$0xff]
  %v48 = vld [vmem:[#allocation2 + $0x30] sm:$0xff]
  %v49 = vld [vmem:[#allocation2 + $0x38] sm:$0xff]
  %v50 = vld [vmem:[#allocation2 + $0x40] sm:$0xff]
  %v51 = vld [vmem:[#allocation2 + $0x48] sm:$0xff]
  %v52 = vld [vmem:[#allocation2 + $0x50] sm:$0xff]
  %v53 = vld [vmem:[#allocation2 + $0x58] sm:$0xff]
  %v54 = vld [vmem:[#allocation2 + $0x60] sm:$0xff]
  %v55 = vld [vmem:[#allocation2 + $0x68] sm:$0xff]
  %v56 = vld [vmem:[#allocation2 + $0x70] sm:$0xff]
  %v57 = vld [vmem:[#allocation2 + $0x78] sm:$0xff]
  %v58 = vld [vmem:[#allocation2 + $0x80] sm:$0xff]
  %v59 = vld [vmem:[#allocation2 + $0x88] sm:$0xff]
  %v60 = vld [vmem:[#allocation2 + $0x90] sm:$0xff]
  %v61 = vld [vmem:[#allocation2 + $0x98] sm:$0xff]
  %v62 = vld [vmem:[#allocation2 + $0xa0] sm:$0xff]
  %v63 = vld [vmem:[#allocation2 + $0xa8] sm:$0xff]
  %v64 = vld [vmem:[#allocation2 + $0xb0] sm:$0xff]
  %v65 = vld [vmem:[#allocation2 + $0xb8] sm:$0xff]
  %v66 = vld [vmem:[#allocation2 + $0xc0] sm:$0xff]
  %v67 = vld [vmem:[%s0] sm:$0xf]
  %v68 = vld [vmem:[%s0 + $0x4] sm:$0xf]
  %v69 = vld [vmem:[%s0 + $0x8] sm:$0xf]
  %v70 = vld [vmem:[%s0 + $0xc] sm:$0xf]
  %v71 = vld [vmem:[%s0 + $0x10] sm:$0xf]
  %v72 = vld [vmem:[%s0 + $0x14] sm:$0xf]
  %v73 = vld [vmem:[%s0 + $0x18] sm:$0xf]
  %v74 = vld [vmem:[%s0 + $0x1c] sm:$0xf]
  %v75 = vld [vmem:[%s0 + $0x20] sm:$0xf]
  %v76 = vld [vmem:[%s0 + $0x24] sm:$0xf]
  %v77 = vld [vmem:[%s0 + $0x28] sm:$0xf]
  %v78 = vld [vmem:[%s0 + $0x2c] sm:$0xf]
  %v79 = vld [vmem:[%s0 + $0x30] sm:$0xf]
  %v80 = vld [vmem:[%s0 + $0x34] sm:$0xf]
  %v81 = vld [vmem:[%s0 + $0x38] sm:$0xf]
  %v82 = vld [vmem:[%s0 + $0x3c] sm:$0xf]
  %v83 = vld [vmem:[%s0 + $0x40] sm:$0xf]
  %v84 = vld [vmem:[%s0 + $0x44] sm:$0xf]
  %v85 = vld [vmem:[%s0 + $0x48] sm:$0xf]
  %v86 = vld [vmem:[%s0 + $0x4c] sm:$0xf]
  %v87 = vld [vmem:[%s0 + $0x50] sm:$0xf]
  %v88 = vld [vmem:[%s0 + $0x54] sm:$0xf]
  %v89 = vld [vmem:[%s0 + $0x58] sm:$0xf]
  %v90 = vld [vmem:[%s0 + $0x5c] sm:$0xf]
  %v91 = vld [vmem:[%s0 + $0x60] sm:$0xf]
  %v92 = vld [vmem:[%s1] sm:$0xf]
  %v118 = vunpack.c.l.b16 %v67
  %v119 = vunpack.c.l.b16 %v68
  %v120 = vunpack.c.l.b16 %v69
  %v121 = vunpack.c.l.b16 %v70
  %v122 = vunpack.c.l.b16 %v71
  %v123 = vunpack.c.l.b16 %v72
  %v124 = vunpack.c.l.b16 %v73
  %v125 = vunpack.c.l.b16 %v74
  %v126 = vunpack.c.l.b16 %v75
  %v127 = vunpack.c.l.b16 %v76
  %v128 = vunpack.c.l.b16 %v77
  %v129 = vunpack.c.l.b16 %v78
  %v130 = vunpack.c.l.b16 %v79
  %v131 = vunpack.c.l.b16 %v80
  %v132 = vunpack.c.l.b16 %v81
  %v133 = vunpack.c.l.b16 %v82
  %v134 = vunpack.c.l.b16 %v83
  %v135 = vunpack.c.l.b16 %v84
  %v136 = vunpack.c.l.b16 %v85
  %v137 = vunpack.c.l.b16 %v86
  %v138 = vunpack.c.l.b16 %v87
  %v139 = vunpack.c.l.b16 %v88
  %v140 = vunpack.c.l.b16 %v89
  %v141 = vunpack.c.l.b16 %v90
  %v142 = vunpack.c.l.b16 %v91
  %v143 = vpack.c.b16 %v119, %v118
  %v144 = vpack.c.b16 %v121, %v120
  %v145 = vpack.c.b16 %v123, %v122
  %v146 = vpack.c.b16 %v125, %v124
  %v147 = vpack.c.b16 %v127, %v126
  %v148 = vpack.c.b16 %v129, %v128
  %v149 = vpack.c.b16 %v131, %v130
  %v150 = vpack.c.b16 %v133, %v132
  %v151 = vpack.c.b16 %v135, %v134
  %v152 = vpack.c.b16 %v137, %v136
  %v153 = vpack.c.b16 %v139, %v138
  %v154 = vpack.c.b16 %v141, %v140
  %v155 = vpack.c.b16 %v142, %v142
  %vm156 = vcmask 64512
  %v158 = vsel %vm156, %v143, 0
  %v161 = vsel %vm156, %v144, 0
  %v164 = vsel %vm156, %v145, 0
  %v167 = vsel %vm156, %v146, 0
  %v170 = vsel %vm156, %v147, 0
  %v173 = vsel %vm156, %v148, 0
  %v176 = vsel %vm156, %v149, 0
  %v179 = vsel %vm156, %v150, 0
  %v182 = vsel %vm156, %v151, 0
  %v185 = vsel %vm156, %v152, 0
  %v188 = vsel %vm156, %v153, 0
  %v191 = vsel %vm156, %v154, 0
  %v194 = vsel %vm156, %v155, 0
  %vm196 = vcmask 1043456
  %v198 = vsel %vm196, %v92, 0
  %200 = vmatprep.subr.bf16.mxu0 0
  %201 = vmatpush1.bf16.msra.mxu0 %v198
  %202 = vmatprep.subr.bf16.mxu0 0
  %203 = vmatpush1.bf16.msra.mxu0 0
  %204 = vmatprep.subr.bf16.mxu0 0
  %205 = vmatpush1.bf16.msra.mxu0 0
  %206 = vmatprep.subr.bf16.mxu0 0
  %207 = vmatpush1.bf16.msra.mxu0 0
  %208 = vmatprep.subr.bf16.mxu0 0
  %209 = vmatpush1.bf16.msra.mxu0 0
  %210 = vmatprep.subr.bf16.mxu0 0
  %211 = vmatpush1.bf16.msra.mxu0 0
  %212 = vmatprep.subr.bf16.mxu0 0
  %213 = vmatpush1.bf16.msra.mxu0 0
  %214 = vmatprep.subr.bf16.mxu0 0
  %215 = vmatpush1.bf16.msra.mxu0 0
  %216 = vmatprep.subr.bf16.mxu0 0
  %217 = vmatpush1.bf16.msra.mxu0 0
  %218 = vmatprep.subr.bf16.mxu0 0
  %219 = vmatpush1.bf16.msra.mxu0 0
  %220 = vmatprep.subr.bf16.mxu0 0
  %221 = vmatpush1.bf16.msra.mxu0 0
  %222 = vmatprep.subr.bf16.mxu0 0
  %223 = vmatpush1.bf16.msra.mxu0 0
  %224 = vmatprep.subr.bf16.mxu0 0
  %225 = vmatpush1.bf16.msra.mxu0 0
  %226 = vmatprep.subr.bf16.mxu0 0
  %227 = vmatpush1.bf16.msra.mxu0 0
  %228 = vmatprep.subr.bf16.mxu0 0
  %229 = vmatpush1.bf16.msra.mxu0 0
  %230 = vmatprep.subr.bf16.mxu0 0
  %231 = vmatpush1.bf16.msra.mxu0 0
  %232 = vmatprep.mubr.bf16.mxu0 0
  %233 = vmatmul.mubr.bf16.gmra.mrb[0].mxu0 %v158
  %v234 = vpop.f32.mrb[0].mxu0
  %v235 = vadd.f32 0.0, %v234
  %v236 = vpop.f32.mrb[0].mxu0
  %v237 = vpop.f32.mrb[0].mxu0
  %v238 = vadd.f32 0.0, %v237
  %v239 = vpop.f32.mrb[0].mxu0
  %240 = vmatprep.mubr.bf16.mxu0 0
  %241 = vmatmul.mubr.bf16.gmra.mrb[0].mxu0 %v161
  %v242 = vpop.f32.mrb[0].mxu0
  %v243 = vadd.f32 0.0, %v242
  %v244 = vpop.f32.mrb[0].mxu0
  %v245 = vpop.f32.mrb[0].mxu0
  %v246 = vadd.f32 0.0, %v245
  %v247 = vpop.f32.mrb[0].mxu0
  %248 = vmatprep.mubr.bf16.mxu0 0
  %249 = vmatmul.mubr.bf16.gmra.mrb[0].mxu0 %v164
  %v250 = vpop.f32.mrb[0].mxu0
  %v251 = vadd.f32 0.0, %v250
  %v252 = vpop.f32.mrb[0].mxu0
  %v253 = vpop.f32.mrb[0].mxu0
  %v254 = vadd.f32 0.0, %v253
  %v255 = vpop.f32.mrb[0].mxu0
  %256 = vmatprep.mubr.bf16.mxu0 0
  %257 = vmatmul.mubr.bf16.gmra.mrb[0].mxu0 %v167
  %v258 = vpop.f32.mrb[0].mxu0
  %v259 = vadd.f32 0.0, %v258
  %v260 = vpop.f32.mrb[0].mxu0
  %v261 = vpop.f32.mrb[0].mxu0
  %v262 = vadd.f32 0.0, %v261
  %v263 = vpop.f32.mrb[0].mxu0
  %264 = vmatprep.mubr.bf16.mxu0 0
  %265 = vmatmul.mubr.bf16.gmra.mrb[0].mxu0 %v170
  %v266 = vpop.f32.mrb[0].mxu0
  %v267 = vadd.f32 0.0, %v266
  %v268 = vpop.f32.mrb[0].mxu0
  %v269 = vpop.f32.mrb[0].mxu0
  %v270 = vadd.f32 0.0, %v269
  %v271 = vpop.f32.mrb[0].mxu0
  %272 = vmatprep.mubr.bf16.mxu0 0
  %273 = vmatmul.mubr.bf16.gmra.mrb[0].mxu0 %v173
  %v274 = vpop.f32.mrb[0].mxu0
  %v275 = vadd.f32 0.0, %v274
  %v276 = vpop.f32.mrb[0].mxu0
  %v277 = vpop.f32.mrb[0].mxu0
  %v278 = vadd.f32 0.0, %v277
  %v279 = vpop.f32.mrb[0].mxu0
  %280 = vmatprep.mubr.bf16.mxu0 0
  %281 = vmatmul.mubr.bf16.gmra.mrb[0].mxu0 %v176
  %v282 = vpop.f32.mrb[0].mxu0
  %v283 = vadd.f32 0.0, %v282
  %v284 = vpop.f32.mrb[0].mxu0
  %v285 = vpop.f32.mrb[0].mxu0
  %v286 = vadd.f32 0.0, %v285
  %v287 = vpop.f32.mrb[0].mxu0
  %288 = vmatprep.mubr.bf16.mxu0 0
  %289 = vmatmul.mubr.bf16.gmra.mrb[0].mxu0 %v179
  %v290 = vpop.f32.mrb[0].mxu0
  %v291 = vadd.f32 0.0, %v290
  %v292 = vpop.f32.mrb[0].mxu0
  %v293 = vpop.f32.mrb[0].mxu0
  %v294 = vadd.f32 0.0, %v293
  %v295 = vpop.f32.mrb[0].mxu0
  %296 = vmatprep.mubr.bf16.mxu0 0
  %297 = vmatmul.mubr.bf16.gmra.mrb[0].mxu0 %v182
  %v298 = vpop.f32.mrb[0].mxu0
  %v299 = vadd.f32 0.0, %v298
  %v300 = vpop.f32.mrb[0].mxu0
  %v301 = vpop.f32.mrb[0].mxu0
  %v302 = vadd.f32 0.0, %v301
  %v303 = vpop.f32.mrb[0].mxu0
  %304 = vmatprep.mubr.bf16.mxu0 0
  %305 = vmatmul.mubr.bf16.gmra.mrb[0].mxu0 %v185
  %v306 = vpop.f32.mrb[0].mxu0
  %v307 = vadd.f32 0.0, %v306
  %v308 = vpop.f32.mrb[0].mxu0
  %v309 = vpop.f32.mrb[0].mxu0
  %v310 = vadd.f32 0.0, %v309
  %v311 = vpop.f32.mrb[0].mxu0
  %312 = vmatprep.mubr.bf16.mxu0 0
  %313 = vmatmul.mubr.bf16.gmra.mrb[0].mxu0 %v188
  %v314 = vpop.f32.mrb[0].mxu0
  %v315 = vadd.f32 0.0, %v314
  %v316 = vpop.f32.mrb[0].mxu0
  %v317 = vpop.f32.mrb[0].mxu0
  %v318 = vadd.f32 0.0, %v317
  %v319 = vpop.f32.mrb[0].mxu0
  %320 = vmatprep.mubr.bf16.mxu0 0
  %321 = vmatmul.mubr.bf16.gmra.mrb[0].mxu0 %v191
  %v322 = vpop.f32.mrb[0].mxu0
  %v323 = vadd.f32 0.0, %v322
  %v324 = vpop.f32.mrb[0].mxu0
  %v325 = vpop.f32.mrb[0].mxu0
  %v326 = vadd.f32 0.0, %v325
  %v327 = vpop.f32.mrb[0].mxu0
  %328 = vmatprep.mubr.bf16.mxu0 0
  %329 = vmatmul.mubr.bf16.gmra.mrb[0].mxu0 %v194
  %v330 = vpop.f32.mrb[0].mxu0
  %v331 = vadd.f32 0.0, %v330
  %v332 = vpop.f32.mrb[0].mxu0
  %v333 = vpop.f32.mrb[0].mxu0
  %v334 = vpop.f32.mrb[0].mxu0
  %335 = vdwg.mxu0
  %v336 = vadd.f32 %v42, %v235
  %v337 = vadd.f32 %v43, %v238
  %v338 = vadd.f32 %v44, %v243
  %v339 = vadd.f32 %v45, %v246
  %v340 = vadd.f32 %v46, %v251
  %v341 = vadd.f32 %v47, %v254
  %v342 = vadd.f32 %v48, %v259
  %v343 = vadd.f32 %v49, %v262
  %v344 = vadd.f32 %v50, %v267
  %v345 = vadd.f32 %v51, %v270
  %v346 = vadd.f32 %v52, %v275
  %v347 = vadd.f32 %v53, %v278
  %v348 = vadd.f32 %v54, %v283
  %v349 = vadd.f32 %v55, %v286
  %v350 = vadd.f32 %v56, %v291
  %v351 = vadd.f32 %v57, %v294
  %v352 = vadd.f32 %v58, %v299
  %v353 = vadd.f32 %v59, %v302
  %v354 = vadd.f32 %v60, %v307
  %v355 = vadd.f32 %v61, %v310
  %v356 = vadd.f32 %v62, %v315
  %v357 = vadd.f32 %v63, %v318
  %v358 = vadd.f32 %v64, %v323
  %v359 = vadd.f32 %v65, %v326
  %v360 = vadd.f32 %v66, %v331
  %361 = vst.msk [vmem:[#allocation2] sm:$0xff] %vm156, %v336
  %362 = vst.msk [vmem:[#allocation2 + $0x8] sm:$0xff] %vm156, %v337
  %363 = vst.msk [vmem:[#allocation2 + $0x10] sm:$0xff] %vm156, %v338
  %364 = vst.msk [vmem:[#allocation2 + $0x18] sm:$0xff] %vm156, %v339
  %365 = vst.msk [vmem:[#allocation2 + $0x20] sm:$0xff] %vm156, %v340
  %366 = vst.msk [vmem:[#allocation2 + $0x28] sm:$0xff] %vm156, %v341
  %367 = vst.msk [vmem:[#allocation2 + $0x30] sm:$0xff] %vm156, %v342
  %368 = vst.msk [vmem:[#allocation2 + $0x38] sm:$0xff] %vm156, %v343
  %369 = vst.msk [vmem:[#allocation2 + $0x40] sm:$0xff] %vm156, %v344
  %370 = vst.msk [vmem:[#allocation2 + $0x48] sm:$0xff] %vm156, %v345
  %371 = vst.msk [vmem:[#allocation2 + $0x50] sm:$0xff] %vm156, %v346
  %372 = vst.msk [vmem:[#allocation2 + $0x58] sm:$0xff] %vm156, %v347
  %373 = vst.msk [vmem:[#allocation2 + $0x60] sm:$0xff] %vm156, %v348
  %374 = vst.msk [vmem:[#allocation2 + $0x68] sm:$0xff] %vm156, %v349
  %375 = vst.msk [vmem:[#allocation2 + $0x70] sm:$0xff] %vm156, %v350
  %376 = vst.msk [vmem:[#allocation2 + $0x78] sm:$0xff] %vm156, %v351
  %377 = vst.msk [vmem:[#allocation2 + $0x80] sm:$0xff] %vm156, %v352
  %378 = vst.msk [vmem:[#allocation2 + $0x88] sm:$0xff] %vm156, %v353
  %379 = vst.msk [vmem:[#allocation2 + $0x90] sm:$0xff] %vm156, %v354
  %380 = vst.msk [vmem:[#allocation2 + $0x98] sm:$0xff] %vm156, %v355
  %381 = vst.msk [vmem:[#allocation2 + $0xa0] sm:$0xff] %vm156, %v356
  %382 = vst.msk [vmem:[#allocation2 + $0xa8] sm:$0xff] %vm156, %v357
  %383 = vst.msk [vmem:[#allocation2 + $0xb0] sm:$0xff] %vm156, %v358
  %384 = vst.msk [vmem:[#allocation2 + $0xb8] sm:$0xff] %vm156, %v359
  %385 = vst.msk [vmem:[#allocation2 + $0xc0] sm:$0xff] %vm156, %v360
  // Predicated region
  $region14: #{mamba_block_forward.29} parent=0 // pred_check
    %p386 = pneg %p12
  $region15: #{mamba_block_forward.29} parent=0 // pred_check_branch
    %388 = sbr.rel (%p386) target = $region17
  $region16: #{mamba_block_forward.29} parent=0 // pred_region
    %v389 = vld [vmem:[#allocation2] sm:$0xff]
    %v390 = vld [vmem:[#allocation2 + $0x8] sm:$0xff]
    %v391 = vld [vmem:[#allocation2 + $0x10] sm:$0xff]
    %v392 = vld [vmem:[#allocation2 + $0x18] sm:$0xff]
    %v393 = vld [vmem:[#allocation2 + $0x20] sm:$0xff]
    %v394 = vld [vmem:[#allocation2 + $0x28] sm:$0xff]
    %v395 = vld [vmem:[#allocation2 + $0x30] sm:$0xff]
    %v396 = vld [vmem:[#allocation2 + $0x38] sm:$0xff]
    %v397 = vld [vmem:[#allocation2 + $0x40] sm:$0xff]
    %v398 = vld [vmem:[#allocation2 + $0x48] sm:$0xff]
    %v399 = vld [vmem:[#allocation2 + $0x50] sm:$0xff]
    %v400 = vld [vmem:[#allocation2 + $0x58] sm:$0xff]
    %v401 = vld [vmem:[#allocation2 + $0x60] sm:$0xff]
    %v402 = vld [vmem:[#allocation2 + $0x68] sm:$0xff]
    %v403 = vld [vmem:[#allocation2 + $0x70] sm:$0xff]
    %v404 = vld [vmem:[#allocation2 + $0x78] sm:$0xff]
    %v405 = vld [vmem:[#allocation2 + $0x80] sm:$0xff]
    %v406 = vld [vmem:[#allocation2 + $0x88] sm:$0xff]
    %v407 = vld [vmem:[#allocation2 + $0x90] sm:$0xff]
    %v408 = vld [vmem:[#allocation2 + $0x98] sm:$0xff]
    %v409 = vld [vmem:[#allocation2 + $0xa0] sm:$0xff]
    %v410 = vld [vmem:[#allocation2 + $0xa8] sm:$0xff]
    %v411 = vld [vmem:[#allocation2 + $0xb0] sm:$0xff]
    %v412 = vld [vmem:[#allocation2 + $0xb8] sm:$0xff]
    %v413 = vld [vmem:[#allocation2 + $0xc0] sm:$0xff]
    %414 = vst.msk [vmem:[%s2] sm:$0xff] %vm156, %v389
    %415 = vst.msk [vmem:[%s2 + $0x8] sm:$0xff] %vm156, %v390
    %416 = vst.msk [vmem:[%s2 + $0x10] sm:$0xff] %vm156, %v391
    %417 = vst.msk [vmem:[%s2 + $0x18] sm:$0xff] %vm156, %v392
    %418 = vst.msk [vmem:[%s2 + $0x20] sm:$0xff] %vm156, %v393
    %419 = vst.msk [vmem:[%s2 + $0x28] sm:$0xff] %vm156, %v394
    %420 = vst.msk [vmem:[%s2 + $0x30] sm:$0xff] %vm156, %v395
    %421 = vst.msk [vmem:[%s2 + $0x38] sm:$0xff] %vm156, %v396
    %422 = vst.msk [vmem:[%s2 + $0x40] sm:$0xff] %vm156, %v397
    %423 = vst.msk [vmem:[%s2 + $0x48] sm:$0xff] %vm156, %v398
    %424 = vst.msk [vmem:[%s2 + $0x50] sm:$0xff] %vm156, %v399
    %425 = vst.msk [vmem:[%s2 + $0x58] sm:$0xff] %vm156, %v400
    %426 = vst.msk [vmem:[%s2 + $0x60] sm:$0xff] %vm156, %v401
    %427 = vst.msk [vmem:[%s2 + $0x68] sm:$0xff] %vm156, %v402
    %428 = vst.msk [vmem:[%s2 + $0x70] sm:$0xff] %vm156, %v403
    %429 = vst.msk [vmem:[%s2 + $0x78] sm:$0xff] %vm156, %v404
    %430 = vst.msk [vmem:[%s2 + $0x80] sm:$0xff] %vm156, %v405
    %431 = vst.msk [vmem:[%s2 + $0x88] sm:$0xff] %vm156, %v406
    %432 = vst.msk [vmem:[%s2 + $0x90] sm:$0xff] %vm156, %v407
    %433 = vst.msk [vmem:[%s2 + $0x98] sm:$0xff] %vm156, %v408
    %434 = vst.msk [vmem:[%s2 + $0xa0] sm:$0xff] %vm156, %v409
    %435 = vst.msk [vmem:[%s2 + $0xa8] sm:$0xff] %vm156, %v410
    %436 = vst.msk [vmem:[%s2 + $0xb0] sm:$0xff] %vm156, %v411
    %437 = vst.msk [vmem:[%s2 + $0xb8] sm:$0xff] %vm156, %v412
    %438 = vst.msk [vmem:[%s2 + $0xc0] sm:$0xff] %vm156, %v413
  $region17: #{mamba_block_forward.29} parent=0 // pred_fallthru
    _
  // Predicated region
  $region18: #{mamba_block_forward.29} parent=0 // pred_check
    _
  $region19: #{mamba_block_forward.29} parent=0 // pred_check_branch
    %440 = sbr.rel (0) target = $region21
  $region20: #{mamba_block_forward.29} parent=0 // pred_region
    _
  $region21: #{mamba_block_forward.29} parent=0 // pred_fallthru
    _
  // Predicated region
  $region22: #{mamba_block_forward.29} parent=0 // pred_check
    _
  $region23: #{mamba_block_forward.29} parent=0 // pred_check_branch
    %442 = sbr.rel (0) target = $region25
  $region24: #{mamba_block_forward.29} parent=0 // pred_region
    _
  $region25: #{mamba_block_forward.29} parent=0 // pred_fallthru
    _

// kernel: mamba_block_forward.33
$region0: #{mamba_block_forward.33}
  #allocation0 [shape = 'u32[]', space=smem, size = 0x4, offset = 0x4, fixed_abs, tag = 'smem constant byte address 0x4 - core index']
  #allocation1 [shape = 'u32[144,128]{1,0:T(1,128)}', space=vmem, size = 0x12000, scoped, tag = 'internal scratch']
  #allocation2 [shape = 'f32[12,12,8]{2,1,0:T(8,128)}', space=vmem, size = 0x18000, scoped, tag = 'scratch operand']
  %s0 = inlined_call_operand.vmem [shape: bf16[2,10,10,8], index: 0, kind: input, shape index: {}]
  %s1 = inlined_call_operand.vmem [shape: f32[3,3,8], index: 1, kind: input, shape index: {}]
  %s2 = inlined_call_operand.vmem [shape: bf16[2,10,10,8], index: 2, kind: output, shape index: {}]
  %s3 = sld [smem:[#allocation0]]
  $region41: #{mamba_block_forward.33} parent=0
    _
  %s5 = ssub.s32 1, %s3
  %s6 = scalar_select 0, %s5, %s3
  loop: start=0, step=1, limit=4
  $region2: #{mamba_block_forward.33} parent=0 // loop_pre_header
    _
  $region3: #{mamba_block_forward.33} parent=0 // loop_header
    %s8 = sphi 0, %s12
    %p9 = scmp.ge.s32.totalorder %s8, 4
    %s15 = sphi 0, %s27
    %s16 = sphi 0, %s23
    %s17 = sphi 0, %s15
    %s18 = sphi 0, %s16
    %s19 = sphi 0, %s17
    %s20 = sphi 0, %s18
    %s32 = sphi 0, %s34
    %s35 = sphi 0, %s32
    %s36 = sphi 0, %s35
    %s52 = sphi 0, %s36
    %s58 = sphi 0, %s60
    %s61 = sphi 0, %s58
    %s62 = sphi 0, %s61
    %s78 = sphi 0, %s62
    %s86 = sphi 0, %s88
    %s89 = sphi 0, %s86
    %s90 = sphi 0, %s89
    %s106 = sphi 0, %s90
  $region4: #{mamba_block_forward.33} parent=0 // loop_header_branch
    %11 = sbr.rel (%p9) target = $region8
  $region5: #{mamba_block_forward.33} parent=0 // loop_body
    %s13 = ssub.s32 %s8, 1
    %s14 = ssub.s32 %s8, 2
    %s21 = sadd.s32 1, %s16
    %p22 = scmp.ge.s32.totalorder %s21, 1
    %s23 = scalar_select %p22, 0, %s21
    %s24 = sadd.s32 1, %s15
    %s25 = scalar_select %p22, %s24, %s15
    %p26 = scmp.ge.s32.totalorder %s25, 2
    %s27 = scalar_select %p26, 0, %s25
    %s28 = ssub.s32 %s15, %s27
    %s29 = ssub.s32 %s16, %s23
    %s30 = sor.u32 %s28, %s29
    %p31 = scmp.eq.s32.totalorder %s30, 0
    %s33 = sadd.s32 %s32, 1
    %s34 = scalar_select %p31, %s32, %s33
    %p37 = pneg %p31
    %p38 = scmp.eq.s32.totalorder %s8, 1
    %p39 = por %p37, %p38
    %p40 = scmp.ne.s32.totalorder %s32, %s35
    %p41 = scmp.eq.s32.totalorder %s8, 0
    %p42 = por %p40, %p41
    %p43 = scmp.ne.s32.totalorder %s32, %s35
    %p44 = scmp.eq.s32.totalorder %s13, 1
    %p45 = por %p43, %p44
    %p46 = scmp.ne.s32.totalorder %s35, %s36
    %p47 = scmp.eq.s32.totalorder %s13, 0
    %p48 = por %p46, %p47
    %p49 = scmp.ne.s32.totalorder %s35, %s36
    %p50 = scmp.eq.s32.totalorder %s14, 1
    %p51 = por %p49, %p50
    %p53 = scmp.ne.s32.totalorder %s36, %s52
    %p54 = scmp.eq.s32.totalorder %s14, 0
    %p55 = por %p53, %p54
    %s56 = ssub.s32 %s16, %s23
    %p57 = scmp.eq.s32.totalorder %s56, 0
    %s59 = sadd.s32 %s58, 1
    %s60 = scalar_select %p57, %s58, %s59
    %p63 = pneg %p57
    %p64 = scmp.eq.s32.totalorder %s8, 1
    %p65 = por %p63, %p64
    %p66 = scmp.ne.s32.totalorder %s58, %s61
    %p67 = scmp.eq.s32.totalorder %s8, 0
    %p68 = por %p66, %p67
    %p69 = scmp.ne.s32.totalorder %s58, %s61
    %p70 = scmp.eq.s32.totalorder %s13, 1
    %p71 = por %p69, %p70
    %p72 = scmp.ne.s32.totalorder %s61, %s62
    %p73 = scmp.eq.s32.totalorder %s13, 0
    %p74 = por %p72, %p73
    %p75 = scmp.ne.s32.totalorder %s61, %s62
    %p76 = scmp.eq.s32.totalorder %s14, 1
    %p77 = por %p75, %p76
    %p79 = scmp.ne.s32.totalorder %s62, %s78
    %p80 = scmp.eq.s32.totalorder %s14, 0
    %p81 = por %p79, %p80
    %s82 = ssub.s32 %s15, %s27
    %s83 = ssub.s32 %s16, %s23
    %s84 = sor.u32 %s82, %s83
    %p85 = scmp.eq.s32.totalorder %s84, 0
    %s87 = sadd.s32 %s86, 1
    %s88 = scalar_select %p85, %s86, %s87
    %p91 = pneg %p85
    %p92 = scmp.eq.s32.totalorder %s8, 1
    %p93 = por %p91, %p92
    %p94 = scmp.ne.s32.totalorder %s86, %s89
    %p95 = scmp.eq.s32.totalorder %s8, 0
    %p96 = por %p94, %p95
    %p97 = scmp.ne.s32.totalorder %s86, %s89
    %p98 = scmp.eq.s32.totalorder %s13, 1
    %p99 = por %p97, %p98
    %p100 = scmp.ne.s32.totalorder %s89, %s90
    %p101 = scmp.eq.s32.totalorder %s13, 0
    %p102 = por %p100, %p101
    %p103 = scmp.ne.s32.totalorder %s89, %s90
    %p104 = scmp.eq.s32.totalorder %s14, 1
    %p105 = por %p103, %p104
    %p107 = scmp.ne.s32.totalorder %s90, %s106
    %p108 = scmp.eq.s32.totalorder %s14, 0
    %p109 = por %p107, %p108
    %p110 = scmp.le.s32.totalorder 1, %s8
    %p111 = scmp.lt.s32.totalorder %s8, 3
    %p112 = pnand %p110, %p111
    %p113 = pneg %p112
    // Predicated region
    $region9: #{mamba_block_forward.33} parent=5 // pred_check
      _
    $region10: #{mamba_block_forward.33} parent=5 // pred_check_branch
      %115 = sbr.rel (%p112) target = $region12
    $region11: #{mamba_block_forward.33} parent=5 // pred_region
      %s116 = ssub.s32 %s8, 1
      // Predicated region
      $region13: #{mamba_block_forward.33} parent=11 // pred_check
        %p117 = pneg %p74
      $region14: #{mamba_block_forward.33} parent=11 // pred_check_branch
        %119 = sbr.rel (%p117) target = $region16
      $region15: #{mamba_block_forward.33} parent=11 // pred_region
        %p120 = scmp.lt.s32.totalorder %s18, 0
        %s121 = scalar_select %p120, %s18, 0
        %s122 = smul.addr %s121, 4
        %s123 = scalar_lea.vmem %s1, %s122
      $region16: #{mamba_block_forward.33} parent=11 // pred_fallthru
        _
    $region12: #{mamba_block_forward.33} parent=5 // pred_fallthru
      _
    %p124 = scmp.lt.s32.totalorder %s8, 2
    // Predicated region
    $region17: #{mamba_block_forward.33} parent=5 // pred_check
      %p125 = pneg %p124
    $region18: #{mamba_block_forward.33} parent=5 // pred_check_branch
      %127 = sbr.rel (%p125) target = $region20
    $region19: #{mamba_block_forward.33} parent=5 // pred_region
      // Predicated region
      $region21: #{mamba_block_forward.33} parent=19 // pred_check
        %p128 = pneg %p42
      $region22: #{mamba_block_forward.33} parent=19 // pred_check_branch
        %130 = sbr.rel (%p128) target = $region24
      $region23: #{mamba_block_forward.33} parent=19 // pred_region
        %p131 = scmp.lt.s32.totalorder %s15, 1
        %s132 = scalar_select %p131, %s15, 1
        %p133 = scmp.lt.s32.totalorder %s16, 0
        %s134 = scalar_select %p133, %s16, 0
        %s135 = smul.addr %s132, 20
        %s136 = sadd.s32 %s134, %s135
        %s137 = smul.addr %s136, 4
        %s138 = scalar_lea.vmem %s0, %s137
      $region24: #{mamba_block_forward.33} parent=19 // pred_fallthru
        _
    $region20: #{mamba_block_forward.33} parent=5 // pred_fallthru
      _
    %p139 = scmp.le.s32.totalorder 1, %s8
    %p140 = scmp.lt.s32.totalorder %s8, 3
    %p141 = pnand %p139, %p140
    %p142 = pneg %p141
    // Predicated region
    $region25: #{mamba_block_forward.33} parent=5 // pred_check
      _
    $region26: #{mamba_block_forward.33} parent=5 // pred_check_branch
      %144 = sbr.rel (%p141) target = $region28
    $region27: #{mamba_block_forward.33} parent=5 // pred_region
      %s145 = ssub.s32 %s8, 1
      %p146 = scmp.lt.s32.totalorder %s17, 1
      %s147 = scalar_select %p146, %s17, 1
      %p148 = scmp.lt.s32.totalorder %s18, 0
      %s149 = scalar_select %p148, %s18, 0
      %s150 = smul.addr %s147, 20
      %s151 = sadd.s32 %s149, %s150
      %s152 = smul.addr %s151, 4
      %s153 = scalar_lea.vmem %s0, %s152
      %p154 = pneg %p48
      %p155 = pneg %p45
      %p156 = scmp.lt.s32.totalorder %s18, 0
      %s157 = scalar_select %p156, %s18, 0
      %s158 = smul.addr %s157, 4
      %s159 = scalar_lea.vmem %s1, %s158
      %p160 = pneg %p74
      %p161 = pneg %p71
      %p162 = pneg %p102
      %p163 = pneg %p99
      %p164 = scmp.lt.s32.totalorder %s17, 1
      %s165 = scalar_select %p164, %s17, 1
      %p166 = scmp.lt.s32.totalorder %s18, 0
      %s167 = scalar_select %p166, %s18, 0
      %s168 = smul.addr %s165, 20
      %s169 = sadd.s32 %s167, %s168
      %s170 = smul.addr %s169, 4
      %s171 = scalar_lea.vmem %s2, %s170
      %p172 = scmp.lt.s32.totalorder %s17, 1
      %s173 = scalar_select %p172, %s17, 1
      %p174 = scmp.lt.s32.totalorder %s18, 0
      %s175 = scalar_select %p174, %s18, 0
      %s176 = smul.addr %s173, 20
      %s177 = sadd.s32 %s175, %s176
      %s178 = smul.addr %s177, 4
      %s179 = scalar_lea.vmem %s0, %s178
      %p180 = scmp.lt.s32.totalorder %s18, 0
      %s181 = scalar_select %p180, %s18, 0
      %s182 = smul.addr %s181, 4
      %s183 = scalar_lea.vmem %s1, %s182
      %p184 = scmp.lt.s32.totalorder %s17, 1
      %s185 = scalar_select %p184, %s17, 1
      %p186 = scmp.lt.s32.totalorder %s18, 0
      %s187 = scalar_select %p186, %s18, 0
      %s188 = smul.addr %s185, 20
      %s189 = sadd.s32 %s187, %s188
      %s190 = smul.addr %s189, 4
      %s191 = scalar_lea.vmem %s2, %s190
      %vm192 = vcmask 64512
      %193 = vst.msk [vmem:[#allocation2] sm:$0xff] %vm192, 0.0
      %vm194 = vcmask 60416
      %195 = vst.msk [vmem:[#allocation2 + $0x8] sm:$0xf] %vm194, 0.0
      %196 = vst.msk [vmem:[#allocation2 + $0x10] sm:$0xff] %vm192, 0.0
      %197 = vst.msk [vmem:[#allocation2 + $0x18] sm:$0xf] %vm194, 0.0
      %198 = vst.msk [vmem:[#allocation2 + $0x20] sm:$0xff] %vm192, 0.0
      %199 = vst.msk [vmem:[#allocation2 + $0x28] sm:$0xf] %vm194, 0.0
      %200 = vst.msk [vmem:[#allocation2 + $0x30] sm:$0xff] %vm192, 0.0
      %201 = vst.msk [vmem:[#allocation2 + $0x38] sm:$0xf] %vm194, 0.0
      %202 = vst.msk [vmem:[#allocation2 + $0x40] sm:$0xff] %vm192, 0.0
      %203 = vst.msk [vmem:[#allocation2 + $0x48] sm:$0xf] %vm194, 0.0
      %204 = vst.msk [vmem:[#allocation2 + $0x50] sm:$0xff] %vm192, 0.0
      %205 = vst.msk [vmem:[#allocation2 + $0x58] sm:$0xf] %vm194, 0.0
      %206 = vst.msk [vmem:[#allocation2 + $0x60] sm:$0xff] %vm192, 0.0
      %207 = vst.msk [vmem:[#allocation2 + $0x68] sm:$0xf] %vm194, 0.0
      %208 = vst.msk [vmem:[#allocation2 + $0x70] sm:$0xff] %vm192, 0.0
      %209 = vst.msk [vmem:[#allocation2 + $0x78] sm:$0xf] %vm194, 0.0
      %210 = vst.msk [vmem:[#allocation2 + $0x80] sm:$0xff] %vm192, 0.0
      %211 = vst.msk [vmem:[#allocation2 + $0x88] sm:$0xf] %vm194, 0.0
      %212 = vst.msk [vmem:[#allocation2 + $0x90] sm:$0xff] %vm192, 0.0
      %213 = vst.msk [vmem:[#allocation2 + $0x98] sm:$0xf] %vm194, 0.0
      %214 = vst.msk [vmem:[#allocation2 + $0xa0] sm:$0xff] %vm192, 0.0
      %215 = vst.msk [vmem:[#allocation2 + $0xa8] sm:$0xf] %vm194, 0.0
      %216 = vst.msk [vmem:[#allocation2 + $0xb0] sm:$0xff] %vm192, 0.0
      %217 = vst.msk [vmem:[#allocation2 + $0xb8] sm:$0xf] %vm194, 0.0
      %v218 = vld [vmem:[%s179] sm:$0xf]
      %v219 = vld [vmem:[%s179 + $0x4] sm:$0x1]
      %v220 = vld [vmem:[%s179 + $0x8] sm:$0xf]
      %v221 = vld [vmem:[%s179 + $0xc] sm:$0x1]
      %v222 = vld [vmem:[%s179 + $0x10] sm:$0xf]
      %v223 = vld [vmem:[%s179 + $0x14] sm:$0x1]
      %v224 = vld [vmem:[%s179 + $0x18] sm:$0xf]
      %v225 = vld [vmem:[%s179 + $0x1c] sm:$0x1]
      %v226 = vld [vmem:[%s179 + $0x20] sm:$0xf]
      %v227 = vld [vmem:[%s179 + $0x24] sm:$0x1]
      %v228 = vld [vmem:[%s179 + $0x28] sm:$0xf]
      %v229 = vld [vmem:[%s179 + $0x2c] sm:$0x1]
      %v230 = vld [vmem:[%s179 + $0x30] sm:$0xf]
      %v231 = vld [vmem:[%s179 + $0x34] sm:$0x1]
      %v232 = vld [vmem:[%s179 + $0x38] sm:$0xf]
      %v233 = vld [vmem:[%s179 + $0x3c] sm:$0x1]
      %v234 = vld [vmem:[%s179 + $0x40] sm:$0xf]
      %v235 = vld [vmem:[%s179 + $0x44] sm:$0x1]
      %v236 = vld [vmem:[%s179 + $0x48] sm:$0xf]
      %v237 = vld [vmem:[%s179 + $0x4c] sm:$0x1]
      %v238 = vunpack.c.l.bf16 %v218
      %v239 = vunpack.c.l.bf16 %v219
      %v240 = vunpack.c.l.bf16 %v220
      %v241 = vunpack.c.l.bf16 %v221
      %v242 = vunpack.c.l.bf16 %v222
      %v243 = vunpack.c.l.bf16 %v223
      %v244 = vunpack.c.l.bf16 %v224
      %v245 = vunpack.c.l.bf16 %v225
      %v246 = vunpack.c.l.bf16 %v226
      %v247 = vunpack.c.l.bf16 %v227
      %v248 = vunpack.c.l.bf16 %v228
      %v249 = vunpack.c.l.bf16 %v229
      %v250 = vunpack.c.l.bf16 %v230
      %v251 = vunpack.c.l.bf16 %v231
      %v252 = vunpack.c.l.bf16 %v232
      %v253 = vunpack.c.l.bf16 %v233
      %v254 = vunpack.c.l.bf16 %v234
      %v255 = vunpack.c.l.bf16 %v235
      %v256 = vunpack.c.l.bf16 %v236
      %v257 = vunpack.c.l.bf16 %v237
      %s258 = scalar_lea.vmem [#allocation2], 16
      %259 = vst.msk [vmem:[%s258 + $0x1] sm:$0xff] %vm192, %v238
      %vm260 = vcmask 58368
      %261 = vst.msk [vmem:[%s258 + $0x9] sm:$0x3] %vm260, %v239
      %262 = vst.msk [vmem:[%s258 + $0x11] sm:$0xff] %vm192, %v240
      %263 = vst.msk [vmem:[%s258 + $0x19] sm:$0x3] %vm260, %v241
      %264 = vst.msk [vmem:[%s258 + $0x21] sm:$0xff] %vm192, %v242
      %265 = vst.msk [vmem:[%s258 + $0x29] sm:$0x3] %vm260, %v243
      %266 = vst.msk [vmem:[%s258 + $0x31] sm:$0xff] %vm192, %v244
      %267 = vst.msk [vmem:[%s258 + $0x39] sm:$0x3] %vm260, %v245
      %268 = vst.msk [vmem:[%s258 + $0x41] sm:$0xff] %vm192, %v246
      %269 = vst.msk [vmem:[%s258 + $0x49] sm:$0x3] %vm260, %v247
      %270 = vst.msk [vmem:[%s258 + $0x51] sm:$0xff] %vm192, %v248
      %271 = vst.msk [vmem:[%s258 + $0x59] sm:$0x3] %vm260, %v249
      %272 = vst.msk [vmem:[%s258 + $0x61] sm:$0xff] %vm192, %v250
      %273 = vst.msk [vmem:[%s258 + $0x69] sm:$0x3] %vm260, %v251
      %274 = vst.msk [vmem:[%s258 + $0x71] sm:$0xff] %vm192, %v252
      %275 = vst.msk [vmem:[%s258 + $0x79] sm:$0x3] %vm260, %v253
      %276 = vst.msk [vmem:[%s258 + $0x81] sm:$0xff] %vm192, %v254
      %277 = vst.msk [vmem:[%s258 + $0x89] sm:$0x3] %vm260, %v255
      %278 = vst.msk [vmem:[%s258 + $0x91] sm:$0xff] %vm192, %v256
      %279 = vst.msk [vmem:[%s258 + $0x99] sm:$0x3] %vm260, %v257
      %v280 = vld [vmem:[%s183] sm:$0x7]
      %v281 = vld [vmem:[%s183 + $0x4] sm:$0x7]
      %v282 = vld [vmem:[%s183 + $0x8] sm:$0x7]
      %v283 = vld [vmem:[#allocation2] sm:$0xff]
      %v284 = vld [vmem:[#allocation2 + $0x8] sm:$0x3]
      %v285 = vld [vmem:[#allocation2 + $0x10] sm:$0xff]
      %v286 = vld [vmem:[#allocation2 + $0x18] sm:$0x3]
      %v287 = vld [vmem:[#allocation2 + $0x20] sm:$0xff]
      %v288 = vld [vmem:[#allocation2 + $0x28] sm:$0x3]
      %v289 = vld [vmem:[#allocation2 + $0x30] sm:$0xff]
      %v290 = vld [vmem:[#allocation2 + $0x38] sm:$0x3]
      %v291 = vld [vmem:[#allocation2 + $0x40] sm:$0xff]
      %v292 = vld [vmem:[#allocation2 + $0x48] sm:$0x3]
      %v293 = vld [vmem:[#allocation2 + $0x50] sm:$0xff]
      %v294 = vld [vmem:[#allocation2 + $0x58] sm:$0x3]
      %v295 = vld [vmem:[#allocation2 + $0x60] sm:$0xff]
      %v296 = vld [vmem:[#allocation2 + $0x68] sm:$0x3]
      %v297 = vld [vmem:[#allocation2 + $0x70] sm:$0xff]
      %v298 = vld [vmem:[#allocation2 + $0x78] sm:$0x3]
      %v299 = vld [vmem:[#allocation2 + $0x80] sm:$0xff]
      %v300 = vld [vmem:[#allocation2 + $0x88] sm:$0x3]
      %v301 = vld [vmem:[#allocation2 + $0x90] sm:$0xff]
      %v302 = vld [vmem:[#allocation2 + $0x98] sm:$0x3]
      %v303 = vlaneseq
      %v304 = vshrl.u32 %v303, 7
      %v305 = vsub.s32 0, %v304
      %v306 = vrot.slane %v280, %v305
      %v307 = vmul.f32 %v283, %v306
      %v308 = vmul.f32 %v284, %v306
      %v309 = vmul.f32 %v285, %v306
      %v310 = vmul.f32 %v286, %v306
      %v311 = vmul.f32 %v287, %v306
      %v312 = vmul.f32 %v288, %v306
      %v313 = vmul.f32 %v289, %v306
      %v314 = vmul.f32 %v290, %v306
      %v315 = vmul.f32 %v291, %v306
      %v316 = vmul.f32 %v292, %v306
      %v317 = vmul.f32 %v293, %v306
      %v318 = vmul.f32 %v294, %v306
      %v319 = vmul.f32 %v295, %v306
      %v320 = vmul.f32 %v296, %v306
      %v321 = vmul.f32 %v297, %v306
      %v322 = vmul.f32 %v298, %v306
      %v323 = vmul.f32 %v299, %v306
      %v324 = vmul.f32 %v300, %v306
      %v325 = vmul.f32 %v301, %v306
      %v326 = vmul.f32 %v302, %v306
      %v327 = vld [vmem:[#allocation2 + $0x1] sm:$0xff]
      %v328 = vld [vmem:[#allocation2 + $0x9] sm:$0x3]
      %v329 = vld [vmem:[#allocation2 + $0x11] sm:$0xff]
      %v330 = vld [vmem:[#allocation2 + $0x19] sm:$0x3]
      %v331 = vld [vmem:[#allocation2 + $0x21] sm:$0xff]
      %v332 = vld [vmem:[#allocation2 + $0x29] sm:$0x3]
      %v333 = vld [vmem:[#allocation2 + $0x31] sm:$0xff]
      %v334 = vld [vmem:[#allocation2 + $0x39] sm:$0x3]
      %v335 = vld [vmem:[#allocation2 + $0x41] sm:$0xff]
      %v336 = vld [vmem:[#allocation2 + $0x49] sm:$0x3]
      %v337 = vld [vmem:[#allocation2 + $0x51] sm:$0xff]
      %v338 = vld [vmem:[#allocation2 + $0x59] sm:$0x3]
      %v339 = vld [vmem:[#allocation2 + $0x61] sm:$0xff]
      %v340 = vld [vmem:[#allocation2 + $0x69] sm:$0x3]
      %v341 = vld [vmem:[#allocation2 + $0x71] sm:$0xff]
      %v342 = vld [vmem:[#allocation2 + $0x79] sm:$0x3]
      %v343 = vld [vmem:[#allocation2 + $0x81] sm:$0xff]
      %v344 = vld [vmem:[#allocation2 + $0x89] sm:$0x3]
      %v345 = vld [vmem:[#allocation2 + $0x91] sm:$0xff]
      %v346 = vld [vmem:[#allocation2 + $0x99] sm:$0x3]
      %v347 = vlaneseq
      %v348 = vshrl.u32 %v347, 7
      %v349 = vsub.s32 1, %v348
      %v350 = vrot.slane %v280, %v349
      %v351 = vmul.f32 %v327, %v350
      %v352 = vmul.f32 %v328, %v350
      %v353 = vmul.f32 %v329, %v350
      %v354 = vmul.f32 %v330, %v350
      %v355 = vmul.f32 %v331, %v350
      %v356 = vmul.f32 %v332, %v350
      %v357 = vmul.f32 %v333, %v350
      %v358 = vmul.f32 %v334, %v350
      %v359 = vmul.f32 %v335, %v350
      %v360 = vmul.f32 %v336, %v350
      %v361 = vmul.f32 %v337, %v350
      %v362 = vmul.f32 %v338, %v350
      %v363 = vmul.f32 %v339, %v350
      %v364 = vmul.f32 %v340, %v350
      %v365 = vmul.f32 %v341, %v350
      %v366 = vmul.f32 %v342, %v350
      %v367 = vmul.f32 %v343, %v350
      %v368 = vmul.f32 %v344, %v350
      %v369 = vmul.f32 %v345, %v350
      %v370 = vmul.f32 %v346, %v350
      %v371 = vadd.f32 %v307, %v351
      %v372 = vadd.f32 %v308, %v352
      %v373 = vadd.f32 %v309, %v353
      %v374 = vadd.f32 %v310, %v354
      %v375 = vadd.f32 %v311, %v355
      %v376 = vadd.f32 %v312, %v356
      %v377 = vadd.f32 %v313, %v357
      %v378 = vadd.f32 %v314, %v358
      %v379 = vadd.f32 %v315, %v359
      %v380 = vadd.f32 %v316, %v360
      %v381 = vadd.f32 %v317, %v361
      %v382 = vadd.f32 %v318, %v362
      %v383 = vadd.f32 %v319, %v363
      %v384 = vadd.f32 %v320, %v364
      %v385 = vadd.f32 %v321, %v365
      %v386 = vadd.f32 %v322, %v366
      %v387 = vadd.f32 %v323, %v367
      %v388 = vadd.f32 %v324, %v368
      %v389 = vadd.f32 %v325, %v369
      %v390 = vadd.f32 %v326, %v370
      %v391 = vld [vmem:[#allocation2 + $0x2] sm:$0xff]
      %v392 = vld [vmem:[#allocation2 + $0xa] sm:$0x3]
      %v393 = vld [vmem:[#allocation2 + $0x12] sm:$0xff]
      %v394 = vld [vmem:[#allocation2 + $0x1a] sm:$0x3]
      %v395 = vld [vmem:[#allocation2 + $0x22] sm:$0xff]
      %v396 = vld [vmem:[#allocation2 + $0x2a] sm:$0x3]
      %v397 = vld [vmem:[#allocation2 + $0x32] sm:$0xff]
      %v398 = vld [vmem:[#allocation2 + $0x3a] sm:$0x3]
      %v399 = vld [vmem:[#allocation2 + $0x42] sm:$0xff]
      %v400 = vld [vmem:[#allocation2 + $0x4a] sm:$0x3]
      %v401 = vld [vmem:[#allocation2 + $0x52] sm:$0xff]
      %v402 = vld [vmem:[#allocation2 + $0x5a] sm:$0x3]
      %v403 = vld [vmem:[#allocation2 + $0x62] sm:$0xff]
      %v404 = vld [vmem:[#allocation2 + $0x6a] sm:$0x3]
      %v405 = vld [vmem:[#allocation2 + $0x72] sm:$0xff]
      %v406 = vld [vmem:[#allocation2 + $0x7a] sm:$0x3]
      %v407 = vld [vmem:[#allocation2 + $0x82] sm:$0xff]
      %v408 = vld [vmem:[#allocation2 + $0x8a] sm:$0x3]
      %v409 = vld [vmem:[#allocation2 + $0x92] sm:$0xff]
      %v410 = vld [vmem:[#allocation2 + $0x9a] sm:$0x3]
      %v411 = vlaneseq
      %v412 = vshrl.u32 %v411, 7
      %v413 = vsub.s32 2, %v412
      %v414 = vrot.slane %v280, %v413
      %v415 = vmul.f32 %v391, %v414
      %v416 = vmul.f32 %v392, %v414
      %v417 = vmul.f32 %v393, %v414
      %v418 = vmul.f32 %v394, %v414
      %v419 = vmul.f32 %v395, %v414
      %v420 = vmul.f32 %v396, %v414
      %v421 = vmul.f32 %v397, %v414
      %v422 = vmul.f32 %v398, %v414
      %v423 = vmul.f32 %v399, %v414
      %v424 = vmul.f32 %v400, %v414
      %v425 = vmul.f32 %v401, %v414
      %v426 = vmul.f32 %v402, %v414
      %v427 = vmul.f32 %v403, %v414
      %v428 = vmul.f32 %v404, %v414
      %v429 = vmul.f32 %v405, %v414
      %v430 = vmul.f32 %v406, %v414
      %v431 = vmul.f32 %v407, %v414
      %v432 = vmul.f32 %v408, %v414
      %v433 = vmul.f32 %v409, %v414
      %v434 = vmul.f32 %v410, %v414
      %v435 = vadd.f32 %v371, %v415
      %v436 = vadd.f32 %v372, %v416
      %v437 = vadd.f32 %v373, %v417
      %v438 = vadd.f32 %v374, %v418
      %v439 = vadd.f32 %v375, %v419
      %v440 = vadd.f32 %v376, %v420
      %v441 = vadd.f32 %v377, %v421
      %v442 = vadd.f32 %v378, %v422
      %v443 = vadd.f32 %v379, %v423
      %v444 = vadd.f32 %v380, %v424
      %v445 = vadd.f32 %v381, %v425
      %v446 = vadd.f32 %v382, %v426
      %v447 = vadd.f32 %v383, %v427
      %v448 = vadd.f32 %v384, %v428
      %v449 = vadd.f32 %v385, %v429
      %v450 = vadd.f32 %v386, %v430
      %v451 = vadd.f32 %v387, %v431
      %v452 = vadd.f32 %v388, %v432
      %v453 = vadd.f32 %v389, %v433
      %v454 = vadd.f32 %v390, %v434
      %v455 = vld [vmem:[%s258] sm:$0xff]
      %v456 = vld [vmem:[%s258 + $0x8] sm:$0x3]
      %v457 = vld [vmem:[%s258 + $0x10] sm:$0xff]
      %v458 = vld [vmem:[%s258 + $0x18] sm:$0x3]
      %v459 = vld [vmem:[%s258 + $0x20] sm:$0xff]
      %v460 = vld [vmem:[%s258 + $0x28] sm:$0x3]
      %v461 = vld [vmem:[%s258 + $0x30] sm:$0xff]
      %v462 = vld [vmem:[%s258 + $0x38] sm:$0x3]
      %v463 = vld [vmem:[%s258 + $0x40] sm:$0xff]
      %v464 = vld [vmem:[%s258 + $0x48] sm:$0x3]
      %v465 = vld [vmem:[%s258 + $0x50] sm:$0xff]
      %v466 = vld [vmem:[%s258 + $0x58] sm:$0x3]
      %v467 = vld [vmem:[%s258 + $0x60] sm:$0xff]
      %v468 = vld [vmem:[%s258 + $0x68] sm:$0x3]
      %v469 = vld [vmem:[%s258 + $0x70] sm:$0xff]
      %v470 = vld [vmem:[%s258 + $0x78] sm:$0x3]
      %v471 = vld [vmem:[%s258 + $0x80] sm:$0xff]
      %v472 = vld [vmem:[%s258 + $0x88] sm:$0x3]
      %v473 = vld [vmem:[%s258 + $0x90] sm:$0xff]
      %v474 = vld [vmem:[%s258 + $0x98] sm:$0x3]
      %v475 = vlaneseq
      %v476 = vshrl.u32 %v475, 7
      %v477 = vsub.s32 0, %v476
      %v478 = vrot.slane %v281, %v477
      %v479 = vmul.f32 %v455, %v478
      %v480 = vmul.f32 %v456, %v478
      %v481 = vmul.f32 %v457, %v478
      %v482 = vmul.f32 %v458, %v478
      %v483 = vmul.f32 %v459, %v478
      %v484 = vmul.f32 %v460, %v478
      %v485 = vmul.f32 %v461, %v478
      %v486 = vmul.f32 %v462, %v478
      %v487 = vmul.f32 %v463, %v478
      %v488 = vmul.f32 %v464, %v478
      %v489 = vmul.f32 %v465, %v478
      %v490 = vmul.f32 %v466, %v478
      %v491 = vmul.f32 %v467, %v478
      %v492 = vmul.f32 %v468, %v478
      %v493 = vmul.f32 %v469, %v478
      %v494 = vmul.f32 %v470, %v478
      %v495 = vmul.f32 %v471, %v478
      %v496 = vmul.f32 %v472, %v478
      %v497 = vmul.f32 %v473, %v478
      %v498 = vmul.f32 %v474, %v478
      %v499 = vadd.f32 %v435, %v479
      %v500 = vadd.f32 %v436, %v480
      %v501 = vadd.f32 %v437, %v481
      %v502 = vadd.f32 %v438, %v482
      %v503 = vadd.f32 %v439, %v483
      %v504 = vadd.f32 %v440, %v484
      %v505 = vadd.f32 %v441, %v485
      %v506 = vadd.f32 %v442, %v486
      %v507 = vadd.f32 %v443, %v487
      %v508 = vadd.f32 %v444, %v488
      %v509 = vadd.f32 %v445, %v489
      %v510 = vadd.f32 %v446, %v490
      %v511 = vadd.f32 %v447, %v491
      %v512 = vadd.f32 %v448, %v492
      %v513 = vadd.f32 %v449, %v493
      %v514 = vadd.f32 %v450, %v494
      %v515 = vadd.f32 %v451, %v495
      %v516 = vadd.f32 %v452, %v496
      %v517 = vadd.f32 %v453, %v497
      %v518 = vadd.f32 %v454, %v498
      %v519 = vld [vmem:[%s258 + $0x1] sm:$0xff]
      %v520 = vld [vmem:[%s258 + $0x9] sm:$0x3]
      %v521 = vld [vmem:[%s258 + $0x11] sm:$0xff]
      %v522 = vld [vmem:[%s258 + $0x19] sm:$0x3]
      %v523 = vld [vmem:[%s258 + $0x21] sm:$0xff]
      %v524 = vld [vmem:[%s258 + $0x29] sm:$0x3]
      %v525 = vld [vmem:[%s258 + $0x31] sm:$0xff]
      %v526 = vld [vmem:[%s258 + $0x39] sm:$0x3]
      %v527 = vld [vmem:[%s258 + $0x41] sm:$0xff]
      %v528 = vld [vmem:[%s258 + $0x49] sm:$0x3]
      %v529 = vld [vmem:[%s258 + $0x51] sm:$0xff]
      %v530 = vld [vmem:[%s258 + $0x59] sm:$0x3]
      %v531 = vld [vmem:[%s258 + $0x61] sm:$0xff]
      %v532 = vld [vmem:[%s258 + $0x69] sm:$0x3]
      %v533 = vld [vmem:[%s258 + $0x71] sm:$0xff]
      %v534 = vld [vmem:[%s258 + $0x79] sm:$0x3]
      %v535 = vld [vmem:[%s258 + $0x81] sm:$0xff]
      %v536 = vld [vmem:[%s258 + $0x89] sm:$0x3]
      %v537 = vld [vmem:[%s258 + $0x91] sm:$0xff]
      %v538 = vld [vmem:[%s258 + $0x99] sm:$0x3]
      %v539 = vlaneseq
      %v540 = vshrl.u32 %v539, 7
      %v541 = vsub.s32 1, %v540
      %v542 = vrot.slane %v281, %v541
      %v543 = vmul.f32 %v519, %v542
      %v544 = vmul.f32 %v520, %v542
      %v545 = vmul.f32 %v521, %v542
      %v546 = vmul.f32 %v522, %v542
      %v547 = vmul.f32 %v523, %v542
      %v548 = vmul.f32 %v524, %v542
      %v549 = vmul.f32 %v525, %v542
      %v550 = vmul.f32 %v526, %v542
      %v551 = vmul.f32 %v527, %v542
      %v552 = vmul.f32 %v528, %v542
      %v553 = vmul.f32 %v529, %v542
      %v554 = vmul.f32 %v530, %v542
      %v555 = vmul.f32 %v531, %v542
      %v556 = vmul.f32 %v532, %v542
      %v557 = vmul.f32 %v533, %v542
      %v558 = vmul.f32 %v534, %v542
      %v559 = vmul.f32 %v535, %v542
      %v560 = vmul.f32 %v536, %v542
      %v561 = vmul.f32 %v537, %v542
      %v562 = vmul.f32 %v538, %v542
      %v563 = vadd.f32 %v499, %v543
      %v564 = vadd.f32 %v500, %v544
      %v565 = vadd.f32 %v501, %v545
      %v566 = vadd.f32 %v502, %v546
      %v567 = vadd.f32 %v503, %v547
      %v568 = vadd.f32 %v504, %v548
      %v569 = vadd.f32 %v505, %v549
      %v570 = vadd.f32 %v506, %v550
      %v571 = vadd.f32 %v507, %v551
      %v572 = vadd.f32 %v508, %v552
      %v573 = vadd.f32 %v509, %v553
      %v574 = vadd.f32 %v510, %v554
      %v575 = vadd.f32 %v511, %v555
      %v576 = vadd.f32 %v512, %v556
      %v577 = vadd.f32 %v513, %v557
      %v578 = vadd.f32 %v514, %v558
      %v579 = vadd.f32 %v515, %v559
      %v580 = vadd.f32 %v516, %v560
      %v581 = vadd.f32 %v517, %v561
      %v582 = vadd.f32 %v518, %v562
      %v583 = vld [vmem:[%s258 + $0x2] sm:$0xff]
      %v584 = vld [vmem:[%s258 + $0xa] sm:$0x3]
      %v585 = vld [vmem:[%s258 + $0x12] sm:$0xff]
      %v586 = vld [vmem:[%s258 + $0x1a] sm:$0x3]
      %v587 = vld [vmem:[%s258 + $0x22] sm:$0xff]
      %v588 = vld [vmem:[%s258 + $0x2a] sm:$0x3]
      %v589 = vld [vmem:[%s258 + $0x32] sm:$0xff]
      %v590 = vld [vmem:[%s258 + $0x3a] sm:$0x3]
      %v591 = vld [vmem:[%s258 + $0x42] sm:$0xff]
      %v592 = vld [vmem:[%s258 + $0x4a] sm:$0x3]
      %v593 = vld [vmem:[%s258 + $0x52] sm:$0xff]
      %v594 = vld [vmem:[%s258 + $0x5a] sm:$0x3]
      %v595 = vld [vmem:[%s258 + $0x62] sm:$0xff]
      %v596 = vld [vmem:[%s258 + $0x6a] sm:$0x3]
      %v597 = vld [vmem:[%s258 + $0x72] sm:$0xff]
      %v598 = vld [vmem:[%s258 + $0x7a] sm:$0x3]
      %v599 = vld [vmem:[%s258 + $0x82] sm:$0xff]
      %v600 = vld [vmem:[%s258 + $0x8a] sm:$0x3]
      %v601 = vld [vmem:[%s258 + $0x92] sm:$0xff]
      %v602 = vld [vmem:[%s258 + $0x9a] sm:$0x3]
      %v603 = vlaneseq
      %v604 = vshrl.u32 %v603, 7
      %v605 = vsub.s32 2, %v604
      %v606 = vrot.slane %v281, %v605
      %v607 = vmul.f32 %v583, %v606
      %v608 = vmul.f32 %v584, %v606
      %v609 = vmul.f32 %v585, %v606
      %v610 = vmul.f32 %v586, %v606
      %v611 = vmul.f32 %v587, %v606
      %v612 = vmul.f32 %v588, %v606
      %v613 = vmul.f32 %v589, %v606
      %v614 = vmul.f32 %v590, %v606
      %v615 = vmul.f32 %v591, %v606
      %v616 = vmul.f32 %v592, %v606
      %v617 = vmul.f32 %v593, %v606
      %v618 = vmul.f32 %v594, %v606
      %v619 = vmul.f32 %v595, %v606
      %v620 = vmul.f32 %v596, %v606
      %v621 = vmul.f32 %v597, %v606
      %v622 = vmul.f32 %v598, %v606
      %v623 = vmul.f32 %v599, %v606
      %v624 = vmul.f32 %v600, %v606
      %v625 = vmul.f32 %v601, %v606
      %v626 = vmul.f32 %v602, %v606
      %v627 = vadd.f32 %v563, %v607
      %v628 = vadd.f32 %v564, %v608
      %v629 = vadd.f32 %v565, %v609
      %v630 = vadd.f32 %v566, %v610
      %v631 = vadd.f32 %v567, %v611
      %v632 = vadd.f32 %v568, %v612
      %v633 = vadd.f32 %v569, %v613
      %v634 = vadd.f32 %v570, %v614
      %v635 = vadd.f32 %v571, %v615
      %v636 = vadd.f32 %v572, %v616
      %v637 = vadd.f32 %v573, %v617
      %v638 = vadd.f32 %v574, %v618
      %v639 = vadd.f32 %v575, %v619
      %v640 = vadd.f32 %v576, %v620
      %v641 = vadd.f32 %v577, %v621
      %v642 = vadd.f32 %v578, %v622
      %v643 = vadd.f32 %v579, %v623
      %v644 = vadd.f32 %v580, %v624
      %v645 = vadd.f32 %v581, %v625
      %v646 = vadd.f32 %v582, %v626
      %s647 = scalar_lea.vmem [#allocation2], 32
      %v648 = vld [vmem:[%s647] sm:$0xff]
      %v649 = vld [vmem:[%s647 + $0x8] sm:$0x3]
      %v650 = vld [vmem:[%s647 + $0x10] sm:$0xff]
      %v651 = vld [vmem:[%s647 + $0x18] sm:$0x3]
      %v652 = vld [vmem:[%s647 + $0x20] sm:$0xff]
      %v653 = vld [vmem:[%s647 + $0x28] sm:$0x3]
      %v654 = vld [vmem:[%s647 + $0x30] sm:$0xff]
      %v655 = vld [vmem:[%s647 + $0x38] sm:$0x3]
      %v656 = vld [vmem:[%s647 + $0x40] sm:$0xff]
      %v657 = vld [vmem:[%s647 + $0x48] sm:$0x3]
      %v658 = vld [vmem:[%s647 + $0x50] sm:$0xff]
      %v659 = vld [vmem:[%s647 + $0x58] sm:$0x3]
      %v660 = vld [vmem:[%s647 + $0x60] sm:$0xff]
      %v661 = vld [vmem:[%s647 + $0x68] sm:$0x3]
      %v662 = vld [vmem:[%s647 + $0x70] sm:$0xff]
      %v663 = vld [vmem:[%s647 + $0x78] sm:$0x3]
      %v664 = vld [vmem:[%s647 + $0x80] sm:$0xff]
      %v665 = vld [vmem:[%s647 + $0x88] sm:$0x3]
      %v666 = vld [vmem:[%s647 + $0x90] sm:$0xff]
      %v667 = vld [vmem:[%s647 + $0x98] sm:$0x3]
      %v668 = vlaneseq
      %v669 = vshrl.u32 %v668, 7
      %v670 = vsub.s32 0, %v669
      %v671 = vrot.slane %v282, %v670
      %v672 = vmul.f32 %v648, %v671
      %v673 = vmul.f32 %v649, %v671
      %v674 = vmul.f32 %v650, %v671
      %v675 = vmul.f32 %v651, %v671
      %v676 = vmul.f32 %v652, %v671
      %v677 = vmul.f32 %v653, %v671
      %v678 = vmul.f32 %v654, %v671
      %v679 = vmul.f32 %v655, %v671
      %v680 = vmul.f32 %v656, %v671
      %v681 = vmul.f32 %v657, %v671
      %v682 = vmul.f32 %v658, %v671
      %v683 = vmul.f32 %v659, %v671
      %v684 = vmul.f32 %v660, %v671
      %v685 = vmul.f32 %v661, %v671
      %v686 = vmul.f32 %v662, %v671
      %v687 = vmul.f32 %v663, %v671
      %v688 = vmul.f32 %v664, %v671
      %v689 = vmul.f32 %v665, %v671
      %v690 = vmul.f32 %v666, %v671
      %v691 = vmul.f32 %v667, %v671
      %v692 = vadd.f32 %v627, %v672
      %v693 = vadd.f32 %v628, %v673
      %v694 = vadd.f32 %v629, %v674
      %v695 = vadd.f32 %v630, %v675
      %v696 = vadd.f32 %v631, %v676
      %v697 = vadd.f32 %v632, %v677
      %v698 = vadd.f32 %v633, %v678
      %v699 = vadd.f32 %v634, %v679
      %v700 = vadd.f32 %v635, %v680
      %v701 = vadd.f32 %v636, %v681
      %v702 = vadd.f32 %v637, %v682
      %v703 = vadd.f32 %v638, %v683
      %v704 = vadd.f32 %v639, %v684
      %v705 = vadd.f32 %v640, %v685
      %v706 = vadd.f32 %v641, %v686
      %v707 = vadd.f32 %v642, %v687
      %v708 = vadd.f32 %v643, %v688
      %v709 = vadd.f32 %v644, %v689
      %v710 = vadd.f32 %v645, %v690
      %v711 = vadd.f32 %v646, %v691
      %v712 = vld [vmem:[%s647 + $0x1] sm:$0xff]
      %v713 = vld [vmem:[%s647 + $0x9] sm:$0x3]
      %v714 = vld [vmem:[%s647 + $0x11] sm:$0xff]
      %v715 = vld [vmem:[%s647 + $0x19] sm:$0x3]
      %v716 = vld [vmem:[%s647 + $0x21] sm:$0xff]
      %v717 = vld [vmem:[%s647 + $0x29] sm:$0x3]
      %v718 = vld [vmem:[%s647 + $0x31] sm:$0xff]
      %v719 = vld [vmem:[%s647 + $0x39] sm:$0x3]
      %v720 = vld [vmem:[%s647 + $0x41] sm:$0xff]
      %v721 = vld [vmem:[%s647 + $0x49] sm:$0x3]
      %v722 = vld [vmem:[%s647 + $0x51] sm:$0xff]
      %v723 = vld [vmem:[%s647 + $0x59] sm:$0x3]
      %v724 = vld [vmem:[%s647 + $0x61] sm:$0xff]
      %v725 = vld [vmem:[%s647 + $0x69] sm:$0x3]
      %v726 = vld [vmem:[%s647 + $0x71] sm:$0xff]
      %v727 = vld [vmem:[%s647 + $0x79] sm:$0x3]
      %v728 = vld [vmem:[%s647 + $0x81] sm:$0xff]
      %v729 = vld [vmem:[%s647 + $0x89] sm:$0x3]
      %v730 = vld [vmem:[%s647 + $0x91] sm:$0xff]
      %v731 = vld [vmem:[%s647 + $0x99] sm:$0x3]
      %v732 = vlaneseq
      %v733 = vshrl.u32 %v732, 7
      %v734 = vsub.s32 1, %v733
      %v735 = vrot.slane %v282, %v734
      %v736 = vmul.f32 %v712, %v735
      %v737 = vmul.f32 %v713, %v735
      %v738 = vmul.f32 %v714, %v735
      %v739 = vmul.f32 %v715, %v735
      %v740 = vmul.f32 %v716, %v735
      %v741 = vmul.f32 %v717, %v735
      %v742 = vmul.f32 %v718, %v735
      %v743 = vmul.f32 %v719, %v735
      %v744 = vmul.f32 %v720, %v735
      %v745 = vmul.f32 %v721, %v735
      %v746 = vmul.f32 %v722, %v735
      %v747 = vmul.f32 %v723, %v735
      %v748 = vmul.f32 %v724, %v735
      %v749 = vmul.f32 %v725, %v735
      %v750 = vmul.f32 %v726, %v735
      %v751 = vmul.f32 %v727, %v735
      %v752 = vmul.f32 %v728, %v735
      %v753 = vmul.f32 %v729, %v735
      %v754 = vmul.f32 %v730, %v735
      %v755 = vmul.f32 %v731, %v735
      %v756 = vadd.f32 %v692, %v736
      %v757 = vadd.f32 %v693, %v737
      %v758 = vadd.f32 %v694, %v738
      %v759 = vadd.f32 %v695, %v739
      %v760 = vadd.f32 %v696, %v740
      %v761 = vadd.f32 %v697, %v741
      %v762 = vadd.f32 %v698, %v742
      %v763 = vadd.f32 %v699, %v743
      %v764 = vadd.f32 %v700, %v744
      %v765 = vadd.f32 %v701, %v745
      %v766 = vadd.f32 %v702, %v746
      %v767 = vadd.f32 %v703, %v747
      %v768 = vadd.f32 %v704, %v748
      %v769 = vadd.f32 %v705, %v749
      %v770 = vadd.f32 %v706, %v750
      %v771 = vadd.f32 %v707, %v751
      %v772 = vadd.f32 %v708, %v752
      %v773 = vadd.f32 %v709, %v753
      %v774 = vadd.f32 %v710, %v754
      %v775 = vadd.f32 %v711, %v755
      %v776 = vld [vmem:[%s647 + $0x2] sm:$0xff]
      %v777 = vld [vmem:[%s647 + $0xa] sm:$0x3]
      %v778 = vld [vmem:[%s647 + $0x12] sm:$0xff]
      %v779 = vld [vmem:[%s647 + $0x1a] sm:$0x3]
      %v780 = vld [vmem:[%s647 + $0x22] sm:$0xff]
      %v781 = vld [vmem:[%s647 + $0x2a] sm:$0x3]
      %v782 = vld [vmem:[%s647 + $0x32] sm:$0xff]
      %v783 = vld [vmem:[%s647 + $0x3a] sm:$0x3]
      %v784 = vld [vmem:[%s647 + $0x42] sm:$0xff]
      %v785 = vld [vmem:[%s647 + $0x4a] sm:$0x3]
      %v786 = vld [vmem:[%s647 + $0x52] sm:$0xff]
      %v787 = vld [vmem:[%s647 + $0x5a] sm:$0x3]
      %v788 = vld [vmem:[%s647 + $0x62] sm:$0xff]
      %v789 = vld [vmem:[%s647 + $0x6a] sm:$0x3]
      %v790 = vld [vmem:[%s647 + $0x72] sm:$0xff]
      %v791 = vld [vmem:[%s647 + $0x7a] sm:$0x3]
      %v792 = vld [vmem:[%s647 + $0x82] sm:$0xff]
      %v793 = vld [vmem:[%s647 + $0x8a] sm:$0x3]
      %v794 = vld [vmem:[%s647 + $0x92] sm:$0xff]
      %v795 = vld [vmem:[%s647 + $0x9a] sm:$0x3]
      %v796 = vlaneseq
      %v797 = vshrl.u32 %v796, 7
      %v798 = vsub.s32 2, %v797
      %v799 = vrot.slane %v282, %v798
      %v800 = vmul.f32 %v776, %v799
      %v801 = vmul.f32 %v777, %v799
      %v802 = vmul.f32 %v778, %v799
      %v803 = vmul.f32 %v779, %v799
      %v804 = vmul.f32 %v780, %v799
      %v805 = vmul.f32 %v781, %v799
      %v806 = vmul.f32 %v782, %v799
      %v807 = vmul.f32 %v783, %v799
      %v808 = vmul.f32 %v784, %v799
      %v809 = vmul.f32 %v785, %v799
      %v810 = vmul.f32 %v786, %v799
      %v811 = vmul.f32 %v787, %v799
      %v812 = vmul.f32 %v788, %v799
      %v813 = vmul.f32 %v789, %v799
      %v814 = vmul.f32 %v790, %v799
      %v815 = vmul.f32 %v791, %v799
      %v816 = vmul.f32 %v792, %v799
      %v817 = vmul.f32 %v793, %v799
      %v818 = vmul.f32 %v794, %v799
      %v819 = vmul.f32 %v795, %v799
      %v820 = vadd.f32 %v756, %v800
      %v821 = vadd.f32 %v757, %v801
      %v822 = vadd.f32 %v758, %v802
      %v823 = vadd.f32 %v759, %v803
      %v824 = vadd.f32 %v760, %v804
      %v825 = vadd.f32 %v761, %v805
      %v826 = vadd.f32 %v762, %v806
      %v827 = vadd.f32 %v763, %v807
      %v828 = vadd.f32 %v764, %v808
      %v829 = vadd.f32 %v765, %v809
      %v830 = vadd.f32 %v766, %v810
      %v831 = vadd.f32 %v767, %v811
      %v832 = vadd.f32 %v768, %v812
      %v833 = vadd.f32 %v769, %v813
      %v834 = vadd.f32 %v770, %v814
      %v835 = vadd.f32 %v771, %v815
      %v836 = vadd.f32 %v772, %v816
      %v837 = vadd.f32 %v773, %v817
      %v838 = vadd.f32 %v774, %v818
      %v839 = vadd.f32 %v775, %v819
      %v840 = vpack.c.bf16 %v821, %v820
      %v841 = vpack.c.bf16 %v823, %v822
      %v842 = vpack.c.bf16 %v825, %v824
      %v843 = vpack.c.bf16 %v827, %v826
      %v844 = vpack.c.bf16 %v829, %v828
      %v845 = vpack.c.bf16 %v831, %v830
      %v846 = vpack.c.bf16 %v833, %v832
      %v847 = vpack.c.bf16 %v835, %v834
      %v848 = vpack.c.bf16 %v837, %v836
      %v849 = vpack.c.bf16 %v839, %v838
      %v860 = vunpack.c.l.b16 %v840
      %v861 = vunpack.c.h.b16 %v840
      %v862 = vunpack.c.l.b16 %v841
      %v863 = vunpack.c.h.b16 %v841
      %v864 = vunpack.c.l.b16 %v842
      %v865 = vunpack.c.h.b16 %v842
      %v866 = vunpack.c.l.b16 %v843
      %v867 = vunpack.c.h.b16 %v843
      %v868 = vunpack.c.l.b16 %v844
      %v869 = vunpack.c.h.b16 %v844
      %v870 = vunpack.c.l.b16 %v845
      %v871 = vunpack.c.h.b16 %v845
      %v872 = vunpack.c.l.b16 %v846
      %v873 = vunpack.c.h.b16 %v846
      %v874 = vunpack.c.l.b16 %v847
      %v875 = vunpack.c.h.b16 %v847
      %v876 = vunpack.c.l.b16 %v848
      %v877 = vunpack.c.h.b16 %v848
      %v878 = vunpack.c.l.b16 %v849
      %v879 = vunpack.c.h.b16 %v849
      %v880 = vpack.c.b16 %v860, %v860
      %v881 = vpack.c.b16 %v861, %v861
      %v882 = vpack.c.b16 %v862, %v862
      %v883 = vpack.c.b16 %v863, %v863
      %v884 = vpack.c.b16 %v864, %v864
      %v885 = vpack.c.b16 %v865, %v865
      %v886 = vpack.c.b16 %v866, %v866
      %v887 = vpack.c.b16 %v867, %v867
      %v888 = vpack.c.b16 %v868, %v868
      %v889 = vpack.c.b16 %v869, %v869
      %v890 = vpack.c.b16 %v870, %v870
      %v891 = vpack.c.b16 %v871, %v871
      %v892 = vpack.c.b16 %v872, %v872
      %v893 = vpack.c.b16 %v873, %v873
      %v894 = vpack.c.b16 %v874, %v874
      %v895 = vpack.c.b16 %v875, %v875
      %v896 = vpack.c.b16 %v876, %v876
      %v897 = vpack.c.b16 %v877, %v877
      %v898 = vpack.c.b16 %v878, %v878
      %v899 = vpack.c.b16 %v879, %v879
      %920 = vst.msk [vmem:[%s191] sm:$0xf] %vm194, %v880
      %vm921 = vcmask 57344
      %922 = vst.msk [vmem:[%s191 + $0x4] sm:$0x1] %vm921, %v881
      %923 = vst.msk [vmem:[%s191 + $0x8] sm:$0xf] %vm194, %v882
      %924 = vst.msk [vmem:[%s191 + $0xc] sm:$0x1] %vm921, %v883
      %925 = vst.msk [vmem:[%s191 + $0x10] sm:$0xf] %vm194, %v884
      %926 = vst.msk [vmem:[%s191 + $0x14] sm:$0x1] %vm921, %v885
      %927 = vst.msk [vmem:[%s191 + $0x18] sm:$0xf] %vm194, %v886
      %928 = vst.msk [vmem:[%s191 + $0x1c] sm:$0x1] %vm921, %v887
      %929 = vst.msk [vmem:[%s191 + $0x20] sm:$0xf] %vm194, %v888
      %930 = vst.msk [vmem:[%s191 + $0x24] sm:$0x1] %vm921, %v889
      %931 = vst.msk [vmem:[%s191 + $0x28] sm:$0xf] %vm194, %v890
      %932 = vst.msk [vmem:[%s191 + $0x2c] sm:$0x1] %vm921, %v891
      %933 = vst.msk [vmem:[%s191 + $0x30] sm:$0xf] %vm194, %v892
      %934 = vst.msk [vmem:[%s191 + $0x34] sm:$0x1] %vm921, %v893
      %935 = vst.msk [vmem:[%s191 + $0x38] sm:$0xf] %vm194, %v894
      %936 = vst.msk [vmem:[%s191 + $0x3c] sm:$0x1] %vm921, %v895
      %937 = vst.msk [vmem:[%s191 + $0x40] sm:$0xf] %vm194, %v896
      %938 = vst.msk [vmem:[%s191 + $0x44] sm:$0x1] %vm921, %v897
      %939 = vst.msk [vmem:[%s191 + $0x48] sm:$0xf] %vm194, %v898
      %940 = vst.msk [vmem:[%s191 + $0x4c] sm:$0x1] %vm921, %v899
      %p941 = scmp.lt.s32.totalorder %s17, 1
      %s942 = scalar_select %p941, %s17, 1
      %p943 = scmp.lt.s32.totalorder %s18, 0
      %s944 = scalar_select %p943, %s18, 0
      %s945 = smul.addr %s942, 20
      %s946 = sadd.s32 %s944, %s945
      %s947 = smul.addr %s946, 4
      %s948 = scalar_lea.vmem %s2, %s947
      // Predicated region
      $region29: #{mamba_block_forward.33} parent=27 // pred_check
        %p949 = pneg %p99
      $region30: #{mamba_block_forward.33} parent=27 // pred_check_branch
        %951 = sbr.rel (%p949) target = $region32
      $region31: #{mamba_block_forward.33} parent=27 // pred_region
        _
      $region32: #{mamba_block_forward.33} parent=27 // pred_fallthru
        _
    $region28: #{mamba_block_forward.33} parent=5 // pred_fallthru
      _
    %p952 = scmp.le.s32.totalorder 2, %s8
    // Predicated region
    $region33: #{mamba_block_forward.33} parent=5 // pred_check
      %p953 = pneg %p952
    $region34: #{mamba_block_forward.33} parent=5 // pred_check_branch
      %955 = sbr.rel (%p953) target = $region36
    $region35: #{mamba_block_forward.33} parent=5 // pred_region
      %s956 = ssub.s32 %s8, 2
      // Predicated region
      $region37: #{mamba_block_forward.33} parent=35 // pred_check
        %p957 = pneg %p105
      $region38: #{mamba_block_forward.33} parent=35 // pred_check_branch
        %959 = sbr.rel (%p957) target = $region40
      $region39: #{mamba_block_forward.33} parent=35 // pred_region
        %p960 = scmp.lt.s32.totalorder %s19, 1
        %s961 = scalar_select %p960, %s19, 1
        %p962 = scmp.lt.s32.totalorder %s20, 0
        %s963 = scalar_select %p962, %s20, 0
        %s964 = smul.addr %s961, 20
        %s965 = sadd.s32 %s963, %s964
        %s966 = smul.addr %s965, 4
        %s967 = scalar_lea.vmem %s2, %s966
      $region40: #{mamba_block_forward.33} parent=35 // pred_fallthru
        _
    $region36: #{mamba_block_forward.33} parent=5 // pred_fallthru
      _
  $region6: #{mamba_block_forward.33} parent=0 // loop_footer
    %s12 = sadd.s32 1, %s8
  $region7: #{mamba_block_forward.33} parent=0 // loop_footer_branch
    %7 = sbr.rel target = $region3
  $region8: #{mamba_block_forward.33} parent=0 // loop_exit
    _

// kernel: mamba_block_forward.35
$region0: #{mamba_block_forward.35}
  #allocation0 [shape = 'u32[]', space=smem, size = 0x4, offset = 0x4, fixed_abs, tag = 'smem constant byte address 0x4 - core index']
  #allocation1 [shape = 'u32[144,128]{1,0:T(1,128)}', space=vmem, size = 0x12000, scoped, tag = 'internal scratch']
  #allocation2 [shape = 'f32[200,8]{1,0:T(8,128)}', space=vmem, size = 0x19000, scoped, tag = 'scratch operand']
  %s0 = inlined_call_operand.vmem [shape: bf16[200,8], index: 0, kind: input, shape index: {}]
  %s1 = inlined_call_operand.vmem [shape: bf16[200,8], index: 1, kind: input, shape index: {}]
  %s2 = inlined_call_operand.vmem [shape: bf16[8,8], index: 2, kind: input, shape index: {}]
  %s3 = inlined_call_operand.vmem [shape: f32[200,8], index: 3, kind: output, shape index: {}]
  %s4 = sld [smem:[#allocation0]]
  $region30: #{mamba_block_forward.35} parent=0
    _
  %s6 = ssub.s32 1, %s4
  %s7 = scalar_select 0, %s6, %s4
  // Predicated region
  $region2: #{mamba_block_forward.35} parent=0 // pred_check
    _
  $region3: #{mamba_block_forward.35} parent=0 // pred_check_branch
    %9 = sbr.rel (0) target = $region5
  $region4: #{mamba_block_forward.35} parent=0 // pred_region
    _
  $region5: #{mamba_block_forward.35} parent=0 // pred_fallthru
    _
  // Predicated region
  $region6: #{mamba_block_forward.35} parent=0 // pred_check
    _
  $region7: #{mamba_block_forward.35} parent=0 // pred_check_branch
    %11 = sbr.rel (0) target = $region9
  $region8: #{mamba_block_forward.35} parent=0 // pred_region
    _
  $region9: #{mamba_block_forward.35} parent=0 // pred_fallthru
    _
  // Predicated region
  $region10: #{mamba_block_forward.35} parent=0 // pred_check
    _
  $region11: #{mamba_block_forward.35} parent=0 // pred_check_branch
    %13 = sbr.rel (0) target = $region13
  $region12: #{mamba_block_forward.35} parent=0 // pred_region
    _
  $region13: #{mamba_block_forward.35} parent=0 // pred_fallthru
    _
  %p15 = scmp.eq.s32.totalorder 0, 0
  // Predicated region
  $region14: #{mamba_block_forward.35} parent=0 // pred_check
    %p16 = pneg %p15
  $region15: #{mamba_block_forward.35} parent=0 // pred_check_branch
    %18 = sbr.rel (%p16) target = $region17
  $region16: #{mamba_block_forward.35} parent=0 // pred_region
    %vm19 = vcmask 64512
    %20 = vst.msk [vmem:[#allocation2] sm:$0xff] %vm19, 0.0
    %21 = vst.msk [vmem:[#allocation2 + $0x8] sm:$0xff] %vm19, 0.0
    %22 = vst.msk [vmem:[#allocation2 + $0x10] sm:$0xff] %vm19, 0.0
    %23 = vst.msk [vmem:[#allocation2 + $0x18] sm:$0xff] %vm19, 0.0
    %24 = vst.msk [vmem:[#allocation2 + $0x20] sm:$0xff] %vm19, 0.0
    %25 = vst.msk [vmem:[#allocation2 + $0x28] sm:$0xff] %vm19, 0.0
    %26 = vst.msk [vmem:[#allocation2 + $0x30] sm:$0xff] %vm19, 0.0
    %27 = vst.msk [vmem:[#allocation2 + $0x38] sm:$0xff] %vm19, 0.0
    %28 = vst.msk [vmem:[#allocation2 + $0x40] sm:$0xff] %vm19, 0.0
    %29 = vst.msk [vmem:[#allocation2 + $0x48] sm:$0xff] %vm19, 0.0
    %30 = vst.msk [vmem:[#allocation2 + $0x50] sm:$0xff] %vm19, 0.0
    %31 = vst.msk [vmem:[#allocation2 + $0x58] sm:$0xff] %vm19, 0.0
    %32 = vst.msk [vmem:[#allocation2 + $0x60] sm:$0xff] %vm19, 0.0
    %33 = vst.msk [vmem:[#allocation2 + $0x68] sm:$0xff] %vm19, 0.0
    %34 = vst.msk [vmem:[#allocation2 + $0x70] sm:$0xff] %vm19, 0.0
    %35 = vst.msk [vmem:[#allocation2 + $0x78] sm:$0xff] %vm19, 0.0
    %36 = vst.msk [vmem:[#allocation2 + $0x80] sm:$0xff] %vm19, 0.0
    %37 = vst.msk [vmem:[#allocation2 + $0x88] sm:$0xff] %vm19, 0.0
    %38 = vst.msk [vmem:[#allocation2 + $0x90] sm:$0xff] %vm19, 0.0
    %39 = vst.msk [vmem:[#allocation2 + $0x98] sm:$0xff] %vm19, 0.0
    %40 = vst.msk [vmem:[#allocation2 + $0xa0] sm:$0xff] %vm19, 0.0
    %41 = vst.msk [vmem:[#allocation2 + $0xa8] sm:$0xff] %vm19, 0.0
    %42 = vst.msk [vmem:[#allocation2 + $0xb0] sm:$0xff] %vm19, 0.0
    %43 = vst.msk [vmem:[#allocation2 + $0xb8] sm:$0xff] %vm19, 0.0
    %44 = vst.msk [vmem:[#allocation2 + $0xc0] sm:$0xff] %vm19, 0.0
  $region17: #{mamba_block_forward.35} parent=0 // pred_fallthru
    _
  %v45 = vld [vmem:[%s1] sm:$0xf]
  %v46 = vld [vmem:[%s1 + $0x4] sm:$0xf]
  %v47 = vld [vmem:[%s1 + $0x8] sm:$0xf]
  %v48 = vld [vmem:[%s1 + $0xc] sm:$0xf]
  %v49 = vld [vmem:[%s1 + $0x10] sm:$0xf]
  %v50 = vld [vmem:[%s1 + $0x14] sm:$0xf]
  %v51 = vld [vmem:[%s1 + $0x18] sm:$0xf]
  %v52 = vld [vmem:[%s1 + $0x1c] sm:$0xf]
  %v53 = vld [vmem:[%s1 + $0x20] sm:$0xf]
  %v54 = vld [vmem:[%s1 + $0x24] sm:$0xf]
  %v55 = vld [vmem:[%s1 + $0x28] sm:$0xf]
  %v56 = vld [vmem:[%s1 + $0x2c] sm:$0xf]
  %v57 = vld [vmem:[%s1 + $0x30] sm:$0xf]
  %v58 = vld [vmem:[%s1 + $0x34] sm:$0xf]
  %v59 = vld [vmem:[%s1 + $0x38] sm:$0xf]
  %v60 = vld [vmem:[%s1 + $0x3c] sm:$0xf]
  %v61 = vld [vmem:[%s1 + $0x40] sm:$0xf]
  %v62 = vld [vmem:[%s1 + $0x44] sm:$0xf]
  %v63 = vld [vmem:[%s1 + $0x48] sm:$0xf]
  %v64 = vld [vmem:[%s1 + $0x4c] sm:$0xf]
  %v65 = vld [vmem:[%s1 + $0x50] sm:$0xf]
  %v66 = vld [vmem:[%s1 + $0x54] sm:$0xf]
  %v67 = vld [vmem:[%s1 + $0x58] sm:$0xf]
  %v68 = vld [vmem:[%s1 + $0x5c] sm:$0xf]
  %v69 = vld [vmem:[%s1 + $0x60] sm:$0xf]
  %v70 = vunpack.c.l.bf16 %v45
  %v71 = vunpack.c.l.bf16 %v46
  %v72 = vunpack.c.l.bf16 %v47
  %v73 = vunpack.c.l.bf16 %v48
  %v74 = vunpack.c.l.bf16 %v49
  %v75 = vunpack.c.l.bf16 %v50
  %v76 = vunpack.c.l.bf16 %v51
  %v77 = vunpack.c.l.bf16 %v52
  %v78 = vunpack.c.l.bf16 %v53
  %v79 = vunpack.c.l.bf16 %v54
  %v80 = vunpack.c.l.bf16 %v55
  %v81 = vunpack.c.l.bf16 %v56
  %v82 = vunpack.c.l.bf16 %v57
  %v83 = vunpack.c.l.bf16 %v58
  %v84 = vunpack.c.l.bf16 %v59
  %v85 = vunpack.c.l.bf16 %v60
  %v86 = vunpack.c.l.bf16 %v61
  %v87 = vunpack.c.l.bf16 %v62
  %v88 = vunpack.c.l.bf16 %v63
  %v89 = vunpack.c.l.bf16 %v64
  %v90 = vunpack.c.l.bf16 %v65
  %v91 = vunpack.c.l.bf16 %v66
  %v92 = vunpack.c.l.bf16 %v67
  %v93 = vunpack.c.l.bf16 %v68
  %v94 = vunpack.c.l.bf16 %v69
  %v95 = vld [vmem:[%s0] sm:$0xf]
  %v96 = vld [vmem:[%s0 + $0x4] sm:$0xf]
  %v97 = vld [vmem:[%s0 + $0x8] sm:$0xf]
  %v98 = vld [vmem:[%s0 + $0xc] sm:$0xf]
  %v99 = vld [vmem:[%s0 + $0x10] sm:$0xf]
  %v100 = vld [vmem:[%s0 + $0x14] sm:$0xf]
  %v101 = vld [vmem:[%s0 + $0x18] sm:$0xf]
  %v102 = vld [vmem:[%s0 + $0x1c] sm:$0xf]
  %v103 = vld [vmem:[%s0 + $0x20] sm:$0xf]
  %v104 = vld [vmem:[%s0 + $0x24] sm:$0xf]
  %v105 = vld [vmem:[%s0 + $0x28] sm:$0xf]
  %v106 = vld [vmem:[%s0 + $0x2c] sm:$0xf]
  %v107 = vld [vmem:[%s0 + $0x30] sm:$0xf]
  %v108 = vld [vmem:[%s0 + $0x34] sm:$0xf]
  %v109 = vld [vmem:[%s0 + $0x38] sm:$0xf]
  %v110 = vld [vmem:[%s0 + $0x3c] sm:$0xf]
  %v111 = vld [vmem:[%s0 + $0x40] sm:$0xf]
  %v112 = vld [vmem:[%s0 + $0x44] sm:$0xf]
  %v113 = vld [vmem:[%s0 + $0x48] sm:$0xf]
  %v114 = vld [vmem:[%s0 + $0x4c] sm:$0xf]
  %v115 = vld [vmem:[%s0 + $0x50] sm:$0xf]
  %v116 = vld [vmem:[%s0 + $0x54] sm:$0xf]
  %v117 = vld [vmem:[%s0 + $0x58] sm:$0xf]
  %v118 = vld [vmem:[%s0 + $0x5c] sm:$0xf]
  %v119 = vld [vmem:[%s0 + $0x60] sm:$0xf]
  %v120 = vunpack.c.l.bf16 %v95
  %v121 = vunpack.c.l.bf16 %v96
  %v122 = vunpack.c.l.bf16 %v97
  %v123 = vunpack.c.l.bf16 %v98
  %v124 = vunpack.c.l.bf16 %v99
  %v125 = vunpack.c.l.bf16 %v100
  %v126 = vunpack.c.l.bf16 %v101
  %v127 = vunpack.c.l.bf16 %v102
  %v128 = vunpack.c.l.bf16 %v103
  %v129 = vunpack.c.l.bf16 %v104
  %v130 = vunpack.c.l.bf16 %v105
  %v131 = vunpack.c.l.bf16 %v106
  %v132 = vunpack.c.l.bf16 %v107
  %v133 = vunpack.c.l.bf16 %v108
  %v134 = vunpack.c.l.bf16 %v109
  %v135 = vunpack.c.l.bf16 %v110
  %v136 = vunpack.c.l.bf16 %v111
  %v137 = vunpack.c.l.bf16 %v112
  %v138 = vunpack.c.l.bf16 %v113
  %v139 = vunpack.c.l.bf16 %v114
  %v140 = vunpack.c.l.bf16 %v115
  %v141 = vunpack.c.l.bf16 %v116
  %v142 = vunpack.c.l.bf16 %v117
  %v143 = vunpack.c.l.bf16 %v118
  %v144 = vunpack.c.l.bf16 %v119
  %v145 = vxor.u32 %v70, 2147483648
  %v146 = vxor.u32 %v71, 2147483648
  %v147 = vxor.u32 %v72, 2147483648
  %v148 = vxor.u32 %v73, 2147483648
  %v149 = vxor.u32 %v74, 2147483648
  %v150 = vxor.u32 %v75, 2147483648
  %v151 = vxor.u32 %v76, 2147483648
  %v152 = vxor.u32 %v77, 2147483648
  %v153 = vxor.u32 %v78, 2147483648
  %v154 = vxor.u32 %v79, 2147483648
  %v155 = vxor.u32 %v80, 2147483648
  %v156 = vxor.u32 %v81, 2147483648
  %v157 = vxor.u32 %v82, 2147483648
  %v158 = vxor.u32 %v83, 2147483648
  %v159 = vxor.u32 %v84, 2147483648
  %v160 = vxor.u32 %v85, 2147483648
  %v161 = vxor.u32 %v86, 2147483648
  %v162 = vxor.u32 %v87, 2147483648
  %v163 = vxor.u32 %v88, 2147483648
  %v164 = vxor.u32 %v89, 2147483648
  %v165 = vxor.u32 %v90, 2147483648
  %v166 = vxor.u32 %v91, 2147483648
  %v167 = vxor.u32 %v92, 2147483648
  %v168 = vxor.u32 %v93, 2147483648
  %v169 = vxor.u32 %v94, 2147483648
  %v170 = vmul.f32 %v145, 1.442695
  %v171 = vpow.pop %v170
  %v172 = vmul.f32 %v146, 1.442695
  %v173 = vpow.pop %v172
  %v174 = vmul.f32 %v147, 1.442695
  %v175 = vpow.pop %v174
  %v176 = vmul.f32 %v148, 1.442695
  %v177 = vpow.pop %v176
  %v178 = vmul.f32 %v149, 1.442695
  %v179 = vpow.pop %v178
  %v180 = vmul.f32 %v150, 1.442695
  %v181 = vpow.pop %v180
  %v182 = vmul.f32 %v151, 1.442695
  %v183 = vpow.pop %v182
  %v184 = vmul.f32 %v152, 1.442695
  %v185 = vpow.pop %v184
  %v186 = vmul.f32 %v153, 1.442695
  %v187 = vpow.pop %v186
  %v188 = vmul.f32 %v154, 1.442695
  %v189 = vpow.pop %v188
  %v190 = vmul.f32 %v155, 1.442695
  %v191 = vpow.pop %v190
  %v192 = vmul.f32 %v156, 1.442695
  %v193 = vpow.pop %v192
  %v194 = vmul.f32 %v157, 1.442695
  %v195 = vpow.pop %v194
  %v196 = vmul.f32 %v158, 1.442695
  %v197 = vpow.pop %v196
  %v198 = vmul.f32 %v159, 1.442695
  %v199 = vpow.pop %v198
  %v200 = vmul.f32 %v160, 1.442695
  %v201 = vpow.pop %v200
  %v202 = vmul.f32 %v161, 1.442695
  %v203 = vpow.pop %v202
  %v204 = vmul.f32 %v162, 1.442695
  %v205 = vpow.pop %v204
  %v206 = vmul.f32 %v163, 1.442695
  %v207 = vpow.pop %v206
  %v208 = vmul.f32 %v164, 1.442695
  %v209 = vpow.pop %v208
  %v210 = vmul.f32 %v165, 1.442695
  %v211 = vpow.pop %v210
  %v212 = vmul.f32 %v166, 1.442695
  %v213 = vpow.pop %v212
  %v214 = vmul.f32 %v167, 1.442695
  %v215 = vpow.pop %v214
  %v216 = vmul.f32 %v168, 1.442695
  %v217 = vpow.pop %v216
  %v218 = vmul.f32 %v169, 1.442695
  %v219 = vpow.pop %v218
  %v220 = vadd.f32 %v171, 1.0
  %v221 = vadd.f32 %v173, 1.0
  %v222 = vadd.f32 %v175, 1.0
  %v223 = vadd.f32 %v177, 1.0
  %v224 = vadd.f32 %v179, 1.0
  %v225 = vadd.f32 %v181, 1.0
  %v226 = vadd.f32 %v183, 1.0
  %v227 = vadd.f32 %v185, 1.0
  %v228 = vadd.f32 %v187, 1.0
  %v229 = vadd.f32 %v189, 1.0
  %v230 = vadd.f32 %v191, 1.0
  %v231 = vadd.f32 %v193, 1.0
  %v232 = vadd.f32 %v195, 1.0
  %v233 = vadd.f32 %v197, 1.0
  %v234 = vadd.f32 %v199, 1.0
  %v235 = vadd.f32 %v201, 1.0
  %v236 = vadd.f32 %v203, 1.0
  %v237 = vadd.f32 %v205, 1.0
  %v238 = vadd.f32 %v207, 1.0
  %v239 = vadd.f32 %v209, 1.0
  %v240 = vadd.f32 %v211, 1.0
  %v241 = vadd.f32 %v213, 1.0
  %v242 = vadd.f32 %v215, 1.0
  %v243 = vadd.f32 %v217, 1.0
  %v244 = vadd.f32 %v219, 1.0
  %v245 = vrcp.pop %v220
  %v246 = vmul.f32 1.0, %v245
  %v247 = vrcp.pop %v221
  %v248 = vmul.f32 1.0, %v247
  %v249 = vrcp.pop %v222
  %v250 = vmul.f32 1.0, %v249
  %v251 = vrcp.pop %v223
  %v252 = vmul.f32 1.0, %v251
  %v253 = vrcp.pop %v224
  %v254 = vmul.f32 1.0, %v253
  %v255 = vrcp.pop %v225
  %v256 = vmul.f32 1.0, %v255
  %v257 = vrcp.pop %v226
  %v258 = vmul.f32 1.0, %v257
  %v259 = vrcp.pop %v227
  %v260 = vmul.f32 1.0, %v259
  %v261 = vrcp.pop %v228
  %v262 = vmul.f32 1.0, %v261
  %v263 = vrcp.pop %v229
  %v264 = vmul.f32 1.0, %v263
  %v265 = vrcp.pop %v230
  %v266 = vmul.f32 1.0, %v265
  %v267 = vrcp.pop %v231
  %v268 = vmul.f32 1.0, %v267
  %v269 = vrcp.pop %v232
  %v270 = vmul.f32 1.0, %v269
  %v271 = vrcp.pop %v233
  %v272 = vmul.f32 1.0, %v271
  %v273 = vrcp.pop %v234
  %v274 = vmul.f32 1.0, %v273
  %v275 = vrcp.pop %v235
  %v276 = vmul.f32 1.0, %v275
  %v277 = vrcp.pop %v236
  %v278 = vmul.f32 1.0, %v277
  %v279 = vrcp.pop %v237
  %v280 = vmul.f32 1.0, %v279
  %v281 = vrcp.pop %v238
  %v282 = vmul.f32 1.0, %v281
  %v283 = vrcp.pop %v239
  %v284 = vmul.f32 1.0, %v283
  %v285 = vrcp.pop %v240
  %v286 = vmul.f32 1.0, %v285
  %v287 = vrcp.pop %v241
  %v288 = vmul.f32 1.0, %v287
  %v289 = vrcp.pop %v242
  %v290 = vmul.f32 1.0, %v289
  %v291 = vrcp.pop %v243
  %v292 = vmul.f32 1.0, %v291
  %v293 = vrcp.pop %v244
  %v294 = vmul.f32 1.0, %v293
  %v295 = vmul.f32 %v70, %v246
  %v296 = vmul.f32 %v71, %v248
  %v297 = vmul.f32 %v72, %v250
  %v298 = vmul.f32 %v73, %v252
  %v299 = vmul.f32 %v74, %v254
  %v300 = vmul.f32 %v75, %v256
  %v301 = vmul.f32 %v76, %v258
  %v302 = vmul.f32 %v77, %v260
  %v303 = vmul.f32 %v78, %v262
  %v304 = vmul.f32 %v79, %v264
  %v305 = vmul.f32 %v80, %v266
  %v306 = vmul.f32 %v81, %v268
  %v307 = vmul.f32 %v82, %v270
  %v308 = vmul.f32 %v83, %v272
  %v309 = vmul.f32 %v84, %v274
  %v310 = vmul.f32 %v85, %v276
  %v311 = vmul.f32 %v86, %v278
  %v312 = vmul.f32 %v87, %v280
  %v313 = vmul.f32 %v88, %v282
  %v314 = vmul.f32 %v89, %v284
  %v315 = vmul.f32 %v90, %v286
  %v316 = vmul.f32 %v91, %v288
  %v317 = vmul.f32 %v92, %v290
  %v318 = vmul.f32 %v93, %v292
  %v319 = vmul.f32 %v94, %v294
  %v320 = vmul.f32 %v120, %v295
  %v321 = vmul.f32 %v121, %v296
  %v322 = vmul.f32 %v122, %v297
  %v323 = vmul.f32 %v123, %v298
  %v324 = vmul.f32 %v124, %v299
  %v325 = vmul.f32 %v125, %v300
  %v326 = vmul.f32 %v126, %v301
  %v327 = vmul.f32 %v127, %v302
  %v328 = vmul.f32 %v128, %v303
  %v329 = vmul.f32 %v129, %v304
  %v330 = vmul.f32 %v130, %v305
  %v331 = vmul.f32 %v131, %v306
  %v332 = vmul.f32 %v132, %v307
  %v333 = vmul.f32 %v133, %v308
  %v334 = vmul.f32 %v134, %v309
  %v335 = vmul.f32 %v135, %v310
  %v336 = vmul.f32 %v136, %v311
  %v337 = vmul.f32 %v137, %v312
  %v338 = vmul.f32 %v138, %v313
  %v339 = vmul.f32 %v139, %v314
  %v340 = vmul.f32 %v140, %v315
  %v341 = vmul.f32 %v141, %v316
  %v342 = vmul.f32 %v142, %v317
  %v343 = vmul.f32 %v143, %v318
  %v344 = vmul.f32 %v144, %v319
  %v345 = vld [vmem:[#allocation2] sm:$0xff]
  %v346 = vld [vmem:[#allocation2 + $0x8] sm:$0xff]
  %v347 = vld [vmem:[#allocation2 + $0x10] sm:$0xff]
  %v348 = vld [vmem:[#allocation2 + $0x18] sm:$0xff]
  %v349 = vld [vmem:[#allocation2 + $0x20] sm:$0xff]
  %v350 = vld [vmem:[#allocation2 + $0x28] sm:$0xff]
  %v351 = vld [vmem:[#allocation2 + $0x30] sm:$0xff]
  %v352 = vld [vmem:[#allocation2 + $0x38] sm:$0xff]
  %v353 = vld [vmem:[#allocation2 + $0x40] sm:$0xff]
  %v354 = vld [vmem:[#allocation2 + $0x48] sm:$0xff]
  %v355 = vld [vmem:[#allocation2 + $0x50] sm:$0xff]
  %v356 = vld [vmem:[#allocation2 + $0x58] sm:$0xff]
  %v357 = vld [vmem:[#allocation2 + $0x60] sm:$0xff]
  %v358 = vld [vmem:[#allocation2 + $0x68] sm:$0xff]
  %v359 = vld [vmem:[#allocation2 + $0x70] sm:$0xff]
  %v360 = vld [vmem:[#allocation2 + $0x78] sm:$0xff]
  %v361 = vld [vmem:[#allocation2 + $0x80] sm:$0xff]
  %v362 = vld [vmem:[#allocation2 + $0x88] sm:$0xff]
  %v363 = vld [vmem:[#allocation2 + $0x90] sm:$0xff]
  %v364 = vld [vmem:[#allocation2 + $0x98] sm:$0xff]
  %v365 = vld [vmem:[#allocation2 + $0xa0] sm:$0xff]
  %v366 = vld [vmem:[#allocation2 + $0xa8] sm:$0xff]
  %v367 = vld [vmem:[#allocation2 + $0xb0] sm:$0xff]
  %v368 = vld [vmem:[#allocation2 + $0xb8] sm:$0xff]
  %v369 = vld [vmem:[#allocation2 + $0xc0] sm:$0xff]
  %v370 = vpack.c.bf16 %v321, %v320
  %v371 = vpack.c.bf16 %v323, %v322
  %v372 = vpack.c.bf16 %v325, %v324
  %v373 = vpack.c.bf16 %v327, %v326
  %v374 = vpack.c.bf16 %v329, %v328
  %v375 = vpack.c.bf16 %v331, %v330
  %v376 = vpack.c.bf16 %v333, %v332
  %v377 = vpack.c.bf16 %v335, %v334
  %v378 = vpack.c.bf16 %v337, %v336
  %v379 = vpack.c.bf16 %v339, %v338
  %v380 = vpack.c.bf16 %v341, %v340
  %v381 = vpack.c.bf16 %v343, %v342
  %v382 = vpack.c.bf16 %v344, %v344
  %v383 = vld [vmem:[%s2] sm:$0xf]
  %vm384 = vcmask 64512
  %v386 = vsel %vm384, %v370, 0
  %v389 = vsel %vm384, %v371, 0
  %v392 = vsel %vm384, %v372, 0
  %v395 = vsel %vm384, %v373, 0
  %v398 = vsel %vm384, %v374, 0
  %v401 = vsel %vm384, %v375, 0
  %v404 = vsel %vm384, %v376, 0
  %v407 = vsel %vm384, %v377, 0
  %v410 = vsel %vm384, %v378, 0
  %v413 = vsel %vm384, %v379, 0
  %v416 = vsel %vm384, %v380, 0
  %v419 = vsel %vm384, %v381, 0
  %v422 = vsel %vm384, %v382, 0
  %vm424 = vcmask 1043456
  %v426 = vsel %vm424, %v383, 0
  %428 = vmatprep.subr.bf16.mxu0 0
  %429 = vmatpush1.bf16.msra.mxu0 %v426
  %430 = vmatprep.subr.bf16.mxu0 0
  %431 = vmatpush1.bf16.msra.mxu0 0
  %432 = vmatprep.subr.bf16.mxu0 0
  %433 = vmatpush1.bf16.msra.mxu0 0
  %434 = vmatprep.subr.bf16.mxu0 0
  %435 = vmatpush1.bf16.msra.mxu0 0
  %436 = vmatprep.subr.bf16.mxu0 0
  %437 = vmatpush1.bf16.msra.mxu0 0
  %438 = vmatprep.subr.bf16.mxu0 0
  %439 = vmatpush1.bf16.msra.mxu0 0
  %440 = vmatprep.subr.bf16.mxu0 0
  %441 = vmatpush1.bf16.msra.mxu0 0
  %442 = vmatprep.subr.bf16.mxu0 0
  %443 = vmatpush1.bf16.msra.mxu0 0
  %444 = vmatprep.subr.bf16.mxu0 0
  %445 = vmatpush1.bf16.msra.mxu0 0
  %446 = vmatprep.subr.bf16.mxu0 0
  %447 = vmatpush1.bf16.msra.mxu0 0
  %448 = vmatprep.subr.bf16.mxu0 0
  %449 = vmatpush1.bf16.msra.mxu0 0
  %450 = vmatprep.subr.bf16.mxu0 0
  %451 = vmatpush1.bf16.msra.mxu0 0
  %452 = vmatprep.subr.bf16.mxu0 0
  %453 = vmatpush1.bf16.msra.mxu0 0
  %454 = vmatprep.subr.bf16.mxu0 0
  %455 = vmatpush1.bf16.msra.mxu0 0
  %456 = vmatprep.subr.bf16.mxu0 0
  %457 = vmatpush1.bf16.msra.mxu0 0
  %458 = vmatprep.subr.bf16.mxu0 0
  %459 = vmatpush1.bf16.msra.mxu0 0
  %460 = vmatprep.mubr.bf16.mxu0 0
  %461 = vmatmul.mubr.bf16.gmra.mrb[0].mxu0 %v386
  %v462 = vpop.f32.mrb[0].mxu0
  %v463 = vadd.f32 0.0, %v462
  %v464 = vpop.f32.mrb[0].mxu0
  %v465 = vpop.f32.mrb[0].mxu0
  %v466 = vadd.f32 0.0, %v465
  %v467 = vpop.f32.mrb[0].mxu0
  %468 = vmatprep.mubr.bf16.mxu0 0
  %469 = vmatmul.mubr.bf16.gmra.mrb[0].mxu0 %v389
  %v470 = vpop.f32.mrb[0].mxu0
  %v471 = vadd.f32 0.0, %v470
  %v472 = vpop.f32.mrb[0].mxu0
  %v473 = vpop.f32.mrb[0].mxu0
  %v474 = vadd.f32 0.0, %v473
  %v475 = vpop.f32.mrb[0].mxu0
  %476 = vmatprep.mubr.bf16.mxu0 0
  %477 = vmatmul.mubr.bf16.gmra.mrb[0].mxu0 %v392
  %v478 = vpop.f32.mrb[0].mxu0
  %v479 = vadd.f32 0.0, %v478
  %v480 = vpop.f32.mrb[0].mxu0
  %v481 = vpop.f32.mrb[0].mxu0
  %v482 = vadd.f32 0.0, %v481
  %v483 = vpop.f32.mrb[0].mxu0
  %484 = vmatprep.mubr.bf16.mxu0 0
  %485 = vmatmul.mubr.bf16.gmra.mrb[0].mxu0 %v395
  %v486 = vpop.f32.mrb[0].mxu0
  %v487 = vadd.f32 0.0, %v486
  %v488 = vpop.f32.mrb[0].mxu0
  %v489 = vpop.f32.mrb[0].mxu0
  %v490 = vadd.f32 0.0, %v489
  %v491 = vpop.f32.mrb[0].mxu0
  %492 = vmatprep.mubr.bf16.mxu0 0
  %493 = vmatmul.mubr.bf16.gmra.mrb[0].mxu0 %v398
  %v494 = vpop.f32.mrb[0].mxu0
  %v495 = vadd.f32 0.0, %v494
  %v496 = vpop.f32.mrb[0].mxu0
  %v497 = vpop.f32.mrb[0].mxu0
  %v498 = vadd.f32 0.0, %v497
  %v499 = vpop.f32.mrb[0].mxu0
  %500 = vmatprep.mubr.bf16.mxu0 0
  %501 = vmatmul.mubr.bf16.gmra.mrb[0].mxu0 %v401
  %v502 = vpop.f32.mrb[0].mxu0
  %v503 = vadd.f32 0.0, %v502
  %v504 = vpop.f32.mrb[0].mxu0
  %v505 = vpop.f32.mrb[0].mxu0
  %v506 = vadd.f32 0.0, %v505
  %v507 = vpop.f32.mrb[0].mxu0
  %508 = vmatprep.mubr.bf16.mxu0 0
  %509 = vmatmul.mubr.bf16.gmra.mrb[0].mxu0 %v404
  %v510 = vpop.f32.mrb[0].mxu0
  %v511 = vadd.f32 0.0, %v510
  %v512 = vpop.f32.mrb[0].mxu0
  %v513 = vpop.f32.mrb[0].mxu0
  %v514 = vadd.f32 0.0, %v513
  %v515 = vpop.f32.mrb[0].mxu0
  %516 = vmatprep.mubr.bf16.mxu0 0
  %517 = vmatmul.mubr.bf16.gmra.mrb[0].mxu0 %v407
  %v518 = vpop.f32.mrb[0].mxu0
  %v519 = vadd.f32 0.0, %v518
  %v520 = vpop.f32.mrb[0].mxu0
  %v521 = vpop.f32.mrb[0].mxu0
  %v522 = vadd.f32 0.0, %v521
  %v523 = vpop.f32.mrb[0].mxu0
  %524 = vmatprep.mubr.bf16.mxu0 0
  %525 = vmatmul.mubr.bf16.gmra.mrb[0].mxu0 %v410
  %v526 = vpop.f32.mrb[0].mxu0
  %v527 = vadd.f32 0.0, %v526
  %v528 = vpop.f32.mrb[0].mxu0
  %v529 = vpop.f32.mrb[0].mxu0
  %v530 = vadd.f32 0.0, %v529
  %v531 = vpop.f32.mrb[0].mxu0
  %532 = vmatprep.mubr.bf16.mxu0 0
  %533 = vmatmul.mubr.bf16.gmra.mrb[0].mxu0 %v413
  %v534 = vpop.f32.mrb[0].mxu0
  %v535 = vadd.f32 0.0, %v534
  %v536 = vpop.f32.mrb[0].mxu0
  %v537 = vpop.f32.mrb[0].mxu0
  %v538 = vadd.f32 0.0, %v537
  %v539 = vpop.f32.mrb[0].mxu0
  %540 = vmatprep.mubr.bf16.mxu0 0
  %541 = vmatmul.mubr.bf16.gmra.mrb[0].mxu0 %v416
  %v542 = vpop.f32.mrb[0].mxu0
  %v543 = vadd.f32 0.0, %v542
  %v544 = vpop.f32.mrb[0].mxu0
  %v545 = vpop.f32.mrb[0].mxu0
  %v546 = vadd.f32 0.0, %v545
  %v547 = vpop.f32.mrb[0].mxu0
  %548 = vmatprep.mubr.bf16.mxu0 0
  %549 = vmatmul.mubr.bf16.gmra.mrb[0].mxu0 %v419
  %v550 = vpop.f32.mrb[0].mxu0
  %v551 = vadd.f32 0.0, %v550
  %v552 = vpop.f32.mrb[0].mxu0
  %v553 = vpop.f32.mrb[0].mxu0
  %v554 = vadd.f32 0.0, %v553
  %v555 = vpop.f32.mrb[0].mxu0
  %556 = vmatprep.mubr.bf16.mxu0 0
  %557 = vmatmul.mubr.bf16.gmra.mrb[0].mxu0 %v422
  %v558 = vpop.f32.mrb[0].mxu0
  %v559 = vadd.f32 0.0, %v558
  %v560 = vpop.f32.mrb[0].mxu0
  %v561 = vpop.f32.mrb[0].mxu0
  %v562 = vpop.f32.mrb[0].mxu0
  %563 = vdwg.mxu0
  %v564 = vadd.f32 %v345, %v463
  %v565 = vadd.f32 %v346, %v466
  %v566 = vadd.f32 %v347, %v471
  %v567 = vadd.f32 %v348, %v474
  %v568 = vadd.f32 %v349, %v479
  %v569 = vadd.f32 %v350, %v482
  %v570 = vadd.f32 %v351, %v487
  %v571 = vadd.f32 %v352, %v490
  %v572 = vadd.f32 %v353, %v495
  %v573 = vadd.f32 %v354, %v498
  %v574 = vadd.f32 %v355, %v503
  %v575 = vadd.f32 %v356, %v506
  %v576 = vadd.f32 %v357, %v511
  %v577 = vadd.f32 %v358, %v514
  %v578 = vadd.f32 %v359, %v519
  %v579 = vadd.f32 %v360, %v522
  %v580 = vadd.f32 %v361, %v527
  %v581 = vadd.f32 %v362, %v530
  %v582 = vadd.f32 %v363, %v535
  %v583 = vadd.f32 %v364, %v538
  %v584 = vadd.f32 %v365, %v543
  %v585 = vadd.f32 %v366, %v546
  %v586 = vadd.f32 %v367, %v551
  %v587 = vadd.f32 %v368, %v554
  %v588 = vadd.f32 %v369, %v559
  %589 = vst.msk [vmem:[#allocation2] sm:$0xff] %vm384, %v564
  %590 = vst.msk [vmem:[#allocation2 + $0x8] sm:$0xff] %vm384, %v565
  %591 = vst.msk [vmem:[#allocation2 + $0x10] sm:$0xff] %vm384, %v566
  %592 = vst.msk [vmem:[#allocation2 + $0x18] sm:$0xff] %vm384, %v567
  %593 = vst.msk [vmem:[#allocation2 + $0x20] sm:$0xff] %vm384, %v568
  %594 = vst.msk [vmem:[#allocation2 + $0x28] sm:$0xff] %vm384, %v569
  %595 = vst.msk [vmem:[#allocation2 + $0x30] sm:$0xff] %vm384, %v570
  %596 = vst.msk [vmem:[#allocation2 + $0x38] sm:$0xff] %vm384, %v571
  %597 = vst.msk [vmem:[#allocation2 + $0x40] sm:$0xff] %vm384, %v572
  %598 = vst.msk [vmem:[#allocation2 + $0x48] sm:$0xff] %vm384, %v573
  %599 = vst.msk [vmem:[#allocation2 + $0x50] sm:$0xff] %vm384, %v574
  %600 = vst.msk [vmem:[#allocation2 + $0x58] sm:$0xff] %vm384, %v575
  %601 = vst.msk [vmem:[#allocation2 + $0x60] sm:$0xff] %vm384, %v576
  %602 = vst.msk [vmem:[#allocation2 + $0x68] sm:$0xff] %vm384, %v577
  %603 = vst.msk [vmem:[#allocation2 + $0x70] sm:$0xff] %vm384, %v578
  %604 = vst.msk [vmem:[#allocation2 + $0x78] sm:$0xff] %vm384, %v579
  %605 = vst.msk [vmem:[#allocation2 + $0x80] sm:$0xff] %vm384, %v580
  %606 = vst.msk [vmem:[#allocation2 + $0x88] sm:$0xff] %vm384, %v581
  %607 = vst.msk [vmem:[#allocation2 + $0x90] sm:$0xff] %vm384, %v582
  %608 = vst.msk [vmem:[#allocation2 + $0x98] sm:$0xff] %vm384, %v583
  %609 = vst.msk [vmem:[#allocation2 + $0xa0] sm:$0xff] %vm384, %v584
  %610 = vst.msk [vmem:[#allocation2 + $0xa8] sm:$0xff] %vm384, %v585
  %611 = vst.msk [vmem:[#allocation2 + $0xb0] sm:$0xff] %vm384, %v586
  %612 = vst.msk [vmem:[#allocation2 + $0xb8] sm:$0xff] %vm384, %v587
  %613 = vst.msk [vmem:[#allocation2 + $0xc0] sm:$0xff] %vm384, %v588
  // Predicated region
  $region18: #{mamba_block_forward.35} parent=0 // pred_check
    %p614 = pneg %p15
  $region19: #{mamba_block_forward.35} parent=0 // pred_check_branch
    %616 = sbr.rel (%p614) target = $region21
  $region20: #{mamba_block_forward.35} parent=0 // pred_region
    %v617 = vld [vmem:[#allocation2] sm:$0xff]
    %v618 = vld [vmem:[#allocation2 + $0x8] sm:$0xff]
    %v619 = vld [vmem:[#allocation2 + $0x10] sm:$0xff]
    %v620 = vld [vmem:[#allocation2 + $0x18] sm:$0xff]
    %v621 = vld [vmem:[#allocation2 + $0x20] sm:$0xff]
    %v622 = vld [vmem:[#allocation2 + $0x28] sm:$0xff]
    %v623 = vld [vmem:[#allocation2 + $0x30] sm:$0xff]
    %v624 = vld [vmem:[#allocation2 + $0x38] sm:$0xff]
    %v625 = vld [vmem:[#allocation2 + $0x40] sm:$0xff]
    %v626 = vld [vmem:[#allocation2 + $0x48] sm:$0xff]
    %v627 = vld [vmem:[#allocation2 + $0x50] sm:$0xff]
    %v628 = vld [vmem:[#allocation2 + $0x58] sm:$0xff]
    %v629 = vld [vmem:[#allocation2 + $0x60] sm:$0xff]
    %v630 = vld [vmem:[#allocation2 + $0x68] sm:$0xff]
    %v631 = vld [vmem:[#allocation2 + $0x70] sm:$0xff]
    %v632 = vld [vmem:[#allocation2 + $0x78] sm:$0xff]
    %v633 = vld [vmem:[#allocation2 + $0x80] sm:$0xff]
    %v634 = vld [vmem:[#allocation2 + $0x88] sm:$0xff]
    %v635 = vld [vmem:[#allocation2 + $0x90] sm:$0xff]
    %v636 = vld [vmem:[#allocation2 + $0x98] sm:$0xff]
    %v637 = vld [vmem:[#allocation2 + $0xa0] sm:$0xff]
    %v638 = vld [vmem:[#allocation2 + $0xa8] sm:$0xff]
    %v639 = vld [vmem:[#allocation2 + $0xb0] sm:$0xff]
    %v640 = vld [vmem:[#allocation2 + $0xb8] sm:$0xff]
    %v641 = vld [vmem:[#allocation2 + $0xc0] sm:$0xff]
    %642 = vst.msk [vmem:[%s3] sm:$0xff] %vm384, %v617
    %643 = vst.msk [vmem:[%s3 + $0x8] sm:$0xff] %vm384, %v618
    %644 = vst.msk [vmem:[%s3 + $0x10] sm:$0xff] %vm384, %v619
    %645 = vst.msk [vmem:[%s3 + $0x18] sm:$0xff] %vm384, %v620
    %646 = vst.msk [vmem:[%s3 + $0x20] sm:$0xff] %vm384, %v621
    %647 = vst.msk [vmem:[%s3 + $0x28] sm:$0xff] %vm384, %v622
    %648 = vst.msk [vmem:[%s3 + $0x30] sm:$0xff] %vm384, %v623
    %649 = vst.msk [vmem:[%s3 + $0x38] sm:$0xff] %vm384, %v624
    %650 = vst.msk [vmem:[%s3 + $0x40] sm:$0xff] %vm384, %v625
    %651 = vst.msk [vmem:[%s3 + $0x48] sm:$0xff] %vm384, %v626
    %652 = vst.msk [vmem:[%s3 + $0x50] sm:$0xff] %vm384, %v627
    %653 = vst.msk [vmem:[%s3 + $0x58] sm:$0xff] %vm384, %v628
    %654 = vst.msk [vmem:[%s3 + $0x60] sm:$0xff] %vm384, %v629
    %655 = vst.msk [vmem:[%s3 + $0x68] sm:$0xff] %vm384, %v630
    %656 = vst.msk [vmem:[%s3 + $0x70] sm:$0xff] %vm384, %v631
    %657 = vst.msk [vmem:[%s3 + $0x78] sm:$0xff] %vm384, %v632
    %658 = vst.msk [vmem:[%s3 + $0x80] sm:$0xff] %vm384, %v633
    %659 = vst.msk [vmem:[%s3 + $0x88] sm:$0xff] %vm384, %v634
    %660 = vst.msk [vmem:[%s3 + $0x90] sm:$0xff] %vm384, %v635
    %661 = vst.msk [vmem:[%s3 + $0x98] sm:$0xff] %vm384, %v636
    %662 = vst.msk [vmem:[%s3 + $0xa0] sm:$0xff] %vm384, %v637
    %663 = vst.msk [vmem:[%s3 + $0xa8] sm:$0xff] %vm384, %v638
    %664 = vst.msk [vmem:[%s3 + $0xb0] sm:$0xff] %vm384, %v639
    %665 = vst.msk [vmem:[%s3 + $0xb8] sm:$0xff] %vm384, %v640
    %666 = vst.msk [vmem:[%s3 + $0xc0] sm:$0xff] %vm384, %v641
  $region21: #{mamba_block_forward.35} parent=0 // pred_fallthru
    _
  // Predicated region
  $region22: #{mamba_block_forward.35} parent=0 // pred_check
    _
  $region23: #{mamba_block_forward.35} parent=0 // pred_check_branch
    %668 = sbr.rel (0) target = $region25
  $region24: #{mamba_block_forward.35} parent=0 // pred_region
    _
  $region25: #{mamba_block_forward.35} parent=0 // pred_fallthru
    _
  // Predicated region
  $region26: #{mamba_block_forward.35} parent=0 // pred_check
    _
  $region27: #{mamba_block_forward.35} parent=0 // pred_check_branch
    %670 = sbr.rel (0) target = $region29
  $region28: #{mamba_block_forward.35} parent=0 // pred_region
    _
  $region29: #{mamba_block_forward.35} parent=0 // pred_fallthru
    _

</llo_original>
